<compile_context>
chip_gen: v6e
topology: v6e:2x2x1
jax: 0.10.0
libtpu: 0.0.40
codegen_flags: <defaults>
</compile_context>

<pallas_src>
import jax
import jax.numpy as jnp
from jax.experimental import pallas as pl
from jax.experimental.pallas import tpu as pltpu

# ----------------------------- configuration ---------------------------------
B = 8                       # demo batch
IN_FEATS = 256              # in_feats          (multiple of 128 -> lane-dense matmuls)
HIDDEN_FEATS = 512          # hidden_feats      (module default 4096, scaled for the demo)
N_MODES = 3                 # MTP n_modes default
PATH_LEN = 200
MAIN_DIM = N_MODES * PATH_LEN * 2                 # 1200 (kept trajectory columns)
OUT_LIN = MAIN_DIM + N_MODES                      # 1203 (fc2 / sigma / mu linear width)
MDN_N_MODES, MDN_N_POINTS, N_GAUSS = 5, 200, 1    # hardcoded inside MDN
PI_DIM = MDN_N_MODES * MDN_N_POINTS * N_GAUSS     # 1000
BN_EPS = 1e-5
NEG_MASK = -1e30            # bias mask -> padded softmax columns get exactly 0 probability


def _pad128(n):
    return ((n + 127) // 128) * 128


# fused-head column layout (every head starts/ends on a 128-lane boundary)
PI_PAD = _pad128(PI_DIM)                          # 1024
SG_PAD = _pad128(MAIN_DIM)                        # 1280
MU_PAD = _pad128(MAIN_DIM)                        # 1280
MODE_PAD = 128
PI_OFF = 0
SG_OFF = PI_OFF + PI_PAD                          # 1024
MU_OFF = SG_OFF + SG_PAD                          # 2304
MODE_OFF = MU_OFF + MU_PAD                        # 3584
HEAD_TOTAL = MODE_OFF + MODE_PAD                  # 3712

# use_mdn=False fused fc2 layout
P_MAIN_OFF = 0
P_MODE_OFF = _pad128(MAIN_DIM)                    # 1280
PLAIN_TOTAL = P_MODE_OFF + MODE_PAD               # 1408

_VMEM = pltpu.MemorySpace.VMEM
_COMPILER_PARAMS = pltpu.CompilerParams(
    dimension_semantics=("parallel",),            # batch tiles are independent
    # Demo footprint is ~20 MB at tb=256; raise toward ~96 MiB on v6e at hidden=4096.
    vmem_limit_bytes=48 * 1024 * 1024,
)


# --------------- optional single-buffering of replicated weights -------------
def _probe_single_buffered():
    """Return pl.Buffered(1) iff this jax/libtpu build supports single-buffered
    constant-index BlockSpecs in the main pallas_call pipeline; else None."""
    if not hasattr(pl, "Buffered"):
        return None
    try:
        w_spec = pl.BlockSpec((8, 128), lambda i: (0, 0), memory_space=_VMEM,
                              pipeline_mode=pl.Buffered(1))

        def _k(w_ref, x_ref, o_ref):
            o_ref[...] = x_ref[...] + w_ref[...]

        f = pl.pallas_call(
            _k,
            out_shape=jax.ShapeDtypeStruct((16, 128), jnp.float32),
            grid_spec=pltpu.PrefetchScalarGridSpec(
                num_scalar_prefetch=0, grid=(2,),
                in_specs=[w_spec,
                          pl.BlockSpec((8, 128), lambda i: (i, 0), memory_space=_VMEM)],
                out_specs=pl.BlockSpec((8, 128), lambda i: (i, 0), memory_space=_VMEM)),
        )
        jax.block_until_ready(f(jnp.ones((8, 128), jnp.float32),
                                jnp.ones((16, 128), jnp.float32)))
        return pl.Buffered(1)
    except Exception:                 # kwarg missing / lowering unsupported -> default
        return None


_WEIGHT_PIPELINE_MODE = _probe_single_buffered()


def _replicated_spec(arr):
    """Full-array weight block, re-used (not re-indexed) across batch-grid steps;
    single-buffered when supported (block index never changes, so 2 buffers buy nothing)."""
    if _WEIGHT_PIPELINE_MODE is not None:
        return pl.BlockSpec(arr.shape, lambda i: (0, 0), memory_space=_VMEM,
                            pipeline_mode=_WEIGHT_PIPELINE_MODE)
    return pl.BlockSpec(arr.shape, lambda i: (0, 0), memory_space=_VMEM)


def _batch_tile(bn):
    """Largest MXU-friendly batch tile (multiple of 8 sublanes, up to 256 rows)."""
    for cand in (256, 128, 64, 32, 16, 8):
        if bn % cand == 0:
            return cand
    return bn        # full-array block (allowed when block dim equals the array dim)


# ------------------------------ shared math -----------------------------------
def _softmax(x):
    """In-kernel softmax: divide goes to the EUP via approximate reciprocal."""
    x = x - jnp.max(x, axis=-1, keepdims=True)
    e = jnp.exp(x)
    return e * pl.reciprocal(jnp.sum(e, axis=-1, keepdims=True), approx=True)


# -------------------------------- kernels -------------------------------------
def _mtp_mdn_kernel(x_ref, w1_ref, b1_ref, w2_ref, b2_ref, wh_ref, bh_ref, out_ref):
    # fc1 + eval-mode BatchNorm1d (folded into w1/b1 at prep time) + ReLU
    h = jnp.dot(x_ref[...], w1_ref[...], preferred_element_type=jnp.float32) + b1_ref[...]
    h = jnp.maximum(h, 0.0).astype(jnp.bfloat16)
    # fc2
    h2 = (jnp.dot(h, w2_ref[...], preferred_element_type=jnp.float32)
          + b2_ref[...]).astype(jnp.bfloat16)
    # single fused head matmul (pi|sigma|mu|mode, lane-padded) -> padded output slab
    out_ref[...] = (jnp.dot(h2, wh_ref[...], preferred_element_type=jnp.float32)
                    + bh_ref[...])
    # per-head activations in place on 128-aligned column slices of the slab
    out_ref[:, PI_OFF:PI_OFF + PI_PAD] = _softmax(out_ref[:, PI_OFF:PI_OFF + PI_PAD])
    out_ref[:, SG_OFF:SG_OFF + SG_PAD] = jnp.exp(out_ref[:, SG_OFF:SG_OFF + SG_PAD])
    # mu slice: identity (already written by the fused matmul)
    out_ref[:, MODE_OFF:MODE_OFF + MODE_PAD] = _softmax(
        out_ref[:, MODE_OFF:MODE_OFF + MODE_PAD])


def _mtp_plain_kernel(x_ref, w1_ref, b1_ref, w2_ref, b2_ref, out_ref):
    # use_mdn=False: fc2(fc1(x)) (no bn / relu in the module), fc2 fused & lane-padded
    h = (jnp.dot(x_ref[...], w1_ref[...], preferred_element_type=jnp.float32)
         + b1_ref[...]).astype(jnp.bfloat16)
    out_ref[...] = (jnp.dot(h, w2_ref[...], preferred_element_type=jnp.float32)
                    + b2_ref[...])
    out_ref[:, P_MODE_OFF:P_MODE_OFF + MODE_PAD] = _softmax(
        out_ref[:, P_MODE_OFF:P_MODE_OFF + MODE_PAD])


# ------------------------------- wrappers --------------------------------------
def _mdn_slab(params, x):
    """Pallas call: returns the padded (bn, 3712) head slab (lane-dense outputs)."""
    bn = x.shape[0]
    tb = _batch_tile(bn)
    weights = (params["w1"], params["b1"], params["w2"], params["b2"],
               params["wh"], params["bh"])
    in_specs = [pl.BlockSpec((tb, x.shape[1]), lambda i: (i, 0), memory_space=_VMEM)]
    in_specs += [_replicated_spec(w) for w in weights]
    return pl.pallas_call(
        _mtp_mdn_kernel,
        out_shape=jax.ShapeDtypeStruct((bn, HEAD_TOTAL), jnp.float32),
        grid_spec=pltpu.PrefetchScalarGridSpec(
            num_scalar_prefetch=0,
            grid=(bn // tb,),
            in_specs=in_specs,
            out_specs=pl.BlockSpec((tb, HEAD_TOTAL), lambda i: (i, 0), memory_space=_VMEM),
        ),
        compiler_params=_COMPILER_PARAMS,
    )(x.astype(jnp.bfloat16), *weights)


def _plain_slab(params, x):
    bn = x.shape[0]
    tb = _batch_tile(bn)
    weights = (params["w1"], params["b1"], params["w2"], params["b2"])
    in_specs = [pl.BlockSpec((tb, x.shape[1]), lambda i: (i, 0), memory_space=_VMEM)]
    in_specs += [_replicated_spec(w) for w in weights]
    return pl.pallas_call(
        _mtp_plain_kernel,
        out_shape=jax.ShapeDtypeStruct((bn, PLAIN_TOTAL), jnp.float32),
        grid_spec=pltpu.PrefetchScalarGridSpec(
            num_scalar_prefetch=0,
            grid=(bn // tb,),
            in_specs=in_specs,
            out_specs=pl.BlockSpec((tb, PLAIN_TOTAL), lambda i: (i, 0), memory_space=_VMEM),
        ),
        compiler_params=_COMPILER_PARAMS,
    )(x.astype(jnp.bfloat16), *weights)


# Layout-aware consumers should use these and index the 128-aligned slab directly
# (skips the module-layout concatenate below, i.e. one extra HBM pass over the output).
mtp_forward_mdn_padded = jax.jit(_mdn_slab)
mtp_forward_plain_padded = jax.jit(_plain_slab)


@jax.jit
def mtp_forward_mdn(params, x):
    """MTP forward, use_mdn=True (module default), eval mode.  (B, in) -> (B, 3403)."""
    slab = _mdn_slab(params, x)
    # torch.cat((pi, sigma, mu, mode_probs), 1) layout, assembled from the padded slab.
    return jnp.concatenate(
        [slab[:, PI_OFF:PI_OFF + PI_DIM],
         slab[:, SG_OFF:SG_OFF + MAIN_DIM],
         slab[:, MU_OFF:MU_OFF + MAIN_DIM],
         slab[:, MODE_OFF:MODE_OFF + N_MODES]], axis=1)


@jax.jit
def mtp_forward_plain(params, x):
    """MTP forward, use_mdn=False, eval mode.  (B, in) -> (B, 1203)."""
    slab = _plain_slab(params, x)
    return jnp.concatenate(
        [slab[:, P_MAIN_OFF:P_MAIN_OFF + MAIN_DIM],
         slab[:, P_MODE_OFF:P_MODE_OFF + N_MODES]], axis=1)


# ------------------------- parameter init / one-time prep ----------------------
def init_raw_params(key):
    """Raw parameters in PyTorch layout (Linear.weight: (out, in), bias: (out,))."""
    ks = jax.random.split(key, 16)

    def lin(kw, kb, out_f, in_f):
        bound = 1.0 / jnp.sqrt(jnp.float32(in_f))
        return (jax.random.uniform(kw, (out_f, in_f), jnp.float32, -bound, bound),
                jax.random.uniform(kb, (out_f,), jnp.float32, -bound, bound))

    p = {}
    p["fc1_w"], p["fc1_b"] = lin(ks[0], ks[1], HIDDEN_FEATS, IN_FEATS)
    # BatchNorm1d(hidden_feats) affine + running stats (randomized so folding is exercised).
    p["bn_gamma"] = 1.0 + 0.1 * jax.random.normal(ks[2], (HIDDEN_FEATS,), jnp.float32)
    p["bn_beta"] = 0.1 * jax.random.normal(ks[3], (HIDDEN_FEATS,), jnp.float32)
    p["bn_mean"] = 0.1 * jax.random.normal(ks[4], (HIDDEN_FEATS,), jnp.float32)
    p["bn_var"] = jax.random.uniform(ks[5], (HIDDEN_FEATS,), jnp.float32, 0.5, 1.5)
    # use_mdn=True branch: fc2 hidden->hidden, MDN heads.
    p["fc2_w"], p["fc2_b"] = lin(ks[6], ks[7], HIDDEN_FEATS, HIDDEN_FEATS)
    p["pi_w"], p["pi_b"] = lin(ks[8], ks[9], PI_DIM, HIDDEN_FEATS)
    p["sigma_w"], p["sigma_b"] = lin(ks[10], ks[11], OUT_LIN, HIDDEN_FEATS)
    p["mu_w"], p["mu_b"] = lin(ks[12], ks[13], OUT_LIN, HIDDEN_FEATS)
    # use_mdn=False branch: fc2 hidden->OUT_LIN.
    p["fc2p_w"], p["fc2p_b"] = lin(ks[14], ks[15], OUT_LIN, HIDDEN_FEATS)
    return p


def prepare_params_mdn(raw):
    """One-time prep: transpose to (in, out), fold eval-mode BN into fc1, fuse the three
    MDN head matrices + the mode head into one lane-padded (HIDDEN, 3712) bf16 weight
    (padded softmax columns get a -1e30 bias so they contribute exactly 0 probability),
    and cast matmul operands to bf16 (biases stay f32, added after f32 accumulation)."""
    s = raw["bn_gamma"] / jnp.sqrt(raw["bn_var"] + BN_EPS)
    t = raw["bn_beta"] - raw["bn_mean"] * s

    wh = jnp.zeros((HIDDEN_FEATS, HEAD_TOTAL), jnp.float32)
    bh = jnp.zeros((1, HEAD_TOTAL), jnp.float32)
    # pi head (softmax)
    wh = wh.at[:, PI_OFF:PI_OFF + PI_DIM].set(raw["pi_w"].T)
    bh = bh.at[:, PI_OFF:PI_OFF + PI_DIM].set(raw["pi_b"][None, :])
    bh = bh.at[:, PI_OFF + PI_DIM:PI_OFF + PI_PAD].set(NEG_MASK)
    # sigma head (exp); padded columns are sliced away in the wrapper
    wh = wh.at[:, SG_OFF:SG_OFF + MAIN_DIM].set(raw["sigma_w"][:MAIN_DIM].T)
    bh = bh.at[:, SG_OFF:SG_OFF + MAIN_DIM].set(raw["sigma_b"][:MAIN_DIM][None, :])
    # mu head (identity)
    wh = wh.at[:, MU_OFF:MU_OFF + MAIN_DIM].set(raw["mu_w"][:MAIN_DIM].T)
    bh = bh.at[:, MU_OFF:MU_OFF + MAIN_DIM].set(raw["mu_b"][:MAIN_DIM][None, :])
    # mode head (softmax over the last n_modes columns of mu)
    wh = wh.at[:, MODE_OFF:MODE_OFF + N_MODES].set(raw["mu_w"][MAIN_DIM:].T)
    bh = bh.at[:, MODE_OFF:MODE_OFF + N_MODES].set(raw["mu_b"][MAIN_DIM:][None, :])
    bh = bh.at[:, MODE_OFF + N_MODES:].set(NEG_MASK)

    return {
        "w1": (raw["fc1_w"].T * s[None, :]).astype(jnp.bfloat16),
        "b1": (raw["fc1_b"] * s + t).reshape(1, -1),
        "w2": raw["fc2_w"].T.astype(jnp.bfloat16),
        "b2": raw["fc2_b"].reshape(1, -1),
        "wh": wh.astype(jnp.bfloat16),
        "bh": bh,                                      # stays f32 (carries the -1e30 masks)
    }


def prepare_params_plain(raw):
    wh = jnp.zeros((HIDDEN_FEATS, PLAIN_TOTAL), jnp.float32)
    bh = jnp.zeros((1, PLAIN_TOTAL), jnp.float32)
    wh = wh.at[:, P_MAIN_OFF:P_MAIN_OFF + MAIN_DIM].set(raw["fc2p_w"][:MAIN_DIM].T)
    bh = bh.at[:, P_MAIN_OFF:P_MAIN_OFF + MAIN_DIM].set(raw["fc2p_b"][:MAIN_DIM][None, :])
    wh = wh.at[:, P_MODE_OFF:P_MODE_OFF + N_MODES].set(raw["fc2p_w"][MAIN_DIM:].T)
    bh = bh.at[:, P_MODE_OFF:P_MODE_OFF + N_MODES].set(raw["fc2p_b"][MAIN_DIM:][None, :])
    bh = bh.at[:, P_MODE_OFF + N_MODES:].set(NEG_MASK)
    return {
        "w1": raw["fc1_w"].T.astype(jnp.bfloat16),
        "b1": raw["fc1_b"].reshape(1, -1),
        "w2": wh.astype(jnp.bfloat16),
        "b2": bh,
    }


# ---------------------------- pure-JAX references -------------------------------
def _ref_softmax(z):
    z = z - jnp.max(z, axis=-1, keepdims=True)
    e = jnp.exp(z)
    return e / jnp.sum(e, axis=-1, keepdims=True)


def mtp_reference_mdn(p, x):
    xb = x.astype(jnp.bfloat16)
    h = jnp.maximum(jnp.dot(xb, p["w1"], preferred_element_type=jnp.float32)
                    + p["b1"], 0.0).astype(jnp.bfloat16)
    h2 = (jnp.dot(h, p["w2"], preferred_element_type=jnp.float32)
          + p["b2"]).astype(jnp.bfloat16)
    raw = jnp.dot(h2, p["wh"], preferred_element_type=jnp.float32) + p["bh"]
    pi = _ref_softmax(raw[:, PI_OFF:PI_OFF + PI_DIM])
    sg = jnp.exp(raw[:, SG_OFF:SG_OFF + MAIN_DIM])
    mu = raw[:, MU_OFF:MU_OFF + MAIN_DIM]
    mp = _ref_softmax(raw[:, MODE_OFF:MODE_OFF + N_MODES])
    return jnp.concatenate([pi, sg, mu, mp], axis=1)


def mtp_reference_plain(p, x):
    xb = x.astype(jnp.bfloat16)
    h = (jnp.dot(xb, p["w1"], preferred_element_type=jnp.float32)
         + p["b1"]).astype(jnp.bfloat16)
    raw = jnp.dot(h, p["w2"], preferred_element_type=jnp.float32) + p["b2"]
    main = raw[:, P_MAIN_OFF:P_MAIN_OFF + MAIN_DIM]
    mp = _ref_softmax(raw[:, P_MODE_OFF:P_MODE_OFF + N_MODES])
    return jnp.concatenate([main, mp], axis=1)


# ------------------------------------ main --------------------------------------
if __name__ == "__main__":
    key = jax.random.PRNGKey(0)
    k_x, k_p, k_x2 = jax.random.split(key, 3)
    x = jax.random.normal(k_x, (B, IN_FEATS), jnp.float32)
    raw = init_raw_params(k_p)

    TOL = dict(atol=3e-3, rtol=3e-3)

    # ---- use_mdn=True (module default), demo batch ----
    p_mdn = prepare_params_mdn(raw)
    out_mdn = mtp_forward_mdn(p_mdn, x)
    jax.block_until_ready(out_mdn)
    ref_mdn = jax.jit(mtp_reference_mdn)(p_mdn, x)
    assert out_mdn.shape == (B, PI_DIM + 2 * MAIN_DIM + N_MODES)   # (B, 3403)
    assert out_mdn.dtype == jnp.float32
    assert bool(jnp.all(jnp.isfinite(out_mdn)))
    # MDN pi softmax rows and eval-mode mode_probs rows each sum to ~1.
    assert bool(jnp.allclose(jnp.sum(out_mdn[:, :PI_DIM], axis=1), 1.0, atol=3e-3))
    assert bool(jnp.allclose(jnp.sum(out_mdn[:, -N_MODES:], axis=1), 1.0, atol=3e-3))
    assert bool(jnp.allclose(out_mdn, ref_mdn, **TOL))

    # ---- use_mdn=True, larger batch: exercises the 128-row tile and a multi-step grid ----
    BN_LARGE = 384                                                  # tile 128, grid (3,)
    x2 = jax.random.normal(k_x2, (BN_LARGE, IN_FEATS), jnp.float32)
    out_mdn2 = mtp_forward_mdn(p_mdn, x2)
    jax.block_until_ready(out_mdn2)
    ref_mdn2 = jax.jit(mtp_reference_mdn)(p_mdn, x2)
    assert out_mdn2.shape == (BN_LARGE, PI_DIM + 2 * MAIN_DIM + N_MODES)
    assert bool(jnp.allclose(out_mdn2, ref_mdn2, **TOL))

    # ---- use_mdn=False branch ----
    p_plain = prepare_params_plain(raw)
    out_plain = mtp_forward_plain(p_plain, x)
    jax.block_until_ready(out_plain)
    ref_plain = jax.jit(mtp_reference_plain)(p_plain, x)
    assert out_plain.shape == (B, OUT_LIN)                          # (B, 1203)
    assert bool(jnp.allclose(jnp.sum(out_plain[:, -N_MODES:], axis=1), 1.0, atol=3e-3))
    assert bool(jnp.allclose(out_plain, ref_plain, **TOL))

    print("KERNEL_OK")
</pallas_src>

<mosaic_0001>
module attributes {stable_mosaic.version = 11 : i64} {
  func.func @_k(%arg0: i32, %arg1: memref<8x128xf32, #tpu.memory_space<vmem>>, %arg2: memref<8x128xf32, #tpu.memory_space<vmem>>, %arg3: memref<8x128xf32, #tpu.memory_space<vmem>>) attributes {dimension_semantics = [#tpu.dimension_semantics<arbitrary>], iteration_bounds = array<i64: 2>, scalar_prefetch = 0 : i64, scratch_operands = 0 : i64, tpu.core_type = #tpu.core_type<tc>, window_params = [{pipeline_mode = #tpu.pipeline_mode<synchronous>, transform_indices = @transform_0, window_bounds = array<i64: 8, 128>}, {transform_indices = @transform_1, window_bounds = array<i64: 8, 128>}, {transform_indices = @transform_2, window_bounds = array<i64: 8, 128>}]} {
    %c0 = arith.constant 0 : index
    %c0_0 = arith.constant 0 : index
    %0 = vector.load %arg2[%c0, %c0_0] : memref<8x128xf32, #tpu.memory_space<vmem>>, vector<8x128xf32>
    %c0_1 = arith.constant 0 : index
    %c0_2 = arith.constant 0 : index
    %1 = vector.load %arg1[%c0_1, %c0_2] : memref<8x128xf32, #tpu.memory_space<vmem>>, vector<8x128xf32>
    %2 = arith.addf %0, %1 : vector<8x128xf32>
    %c0_3 = arith.constant 0 : index
    %c0_4 = arith.constant 0 : index
    %3 = vector.load %arg3[%c0_3, %c0_4] : memref<8x128xf32, #tpu.memory_space<vmem>>, vector<8x128xf32>
    tpu.vector_store %arg3[%c0_3, %c0_4], %2 {strides = array<i32>} : memref<8x128xf32, #tpu.memory_space<vmem>>, vector<8x128xf32>,
    return
  }
  func.func @transform_0(%arg0: i32) -> (i32, i32) {
    %c0_i32 = arith.constant 0 : i32
    %c0_i32_0 = arith.constant 0 : i32
    %c0_i32_1 = arith.constant 0 : i32
    return %c0_i32, %c0_i32_0 : i32, i32
  }
  func.func @transform_1(%arg0: i32) -> (i32, i32) {
    %c0_i32 = arith.constant 0 : i32
    %c0_i32_0 = arith.constant 0 : i32
    return %arg0, %c0_i32 : i32, i32
  }
  func.func @transform_2(%arg0: i32) -> (i32, i32) {
    %c0_i32 = arith.constant 0 : i32
    %c0_i32_0 = arith.constant 0 : i32
    return %arg0, %c0_i32 : i32, i32
  }
}

module attributes {stable_mosaic.version = 11 : i64} {
  func.func @_mtp_mdn_kernel(%arg0: i32, %arg1: memref<8x256xbf16, #tpu.memory_space<vmem>>, %arg2: memref<256x512xbf16, #tpu.memory_space<vmem>>, %arg3: memref<1x512xf32, #tpu.memory_space<vmem>>, %arg4: memref<512x512xbf16, #tpu.memory_space<vmem>>, %arg5: memref<1x512xf32, #tpu.memory_space<vmem>>, %arg6: memref<512x3712xbf16, #tpu.memory_space<vmem>>, %arg7: memref<1x3712xf32, #tpu.memory_space<vmem>>, %arg8: memref<8x3712xf32, #tpu.memory_space<vmem>>) attributes {dimension_semantics = [#tpu.dimension_semantics<parallel>], iteration_bounds = array<i64: 1>, scalar_prefetch = 0 : i64, scratch_operands = 0 : i64, tpu.core_type = #tpu.core_type<tc>, window_params = [{transform_indices = @transform_0, window_bounds = array<i64: 8, 256>}, {pipeline_mode = #tpu.pipeline_mode<synchronous>, transform_indices = @transform_1, window_bounds = array<i64: 256, 512>}, {pipeline_mode = #tpu.pipeline_mode<synchronous>, transform_indices = @transform_2, window_bounds = array<i64: 1, 512>}, {pipeline_mode = #tpu.pipeline_mode<synchronous>, transform_indices = @transform_3, window_bounds = array<i64: 512, 512>}, {pipeline_mode = #tpu.pipeline_mode<synchronous>, transform_indices = @transform_4, window_bounds = array<i64: 1, 512>}, {pipeline_mode = #tpu.pipeline_mode<synchronous>, transform_indices = @transform_5, window_bounds = array<i64: 512, 3712>}, {pipeline_mode = #tpu.pipeline_mode<synchronous>, transform_indices = @transform_6, window_bounds = array<i64: 1, 3712>}, {transform_indices = @transform_7, window_bounds = array<i64: 8, 3712>}]} {
    %c0 = arith.constant 0 : index
    %c0_0 = arith.constant 0 : index
    %0 = vector.load %arg1[%c0, %c0_0] : memref<8x256xbf16, #tpu.memory_space<vmem>>, vector<8x256xbf16>
    %c0_1 = arith.constant 0 : index
    %c0_2 = arith.constant 0 : index
    %1 = vector.load %arg2[%c0_1, %c0_2] : memref<256x512xbf16, #tpu.memory_space<vmem>>, vector<256x512xbf16>
    %cst = arith.constant dense<0.000000e+00> : vector<8x512xf32>
    %2 = tpu.matmul %0, %1, %cst {dimension_numbers = #tpu.dot_dimension_numbers<[1], [0], [0], [1], [0, 0, 1, 1], [], []>} : vector<8x256xbf16>, vector<256x512xbf16>, vector<8x512xf32> -> vector<8x512xf32>
    %c0_3 = arith.constant 0 : index
    %c0_4 = arith.constant 0 : index
    %3 = vector.load %arg3[%c0_3, %c0_4] : memref<1x512xf32, #tpu.memory_space<vmem>>, vector<1x512xf32>
    %4 = vector.broadcast %3 : vector<1x512xf32> to vector<8x512xf32>
    %5 = arith.addf %2, %4 : vector<8x512xf32>
    %cst_5 = arith.constant 0.000000e+00 : f32
    %6 = vector.broadcast %cst_5 : f32 to vector<8x512xf32>
    %7 = arith.maximumf %5, %6 : vector<8x512xf32>
    %8 = arith.truncf %7 : vector<8x512xf32> to vector<8x512xbf16>
    %c0_6 = arith.constant 0 : index
    %c0_7 = arith.constant 0 : index
    %9 = vector.load %arg4[%c0_6, %c0_7] : memref<512x512xbf16, #tpu.memory_space<vmem>>, vector<512x512xbf16>
    %cst_8 = arith.constant dense<0.000000e+00> : vector<8x512xf32>
    %10 = tpu.matmul %8, %9, %cst_8 {dimension_numbers = #tpu.dot_dimension_numbers<[1], [0], [0], [1], [0, 0, 1, 1], [], []>} : vector<8x512xbf16>, vector<512x512xbf16>, vector<8x512xf32> -> vector<8x512xf32>
    %c0_9 = arith.constant 0 : index
    %c0_10 = arith.constant 0 : index
    %11 = vector.load %arg5[%c0_9, %c0_10] : memref<1x512xf32, #tpu.memory_space<vmem>>, vector<1x512xf32>
    %12 = vector.broadcast %11 : vector<1x512xf32> to vector<8x512xf32>
    %13 = arith.addf %10, %12 : vector<8x512xf32>
    %14 = arith.truncf %13 : vector<8x512xf32> to vector<8x512xbf16>
    %c0_11 = arith.constant 0 : index
    %c0_12 = arith.constant 0 : index
    %15 = vector.load %arg6[%c0_11, %c0_12] : memref<512x3712xbf16, #tpu.memory_space<vmem>>, vector<512x3712xbf16>
    %cst_13 = arith.constant dense<0.000000e+00> : vector<8x3712xf32>
    %16 = tpu.matmul %14, %15, %cst_13 {dimension_numbers = #tpu.dot_dimension_numbers<[1], [0], [0], [1], [0, 0, 1, 1], [], []>} : vector<8x512xbf16>, vector<512x3712xbf16>, vector<8x3712xf32> -> vector<8x3712xf32>
    %c0_14 = arith.constant 0 : index
    %c0_15 = arith.constant 0 : index
    %17 = vector.load %arg7[%c0_14, %c0_15] : memref<1x3712xf32, #tpu.memory_space<vmem>>, vector<1x3712xf32>
    %18 = vector.broadcast %17 : vector<1x3712xf32> to vector<8x3712xf32>
    %19 = arith.addf %16, %18 : vector<8x3712xf32>
    %c0_16 = arith.constant 0 : index
    %c0_17 = arith.constant 0 : index
    %20 = vector.load %arg8[%c0_16, %c0_17] : memref<8x3712xf32, #tpu.memory_space<vmem>>, vector<8x3712xf32>
    tpu.vector_store %arg8[%c0_16, %c0_17], %19 {strides = array<i32>} : memref<8x3712xf32, #tpu.memory_space<vmem>>, vector<8x3712xf32>,
    %c0_18 = arith.constant 0 : index
    %c0_19 = arith.constant 0 : index
    %21 = vector.load %arg8[%c0_18, %c0_19] : memref<8x3712xf32, #tpu.memory_space<vmem>>, vector<8x1024xf32>
    %cst_20 = arith.constant dense<0xFF800000> : vector<8xf32>
    %22 = vector.multi_reduction <maximumf>, %21, %cst_20 [1] : vector<8x1024xf32> to vector<8xf32>
    %23 = vector.shape_cast %22 : vector<8xf32> to vector<8x1xf32>
    %24 = vector.broadcast %23 : vector<8x1xf32> to vector<8x1024xf32>
    %25 = arith.subf %21, %24 : vector<8x1024xf32>
    %26 = math.exp %25 : vector<8x1024xf32>
    %cst_21 = arith.constant dense<0.000000e+00> : vector<8xf32>
    %27 = vector.multi_reduction <add>, %26, %cst_21 [1] : vector<8x1024xf32> to vector<8xf32>
    %28 = vector.shape_cast %27 : vector<8xf32> to vector<8x1xf32>
    %29 = tpu.reciprocal %28 {approx = true} : vector<8x1xf32> -> vector<8x1xf32>
    %30 = vector.broadcast %29 : vector<8x1xf32> to vector<8x1024xf32>
    %31 = arith.mulf %26, %30 : vector<8x1024xf32>
    %c0_22 = arith.constant 0 : index
    %c0_23 = arith.constant 0 : index
    %32 = vector.load %arg8[%c0_22, %c0_23] : memref<8x3712xf32, #tpu.memory_space<vmem>>, vector<8x1024xf32>
    tpu.vector_store %arg8[%c0_22, %c0_23], %31 {strides = array<i32>} : memref<8x3712xf32, #tpu.memory_space<vmem>>, vector<8x1024xf32>,
    %c0_24 = arith.constant 0 : index
    %c1024 = arith.constant 1024 : index
    %33 = vector.load %arg8[%c0_24, %c1024] : memref<8x3712xf32, #tpu.memory_space<vmem>>, vector<8x1280xf32>
    %34 = math.exp %33 : vector<8x1280xf32>
    %c0_25 = arith.constant 0 : index
    %c1024_26 = arith.constant 1024 : index
    %35 = vector.load %arg8[%c0_25, %c1024_26] : memref<8x3712xf32, #tpu.memory_space<vmem>>, vector<8x1280xf32>
    tpu.vector_store %arg8[%c0_25, %c1024_26], %34 {strides = array<i32>} : memref<8x3712xf32, #tpu.memory_space<vmem>>, vector<8x1280xf32>,
    %c0_27 = arith.constant 0 : index
    %c3584 = arith.constant 3584 : index
    %36 = vector.load %arg8[%c0_27, %c3584] : memref<8x3712xf32, #tpu.memory_space<vmem>>, vector<8x128xf32>
    %cst_28 = arith.constant dense<0xFF800000> : vector<8xf32>
    %37 = vector.multi_reduction <maximumf>, %36, %cst_28 [1] : vector<8x128xf32> to vector<8xf32>
    %38 = vector.shape_cast %37 : vector<8xf32> to vector<8x1xf32>
    %39 = vector.broadcast %38 : vector<8x1xf32> to vector<8x128xf32>
    %40 = arith.subf %36, %39 : vector<8x128xf32>
    %41 = math.exp %40 : vector<8x128xf32>
    %cst_29 = arith.constant dense<0.000000e+00> : vector<8xf32>
    %42 = vector.multi_reduction <add>, %41, %cst_29 [1] : vector<8x128xf32> to vector<8xf32>
    %43 = vector.shape_cast %42 : vector<8xf32> to vector<8x1xf32>
    %44 = tpu.reciprocal %43 {approx = true} : vector<8x1xf32> -> vector<8x1xf32>
    %45 = vector.broadcast %44 : vector<8x1xf32> to vector<8x128xf32>
    %46 = arith.mulf %41, %45 : vector<8x128xf32>
    %c0_30 = arith.constant 0 : index
    %c3584_31 = arith.constant 3584 : index
    %47 = vector.load %arg8[%c0_30, %c3584_31] : memref<8x3712xf32, #tpu.memory_space<vmem>>, vector<8x128xf32>
    tpu.vector_store %arg8[%c0_30, %c3584_31], %46 {strides = array<i32>} : memref<8x3712xf32, #tpu.memory_space<vmem>>, vector<8x128xf32>,
    return
  }
  func.func @transform_0(%arg0: i32) -> (i32, i32) {
    %c0_i32 = arith.constant 0 : i32
    %c0_i32_0 = arith.constant 0 : i32
    return %arg0, %c0_i32 : i32, i32
  }
  func.func @transform_1(%arg0: i32) -> (i32, i32) {
    %c0_i32 = arith.constant 0 : i32
    %c0_i32_0 = arith.constant 0 : i32
    %c0_i32_1 = arith.constant 0 : i32
    return %c0_i32, %c0_i32_0 : i32, i32
  }
  func.func @transform_2(%arg0: i32) -> (i32, i32) {
    %c0_i32 = arith.constant 0 : i32
    %c0_i32_0 = arith.constant 0 : i32
    %c0_i32_1 = arith.constant 0 : i32
    return %c0_i32, %c0_i32_0 : i32, i32
  }
  func.func @transform_3(%arg0: i32) -> (i32, i32) {
    %c0_i32 = arith.constant 0 : i32
    %c0_i32_0 = arith.constant 0 : i32
    %c0_i32_1 = arith.constant 0 : i32
    return %c0_i32, %c0_i32_0 : i32, i32
  }
  func.func @transform_4(%arg0: i32) -> (i32, i32) {
    %c0_i32 = arith.constant 0 : i32
    %c0_i32_0 = arith.constant 0 : i32
    %c0_i32_1 = arith.constant 0 : i32
    return %c0_i32, %c0_i32_0 : i32, i32
  }
  func.func @transform_5(%arg0: i32) -> (i32, i32) {
    %c0_i32 = arith.constant 0 : i32
    %c0_i32_0 = arith.constant 0 : i32
    %c0_i32_1 = arith.constant 0 : i32
    return %c0_i32, %c0_i32_0 : i32, i32
  }
  func.func @transform_6(%arg0: i32) -> (i32, i32) {
    %c0_i32 = arith.constant 0 : i32
    %c0_i32_0 = arith.constant 0 : i32
    %c0_i32_1 = arith.constant 0 : i32
    return %c0_i32, %c0_i32_0 : i32, i32
  }
  func.func @transform_7(%arg0: i32) -> (i32, i32) {
    %c0_i32 = arith.constant 0 : i32
    %c0_i32_0 = arith.constant 0 : i32
    return %arg0, %c0_i32 : i32, i32
  }
}

</mosaic_0001>

<llo_original>
// kernel: tpu_custom_call.1
$region0: #{tpu_custom_call.1}
  #allocation0 [shape = 'u32[]', space=smem, size = 0x4, offset = 0x4, fixed_abs, tag = 'smem constant byte address 0x4 - core index']
  #allocation1 [shape = 'u32[144,128]{1,0:T(1,128)}', space=vmem, size = 0x12000, scoped, tag = 'internal scratch']
  %s0 = inlined_call_operand.hbm [shape: f32[8,128], index: 0, kind: input, shape index: {}]
  %s1 = inlined_call_operand.hbm [shape: f32[16,128], index: 1, kind: input, shape index: {}]
  %s2 = inlined_call_operand.hbm [shape: f32[16,128], index: 2, kind: output, shape index: {}]
  %s3 = sld [smem:[#allocation0]]
  $region49: #{tpu_custom_call.1} parent=0
    _
  %s5 = ssub.s32 1, %s3
  %s6 = scalar_select 0, %s5, %s3
  $region1: #{tpu_custom_call.1} parent=0
    #allocation2 [shape = 'u8[4096]{0}', space=vmem, size = 0x1000, scoped, tag = 'input window, operand 0, single buffered']
    #allocation3 [shape = 's32[2]{0}', space=sflag, size = 0x8, scoped, tag = 'scoped memory for tpu_custom_call.1']
    #allocation4 [shape = 's32[2]{0}', space=sflag, size = 0x8, scoped, tag = 'scoped memory for tpu_custom_call.1']
    #allocation5 [shape = 'u8[8192]{0}', space=vmem, size = 0x2000, scoped, tag = 'input window, operand 1']
    #allocation6 [shape = 's32[2]{0}', space=sflag, size = 0x8, scoped, tag = 'scoped memory for tpu_custom_call.1']
    #allocation7 [shape = 'u8[8192]{0}', space=vmem, size = 0x2000, scoped, tag = 'output window, operand 0']
    %7 = vsyncpa [#allocation3], 0
    %8 = vsyncpa [#allocation6], 0
    %s9 = scalar_lea.sflag [#allocation6], 1
    %10 = vsyncpa %s9, 0
    %11 = vsyncpa [#allocation4], 0
    %s12 = scalar_lea.sflag [#allocation4], 1
    %13 = vsyncpa %s12, 0
    loop: start=0, step=1, limit=4
    $region2: #{tpu_custom_call.1} parent=1 // loop_pre_header
      _
    $region3: #{tpu_custom_call.1} parent=1 // loop_header
      %s15 = sphi 0, %s19
      %p16 = scmp.ge.s32.totalorder %s15, 4
      %s23 = sphi 0, %s23
      %s25 = sphi 0, %s23
      %s26 = sphi 0, %s25
      %s40 = sphi 0, %s26
      %s46 = sphi 0, %s48
      %s49 = sphi 0, %s46
      %s50 = sphi 0, %s49
      %s66 = sphi 0, %s50
      %s72 = sphi 0, %s74
      %s75 = sphi 0, %s72
      %s76 = sphi 0, %s75
      %s92 = sphi 0, %s76
    $region4: #{tpu_custom_call.1} parent=1 // loop_header_branch
      %18 = sbr.rel (%p16) target = $region8
    $region5: #{tpu_custom_call.1} parent=1 // loop_body
      %s20 = ssub.s32 %s15, 1
      %s21 = ssub.s32 %s15, 2
      %s22 = sadd.s32 %s15, 1
      %s24 = sadd.s32 %s23, 1
      %p27 = scmp.eq.s32.totalorder %s15, 1
      %p28 = scmp.ne.s32.totalorder %s23, %s25
      %p29 = scmp.eq.s32.totalorder %s15, 0
      %p30 = por %p28, %p29
      %p31 = scmp.ne.s32.totalorder %s23, %s25
      %p32 = scmp.eq.s32.totalorder %s20, 1
      %p33 = por %p31, %p32
      %p34 = scmp.ne.s32.totalorder %s25, %s26
      %p35 = scmp.eq.s32.totalorder %s20, 0
      %p36 = por %p34, %p35
      %p37 = scmp.ne.s32.totalorder %s25, %s26
      %p38 = scmp.eq.s32.totalorder %s21, 1
      %p39 = por %p37, %p38
      %p41 = scmp.ne.s32.totalorder %s26, %s40
      %p42 = scmp.eq.s32.totalorder %s21, 0
      %p43 = por %p41, %p42
      %s44 = ssub.s32 %s15, %s22
      %p45 = scmp.eq.s32.totalorder %s44, 0
      %s47 = sadd.s32 %s46, 1
      %s48 = scalar_select %p45, %s46, %s47
      %p51 = pneg %p45
      %p52 = scmp.eq.s32.totalorder %s15, 1
      %p53 = por %p51, %p52
      %p54 = scmp.ne.s32.totalorder %s46, %s49
      %p55 = scmp.eq.s32.totalorder %s15, 0
      %p56 = por %p54, %p55
      %p57 = scmp.ne.s32.totalorder %s46, %s49
      %p58 = scmp.eq.s32.totalorder %s20, 1
      %p59 = por %p57, %p58
      %p60 = scmp.ne.s32.totalorder %s49, %s50
      %p61 = scmp.eq.s32.totalorder %s20, 0
      %p62 = por %p60, %p61
      %p63 = scmp.ne.s32.totalorder %s49, %s50
      %p64 = scmp.eq.s32.totalorder %s21, 1
      %p65 = por %p63, %p64
      %p67 = scmp.ne.s32.totalorder %s50, %s66
      %p68 = scmp.eq.s32.totalorder %s21, 0
      %p69 = por %p67, %p68
      %s70 = ssub.s32 %s15, %s22
      %p71 = scmp.eq.s32.totalorder %s70, 0
      %s73 = sadd.s32 %s72, 1
      %s74 = scalar_select %p71, %s72, %s73
      %p77 = pneg %p71
      %p78 = scmp.eq.s32.totalorder %s15, 1
      %p79 = por %p77, %p78
      %p80 = scmp.ne.s32.totalorder %s72, %s75
      %p81 = scmp.eq.s32.totalorder %s15, 0
      %p82 = por %p80, %p81
      %p83 = scmp.ne.s32.totalorder %s72, %s75
      %p84 = scmp.eq.s32.totalorder %s20, 1
      %p85 = por %p83, %p84
      %p86 = scmp.ne.s32.totalorder %s75, %s76
      %p87 = scmp.eq.s32.totalorder %s20, 0
      %p88 = por %p86, %p87
      %p89 = scmp.ne.s32.totalorder %s75, %s76
      %p90 = scmp.eq.s32.totalorder %s21, 1
      %p91 = por %p89, %p90
      %p93 = scmp.ne.s32.totalorder %s76, %s92
      %p94 = scmp.eq.s32.totalorder %s21, 0
      %p95 = por %p93, %p94
      %p96 = scmp.le.s32.totalorder 1, %s15
      %p97 = scmp.lt.s32.totalorder %s15, 3
      %p98 = pnand %p96, %p97
      %p99 = pneg %p98
      // Predicated region
      $region9: #{tpu_custom_call.1} parent=5 // pred_check
        _
      $region10: #{tpu_custom_call.1} parent=5 // pred_check_branch
        %101 = sbr.rel (%p98) target = $region12
      $region11: #{tpu_custom_call.1} parent=5 // pred_region
        %s102 = ssub.s32 %s15, 1
        // Predicated region
        $region13: #{tpu_custom_call.1} parent=11 // pred_check
          %p103 = pneg %p36
        $region14: #{tpu_custom_call.1} parent=11 // pred_check_branch
          %105 = sbr.rel (%p103) target = $region16
        $region15: #{tpu_custom_call.1} parent=11 // pred_region
          %s107 = ssub.s32 128, 128
          %108 = vsyncadd [#allocation3], %s107
          %s110 = sshll.u32 [#allocation2], 4
          %s111 = int_to_ptr.vmem [resolvable:$true] %s110
          %113 = dma.hbm_to_vmem [thread:$0]  %s0, 128, %s111, [#allocation3]
        $region16: #{tpu_custom_call.1} parent=11 // pred_fallthru
          _
      $region12: #{tpu_custom_call.1} parent=5 // pred_fallthru
        _
      %p114 = scmp.lt.s32.totalorder %s15, 2
      // Predicated region
      $region17: #{tpu_custom_call.1} parent=5 // pred_check
        %p115 = pneg %p114
      $region18: #{tpu_custom_call.1} parent=5 // pred_check_branch
        %117 = sbr.rel (%p115) target = $region20
      $region19: #{tpu_custom_call.1} parent=5 // pred_region
        // Predicated region
        $region21: #{tpu_custom_call.1} parent=19 // pred_check
          %p118 = pneg %p56
        $region22: #{tpu_custom_call.1} parent=19 // pred_check_branch
          %120 = sbr.rel (%p118) target = $region24
        $region23: #{tpu_custom_call.1} parent=19 // pred_region
          %s121 = sand.u32 %s46, 1
          %s122 = scalar_lea.sflag [#allocation6], %s121
          %s123 = sand.u32 %s46, 1
          %s124 = smul.addr %s123, 8
          %s125 = scalar_lea.vmem [#allocation5], %s124
          %s127 = ssub.s32 128, 128
          %128 = vsyncadd %s122, %s127
          %s129 = smul.addr %s15, 128
          %s130 = scalar_lea.hbm %s1, %s129
          %s132 = sshll.u32 %s125, 4
          %s133 = int_to_ptr.vmem [resolvable:$true] %s132
          %135 = dma.hbm_to_vmem [thread:$0]  %s130, 128, %s133, %s122
        $region24: #{tpu_custom_call.1} parent=19 // pred_fallthru
          _
      $region20: #{tpu_custom_call.1} parent=5 // pred_fallthru
        _
      %p136 = scmp.le.s32.totalorder 1, %s15
      %p137 = scmp.lt.s32.totalorder %s15, 3
      %p138 = pnand %p136, %p137
      %p139 = pneg %p138
      // Predicated region
      $region25: #{tpu_custom_call.1} parent=5 // pred_check
        _
      $region26: #{tpu_custom_call.1} parent=5 // pred_check_branch
        %141 = sbr.rel (%p138) target = $region28
      $region27: #{tpu_custom_call.1} parent=5 // pred_region
        %s142 = ssub.s32 %s15, 1
        // Predicated region
        $region29: #{tpu_custom_call.1} parent=27 // pred_check
          %p143 = pneg %p36
        $region30: #{tpu_custom_call.1} parent=27 // pred_check_branch
          %145 = sbr.rel (%p143) target = $region32
        $region31: #{tpu_custom_call.1} parent=27 // pred_region
          %146 = dma.done [#allocation3], 128
        $region32: #{tpu_custom_call.1} parent=27 // pred_fallthru
          _
        %s147 = sand.u32 %s49, 1
        %s148 = scalar_lea.sflag [#allocation6], %s147
        %s149 = sand.u32 %s49, 1
        %s150 = smul.addr %s149, 8
        %s151 = scalar_lea.vmem [#allocation5], %s150
        // Predicated region
        $region33: #{tpu_custom_call.1} parent=27 // pred_check
          %p152 = pneg %p62
        $region34: #{tpu_custom_call.1} parent=27 // pred_check_branch
          %154 = sbr.rel (%p152) target = $region36
        $region35: #{tpu_custom_call.1} parent=27 // pred_region
          %155 = dma.done %s148, 128
        $region36: #{tpu_custom_call.1} parent=27 // pred_fallthru
          _
        %p156 = pneg %p36
        %p157 = pneg %p33
        %s158 = sand.u32 %s49, 1
        %s159 = scalar_lea.sflag [#allocation6], %s158
        %s160 = sand.u32 %s49, 1
        %s161 = smul.addr %s160, 8
        %s162 = scalar_lea.vmem [#allocation5], %s161
        %p163 = pneg %p62
        %p164 = pneg %p59
        %p165 = pneg %p88
        %p166 = pneg %p85
        %s167 = sand.u32 %s75, 1
        %s168 = scalar_lea.sflag [#allocation4], %s167
        %s169 = sand.u32 %s75, 1
        %s170 = smul.addr %s169, 8
        %s171 = scalar_lea.vmem [#allocation7], %s170
        %v172 = vld [vmem:[%s151] sm:$0xff]
        %v173 = vld [vmem:[#allocation2] sm:$0xff]
        %v174 = vadd.f32 %v172, %v173
        %175 = vst [vmem:[%s171] sm:$0xff] %v174
        %s176 = sand.u32 %s75, 1
        %s177 = scalar_lea.sflag [#allocation4], %s176
        %s178 = sand.u32 %s75, 1
        %s179 = smul.addr %s178, 8
        %s180 = scalar_lea.vmem [#allocation7], %s179
        // Predicated region
        $region37: #{tpu_custom_call.1} parent=27 // pred_check
          %p181 = pneg %p85
        $region38: #{tpu_custom_call.1} parent=27 // pred_check_branch
          %183 = sbr.rel (%p181) target = $region40
        $region39: #{tpu_custom_call.1} parent=27 // pred_region
          %s185 = ssub.s32 128, 128
          %186 = vsyncadd %s177, %s185
          %s187 = smul.addr %s20, 128
          %s188 = scalar_lea.hbm %s2, %s187
          %s190 = sshll.u32 %s180, 4
          %s191 = int_to_ptr.vmem [resolvable:$true] %s190
          %193 = dma.vmem_to_hbm [thread:$0]  %s191, 128, %s188, %s177
        $region40: #{tpu_custom_call.1} parent=27 // pred_fallthru
          _
      $region28: #{tpu_custom_call.1} parent=5 // pred_fallthru
        _
      %p194 = scmp.le.s32.totalorder 2, %s15
      // Predicated region
      $region41: #{tpu_custom_call.1} parent=5 // pred_check
        %p195 = pneg %p194
      $region42: #{tpu_custom_call.1} parent=5 // pred_check_branch
        %197 = sbr.rel (%p195) target = $region44
      $region43: #{tpu_custom_call.1} parent=5 // pred_region
        %s198 = ssub.s32 %s15, 2
        // Predicated region
        $region45: #{tpu_custom_call.1} parent=43 // pred_check
          %p199 = pneg %p91
        $region46: #{tpu_custom_call.1} parent=43 // pred_check_branch
          %201 = sbr.rel (%p199) target = $region48
        $region47: #{tpu_custom_call.1} parent=43 // pred_region
          %s202 = sand.u32 %s76, 1
          %s203 = scalar_lea.sflag [#allocation4], %s202
          %s204 = sand.u32 %s76, 1
          %s205 = smul.addr %s204, 8
          %s206 = scalar_lea.vmem [#allocation7], %s205
          %207 = dma.done %s203, 128
        $region48: #{tpu_custom_call.1} parent=43 // pred_fallthru
          _
      $region44: #{tpu_custom_call.1} parent=5 // pred_fallthru
        _
    $region6: #{tpu_custom_call.1} parent=1 // loop_footer
      %s19 = sadd.s32 1, %s15
    $region7: #{tpu_custom_call.1} parent=1 // loop_footer_branch
      %14 = sbr.rel target = $region3
    $region8: #{tpu_custom_call.1} parent=1 // loop_exit
      _
    %208 = vsyncpa [#allocation3], 1
    %s209 = scalar_lea.sflag [#allocation3], 1
    %210 = vsyncpa %s209, 1
    %211 = vsyncpa [#allocation6], 1
    %s212 = scalar_lea.sflag [#allocation6], 1
    %213 = vsyncpa %s212, 1
    %214 = vsyncpa [#allocation4], 1
    %s215 = scalar_lea.sflag [#allocation4], 1
    %216 = vsyncpa %s215, 1

// kernel: mtp_forward_mdn.1
$region0: #{mtp_forward_mdn.1}
  #allocation0 [shape = 'u32[]', space=smem, size = 0x4, offset = 0x4, fixed_abs, tag = 'smem constant byte address 0x4 - core index']
  #allocation1 [shape = 'u32[144,128]{1,0:T(1,128)}', space=vmem, size = 0x12000, scoped, tag = 'internal scratch']
  %s0 = inlined_call_operand.vmem [shape: bf16[8,256], index: 0, kind: input, shape index: {}]
  %s1 = inlined_call_operand.hbm [shape: bf16[256,512], index: 1, kind: input, shape index: {}]
  %s2 = inlined_call_operand.hbm [shape: f32[1,512], index: 2, kind: input, shape index: {}]
  %s3 = inlined_call_operand.hbm [shape: bf16[512,512], index: 3, kind: input, shape index: {}]
  %s4 = inlined_call_operand.hbm [shape: f32[1,512], index: 4, kind: input, shape index: {}]
  %s5 = inlined_call_operand.hbm [shape: bf16[512,3712], index: 5, kind: input, shape index: {}]
  %s6 = inlined_call_operand.hbm [shape: f32[1,3712], index: 6, kind: input, shape index: {}]
  %s7 = inlined_call_operand.vmem [shape: f32[8,3712], index: 7, kind: output, shape index: {}]
  %s8 = sld [smem:[#allocation0]]
  $region62: #{mtp_forward_mdn.1} parent=0
    _
  %s10 = ssub.s32 1, %s8
  %s11 = scalar_select 0, %s10, %s8
  $region1: #{mtp_forward_mdn.1} parent=0
    #allocation2 [shape = 'u8[262144]{0}', space=vmem, size = 0x40000, scoped, tag = 'input window, operand 1, single buffered']
    #allocation3 [shape = 's32[1]{0}', space=sflag, size = 0x4, scoped, tag = 'scoped memory for mtp_forward_mdn.1']
    #allocation4 [shape = 'u8[2048]{0}', space=vmem, size = 0x800, scoped, tag = 'input window, operand 2, single buffered']
    #allocation5 [shape = 's32[1]{0}', space=sflag, size = 0x4, scoped, tag = 'scoped memory for mtp_forward_mdn.1']
    #allocation6 [shape = 'u8[524288]{0}', space=vmem, size = 0x80000, scoped, tag = 'input window, operand 3, single buffered']
    #allocation7 [shape = 'u8[2048]{0}', space=vmem, size = 0x800, scoped, tag = 'input window, operand 4, single buffered']
    #allocation8 [shape = 's32[1]{0}', space=sflag, size = 0x4, scoped, tag = 'scoped memory for mtp_forward_mdn.1']
    #allocation9 [shape = 'u8[3801088]{0}', space=vmem, size = 0x3a0000, scoped, tag = 'input window, operand 5, single buffered']
    #allocation10 [shape = 'u8[14848]{0}', space=vmem, size = 0x3c00, scoped, tag = 'input window, operand 6, single buffered']
    #allocation11 [shape = 's32[1]{0}', space=sflag, size = 0x4, scoped, tag = 'scoped memory for mtp_forward_mdn.1']
    %12 = vsyncpa [#allocation3], 0
    %13 = vsyncpa [#allocation5], 0
    %14 = vsyncpa [#allocation8], 0
    %15 = vsyncpa [#allocation11], 0
    // Predicated region
    $region2: #{mtp_forward_mdn.1} parent=1 // pred_check
      _
    $region3: #{mtp_forward_mdn.1} parent=1 // pred_check_branch
      %17 = sbr.rel (0) target = $region5
    $region4: #{mtp_forward_mdn.1} parent=1 // pred_region
      _
    $region5: #{mtp_forward_mdn.1} parent=1 // pred_fallthru
      _
    // Predicated region
    $region6: #{mtp_forward_mdn.1} parent=1 // pred_check
      _
    $region7: #{mtp_forward_mdn.1} parent=1 // pred_check_branch
      %19 = sbr.rel (0) target = $region9
    $region8: #{mtp_forward_mdn.1} parent=1 // pred_region
      %s21 = ssub.s32 8192, 8192
      %22 = vsyncadd [#allocation3], %s21
      %s23 = sshll.u32 [#allocation2], 4
      %s24 = int_to_ptr.vmem [resolvable:$true] %s23
      %29 = dma.hbm_to_vmem [thread:$0]  %s1, 8192, %s24, [#allocation3], 256, 256, 16
    $region9: #{mtp_forward_mdn.1} parent=1 // pred_fallthru
      _
    // Predicated region
    $region10: #{mtp_forward_mdn.1} parent=1 // pred_check
      _
    $region11: #{mtp_forward_mdn.1} parent=1 // pred_check_branch
      %31 = sbr.rel (0) target = $region13
    $region12: #{mtp_forward_mdn.1} parent=1 // pred_region
      %s33 = ssub.s32 64, 64
      %34 = vsyncadd [#allocation5], %s33
      %s36 = sshll.u32 [#allocation4], 4
      %s37 = int_to_ptr.vmem [resolvable:$true] %s36
      %39 = dma.hbm_to_vmem [thread:$0]  %s2, 64, %s37, [#allocation5]
    $region13: #{mtp_forward_mdn.1} parent=1 // pred_fallthru
      _
    // Predicated region
    $region14: #{mtp_forward_mdn.1} parent=1 // pred_check
      _
    $region15: #{mtp_forward_mdn.1} parent=1 // pred_check_branch
      %41 = sbr.rel (0) target = $region17
    $region16: #{mtp_forward_mdn.1} parent=1 // pred_region
      %s43 = ssub.s32 16384, 16384
      %44 = vsyncadd [#allocation5], %s43
      %s45 = sshll.u32 [#allocation6], 4
      %s46 = int_to_ptr.vmem [resolvable:$true] %s45
      %51 = dma.hbm_to_vmem [thread:$0]  %s3, 16384, %s46, [#allocation5], 256, 256, 16
    $region17: #{mtp_forward_mdn.1} parent=1 // pred_fallthru
      _
    // Predicated region
    $region18: #{mtp_forward_mdn.1} parent=1 // pred_check
      _
    $region19: #{mtp_forward_mdn.1} parent=1 // pred_check_branch
      %53 = sbr.rel (0) target = $region21
    $region20: #{mtp_forward_mdn.1} parent=1 // pred_region
      %s55 = ssub.s32 64, 64
      %56 = vsyncadd [#allocation8], %s55
      %s58 = sshll.u32 [#allocation7], 4
      %s59 = int_to_ptr.vmem [resolvable:$true] %s58
      %61 = dma.hbm_to_vmem [thread:$0]  %s4, 64, %s59, [#allocation8]
    $region21: #{mtp_forward_mdn.1} parent=1 // pred_fallthru
      _
    // Predicated region
    $region22: #{mtp_forward_mdn.1} parent=1 // pred_check
      _
    $region23: #{mtp_forward_mdn.1} parent=1 // pred_check_branch
      %63 = sbr.rel (0) target = $region25
    $region24: #{mtp_forward_mdn.1} parent=1 // pred_region
      %s65 = ssub.s32 118784, 118784
      %66 = vsyncadd [#allocation8], %s65
      %s67 = sshll.u32 [#allocation9], 4
      %s68 = int_to_ptr.vmem [resolvable:$true] %s67
      %73 = dma.hbm_to_vmem [thread:$0]  %s5, 118784, %s68, [#allocation8], 1856, 1856, 116
    $region25: #{mtp_forward_mdn.1} parent=1 // pred_fallthru
      _
    // Predicated region
    $region26: #{mtp_forward_mdn.1} parent=1 // pred_check
      _
    $region27: #{mtp_forward_mdn.1} parent=1 // pred_check_branch
      %75 = sbr.rel (0) target = $region29
    $region28: #{mtp_forward_mdn.1} parent=1 // pred_region
      %s77 = ssub.s32 464, 464
      %78 = vsyncadd [#allocation11], %s77
      %s80 = sshll.u32 [#allocation10], 4
      %s81 = int_to_ptr.vmem [resolvable:$true] %s80
      %83 = dma.hbm_to_vmem [thread:$0]  %s6, 464, %s81, [#allocation11]
    $region29: #{mtp_forward_mdn.1} parent=1 // pred_fallthru
      _
    // Predicated region
    $region30: #{mtp_forward_mdn.1} parent=1 // pred_check
      _
    $region31: #{mtp_forward_mdn.1} parent=1 // pred_check_branch
      %85 = sbr.rel (0) target = $region33
    $region32: #{mtp_forward_mdn.1} parent=1 // pred_region
      %86 = dma.done [#allocation3], 8192
    $region33: #{mtp_forward_mdn.1} parent=1 // pred_fallthru
      _
    // Predicated region
    $region34: #{mtp_forward_mdn.1} parent=1 // pred_check
      _
    $region35: #{mtp_forward_mdn.1} parent=1 // pred_check_branch
      %88 = sbr.rel (0) target = $region37
    $region36: #{mtp_forward_mdn.1} parent=1 // pred_region
      %89 = dma.done [#allocation5], 64
    $region37: #{mtp_forward_mdn.1} parent=1 // pred_fallthru
      _
    // Predicated region
    $region38: #{mtp_forward_mdn.1} parent=1 // pred_check
      _
    $region39: #{mtp_forward_mdn.1} parent=1 // pred_check_branch
      %91 = sbr.rel (0) target = $region41
    $region40: #{mtp_forward_mdn.1} parent=1 // pred_region
      %92 = dma.done [#allocation5], 16384
    $region41: #{mtp_forward_mdn.1} parent=1 // pred_fallthru
      _
    // Predicated region
    $region42: #{mtp_forward_mdn.1} parent=1 // pred_check
      _
    $region43: #{mtp_forward_mdn.1} parent=1 // pred_check_branch
      %94 = sbr.rel (0) target = $region45
    $region44: #{mtp_forward_mdn.1} parent=1 // pred_region
      %95 = dma.done [#allocation8], 64
    $region45: #{mtp_forward_mdn.1} parent=1 // pred_fallthru
      _
    // Predicated region
    $region46: #{mtp_forward_mdn.1} parent=1 // pred_check
      _
    $region47: #{mtp_forward_mdn.1} parent=1 // pred_check_branch
      %97 = sbr.rel (0) target = $region49
    $region48: #{mtp_forward_mdn.1} parent=1 // pred_region
      %98 = dma.done [#allocation8], 118784
    $region49: #{mtp_forward_mdn.1} parent=1 // pred_fallthru
      _
    // Predicated region
    $region50: #{mtp_forward_mdn.1} parent=1 // pred_check
      _
    $region51: #{mtp_forward_mdn.1} parent=1 // pred_check_branch
      %100 = sbr.rel (0) target = $region53
    $region52: #{mtp_forward_mdn.1} parent=1 // pred_region
      %101 = dma.done [#allocation11], 464
    $region53: #{mtp_forward_mdn.1} parent=1 // pred_fallthru
      _
    %v103 = vld [vmem:[%s0] sm:$0xff]
    %v104 = vld [vmem:[#allocation2] sm:$0xff]
    %v105 = vld [vmem:[#allocation2 + $0x8] sm:$0xff]
    %v106 = vld [vmem:[#allocation2 + $0x10] sm:$0xff]
    %v107 = vld [vmem:[#allocation2 + $0x18] sm:$0xff]
    %v108 = vld [vmem:[#allocation2 + $0x20] sm:$0xff]
    %v109 = vld [vmem:[#allocation2 + $0x28] sm:$0xff]
    %v110 = vld [vmem:[#allocation2 + $0x30] sm:$0xff]
    %v111 = vld [vmem:[#allocation2 + $0x38] sm:$0xff]
    %v112 = vld [vmem:[#allocation2 + $0x40] sm:$0xff]
    %v113 = vld [vmem:[#allocation2 + $0x48] sm:$0xff]
    %v114 = vld [vmem:[#allocation2 + $0x50] sm:$0xff]
    %v115 = vld [vmem:[#allocation2 + $0x58] sm:$0xff]
    %v116 = vld [vmem:[#allocation2 + $0x60] sm:$0xff]
    %v117 = vld [vmem:[#allocation2 + $0x68] sm:$0xff]
    %v118 = vld [vmem:[#allocation2 + $0x70] sm:$0xff]
    %v119 = vld [vmem:[#allocation2 + $0x78] sm:$0xff]
    %v120 = vld [vmem:[#allocation2 + $0x80] sm:$0xff]
    %v121 = vld [vmem:[#allocation2 + $0x88] sm:$0xff]
    %v122 = vld [vmem:[#allocation2 + $0x90] sm:$0xff]
    %v123 = vld [vmem:[#allocation2 + $0x98] sm:$0xff]
    %v124 = vld [vmem:[#allocation2 + $0xa0] sm:$0xff]
    %v125 = vld [vmem:[#allocation2 + $0xa8] sm:$0xff]
    %v126 = vld [vmem:[#allocation2 + $0xb0] sm:$0xff]
    %v127 = vld [vmem:[#allocation2 + $0xb8] sm:$0xff]
    %v128 = vld [vmem:[#allocation2 + $0xc0] sm:$0xff]
    %v129 = vld [vmem:[#allocation2 + $0xc8] sm:$0xff]
    %v130 = vld [vmem:[#allocation2 + $0xd0] sm:$0xff]
    %v131 = vld [vmem:[#allocation2 + $0xd8] sm:$0xff]
    %v132 = vld [vmem:[#allocation2 + $0xe0] sm:$0xff]
    %v133 = vld [vmem:[#allocation2 + $0xe8] sm:$0xff]
    %v134 = vld [vmem:[#allocation2 + $0xf0] sm:$0xff]
    %v135 = vld [vmem:[#allocation2 + $0xf8] sm:$0xff]
    %v136 = vld [vmem:[#allocation2 + $0x100] sm:$0xff]
    %v137 = vld [vmem:[#allocation2 + $0x108] sm:$0xff]
    %v138 = vld [vmem:[#allocation2 + $0x110] sm:$0xff]
    %v139 = vld [vmem:[#allocation2 + $0x118] sm:$0xff]
    %v140 = vld [vmem:[#allocation2 + $0x120] sm:$0xff]
    %v141 = vld [vmem:[#allocation2 + $0x128] sm:$0xff]
    %v142 = vld [vmem:[#allocation2 + $0x130] sm:$0xff]
    %v143 = vld [vmem:[#allocation2 + $0x138] sm:$0xff]
    %v144 = vld [vmem:[#allocation2 + $0x140] sm:$0xff]
    %v145 = vld [vmem:[#allocation2 + $0x148] sm:$0xff]
    %v146 = vld [vmem:[#allocation2 + $0x150] sm:$0xff]
    %v147 = vld [vmem:[#allocation2 + $0x158] sm:$0xff]
    %v148 = vld [vmem:[#allocation2 + $0x160] sm:$0xff]
    %v149 = vld [vmem:[#allocation2 + $0x168] sm:$0xff]
    %v150 = vld [vmem:[#allocation2 + $0x170] sm:$0xff]
    %v151 = vld [vmem:[#allocation2 + $0x178] sm:$0xff]
    %v152 = vld [vmem:[#allocation2 + $0x180] sm:$0xff]
    %v153 = vld [vmem:[#allocation2 + $0x188] sm:$0xff]
    %v154 = vld [vmem:[#allocation2 + $0x190] sm:$0xff]
    %v155 = vld [vmem:[#allocation2 + $0x198] sm:$0xff]
    %v156 = vld [vmem:[#allocation2 + $0x1a0] sm:$0xff]
    %v157 = vld [vmem:[#allocation2 + $0x1a8] sm:$0xff]
    %v158 = vld [vmem:[#allocation2 + $0x1b0] sm:$0xff]
    %v159 = vld [vmem:[#allocation2 + $0x1b8] sm:$0xff]
    %v160 = vld [vmem:[#allocation2 + $0x1c0] sm:$0xff]
    %v161 = vld [vmem:[#allocation2 + $0x1c8] sm:$0xff]
    %v162 = vld [vmem:[#allocation2 + $0x1d0] sm:$0xff]
    %v163 = vld [vmem:[#allocation2 + $0x1d8] sm:$0xff]
    %v164 = vld [vmem:[#allocation2 + $0x1e0] sm:$0xff]
    %v165 = vld [vmem:[#allocation2 + $0x1e8] sm:$0xff]
    %v166 = vld [vmem:[#allocation2 + $0x1f0] sm:$0xff]
    %v167 = vld [vmem:[#allocation2 + $0x1f8] sm:$0xff]
    %v168 = vld [vmem:[#allocation4] sm:$0xf]
    %v170 = vlaneseq
    %v171 = vshrl.u32 %v170, 7
    %v172 = vsub.s32 0, %v171
    %v173 = vrot.slane %v168, %v172
    %v174 = vlaneseq
    %v175 = vshrl.u32 %v174, 7
    %v176 = vsub.s32 1, %v175
    %v177 = vrot.slane %v168, %v176
    %v178 = vlaneseq
    %v179 = vshrl.u32 %v178, 7
    %v180 = vsub.s32 2, %v179
    %v181 = vrot.slane %v168, %v180
    %v182 = vlaneseq
    %v183 = vshrl.u32 %v182, 7
    %v184 = vsub.s32 3, %v183
    %v185 = vrot.slane %v168, %v184
    %v191 = vunpack.c.l.b16 %v103
    %v192 = vunpack.c.h.b16 %v103
    %v193 = vpack.c.b16 %v191, %v191
    %v194 = vpack.c.b16 %v192, %v192
    %v261 = vunpack.c.l.b16 %v104
    %v262 = vunpack.c.h.b16 %v104
    %v263 = vunpack.c.l.b16 %v105
    %v264 = vunpack.c.h.b16 %v105
    %v265 = vunpack.c.l.b16 %v106
    %v266 = vunpack.c.h.b16 %v106
    %v267 = vunpack.c.l.b16 %v107
    %v268 = vunpack.c.h.b16 %v107
    %v269 = vunpack.c.l.b16 %v108
    %v270 = vunpack.c.h.b16 %v108
    %v271 = vunpack.c.l.b16 %v109
    %v272 = vunpack.c.h.b16 %v109
    %v273 = vunpack.c.l.b16 %v110
    %v274 = vunpack.c.h.b16 %v110
    %v275 = vunpack.c.l.b16 %v111
    %v276 = vunpack.c.h.b16 %v111
    %v277 = vunpack.c.l.b16 %v112
    %v278 = vunpack.c.h.b16 %v112
    %v279 = vunpack.c.l.b16 %v113
    %v280 = vunpack.c.h.b16 %v113
    %v281 = vunpack.c.l.b16 %v114
    %v282 = vunpack.c.h.b16 %v114
    %v283 = vunpack.c.l.b16 %v115
    %v284 = vunpack.c.h.b16 %v115
    %v285 = vunpack.c.l.b16 %v116
    %v286 = vunpack.c.h.b16 %v116
    %v287 = vunpack.c.l.b16 %v117
    %v288 = vunpack.c.h.b16 %v117
    %v289 = vunpack.c.l.b16 %v118
    %v290 = vunpack.c.h.b16 %v118
    %v291 = vunpack.c.l.b16 %v119
    %v292 = vunpack.c.h.b16 %v119
    %v293 = vunpack.c.l.b16 %v120
    %v294 = vunpack.c.h.b16 %v120
    %v295 = vunpack.c.l.b16 %v121
    %v296 = vunpack.c.h.b16 %v121
    %v297 = vunpack.c.l.b16 %v122
    %v298 = vunpack.c.h.b16 %v122
    %v299 = vunpack.c.l.b16 %v123
    %v300 = vunpack.c.h.b16 %v123
    %v301 = vunpack.c.l.b16 %v124
    %v302 = vunpack.c.h.b16 %v124
    %v303 = vunpack.c.l.b16 %v125
    %v304 = vunpack.c.h.b16 %v125
    %v305 = vunpack.c.l.b16 %v126
    %v306 = vunpack.c.h.b16 %v126
    %v307 = vunpack.c.l.b16 %v127
    %v308 = vunpack.c.h.b16 %v127
    %v309 = vunpack.c.l.b16 %v128
    %v310 = vunpack.c.h.b16 %v128
    %v311 = vunpack.c.l.b16 %v129
    %v312 = vunpack.c.h.b16 %v129
    %v313 = vunpack.c.l.b16 %v130
    %v314 = vunpack.c.h.b16 %v130
    %v315 = vunpack.c.l.b16 %v131
    %v316 = vunpack.c.h.b16 %v131
    %v317 = vunpack.c.l.b16 %v132
    %v318 = vunpack.c.h.b16 %v132
    %v319 = vunpack.c.l.b16 %v133
    %v320 = vunpack.c.h.b16 %v133
    %v321 = vunpack.c.l.b16 %v134
    %v322 = vunpack.c.h.b16 %v134
    %v323 = vunpack.c.l.b16 %v135
    %v324 = vunpack.c.h.b16 %v135
    %v325 = vunpack.c.l.b16 %v136
    %v326 = vunpack.c.h.b16 %v136
    %v327 = vunpack.c.l.b16 %v137
    %v328 = vunpack.c.h.b16 %v137
    %v329 = vunpack.c.l.b16 %v138
    %v330 = vunpack.c.h.b16 %v138
    %v331 = vunpack.c.l.b16 %v139
    %v332 = vunpack.c.h.b16 %v139
    %v333 = vunpack.c.l.b16 %v140
    %v334 = vunpack.c.h.b16 %v140
    %v335 = vunpack.c.l.b16 %v141
    %v336 = vunpack.c.h.b16 %v141
    %v337 = vunpack.c.l.b16 %v142
    %v338 = vunpack.c.h.b16 %v142
    %v339 = vunpack.c.l.b16 %v143
    %v340 = vunpack.c.h.b16 %v143
    %v341 = vunpack.c.l.b16 %v144
    %v342 = vunpack.c.h.b16 %v144
    %v343 = vunpack.c.l.b16 %v145
    %v344 = vunpack.c.h.b16 %v145
    %v345 = vunpack.c.l.b16 %v146
    %v346 = vunpack.c.h.b16 %v146
    %v347 = vunpack.c.l.b16 %v147
    %v348 = vunpack.c.h.b16 %v147
    %v349 = vunpack.c.l.b16 %v148
    %v350 = vunpack.c.h.b16 %v148
    %v351 = vunpack.c.l.b16 %v149
    %v352 = vunpack.c.h.b16 %v149
    %v353 = vunpack.c.l.b16 %v150
    %v354 = vunpack.c.h.b16 %v150
    %v355 = vunpack.c.l.b16 %v151
    %v356 = vunpack.c.h.b16 %v151
    %v357 = vunpack.c.l.b16 %v152
    %v358 = vunpack.c.h.b16 %v152
    %v359 = vunpack.c.l.b16 %v153
    %v360 = vunpack.c.h.b16 %v153
    %v361 = vunpack.c.l.b16 %v154
    %v362 = vunpack.c.h.b16 %v154
    %v363 = vunpack.c.l.b16 %v155
    %v364 = vunpack.c.h.b16 %v155
    %v365 = vunpack.c.l.b16 %v156
    %v366 = vunpack.c.h.b16 %v156
    %v367 = vunpack.c.l.b16 %v157
    %v368 = vunpack.c.h.b16 %v157
    %v369 = vunpack.c.l.b16 %v158
    %v370 = vunpack.c.h.b16 %v158
    %v371 = vunpack.c.l.b16 %v159
    %v372 = vunpack.c.h.b16 %v159
    %v373 = vunpack.c.l.b16 %v160
    %v374 = vunpack.c.h.b16 %v160
    %v375 = vunpack.c.l.b16 %v161
    %v376 = vunpack.c.h.b16 %v161
    %v377 = vunpack.c.l.b16 %v162
    %v378 = vunpack.c.h.b16 %v162
    %v379 = vunpack.c.l.b16 %v163
    %v380 = vunpack.c.h.b16 %v163
    %v381 = vunpack.c.l.b16 %v164
    %v382 = vunpack.c.h.b16 %v164
    %v383 = vunpack.c.l.b16 %v165
    %v384 = vunpack.c.h.b16 %v165
    %v385 = vunpack.c.l.b16 %v166
    %v386 = vunpack.c.h.b16 %v166
    %v387 = vunpack.c.l.b16 %v167
    %v388 = vunpack.c.h.b16 %v167
    %v389 = vpack.c.b16 %v265, %v261
    %v390 = vpack.c.b16 %v266, %v262
    %v391 = vpack.c.b16 %v267, %v263
    %v392 = vpack.c.b16 %v268, %v264
    %v393 = vpack.c.b16 %v273, %v269
    %v394 = vpack.c.b16 %v274, %v270
    %v395 = vpack.c.b16 %v275, %v271
    %v396 = vpack.c.b16 %v276, %v272
    %v397 = vpack.c.b16 %v281, %v277
    %v398 = vpack.c.b16 %v282, %v278
    %v399 = vpack.c.b16 %v283, %v279
    %v400 = vpack.c.b16 %v284, %v280
    %v401 = vpack.c.b16 %v289, %v285
    %v402 = vpack.c.b16 %v290, %v286
    %v403 = vpack.c.b16 %v291, %v287
    %v404 = vpack.c.b16 %v292, %v288
    %v405 = vpack.c.b16 %v297, %v293
    %v406 = vpack.c.b16 %v298, %v294
    %v407 = vpack.c.b16 %v299, %v295
    %v408 = vpack.c.b16 %v300, %v296
    %v409 = vpack.c.b16 %v305, %v301
    %v410 = vpack.c.b16 %v306, %v302
    %v411 = vpack.c.b16 %v307, %v303
    %v412 = vpack.c.b16 %v308, %v304
    %v413 = vpack.c.b16 %v313, %v309
    %v414 = vpack.c.b16 %v314, %v310
    %v415 = vpack.c.b16 %v315, %v311
    %v416 = vpack.c.b16 %v316, %v312
    %v417 = vpack.c.b16 %v321, %v317
    %v418 = vpack.c.b16 %v322, %v318
    %v419 = vpack.c.b16 %v323, %v319
    %v420 = vpack.c.b16 %v324, %v320
    %v421 = vpack.c.b16 %v329, %v325
    %v422 = vpack.c.b16 %v330, %v326
    %v423 = vpack.c.b16 %v331, %v327
    %v424 = vpack.c.b16 %v332, %v328
    %v425 = vpack.c.b16 %v337, %v333
    %v426 = vpack.c.b16 %v338, %v334
    %v427 = vpack.c.b16 %v339, %v335
    %v428 = vpack.c.b16 %v340, %v336
    %v429 = vpack.c.b16 %v345, %v341
    %v430 = vpack.c.b16 %v346, %v342
    %v431 = vpack.c.b16 %v347, %v343
    %v432 = vpack.c.b16 %v348, %v344
    %v433 = vpack.c.b16 %v353, %v349
    %v434 = vpack.c.b16 %v354, %v350
    %v435 = vpack.c.b16 %v355, %v351
    %v436 = vpack.c.b16 %v356, %v352
    %v437 = vpack.c.b16 %v361, %v357
    %v438 = vpack.c.b16 %v362, %v358
    %v439 = vpack.c.b16 %v363, %v359
    %v440 = vpack.c.b16 %v364, %v360
    %v441 = vpack.c.b16 %v369, %v365
    %v442 = vpack.c.b16 %v370, %v366
    %v443 = vpack.c.b16 %v371, %v367
    %v444 = vpack.c.b16 %v372, %v368
    %v445 = vpack.c.b16 %v377, %v373
    %v446 = vpack.c.b16 %v378, %v374
    %v447 = vpack.c.b16 %v379, %v375
    %v448 = vpack.c.b16 %v380, %v376
    %v449 = vpack.c.b16 %v385, %v381
    %v450 = vpack.c.b16 %v386, %v382
    %v451 = vpack.c.b16 %v387, %v383
    %v452 = vpack.c.b16 %v388, %v384
    %517 = vmatprep.subr.bf16.mxu0 %v418
    %518 = vmatpush1.bf16.msra.mxu0 %v417
    %519 = vmatprep.subr.bf16.mxu0 %v414
    %520 = vmatpush1.bf16.msra.mxu0 %v413
    %521 = vmatprep.subr.bf16.mxu0 %v410
    %522 = vmatpush1.bf16.msra.mxu0 %v409
    %523 = vmatprep.subr.bf16.mxu0 %v406
    %524 = vmatpush1.bf16.msra.mxu0 %v405
    %525 = vmatprep.subr.bf16.mxu0 %v402
    %526 = vmatpush1.bf16.msra.mxu0 %v401
    %527 = vmatprep.subr.bf16.mxu0 %v398
    %528 = vmatpush1.bf16.msra.mxu0 %v397
    %529 = vmatprep.subr.bf16.mxu0 %v394
    %530 = vmatpush1.bf16.msra.mxu0 %v393
    %531 = vmatprep.subr.bf16.mxu0 %v390
    %532 = vmatpush1.bf16.msra.mxu0 %v389
    %533 = vmatprep.subr.bf16.mxu0 %v450
    %534 = vmatpush2.bf16.msra.mxu0 %v449
    %535 = vmatprep.subr.bf16.mxu0 %v446
    %536 = vmatpush2.bf16.msra.mxu0 %v445
    %537 = vmatprep.subr.bf16.mxu0 %v442
    %538 = vmatpush2.bf16.msra.mxu0 %v441
    %539 = vmatprep.subr.bf16.mxu0 %v438
    %540 = vmatpush2.bf16.msra.mxu0 %v437
    %541 = vmatprep.subr.bf16.mxu0 %v434
    %542 = vmatpush2.bf16.msra.mxu0 %v433
    %543 = vmatprep.subr.bf16.mxu0 %v430
    %544 = vmatpush2.bf16.msra.mxu0 %v429
    %545 = vmatprep.subr.bf16.mxu0 %v426
    %546 = vmatpush2.bf16.msra.mxu0 %v425
    %547 = vmatprep.subr.bf16.mxu0 %v422
    %548 = vmatpush2.bf16.msra.mxu0 %v421
    %549 = vmatprep.mubr.bf16.mxu0 %v194
    %550 = vmatmul.mubr.bf16.gmra.mxu0 %v193
    %v551 = vpop.f32.mrf.mxu0
    %v552 = vadd.f32 %v173, %v551
    %v553 = vpop.f32.mrf.mxu0
    %v554 = vadd.f32 %v177, %v553
    %v555 = vpop.f32.mrf.mxu0
    %v556 = vpop.f32.mrf.mxu0
    %557 = vdwg.mxu0
    %558 = vmatprep.subr.bf16.mxu0 %v420
    %559 = vmatpush1.bf16.msra.mxu0 %v419
    %560 = vmatprep.subr.bf16.mxu0 %v416
    %561 = vmatpush1.bf16.msra.mxu0 %v415
    %562 = vmatprep.subr.bf16.mxu0 %v412
    %563 = vmatpush1.bf16.msra.mxu0 %v411
    %564 = vmatprep.subr.bf16.mxu0 %v408
    %565 = vmatpush1.bf16.msra.mxu0 %v407
    %566 = vmatprep.subr.bf16.mxu0 %v404
    %567 = vmatpush1.bf16.msra.mxu0 %v403
    %568 = vmatprep.subr.bf16.mxu0 %v400
    %569 = vmatpush1.bf16.msra.mxu0 %v399
    %570 = vmatprep.subr.bf16.mxu0 %v396
    %571 = vmatpush1.bf16.msra.mxu0 %v395
    %572 = vmatprep.subr.bf16.mxu0 %v392
    %573 = vmatpush1.bf16.msra.mxu0 %v391
    %574 = vmatprep.subr.bf16.mxu0 %v452
    %575 = vmatpush2.bf16.msra.mxu0 %v451
    %576 = vmatprep.subr.bf16.mxu0 %v448
    %577 = vmatpush2.bf16.msra.mxu0 %v447
    %578 = vmatprep.subr.bf16.mxu0 %v444
    %579 = vmatpush2.bf16.msra.mxu0 %v443
    %580 = vmatprep.subr.bf16.mxu0 %v440
    %581 = vmatpush2.bf16.msra.mxu0 %v439
    %582 = vmatprep.subr.bf16.mxu0 %v436
    %583 = vmatpush2.bf16.msra.mxu0 %v435
    %584 = vmatprep.subr.bf16.mxu0 %v432
    %585 = vmatpush2.bf16.msra.mxu0 %v431
    %586 = vmatprep.subr.bf16.mxu0 %v428
    %587 = vmatpush2.bf16.msra.mxu0 %v427
    %588 = vmatprep.subr.bf16.mxu0 %v424
    %589 = vmatpush2.bf16.msra.mxu0 %v423
    %590 = vmatprep.mubr.bf16.mxu0 %v194
    %591 = vmatmul.mubr.bf16.gmra.mxu0 %v193
    %v592 = vpop.f32.mrf.mxu0
    %v593 = vadd.f32 %v181, %v592
    %v594 = vpop.f32.mrf.mxu0
    %v595 = vadd.f32 %v185, %v594
    %v596 = vpop.f32.mrf.mxu0
    %v597 = vpop.f32.mrf.mxu0
    %598 = vdwg.mxu0
    %v599 = vmax.f32 %v552, 0.0
    %v600 = vmax.f32 %v554, 0.0
    %v601 = vmax.f32 %v593, 0.0
    %v602 = vmax.f32 %v595, 0.0
    %v603 = vpack.c.bf16 %v599, %v599
    %v604 = vpack.c.bf16 %v600, %v600
    %v605 = vpack.c.bf16 %v601, %v601
    %v606 = vpack.c.bf16 %v602, %v602
    %v607 = vld [vmem:[#allocation6] sm:$0xff]
    %v608 = vld [vmem:[#allocation6 + $0x8] sm:$0xff]
    %v609 = vld [vmem:[#allocation6 + $0x10] sm:$0xff]
    %v610 = vld [vmem:[#allocation6 + $0x18] sm:$0xff]
    %v611 = vld [vmem:[#allocation6 + $0x20] sm:$0xff]
    %v612 = vld [vmem:[#allocation6 + $0x28] sm:$0xff]
    %v613 = vld [vmem:[#allocation6 + $0x30] sm:$0xff]
    %v614 = vld [vmem:[#allocation6 + $0x38] sm:$0xff]
    %v615 = vld [vmem:[#allocation6 + $0x40] sm:$0xff]
    %v616 = vld [vmem:[#allocation6 + $0x48] sm:$0xff]
    %v617 = vld [vmem:[#allocation6 + $0x50] sm:$0xff]
    %v618 = vld [vmem:[#allocation6 + $0x58] sm:$0xff]
    %v619 = vld [vmem:[#allocation6 + $0x60] sm:$0xff]
    %v620 = vld [vmem:[#allocation6 + $0x68] sm:$0xff]
    %v621 = vld [vmem:[#allocation6 + $0x70] sm:$0xff]
    %v622 = vld [vmem:[#allocation6 + $0x78] sm:$0xff]
    %v623 = vld [vmem:[#allocation6 + $0x80] sm:$0xff]
    %v624 = vld [vmem:[#allocation6 + $0x88] sm:$0xff]
    %v625 = vld [vmem:[#allocation6 + $0x90] sm:$0xff]
    %v626 = vld [vmem:[#allocation6 + $0x98] sm:$0xff]
    %v627 = vld [vmem:[#allocation6 + $0xa0] sm:$0xff]
    %v628 = vld [vmem:[#allocation6 + $0xa8] sm:$0xff]
    %v629 = vld [vmem:[#allocation6 + $0xb0] sm:$0xff]
    %v630 = vld [vmem:[#allocation6 + $0xb8] sm:$0xff]
    %v631 = vld [vmem:[#allocation6 + $0xc0] sm:$0xff]
    %v632 = vld [vmem:[#allocation6 + $0xc8] sm:$0xff]
    %v633 = vld [vmem:[#allocation6 + $0xd0] sm:$0xff]
    %v634 = vld [vmem:[#allocation6 + $0xd8] sm:$0xff]
    %v635 = vld [vmem:[#allocation6 + $0xe0] sm:$0xff]
    %v636 = vld [vmem:[#allocation6 + $0xe8] sm:$0xff]
    %v637 = vld [vmem:[#allocation6 + $0xf0] sm:$0xff]
    %v638 = vld [vmem:[#allocation6 + $0xf8] sm:$0xff]
    %v639 = vld [vmem:[#allocation6 + $0x100] sm:$0xff]
    %v640 = vld [vmem:[#allocation6 + $0x108] sm:$0xff]
    %v641 = vld [vmem:[#allocation6 + $0x110] sm:$0xff]
    %v642 = vld [vmem:[#allocation6 + $0x118] sm:$0xff]
    %v643 = vld [vmem:[#allocation6 + $0x120] sm:$0xff]
    %v644 = vld [vmem:[#allocation6 + $0x128] sm:$0xff]
    %v645 = vld [vmem:[#allocation6 + $0x130] sm:$0xff]
    %v646 = vld [vmem:[#allocation6 + $0x138] sm:$0xff]
    %v647 = vld [vmem:[#allocation6 + $0x140] sm:$0xff]
    %v648 = vld [vmem:[#allocation6 + $0x148] sm:$0xff]
    %v649 = vld [vmem:[#allocation6 + $0x150] sm:$0xff]
    %v650 = vld [vmem:[#allocation6 + $0x158] sm:$0xff]
    %v651 = vld [vmem:[#allocation6 + $0x160] sm:$0xff]
    %v652 = vld [vmem:[#allocation6 + $0x168] sm:$0xff]
    %v653 = vld [vmem:[#allocation6 + $0x170] sm:$0xff]
    %v654 = vld [vmem:[#allocation6 + $0x178] sm:$0xff]
    %v655 = vld [vmem:[#allocation6 + $0x180] sm:$0xff]
    %v656 = vld [vmem:[#allocation6 + $0x188] sm:$0xff]
    %v657 = vld [vmem:[#allocation6 + $0x190] sm:$0xff]
    %v658 = vld [vmem:[#allocation6 + $0x198] sm:$0xff]
    %v659 = vld [vmem:[#allocation6 + $0x1a0] sm:$0xff]
    %v660 = vld [vmem:[#allocation6 + $0x1a8] sm:$0xff]
    %v661 = vld [vmem:[#allocation6 + $0x1b0] sm:$0xff]
    %v662 = vld [vmem:[#allocation6 + $0x1b8] sm:$0xff]
    %v663 = vld [vmem:[#allocation6 + $0x1c0] sm:$0xff]
    %v664 = vld [vmem:[#allocation6 + $0x1c8] sm:$0xff]
    %v665 = vld [vmem:[#allocation6 + $0x1d0] sm:$0xff]
    %v666 = vld [vmem:[#allocation6 + $0x1d8] sm:$0xff]
    %v667 = vld [vmem:[#allocation6 + $0x1e0] sm:$0xff]
    %v668 = vld [vmem:[#allocation6 + $0x1e8] sm:$0xff]
    %v669 = vld [vmem:[#allocation6 + $0x1f0] sm:$0xff]
    %v670 = vld [vmem:[#allocation6 + $0x1f8] sm:$0xff]
    %v671 = vld [vmem:[#allocation6 + $0x200] sm:$0xff]
    %v672 = vld [vmem:[#allocation6 + $0x208] sm:$0xff]
    %v673 = vld [vmem:[#allocation6 + $0x210] sm:$0xff]
    %v674 = vld [vmem:[#allocation6 + $0x218] sm:$0xff]
    %v675 = vld [vmem:[#allocation6 + $0x220] sm:$0xff]
    %v676 = vld [vmem:[#allocation6 + $0x228] sm:$0xff]
    %v677 = vld [vmem:[#allocation6 + $0x230] sm:$0xff]
    %v678 = vld [vmem:[#allocation6 + $0x238] sm:$0xff]
    %v679 = vld [vmem:[#allocation6 + $0x240] sm:$0xff]
    %v680 = vld [vmem:[#allocation6 + $0x248] sm:$0xff]
    %v681 = vld [vmem:[#allocation6 + $0x250] sm:$0xff]
    %v682 = vld [vmem:[#allocation6 + $0x258] sm:$0xff]
    %v683 = vld [vmem:[#allocation6 + $0x260] sm:$0xff]
    %v684 = vld [vmem:[#allocation6 + $0x268] sm:$0xff]
    %v685 = vld [vmem:[#allocation6 + $0x270] sm:$0xff]
    %v686 = vld [vmem:[#allocation6 + $0x278] sm:$0xff]
    %v687 = vld [vmem:[#allocation6 + $0x280] sm:$0xff]
    %v688 = vld [vmem:[#allocation6 + $0x288] sm:$0xff]
    %v689 = vld [vmem:[#allocation6 + $0x290] sm:$0xff]
    %v690 = vld [vmem:[#allocation6 + $0x298] sm:$0xff]
    %v691 = vld [vmem:[#allocation6 + $0x2a0] sm:$0xff]
    %v692 = vld [vmem:[#allocation6 + $0x2a8] sm:$0xff]
    %v693 = vld [vmem:[#allocation6 + $0x2b0] sm:$0xff]
    %v694 = vld [vmem:[#allocation6 + $0x2b8] sm:$0xff]
    %v695 = vld [vmem:[#allocation6 + $0x2c0] sm:$0xff]
    %v696 = vld [vmem:[#allocation6 + $0x2c8] sm:$0xff]
    %v697 = vld [vmem:[#allocation6 + $0x2d0] sm:$0xff]
    %v698 = vld [vmem:[#allocation6 + $0x2d8] sm:$0xff]
    %v699 = vld [vmem:[#allocation6 + $0x2e0] sm:$0xff]
    %v700 = vld [vmem:[#allocation6 + $0x2e8] sm:$0xff]
    %v701 = vld [vmem:[#allocation6 + $0x2f0] sm:$0xff]
    %v702 = vld [vmem:[#allocation6 + $0x2f8] sm:$0xff]
    %v703 = vld [vmem:[#allocation6 + $0x300] sm:$0xff]
    %v704 = vld [vmem:[#allocation6 + $0x308] sm:$0xff]
    %v705 = vld [vmem:[#allocation6 + $0x310] sm:$0xff]
    %v706 = vld [vmem:[#allocation6 + $0x318] sm:$0xff]
    %v707 = vld [vmem:[#allocation6 + $0x320] sm:$0xff]
    %v708 = vld [vmem:[#allocation6 + $0x328] sm:$0xff]
    %v709 = vld [vmem:[#allocation6 + $0x330] sm:$0xff]
    %v710 = vld [vmem:[#allocation6 + $0x338] sm:$0xff]
    %v711 = vld [vmem:[#allocation6 + $0x340] sm:$0xff]
    %v712 = vld [vmem:[#allocation6 + $0x348] sm:$0xff]
    %v713 = vld [vmem:[#allocation6 + $0x350] sm:$0xff]
    %v714 = vld [vmem:[#allocation6 + $0x358] sm:$0xff]
    %v715 = vld [vmem:[#allocation6 + $0x360] sm:$0xff]
    %v716 = vld [vmem:[#allocation6 + $0x368] sm:$0xff]
    %v717 = vld [vmem:[#allocation6 + $0x370] sm:$0xff]
    %v718 = vld [vmem:[#allocation6 + $0x378] sm:$0xff]
    %v719 = vld [vmem:[#allocation6 + $0x380] sm:$0xff]
    %v720 = vld [vmem:[#allocation6 + $0x388] sm:$0xff]
    %v721 = vld [vmem:[#allocation6 + $0x390] sm:$0xff]
    %v722 = vld [vmem:[#allocation6 + $0x398] sm:$0xff]
    %v723 = vld [vmem:[#allocation6 + $0x3a0] sm:$0xff]
    %v724 = vld [vmem:[#allocation6 + $0x3a8] sm:$0xff]
    %v725 = vld [vmem:[#allocation6 + $0x3b0] sm:$0xff]
    %v726 = vld [vmem:[#allocation6 + $0x3b8] sm:$0xff]
    %v727 = vld [vmem:[#allocation6 + $0x3c0] sm:$0xff]
    %v728 = vld [vmem:[#allocation6 + $0x3c8] sm:$0xff]
    %v729 = vld [vmem:[#allocation6 + $0x3d0] sm:$0xff]
    %v730 = vld [vmem:[#allocation6 + $0x3d8] sm:$0xff]
    %v731 = vld [vmem:[#allocation6 + $0x3e0] sm:$0xff]
    %v732 = vld [vmem:[#allocation6 + $0x3e8] sm:$0xff]
    %v733 = vld [vmem:[#allocation6 + $0x3f0] sm:$0xff]
    %v734 = vld [vmem:[#allocation6 + $0x3f8] sm:$0xff]
    %v735 = vld [vmem:[#allocation7] sm:$0xf]
    %v737 = vlaneseq
    %v738 = vshrl.u32 %v737, 7
    %v739 = vsub.s32 0, %v738
    %v740 = vrot.slane %v735, %v739
    %v741 = vlaneseq
    %v742 = vshrl.u32 %v741, 7
    %v743 = vsub.s32 1, %v742
    %v744 = vrot.slane %v735, %v743
    %v745 = vlaneseq
    %v746 = vshrl.u32 %v745, 7
    %v747 = vsub.s32 2, %v746
    %v748 = vrot.slane %v735, %v747
    %v749 = vlaneseq
    %v750 = vshrl.u32 %v749, 7
    %v751 = vsub.s32 3, %v750
    %v752 = vrot.slane %v735, %v751
    %v885 = vunpack.c.l.b16 %v607
    %v886 = vunpack.c.h.b16 %v607
    %v887 = vunpack.c.l.b16 %v608
    %v888 = vunpack.c.h.b16 %v608
    %v889 = vunpack.c.l.b16 %v609
    %v890 = vunpack.c.h.b16 %v609
    %v891 = vunpack.c.l.b16 %v610
    %v892 = vunpack.c.h.b16 %v610
    %v893 = vunpack.c.l.b16 %v611
    %v894 = vunpack.c.h.b16 %v611
    %v895 = vunpack.c.l.b16 %v612
    %v896 = vunpack.c.h.b16 %v612
    %v897 = vunpack.c.l.b16 %v613
    %v898 = vunpack.c.h.b16 %v613
    %v899 = vunpack.c.l.b16 %v614
    %v900 = vunpack.c.h.b16 %v614
    %v901 = vunpack.c.l.b16 %v615
    %v902 = vunpack.c.h.b16 %v615
    %v903 = vunpack.c.l.b16 %v616
    %v904 = vunpack.c.h.b16 %v616
    %v905 = vunpack.c.l.b16 %v617
    %v906 = vunpack.c.h.b16 %v617
    %v907 = vunpack.c.l.b16 %v618
    %v908 = vunpack.c.h.b16 %v618
    %v909 = vunpack.c.l.b16 %v619
    %v910 = vunpack.c.h.b16 %v619
    %v911 = vunpack.c.l.b16 %v620
    %v912 = vunpack.c.h.b16 %v620
    %v913 = vunpack.c.l.b16 %v621
    %v914 = vunpack.c.h.b16 %v621
    %v915 = vunpack.c.l.b16 %v622
    %v916 = vunpack.c.h.b16 %v622
    %v917 = vunpack.c.l.b16 %v623
    %v918 = vunpack.c.h.b16 %v623
    %v919 = vunpack.c.l.b16 %v624
    %v920 = vunpack.c.h.b16 %v624
    %v921 = vunpack.c.l.b16 %v625
    %v922 = vunpack.c.h.b16 %v625
    %v923 = vunpack.c.l.b16 %v626
    %v924 = vunpack.c.h.b16 %v626
    %v925 = vunpack.c.l.b16 %v627
    %v926 = vunpack.c.h.b16 %v627
    %v927 = vunpack.c.l.b16 %v628
    %v928 = vunpack.c.h.b16 %v628
    %v929 = vunpack.c.l.b16 %v629
    %v930 = vunpack.c.h.b16 %v629
    %v931 = vunpack.c.l.b16 %v630
    %v932 = vunpack.c.h.b16 %v630
    %v933 = vunpack.c.l.b16 %v631
    %v934 = vunpack.c.h.b16 %v631
    %v935 = vunpack.c.l.b16 %v632
    %v936 = vunpack.c.h.b16 %v632
    %v937 = vunpack.c.l.b16 %v633
    %v938 = vunpack.c.h.b16 %v633
    %v939 = vunpack.c.l.b16 %v634
    %v940 = vunpack.c.h.b16 %v634
    %v941 = vunpack.c.l.b16 %v635
    %v942 = vunpack.c.h.b16 %v635
    %v943 = vunpack.c.l.b16 %v636
    %v944 = vunpack.c.h.b16 %v636
    %v945 = vunpack.c.l.b16 %v637
    %v946 = vunpack.c.h.b16 %v637
    %v947 = vunpack.c.l.b16 %v638
    %v948 = vunpack.c.h.b16 %v638
    %v949 = vunpack.c.l.b16 %v639
    %v950 = vunpack.c.h.b16 %v639
    %v951 = vunpack.c.l.b16 %v640
    %v952 = vunpack.c.h.b16 %v640
    %v953 = vunpack.c.l.b16 %v641
    %v954 = vunpack.c.h.b16 %v641
    %v955 = vunpack.c.l.b16 %v642
    %v956 = vunpack.c.h.b16 %v642
    %v957 = vunpack.c.l.b16 %v643
    %v958 = vunpack.c.h.b16 %v643
    %v959 = vunpack.c.l.b16 %v644
    %v960 = vunpack.c.h.b16 %v644
    %v961 = vunpack.c.l.b16 %v645
    %v962 = vunpack.c.h.b16 %v645
    %v963 = vunpack.c.l.b16 %v646
    %v964 = vunpack.c.h.b16 %v646
    %v965 = vunpack.c.l.b16 %v647
    %v966 = vunpack.c.h.b16 %v647
    %v967 = vunpack.c.l.b16 %v648
    %v968 = vunpack.c.h.b16 %v648
    %v969 = vunpack.c.l.b16 %v649
    %v970 = vunpack.c.h.b16 %v649
    %v971 = vunpack.c.l.b16 %v650
    %v972 = vunpack.c.h.b16 %v650
    %v973 = vunpack.c.l.b16 %v651
    %v974 = vunpack.c.h.b16 %v651
    %v975 = vunpack.c.l.b16 %v652
    %v976 = vunpack.c.h.b16 %v652
    %v977 = vunpack.c.l.b16 %v653
    %v978 = vunpack.c.h.b16 %v653
    %v979 = vunpack.c.l.b16 %v654
    %v980 = vunpack.c.h.b16 %v654
    %v981 = vunpack.c.l.b16 %v655
    %v982 = vunpack.c.h.b16 %v655
    %v983 = vunpack.c.l.b16 %v656
    %v984 = vunpack.c.h.b16 %v656
    %v985 = vunpack.c.l.b16 %v657
    %v986 = vunpack.c.h.b16 %v657
    %v987 = vunpack.c.l.b16 %v658
    %v988 = vunpack.c.h.b16 %v658
    %v989 = vunpack.c.l.b16 %v659
    %v990 = vunpack.c.h.b16 %v659
    %v991 = vunpack.c.l.b16 %v660
    %v992 = vunpack.c.h.b16 %v660
    %v993 = vunpack.c.l.b16 %v661
    %v994 = vunpack.c.h.b16 %v661
    %v995 = vunpack.c.l.b16 %v662
    %v996 = vunpack.c.h.b16 %v662
    %v997 = vunpack.c.l.b16 %v663
    %v998 = vunpack.c.h.b16 %v663
    %v999 = vunpack.c.l.b16 %v664
    %v1000 = vunpack.c.h.b16 %v664
    %v1001 = vunpack.c.l.b16 %v665
    %v1002 = vunpack.c.h.b16 %v665
    %v1003 = vunpack.c.l.b16 %v666
    %v1004 = vunpack.c.h.b16 %v666
    %v1005 = vunpack.c.l.b16 %v667
    %v1006 = vunpack.c.h.b16 %v667
    %v1007 = vunpack.c.l.b16 %v668
    %v1008 = vunpack.c.h.b16 %v668
    %v1009 = vunpack.c.l.b16 %v669
    %v1010 = vunpack.c.h.b16 %v669
    %v1011 = vunpack.c.l.b16 %v670
    %v1012 = vunpack.c.h.b16 %v670
    %v1013 = vunpack.c.l.b16 %v671
    %v1014 = vunpack.c.h.b16 %v671
    %v1015 = vunpack.c.l.b16 %v672
    %v1016 = vunpack.c.h.b16 %v672
    %v1017 = vunpack.c.l.b16 %v673
    %v1018 = vunpack.c.h.b16 %v673
    %v1019 = vunpack.c.l.b16 %v674
    %v1020 = vunpack.c.h.b16 %v674
    %v1021 = vunpack.c.l.b16 %v675
    %v1022 = vunpack.c.h.b16 %v675
    %v1023 = vunpack.c.l.b16 %v676
    %v1024 = vunpack.c.h.b16 %v676
    %v1025 = vunpack.c.l.b16 %v677
    %v1026 = vunpack.c.h.b16 %v677
    %v1027 = vunpack.c.l.b16 %v678
    %v1028 = vunpack.c.h.b16 %v678
    %v1029 = vunpack.c.l.b16 %v679
    %v1030 = vunpack.c.h.b16 %v679
    %v1031 = vunpack.c.l.b16 %v680
    %v1032 = vunpack.c.h.b16 %v680
    %v1033 = vunpack.c.l.b16 %v681
    %v1034 = vunpack.c.h.b16 %v681
    %v1035 = vunpack.c.l.b16 %v682
    %v1036 = vunpack.c.h.b16 %v682
    %v1037 = vunpack.c.l.b16 %v683
    %v1038 = vunpack.c.h.b16 %v683
    %v1039 = vunpack.c.l.b16 %v684
    %v1040 = vunpack.c.h.b16 %v684
    %v1041 = vunpack.c.l.b16 %v685
    %v1042 = vunpack.c.h.b16 %v685
    %v1043 = vunpack.c.l.b16 %v686
    %v1044 = vunpack.c.h.b16 %v686
    %v1045 = vunpack.c.l.b16 %v687
    %v1046 = vunpack.c.h.b16 %v687
    %v1047 = vunpack.c.l.b16 %v688
    %v1048 = vunpack.c.h.b16 %v688
    %v1049 = vunpack.c.l.b16 %v689
    %v1050 = vunpack.c.h.b16 %v689
    %v1051 = vunpack.c.l.b16 %v690
    %v1052 = vunpack.c.h.b16 %v690
    %v1053 = vunpack.c.l.b16 %v691
    %v1054 = vunpack.c.h.b16 %v691
    %v1055 = vunpack.c.l.b16 %v692
    %v1056 = vunpack.c.h.b16 %v692
    %v1057 = vunpack.c.l.b16 %v693
    %v1058 = vunpack.c.h.b16 %v693
    %v1059 = vunpack.c.l.b16 %v694
    %v1060 = vunpack.c.h.b16 %v694
    %v1061 = vunpack.c.l.b16 %v695
    %v1062 = vunpack.c.h.b16 %v695
    %v1063 = vunpack.c.l.b16 %v696
    %v1064 = vunpack.c.h.b16 %v696
    %v1065 = vunpack.c.l.b16 %v697
    %v1066 = vunpack.c.h.b16 %v697
    %v1067 = vunpack.c.l.b16 %v698
    %v1068 = vunpack.c.h.b16 %v698
    %v1069 = vunpack.c.l.b16 %v699
    %v1070 = vunpack.c.h.b16 %v699
    %v1071 = vunpack.c.l.b16 %v700
    %v1072 = vunpack.c.h.b16 %v700
    %v1073 = vunpack.c.l.b16 %v701
    %v1074 = vunpack.c.h.b16 %v701
    %v1075 = vunpack.c.l.b16 %v702
    %v1076 = vunpack.c.h.b16 %v702
    %v1077 = vunpack.c.l.b16 %v703
    %v1078 = vunpack.c.h.b16 %v703
    %v1079 = vunpack.c.l.b16 %v704
    %v1080 = vunpack.c.h.b16 %v704
    %v1081 = vunpack.c.l.b16 %v705
    %v1082 = vunpack.c.h.b16 %v705
    %v1083 = vunpack.c.l.b16 %v706
    %v1084 = vunpack.c.h.b16 %v706
    %v1085 = vunpack.c.l.b16 %v707
    %v1086 = vunpack.c.h.b16 %v707
    %v1087 = vunpack.c.l.b16 %v708
    %v1088 = vunpack.c.h.b16 %v708
    %v1089 = vunpack.c.l.b16 %v709
    %v1090 = vunpack.c.h.b16 %v709
    %v1091 = vunpack.c.l.b16 %v710
    %v1092 = vunpack.c.h.b16 %v710
    %v1093 = vunpack.c.l.b16 %v711
    %v1094 = vunpack.c.h.b16 %v711
    %v1095 = vunpack.c.l.b16 %v712
    %v1096 = vunpack.c.h.b16 %v712
    %v1097 = vunpack.c.l.b16 %v713
    %v1098 = vunpack.c.h.b16 %v713
    %v1099 = vunpack.c.l.b16 %v714
    %v1100 = vunpack.c.h.b16 %v714
    %v1101 = vunpack.c.l.b16 %v715
    %v1102 = vunpack.c.h.b16 %v715
    %v1103 = vunpack.c.l.b16 %v716
    %v1104 = vunpack.c.h.b16 %v716
    %v1105 = vunpack.c.l.b16 %v717
    %v1106 = vunpack.c.h.b16 %v717
    %v1107 = vunpack.c.l.b16 %v718
    %v1108 = vunpack.c.h.b16 %v718
    %v1109 = vunpack.c.l.b16 %v719
    %v1110 = vunpack.c.h.b16 %v719
    %v1111 = vunpack.c.l.b16 %v720
    %v1112 = vunpack.c.h.b16 %v720
    %v1113 = vunpack.c.l.b16 %v721
    %v1114 = vunpack.c.h.b16 %v721
    %v1115 = vunpack.c.l.b16 %v722
    %v1116 = vunpack.c.h.b16 %v722
    %v1117 = vunpack.c.l.b16 %v723
    %v1118 = vunpack.c.h.b16 %v723
    %v1119 = vunpack.c.l.b16 %v724
    %v1120 = vunpack.c.h.b16 %v724
    %v1121 = vunpack.c.l.b16 %v725
    %v1122 = vunpack.c.h.b16 %v725
    %v1123 = vunpack.c.l.b16 %v726
    %v1124 = vunpack.c.h.b16 %v726
    %v1125 = vunpack.c.l.b16 %v727
    %v1126 = vunpack.c.h.b16 %v727
    %v1127 = vunpack.c.l.b16 %v728
    %v1128 = vunpack.c.h.b16 %v728
    %v1129 = vunpack.c.l.b16 %v729
    %v1130 = vunpack.c.h.b16 %v729
    %v1131 = vunpack.c.l.b16 %v730
    %v1132 = vunpack.c.h.b16 %v730
    %v1133 = vunpack.c.l.b16 %v731
    %v1134 = vunpack.c.h.b16 %v731
    %v1135 = vunpack.c.l.b16 %v732
    %v1136 = vunpack.c.h.b16 %v732
    %v1137 = vunpack.c.l.b16 %v733
    %v1138 = vunpack.c.h.b16 %v733
    %v1139 = vunpack.c.l.b16 %v734
    %v1140 = vunpack.c.h.b16 %v734
    %v1141 = vpack.c.b16 %v889, %v885
    %v1142 = vpack.c.b16 %v890, %v886
    %v1143 = vpack.c.b16 %v891, %v887
    %v1144 = vpack.c.b16 %v892, %v888
    %v1145 = vpack.c.b16 %v897, %v893
    %v1146 = vpack.c.b16 %v898, %v894
    %v1147 = vpack.c.b16 %v899, %v895
    %v1148 = vpack.c.b16 %v900, %v896
    %v1149 = vpack.c.b16 %v905, %v901
    %v1150 = vpack.c.b16 %v906, %v902
    %v1151 = vpack.c.b16 %v907, %v903
    %v1152 = vpack.c.b16 %v908, %v904
    %v1153 = vpack.c.b16 %v913, %v909
    %v1154 = vpack.c.b16 %v914, %v910
    %v1155 = vpack.c.b16 %v915, %v911
    %v1156 = vpack.c.b16 %v916, %v912
    %v1157 = vpack.c.b16 %v921, %v917
    %v1158 = vpack.c.b16 %v922, %v918
    %v1159 = vpack.c.b16 %v923, %v919
    %v1160 = vpack.c.b16 %v924, %v920
    %v1161 = vpack.c.b16 %v929, %v925
    %v1162 = vpack.c.b16 %v930, %v926
    %v1163 = vpack.c.b16 %v931, %v927
    %v1164 = vpack.c.b16 %v932, %v928
    %v1165 = vpack.c.b16 %v937, %v933
    %v1166 = vpack.c.b16 %v938, %v934
    %v1167 = vpack.c.b16 %v939, %v935
    %v1168 = vpack.c.b16 %v940, %v936
    %v1169 = vpack.c.b16 %v945, %v941
    %v1170 = vpack.c.b16 %v946, %v942
    %v1171 = vpack.c.b16 %v947, %v943
    %v1172 = vpack.c.b16 %v948, %v944
    %v1173 = vpack.c.b16 %v953, %v949
    %v1174 = vpack.c.b16 %v954, %v950
    %v1175 = vpack.c.b16 %v955, %v951
    %v1176 = vpack.c.b16 %v956, %v952
    %v1177 = vpack.c.b16 %v961, %v957
    %v1178 = vpack.c.b16 %v962, %v958
    %v1179 = vpack.c.b16 %v963, %v959
    %v1180 = vpack.c.b16 %v964, %v960
    %v1181 = vpack.c.b16 %v969, %v965
    %v1182 = vpack.c.b16 %v970, %v966
    %v1183 = vpack.c.b16 %v971, %v967
    %v1184 = vpack.c.b16 %v972, %v968
    %v1185 = vpack.c.b16 %v977, %v973
    %v1186 = vpack.c.b16 %v978, %v974
    %v1187 = vpack.c.b16 %v979, %v975
    %v1188 = vpack.c.b16 %v980, %v976
    %v1189 = vpack.c.b16 %v985, %v981
    %v1190 = vpack.c.b16 %v986, %v982
    %v1191 = vpack.c.b16 %v987, %v983
    %v1192 = vpack.c.b16 %v988, %v984
    %v1193 = vpack.c.b16 %v993, %v989
    %v1194 = vpack.c.b16 %v994, %v990
    %v1195 = vpack.c.b16 %v995, %v991
    %v1196 = vpack.c.b16 %v996, %v992
    %v1197 = vpack.c.b16 %v1001, %v997
    %v1198 = vpack.c.b16 %v1002, %v998
    %v1199 = vpack.c.b16 %v1003, %v999
    %v1200 = vpack.c.b16 %v1004, %v1000
    %v1201 = vpack.c.b16 %v1009, %v1005
    %v1202 = vpack.c.b16 %v1010, %v1006
    %v1203 = vpack.c.b16 %v1011, %v1007
    %v1204 = vpack.c.b16 %v1012, %v1008
    %v1205 = vpack.c.b16 %v1017, %v1013
    %v1206 = vpack.c.b16 %v1018, %v1014
    %v1207 = vpack.c.b16 %v1019, %v1015
    %v1208 = vpack.c.b16 %v1020, %v1016
    %v1209 = vpack.c.b16 %v1025, %v1021
    %v1210 = vpack.c.b16 %v1026, %v1022
    %v1211 = vpack.c.b16 %v1027, %v1023
    %v1212 = vpack.c.b16 %v1028, %v1024
    %v1213 = vpack.c.b16 %v1033, %v1029
    %v1214 = vpack.c.b16 %v1034, %v1030
    %v1215 = vpack.c.b16 %v1035, %v1031
    %v1216 = vpack.c.b16 %v1036, %v1032
    %v1217 = vpack.c.b16 %v1041, %v1037
    %v1218 = vpack.c.b16 %v1042, %v1038
    %v1219 = vpack.c.b16 %v1043, %v1039
    %v1220 = vpack.c.b16 %v1044, %v1040
    %v1221 = vpack.c.b16 %v1049, %v1045
    %v1222 = vpack.c.b16 %v1050, %v1046
    %v1223 = vpack.c.b16 %v1051, %v1047
    %v1224 = vpack.c.b16 %v1052, %v1048
    %v1225 = vpack.c.b16 %v1057, %v1053
    %v1226 = vpack.c.b16 %v1058, %v1054
    %v1227 = vpack.c.b16 %v1059, %v1055
    %v1228 = vpack.c.b16 %v1060, %v1056
    %v1229 = vpack.c.b16 %v1065, %v1061
    %v1230 = vpack.c.b16 %v1066, %v1062
    %v1231 = vpack.c.b16 %v1067, %v1063
    %v1232 = vpack.c.b16 %v1068, %v1064
    %v1233 = vpack.c.b16 %v1073, %v1069
    %v1234 = vpack.c.b16 %v1074, %v1070
    %v1235 = vpack.c.b16 %v1075, %v1071
    %v1236 = vpack.c.b16 %v1076, %v1072
    %v1237 = vpack.c.b16 %v1081, %v1077
    %v1238 = vpack.c.b16 %v1082, %v1078
    %v1239 = vpack.c.b16 %v1083, %v1079
    %v1240 = vpack.c.b16 %v1084, %v1080
    %v1241 = vpack.c.b16 %v1089, %v1085
    %v1242 = vpack.c.b16 %v1090, %v1086
    %v1243 = vpack.c.b16 %v1091, %v1087
    %v1244 = vpack.c.b16 %v1092, %v1088
    %v1245 = vpack.c.b16 %v1097, %v1093
    %v1246 = vpack.c.b16 %v1098, %v1094
    %v1247 = vpack.c.b16 %v1099, %v1095
    %v1248 = vpack.c.b16 %v1100, %v1096
    %v1249 = vpack.c.b16 %v1105, %v1101
    %v1250 = vpack.c.b16 %v1106, %v1102
    %v1251 = vpack.c.b16 %v1107, %v1103
    %v1252 = vpack.c.b16 %v1108, %v1104
    %v1253 = vpack.c.b16 %v1113, %v1109
    %v1254 = vpack.c.b16 %v1114, %v1110
    %v1255 = vpack.c.b16 %v1115, %v1111
    %v1256 = vpack.c.b16 %v1116, %v1112
    %v1257 = vpack.c.b16 %v1121, %v1117
    %v1258 = vpack.c.b16 %v1122, %v1118
    %v1259 = vpack.c.b16 %v1123, %v1119
    %v1260 = vpack.c.b16 %v1124, %v1120
    %v1261 = vpack.c.b16 %v1129, %v1125
    %v1262 = vpack.c.b16 %v1130, %v1126
    %v1263 = vpack.c.b16 %v1131, %v1127
    %v1264 = vpack.c.b16 %v1132, %v1128
    %v1265 = vpack.c.b16 %v1137, %v1133
    %v1266 = vpack.c.b16 %v1138, %v1134
    %v1267 = vpack.c.b16 %v1139, %v1135
    %v1268 = vpack.c.b16 %v1140, %v1136
    %1397 = vmatprep.subr.bf16.mxu0 %v1170
    %1398 = vmatpush1.bf16.msra.mxu0 %v1169
    %1399 = vmatprep.subr.bf16.mxu0 %v1166
    %1400 = vmatpush1.bf16.msra.mxu0 %v1165
    %1401 = vmatprep.subr.bf16.mxu0 %v1162
    %1402 = vmatpush1.bf16.msra.mxu0 %v1161
    %1403 = vmatprep.subr.bf16.mxu0 %v1158
    %1404 = vmatpush1.bf16.msra.mxu0 %v1157
    %1405 = vmatprep.subr.bf16.mxu0 %v1154
    %1406 = vmatpush1.bf16.msra.mxu0 %v1153
    %1407 = vmatprep.subr.bf16.mxu0 %v1150
    %1408 = vmatpush1.bf16.msra.mxu0 %v1149
    %1409 = vmatprep.subr.bf16.mxu0 %v1146
    %1410 = vmatpush1.bf16.msra.mxu0 %v1145
    %1411 = vmatprep.subr.bf16.mxu0 %v1142
    %1412 = vmatpush1.bf16.msra.mxu0 %v1141
    %1413 = vmatprep.subr.bf16.mxu0 %v1202
    %1414 = vmatpush2.bf16.msra.mxu0 %v1201
    %1415 = vmatprep.subr.bf16.mxu0 %v1198
    %1416 = vmatpush2.bf16.msra.mxu0 %v1197
    %1417 = vmatprep.subr.bf16.mxu0 %v1194
    %1418 = vmatpush2.bf16.msra.mxu0 %v1193
    %1419 = vmatprep.subr.bf16.mxu0 %v1190
    %1420 = vmatpush2.bf16.msra.mxu0 %v1189
    %1421 = vmatprep.subr.bf16.mxu0 %v1186
    %1422 = vmatpush2.bf16.msra.mxu0 %v1185
    %1423 = vmatprep.subr.bf16.mxu0 %v1182
    %1424 = vmatpush2.bf16.msra.mxu0 %v1181
    %1425 = vmatprep.subr.bf16.mxu0 %v1178
    %1426 = vmatpush2.bf16.msra.mxu0 %v1177
    %1427 = vmatprep.subr.bf16.mxu0 %v1174
    %1428 = vmatpush2.bf16.msra.mxu0 %v1173
    %1429 = vmatprep.mubr.bf16.mxu0 %v604
    %1430 = vmatmul.mubr.bf16.gmra.mxu0 %v603
    %v1431 = vpop.f32.mrf.mxu0
    %v1432 = vadd.f32 %v740, %v1431
    %v1433 = vpop.f32.mrf.mxu0
    %v1434 = vadd.f32 %v744, %v1433
    %v1435 = vpop.f32.mrf.mxu0
    %v1436 = vpop.f32.mrf.mxu0
    %1437 = vdwg.mxu0
    %1438 = vmatprep.subr.bf16.mxu0 %v1234
    %1439 = vmatpush1.bf16.msra.mxu0 %v1233
    %1440 = vmatprep.subr.bf16.mxu0 %v1230
    %1441 = vmatpush1.bf16.msra.mxu0 %v1229
    %1442 = vmatprep.subr.bf16.mxu0 %v1226
    %1443 = vmatpush1.bf16.msra.mxu0 %v1225
    %1444 = vmatprep.subr.bf16.mxu0 %v1222
    %1445 = vmatpush1.bf16.msra.mxu0 %v1221
    %1446 = vmatprep.subr.bf16.mxu0 %v1218
    %1447 = vmatpush1.bf16.msra.mxu0 %v1217
    %1448 = vmatprep.subr.bf16.mxu0 %v1214
    %1449 = vmatpush1.bf16.msra.mxu0 %v1213
    %1450 = vmatprep.subr.bf16.mxu0 %v1210
    %1451 = vmatpush1.bf16.msra.mxu0 %v1209
    %1452 = vmatprep.subr.bf16.mxu0 %v1206
    %1453 = vmatpush1.bf16.msra.mxu0 %v1205
    %1454 = vmatprep.subr.bf16.mxu0 %v1266
    %1455 = vmatpush2.bf16.msra.mxu0 %v1265
    %1456 = vmatprep.subr.bf16.mxu0 %v1262
    %1457 = vmatpush2.bf16.msra.mxu0 %v1261
    %1458 = vmatprep.subr.bf16.mxu0 %v1258
    %1459 = vmatpush2.bf16.msra.mxu0 %v1257
    %1460 = vmatprep.subr.bf16.mxu0 %v1254
    %1461 = vmatpush2.bf16.msra.mxu0 %v1253
    %1462 = vmatprep.subr.bf16.mxu0 %v1250
    %1463 = vmatpush2.bf16.msra.mxu0 %v1249
    %1464 = vmatprep.subr.bf16.mxu0 %v1246
    %1465 = vmatpush2.bf16.msra.mxu0 %v1245
    %1466 = vmatprep.subr.bf16.mxu0 %v1242
    %1467 = vmatpush2.bf16.msra.mxu0 %v1241
    %1468 = vmatprep.subr.bf16.mxu0 %v1238
    %1469 = vmatpush2.bf16.msra.mxu0 %v1237
    %1470 = vmatprep.mubr.bf16.mxu0 %v606
    %1471 = vmatmul.mubr.bf16.gmra.mxu0 %v605
    %v1472 = vpop.f32.mrf.mxu0
    %v1473 = vadd.f32 %v1432, %v1472
    %v1474 = vpop.f32.mrf.mxu0
    %v1475 = vadd.f32 %v1434, %v1474
    %v1476 = vpop.f32.mrf.mxu0
    %v1477 = vpop.f32.mrf.mxu0
    %1478 = vdwg.mxu0
    %1479 = vmatprep.subr.bf16.mxu0 %v1172
    %1480 = vmatpush1.bf16.msra.mxu0 %v1171
    %1481 = vmatprep.subr.bf16.mxu0 %v1168
    %1482 = vmatpush1.bf16.msra.mxu0 %v1167
    %1483 = vmatprep.subr.bf16.mxu0 %v1164
    %1484 = vmatpush1.bf16.msra.mxu0 %v1163
    %1485 = vmatprep.subr.bf16.mxu0 %v1160
    %1486 = vmatpush1.bf16.msra.mxu0 %v1159
    %1487 = vmatprep.subr.bf16.mxu0 %v1156
    %1488 = vmatpush1.bf16.msra.mxu0 %v1155
    %1489 = vmatprep.subr.bf16.mxu0 %v1152
    %1490 = vmatpush1.bf16.msra.mxu0 %v1151
    %1491 = vmatprep.subr.bf16.mxu0 %v1148
    %1492 = vmatpush1.bf16.msra.mxu0 %v1147
    %1493 = vmatprep.subr.bf16.mxu0 %v1144
    %1494 = vmatpush1.bf16.msra.mxu0 %v1143
    %1495 = vmatprep.subr.bf16.mxu0 %v1204
    %1496 = vmatpush2.bf16.msra.mxu0 %v1203
    %1497 = vmatprep.subr.bf16.mxu0 %v1200
    %1498 = vmatpush2.bf16.msra.mxu0 %v1199
    %1499 = vmatprep.subr.bf16.mxu0 %v1196
    %1500 = vmatpush2.bf16.msra.mxu0 %v1195
    %1501 = vmatprep.subr.bf16.mxu0 %v1192
    %1502 = vmatpush2.bf16.msra.mxu0 %v1191
    %1503 = vmatprep.subr.bf16.mxu0 %v1188
    %1504 = vmatpush2.bf16.msra.mxu0 %v1187
    %1505 = vmatprep.subr.bf16.mxu0 %v1184
    %1506 = vmatpush2.bf16.msra.mxu0 %v1183
    %1507 = vmatprep.subr.bf16.mxu0 %v1180
    %1508 = vmatpush2.bf16.msra.mxu0 %v1179
    %1509 = vmatprep.subr.bf16.mxu0 %v1176
    %1510 = vmatpush2.bf16.msra.mxu0 %v1175
    %1511 = vmatprep.mubr.bf16.mxu0 %v604
    %1512 = vmatmul.mubr.bf16.gmra.mxu0 %v603
    %v1513 = vpop.f32.mrf.mxu0
    %v1514 = vadd.f32 %v748, %v1513
    %v1515 = vpop.f32.mrf.mxu0
    %v1516 = vadd.f32 %v752, %v1515
    %v1517 = vpop.f32.mrf.mxu0
    %v1518 = vpop.f32.mrf.mxu0
    %1519 = vdwg.mxu0
    %1520 = vmatprep.subr.bf16.mxu0 %v1236
    %1521 = vmatpush1.bf16.msra.mxu0 %v1235
    %1522 = vmatprep.subr.bf16.mxu0 %v1232
    %1523 = vmatpush1.bf16.msra.mxu0 %v1231
    %1524 = vmatprep.subr.bf16.mxu0 %v1228
    %1525 = vmatpush1.bf16.msra.mxu0 %v1227
    %1526 = vmatprep.subr.bf16.mxu0 %v1224
    %1527 = vmatpush1.bf16.msra.mxu0 %v1223
    %1528 = vmatprep.subr.bf16.mxu0 %v1220
    %1529 = vmatpush1.bf16.msra.mxu0 %v1219
    %1530 = vmatprep.subr.bf16.mxu0 %v1216
    %1531 = vmatpush1.bf16.msra.mxu0 %v1215
    %1532 = vmatprep.subr.bf16.mxu0 %v1212
    %1533 = vmatpush1.bf16.msra.mxu0 %v1211
    %1534 = vmatprep.subr.bf16.mxu0 %v1208
    %1535 = vmatpush1.bf16.msra.mxu0 %v1207
    %1536 = vmatprep.subr.bf16.mxu0 %v1268
    %1537 = vmatpush2.bf16.msra.mxu0 %v1267
    %1538 = vmatprep.subr.bf16.mxu0 %v1264
    %1539 = vmatpush2.bf16.msra.mxu0 %v1263
    %1540 = vmatprep.subr.bf16.mxu0 %v1260
    %1541 = vmatpush2.bf16.msra.mxu0 %v1259
    %1542 = vmatprep.subr.bf16.mxu0 %v1256
    %1543 = vmatpush2.bf16.msra.mxu0 %v1255
    %1544 = vmatprep.subr.bf16.mxu0 %v1252
    %1545 = vmatpush2.bf16.msra.mxu0 %v1251
    %1546 = vmatprep.subr.bf16.mxu0 %v1248
    %1547 = vmatpush2.bf16.msra.mxu0 %v1247
    %1548 = vmatprep.subr.bf16.mxu0 %v1244
    %1549 = vmatpush2.bf16.msra.mxu0 %v1243
    %1550 = vmatprep.subr.bf16.mxu0 %v1240
    %1551 = vmatpush2.bf16.msra.mxu0 %v1239
    %1552 = vmatprep.mubr.bf16.mxu0 %v606
    %1553 = vmatmul.mubr.bf16.gmra.mxu0 %v605
    %v1554 = vpop.f32.mrf.mxu0
    %v1555 = vadd.f32 %v1514, %v1554
    %v1556 = vpop.f32.mrf.mxu0
    %v1557 = vadd.f32 %v1516, %v1556
    %v1558 = vpop.f32.mrf.mxu0
    %v1559 = vpop.f32.mrf.mxu0
    %1560 = vdwg.mxu0
    %v1561 = vpack.c.bf16 %v1473, %v1473
    %v1562 = vpack.c.bf16 %v1475, %v1475
    %v1563 = vpack.c.bf16 %v1555, %v1555
    %v1564 = vpack.c.bf16 %v1557, %v1557
    %v1565 = vld [vmem:[#allocation9] sm:$0xff]
    %v1566 = vld [vmem:[#allocation9 + $0x8] sm:$0xff]
    %v1567 = vld [vmem:[#allocation9 + $0x10] sm:$0xff]
    %v1568 = vld [vmem:[#allocation9 + $0x18] sm:$0xff]
    %v1569 = vld [vmem:[#allocation9 + $0x20] sm:$0xff]
    %v1570 = vld [vmem:[#allocation9 + $0x28] sm:$0xff]
    %v1571 = vld [vmem:[#allocation9 + $0x30] sm:$0xff]
    %v1572 = vld [vmem:[#allocation9 + $0x38] sm:$0xff]
    %v1573 = vld [vmem:[#allocation9 + $0x40] sm:$0xff]
    %v1574 = vld [vmem:[#allocation9 + $0x48] sm:$0xff]
    %v1575 = vld [vmem:[#allocation9 + $0x50] sm:$0xff]
    %v1576 = vld [vmem:[#allocation9 + $0x58] sm:$0xff]
    %v1577 = vld [vmem:[#allocation9 + $0x60] sm:$0xff]
    %v1578 = vld [vmem:[#allocation9 + $0x68] sm:$0xff]
    %v1579 = vld [vmem:[#allocation9 + $0x70] sm:$0xf]
    %v1580 = vld [vmem:[#allocation9 + $0x74] sm:$0xff]
    %v1581 = vld [vmem:[#allocation9 + $0x7c] sm:$0xff]
    %v1582 = vld [vmem:[#allocation9 + $0x84] sm:$0xff]
    %v1583 = vld [vmem:[#allocation9 + $0x8c] sm:$0xff]
    %v1584 = vld [vmem:[#allocation9 + $0x94] sm:$0xff]
    %v1585 = vld [vmem:[#allocation9 + $0x9c] sm:$0xff]
    %v1586 = vld [vmem:[#allocation9 + $0xa4] sm:$0xff]
    %v1587 = vld [vmem:[#allocation9 + $0xac] sm:$0xff]
    %v1588 = vld [vmem:[#allocation9 + $0xb4] sm:$0xff]
    %v1589 = vld [vmem:[#allocation9 + $0xbc] sm:$0xff]
    %v1590 = vld [vmem:[#allocation9 + $0xc4] sm:$0xff]
    %v1591 = vld [vmem:[#allocation9 + $0xcc] sm:$0xff]
    %v1592 = vld [vmem:[#allocation9 + $0xd4] sm:$0xff]
    %v1593 = vld [vmem:[#allocation9 + $0xdc] sm:$0xff]
    %v1594 = vld [vmem:[#allocation9 + $0xe4] sm:$0xf]
    %v1595 = vld [vmem:[#allocation9 + $0xe8] sm:$0xff]
    %v1596 = vld [vmem:[#allocation9 + $0xf0] sm:$0xff]
    %v1597 = vld [vmem:[#allocation9 + $0xf8] sm:$0xff]
    %v1598 = vld [vmem:[#allocation9 + $0x100] sm:$0xff]
    %v1599 = vld [vmem:[#allocation9 + $0x108] sm:$0xff]
    %v1600 = vld [vmem:[#allocation9 + $0x110] sm:$0xff]
    %v1601 = vld [vmem:[#allocation9 + $0x118] sm:$0xff]
    %v1602 = vld [vmem:[#allocation9 + $0x120] sm:$0xff]
    %v1603 = vld [vmem:[#allocation9 + $0x128] sm:$0xff]
    %v1604 = vld [vmem:[#allocation9 + $0x130] sm:$0xff]
    %v1605 = vld [vmem:[#allocation9 + $0x138] sm:$0xff]
    %v1606 = vld [vmem:[#allocation9 + $0x140] sm:$0xff]
    %v1607 = vld [vmem:[#allocation9 + $0x148] sm:$0xff]
    %v1608 = vld [vmem:[#allocation9 + $0x150] sm:$0xff]
    %v1609 = vld [vmem:[#allocation9 + $0x158] sm:$0xf]
    %v1610 = vld [vmem:[#allocation9 + $0x15c] sm:$0xff]
    %v1611 = vld [vmem:[#allocation9 + $0x164] sm:$0xff]
    %v1612 = vld [vmem:[#allocation9 + $0x16c] sm:$0xff]
    %v1613 = vld [vmem:[#allocation9 + $0x174] sm:$0xff]
    %v1614 = vld [vmem:[#allocation9 + $0x17c] sm:$0xff]
    %v1615 = vld [vmem:[#allocation9 + $0x184] sm:$0xff]
    %v1616 = vld [vmem:[#allocation9 + $0x18c] sm:$0xff]
    %v1617 = vld [vmem:[#allocation9 + $0x194] sm:$0xff]
    %v1618 = vld [vmem:[#allocation9 + $0x19c] sm:$0xff]
    %v1619 = vld [vmem:[#allocation9 + $0x1a4] sm:$0xff]
    %v1620 = vld [vmem:[#allocation9 + $0x1ac] sm:$0xff]
    %v1621 = vld [vmem:[#allocation9 + $0x1b4] sm:$0xff]
    %v1622 = vld [vmem:[#allocation9 + $0x1bc] sm:$0xff]
    %v1623 = vld [vmem:[#allocation9 + $0x1c4] sm:$0xff]
    %v1624 = vld [vmem:[#allocation9 + $0x1cc] sm:$0xf]
    %v1625 = vld [vmem:[#allocation9 + $0x1d0] sm:$0xff]
    %v1626 = vld [vmem:[#allocation9 + $0x1d8] sm:$0xff]
    %v1627 = vld [vmem:[#allocation9 + $0x1e0] sm:$0xff]
    %v1628 = vld [vmem:[#allocation9 + $0x1e8] sm:$0xff]
    %v1629 = vld [vmem:[#allocation9 + $0x1f0] sm:$0xff]
    %v1630 = vld [vmem:[#allocation9 + $0x1f8] sm:$0xff]
    %v1631 = vld [vmem:[#allocation9 + $0x200] sm:$0xff]
    %v1632 = vld [vmem:[#allocation9 + $0x208] sm:$0xff]
    %v1633 = vld [vmem:[#allocation9 + $0x210] sm:$0xff]
    %v1634 = vld [vmem:[#allocation9 + $0x218] sm:$0xff]
    %v1635 = vld [vmem:[#allocation9 + $0x220] sm:$0xff]
    %v1636 = vld [vmem:[#allocation9 + $0x228] sm:$0xff]
    %v1637 = vld [vmem:[#allocation9 + $0x230] sm:$0xff]
    %v1638 = vld [vmem:[#allocation9 + $0x238] sm:$0xff]
    %v1639 = vld [vmem:[#allocation9 + $0x240] sm:$0xf]
    %v1640 = vld [vmem:[#allocation9 + $0x244] sm:$0xff]
    %v1641 = vld [vmem:[#allocation9 + $0x24c] sm:$0xff]
    %v1642 = vld [vmem:[#allocation9 + $0x254] sm:$0xff]
    %v1643 = vld [vmem:[#allocation9 + $0x25c] sm:$0xff]
    %v1644 = vld [vmem:[#allocation9 + $0x264] sm:$0xff]
    %v1645 = vld [vmem:[#allocation9 + $0x26c] sm:$0xff]
    %v1646 = vld [vmem:[#allocation9 + $0x274] sm:$0xff]
    %v1647 = vld [vmem:[#allocation9 + $0x27c] sm:$0xff]
    %v1648 = vld [vmem:[#allocation9 + $0x284] sm:$0xff]
    %v1649 = vld [vmem:[#allocation9 + $0x28c] sm:$0xff]
    %v1650 = vld [vmem:[#allocation9 + $0x294] sm:$0xff]
    %v1651 = vld [vmem:[#allocation9 + $0x29c] sm:$0xff]
    %v1652 = vld [vmem:[#allocation9 + $0x2a4] sm:$0xff]
    %v1653 = vld [vmem:[#allocation9 + $0x2ac] sm:$0xff]
    %v1654 = vld [vmem:[#allocation9 + $0x2b4] sm:$0xf]
    %v1655 = vld [vmem:[#allocation9 + $0x2b8] sm:$0xff]
    %v1656 = vld [vmem:[#allocation9 + $0x2c0] sm:$0xff]
    %v1657 = vld [vmem:[#allocation9 + $0x2c8] sm:$0xff]
    %v1658 = vld [vmem:[#allocation9 + $0x2d0] sm:$0xff]
    %v1659 = vld [vmem:[#allocation9 + $0x2d8] sm:$0xff]
    %v1660 = vld [vmem:[#allocation9 + $0x2e0] sm:$0xff]
    %v1661 = vld [vmem:[#allocation9 + $0x2e8] sm:$0xff]
    %v1662 = vld [vmem:[#allocation9 + $0x2f0] sm:$0xff]
    %v1663 = vld [vmem:[#allocation9 + $0x2f8] sm:$0xff]
    %v1664 = vld [vmem:[#allocation9 + $0x300] sm:$0xff]
    %v1665 = vld [vmem:[#allocation9 + $0x308] sm:$0xff]
    %v1666 = vld [vmem:[#allocation9 + $0x310] sm:$0xff]
    %v1667 = vld [vmem:[#allocation9 + $0x318] sm:$0xff]
    %v1668 = vld [vmem:[#allocation9 + $0x320] sm:$0xff]
    %v1669 = vld [vmem:[#allocation9 + $0x328] sm:$0xf]
    %v1670 = vld [vmem:[#allocation9 + $0x32c] sm:$0xff]
    %v1671 = vld [vmem:[#allocation9 + $0x334] sm:$0xff]
    %v1672 = vld [vmem:[#allocation9 + $0x33c] sm:$0xff]
    %v1673 = vld [vmem:[#allocation9 + $0x344] sm:$0xff]
    %v1674 = vld [vmem:[#allocation9 + $0x34c] sm:$0xff]
    %v1675 = vld [vmem:[#allocation9 + $0x354] sm:$0xff]
    %v1676 = vld [vmem:[#allocation9 + $0x35c] sm:$0xff]
    %v1677 = vld [vmem:[#allocation9 + $0x364] sm:$0xff]
    %v1678 = vld [vmem:[#allocation9 + $0x36c] sm:$0xff]
    %v1679 = vld [vmem:[#allocation9 + $0x374] sm:$0xff]
    %v1680 = vld [vmem:[#allocation9 + $0x37c] sm:$0xff]
    %v1681 = vld [vmem:[#allocation9 + $0x384] sm:$0xff]
    %v1682 = vld [vmem:[#allocation9 + $0x38c] sm:$0xff]
    %v1683 = vld [vmem:[#allocation9 + $0x394] sm:$0xff]
    %v1684 = vld [vmem:[#allocation9 + $0x39c] sm:$0xf]
    %v1685 = vld [vmem:[#allocation9 + $0x3a0] sm:$0xff]
    %v1686 = vld [vmem:[#allocation9 + $0x3a8] sm:$0xff]
    %v1687 = vld [vmem:[#allocation9 + $0x3b0] sm:$0xff]
    %v1688 = vld [vmem:[#allocation9 + $0x3b8] sm:$0xff]
    %v1689 = vld [vmem:[#allocation9 + $0x3c0] sm:$0xff]
    %v1690 = vld [vmem:[#allocation9 + $0x3c8] sm:$0xff]
    %v1691 = vld [vmem:[#allocation9 + $0x3d0] sm:$0xff]
    %v1692 = vld [vmem:[#allocation9 + $0x3d8] sm:$0xff]
    %v1693 = vld [vmem:[#allocation9 + $0x3e0] sm:$0xff]
    %v1694 = vld [vmem:[#allocation9 + $0x3e8] sm:$0xff]
    %v1695 = vld [vmem:[#allocation9 + $0x3f0] sm:$0xff]
    %v1696 = vld [vmem:[#allocation9 + $0x3f8] sm:$0xff]
    %v1697 = vld [vmem:[#allocation9 + $0x400] sm:$0xff]
    %v1698 = vld [vmem:[#allocation9 + $0x408] sm:$0xff]
    %v1699 = vld [vmem:[#allocation9 + $0x410] sm:$0xf]
    %v1700 = vld [vmem:[#allocation9 + $0x414] sm:$0xff]
    %v1701 = vld [vmem:[#allocation9 + $0x41c] sm:$0xff]
    %v1702 = vld [vmem:[#allocation9 + $0x424] sm:$0xff]
    %v1703 = vld [vmem:[#allocation9 + $0x42c] sm:$0xff]
    %v1704 = vld [vmem:[#allocation9 + $0x434] sm:$0xff]
    %v1705 = vld [vmem:[#allocation9 + $0x43c] sm:$0xff]
    %v1706 = vld [vmem:[#allocation9 + $0x444] sm:$0xff]
    %v1707 = vld [vmem:[#allocation9 + $0x44c] sm:$0xff]
    %v1708 = vld [vmem:[#allocation9 + $0x454] sm:$0xff]
    %v1709 = vld [vmem:[#allocation9 + $0x45c] sm:$0xff]
    %v1710 = vld [vmem:[#allocation9 + $0x464] sm:$0xff]
    %v1711 = vld [vmem:[#allocation9 + $0x46c] sm:$0xff]
    %v1712 = vld [vmem:[#allocation9 + $0x474] sm:$0xff]
    %v1713 = vld [vmem:[#allocation9 + $0x47c] sm:$0xff]
    %v1714 = vld [vmem:[#allocation9 + $0x484] sm:$0xf]
    %v1715 = vld [vmem:[#allocation9 + $0x488] sm:$0xff]
    %v1716 = vld [vmem:[#allocation9 + $0x490] sm:$0xff]
    %v1717 = vld [vmem:[#allocation9 + $0x498] sm:$0xff]
    %v1718 = vld [vmem:[#allocation9 + $0x4a0] sm:$0xff]
    %v1719 = vld [vmem:[#allocation9 + $0x4a8] sm:$0xff]
    %v1720 = vld [vmem:[#allocation9 + $0x4b0] sm:$0xff]
    %v1721 = vld [vmem:[#allocation9 + $0x4b8] sm:$0xff]
    %v1722 = vld [vmem:[#allocation9 + $0x4c0] sm:$0xff]
    %v1723 = vld [vmem:[#allocation9 + $0x4c8] sm:$0xff]
    %v1724 = vld [vmem:[#allocation9 + $0x4d0] sm:$0xff]
    %v1725 = vld [vmem:[#allocation9 + $0x4d8] sm:$0xff]
    %v1726 = vld [vmem:[#allocation9 + $0x4e0] sm:$0xff]
    %v1727 = vld [vmem:[#allocation9 + $0x4e8] sm:$0xff]
    %v1728 = vld [vmem:[#allocation9 + $0x4f0] sm:$0xff]
    %v1729 = vld [vmem:[#allocation9 + $0x4f8] sm:$0xf]
    %v1730 = vld [vmem:[#allocation9 + $0x4fc] sm:$0xff]
    %v1731 = vld [vmem:[#allocation9 + $0x504] sm:$0xff]
    %v1732 = vld [vmem:[#allocation9 + $0x50c] sm:$0xff]
    %v1733 = vld [vmem:[#allocation9 + $0x514] sm:$0xff]
    %v1734 = vld [vmem:[#allocation9 + $0x51c] sm:$0xff]
    %v1735 = vld [vmem:[#allocation9 + $0x524] sm:$0xff]
    %v1736 = vld [vmem:[#allocation9 + $0x52c] sm:$0xff]
    %v1737 = vld [vmem:[#allocation9 + $0x534] sm:$0xff]
    %v1738 = vld [vmem:[#allocation9 + $0x53c] sm:$0xff]
    %v1739 = vld [vmem:[#allocation9 + $0x544] sm:$0xff]
    %v1740 = vld [vmem:[#allocation9 + $0x54c] sm:$0xff]
    %v1741 = vld [vmem:[#allocation9 + $0x554] sm:$0xff]
    %v1742 = vld [vmem:[#allocation9 + $0x55c] sm:$0xff]
    %v1743 = vld [vmem:[#allocation9 + $0x564] sm:$0xff]
    %v1744 = vld [vmem:[#allocation9 + $0x56c] sm:$0xf]
    %v1745 = vld [vmem:[#allocation9 + $0x570] sm:$0xff]
    %v1746 = vld [vmem:[#allocation9 + $0x578] sm:$0xff]
    %v1747 = vld [vmem:[#allocation9 + $0x580] sm:$0xff]
    %v1748 = vld [vmem:[#allocation9 + $0x588] sm:$0xff]
    %v1749 = vld [vmem:[#allocation9 + $0x590] sm:$0xff]
    %v1750 = vld [vmem:[#allocation9 + $0x598] sm:$0xff]
    %v1751 = vld [vmem:[#allocation9 + $0x5a0] sm:$0xff]
    %v1752 = vld [vmem:[#allocation9 + $0x5a8] sm:$0xff]
    %v1753 = vld [vmem:[#allocation9 + $0x5b0] sm:$0xff]
    %v1754 = vld [vmem:[#allocation9 + $0x5b8] sm:$0xff]
    %v1755 = vld [vmem:[#allocation9 + $0x5c0] sm:$0xff]
    %v1756 = vld [vmem:[#allocation9 + $0x5c8] sm:$0xff]
    %v1757 = vld [vmem:[#allocation9 + $0x5d0] sm:$0xff]
    %v1758 = vld [vmem:[#allocation9 + $0x5d8] sm:$0xff]
    %v1759 = vld [vmem:[#allocation9 + $0x5e0] sm:$0xf]
    %v1760 = vld [vmem:[#allocation9 + $0x5e4] sm:$0xff]
    %v1761 = vld [vmem:[#allocation9 + $0x5ec] sm:$0xff]
    %v1762 = vld [vmem:[#allocation9 + $0x5f4] sm:$0xff]
    %v1763 = vld [vmem:[#allocation9 + $0x5fc] sm:$0xff]
    %v1764 = vld [vmem:[#allocation9 + $0x604] sm:$0xff]
    %v1765 = vld [vmem:[#allocation9 + $0x60c] sm:$0xff]
    %v1766 = vld [vmem:[#allocation9 + $0x614] sm:$0xff]
    %v1767 = vld [vmem:[#allocation9 + $0x61c] sm:$0xff]
    %v1768 = vld [vmem:[#allocation9 + $0x624] sm:$0xff]
    %v1769 = vld [vmem:[#allocation9 + $0x62c] sm:$0xff]
    %v1770 = vld [vmem:[#allocation9 + $0x634] sm:$0xff]
    %v1771 = vld [vmem:[#allocation9 + $0x63c] sm:$0xff]
    %v1772 = vld [vmem:[#allocation9 + $0x644] sm:$0xff]
    %v1773 = vld [vmem:[#allocation9 + $0x64c] sm:$0xff]
    %v1774 = vld [vmem:[#allocation9 + $0x654] sm:$0xf]
    %v1775 = vld [vmem:[#allocation9 + $0x658] sm:$0xff]
    %v1776 = vld [vmem:[#allocation9 + $0x660] sm:$0xff]
    %v1777 = vld [vmem:[#allocation9 + $0x668] sm:$0xff]
    %v1778 = vld [vmem:[#allocation9 + $0x670] sm:$0xff]
    %v1779 = vld [vmem:[#allocation9 + $0x678] sm:$0xff]
    %v1780 = vld [vmem:[#allocation9 + $0x680] sm:$0xff]
    %v1781 = vld [vmem:[#allocation9 + $0x688] sm:$0xff]
    %v1782 = vld [vmem:[#allocation9 + $0x690] sm:$0xff]
    %v1783 = vld [vmem:[#allocation9 + $0x698] sm:$0xff]
    %v1784 = vld [vmem:[#allocation9 + $0x6a0] sm:$0xff]
    %v1785 = vld [vmem:[#allocation9 + $0x6a8] sm:$0xff]
    %v1786 = vld [vmem:[#allocation9 + $0x6b0] sm:$0xff]
    %v1787 = vld [vmem:[#allocation9 + $0x6b8] sm:$0xff]
    %v1788 = vld [vmem:[#allocation9 + $0x6c0] sm:$0xff]
    %v1789 = vld [vmem:[#allocation9 + $0x6c8] sm:$0xf]
    %v1790 = vld [vmem:[#allocation9 + $0x6cc] sm:$0xff]
    %v1791 = vld [vmem:[#allocation9 + $0x6d4] sm:$0xff]
    %v1792 = vld [vmem:[#allocation9 + $0x6dc] sm:$0xff]
    %v1793 = vld [vmem:[#allocation9 + $0x6e4] sm:$0xff]
    %v1794 = vld [vmem:[#allocation9 + $0x6ec] sm:$0xff]
    %v1795 = vld [vmem:[#allocation9 + $0x6f4] sm:$0xff]
    %v1796 = vld [vmem:[#allocation9 + $0x6fc] sm:$0xff]
    %v1797 = vld [vmem:[#allocation9 + $0x704] sm:$0xff]
    %v1798 = vld [vmem:[#allocation9 + $0x70c] sm:$0xff]
    %v1799 = vld [vmem:[#allocation9 + $0x714] sm:$0xff]
    %v1800 = vld [vmem:[#allocation9 + $0x71c] sm:$0xff]
    %v1801 = vld [vmem:[#allocation9 + $0x724] sm:$0xff]
    %v1802 = vld [vmem:[#allocation9 + $0x72c] sm:$0xff]
    %v1803 = vld [vmem:[#allocation9 + $0x734] sm:$0xff]
    %v1804 = vld [vmem:[#allocation9 + $0x73c] sm:$0xf]
    %v1805 = vld [vmem:[#allocation9 + $0x740] sm:$0xff]
    %v1806 = vld [vmem:[#allocation9 + $0x748] sm:$0xff]
    %v1807 = vld [vmem:[#allocation9 + $0x750] sm:$0xff]
    %v1808 = vld [vmem:[#allocation9 + $0x758] sm:$0xff]
    %v1809 = vld [vmem:[#allocation9 + $0x760] sm:$0xff]
    %v1810 = vld [vmem:[#allocation9 + $0x768] sm:$0xff]
    %v1811 = vld [vmem:[#allocation9 + $0x770] sm:$0xff]
    %v1812 = vld [vmem:[#allocation9 + $0x778] sm:$0xff]
    %v1813 = vld [vmem:[#allocation9 + $0x780] sm:$0xff]
    %v1814 = vld [vmem:[#allocation9 + $0x788] sm:$0xff]
    %v1815 = vld [vmem:[#allocation9 + $0x790] sm:$0xff]
    %v1816 = vld [vmem:[#allocation9 + $0x798] sm:$0xff]
    %v1817 = vld [vmem:[#allocation9 + $0x7a0] sm:$0xff]
    %v1818 = vld [vmem:[#allocation9 + $0x7a8] sm:$0xff]
    %v1819 = vld [vmem:[#allocation9 + $0x7b0] sm:$0xf]
    %v1820 = vld [vmem:[#allocation9 + $0x7b4] sm:$0xff]
    %v1821 = vld [vmem:[#allocation9 + $0x7bc] sm:$0xff]
    %v1822 = vld [vmem:[#allocation9 + $0x7c4] sm:$0xff]
    %v1823 = vld [vmem:[#allocation9 + $0x7cc] sm:$0xff]
    %v1824 = vld [vmem:[#allocation9 + $0x7d4] sm:$0xff]
    %v1825 = vld [vmem:[#allocation9 + $0x7dc] sm:$0xff]
    %v1826 = vld [vmem:[#allocation9 + $0x7e4] sm:$0xff]
    %v1827 = vld [vmem:[#allocation9 + $0x7ec] sm:$0xff]
    %v1828 = vld [vmem:[#allocation9 + $0x7f4] sm:$0xff]
    %v1829 = vld [vmem:[#allocation9 + $0x7fc] sm:$0xff]
    %v1830 = vld [vmem:[#allocation9 + $0x804] sm:$0xff]
    %v1831 = vld [vmem:[#allocation9 + $0x80c] sm:$0xff]
    %v1832 = vld [vmem:[#allocation9 + $0x814] sm:$0xff]
    %v1833 = vld [vmem:[#allocation9 + $0x81c] sm:$0xff]
    %v1834 = vld [vmem:[#allocation9 + $0x824] sm:$0xf]
    %v1835 = vld [vmem:[#allocation9 + $0x828] sm:$0xff]
    %v1836 = vld [vmem:[#allocation9 + $0x830] sm:$0xff]
    %v1837 = vld [vmem:[#allocation9 + $0x838] sm:$0xff]
    %v1838 = vld [vmem:[#allocation9 + $0x840] sm:$0xff]
    %v1839 = vld [vmem:[#allocation9 + $0x848] sm:$0xff]
    %v1840 = vld [vmem:[#allocation9 + $0x850] sm:$0xff]
    %v1841 = vld [vmem:[#allocation9 + $0x858] sm:$0xff]
    %v1842 = vld [vmem:[#allocation9 + $0x860] sm:$0xff]
    %v1843 = vld [vmem:[#allocation9 + $0x868] sm:$0xff]
    %v1844 = vld [vmem:[#allocation9 + $0x870] sm:$0xff]
    %v1845 = vld [vmem:[#allocation9 + $0x878] sm:$0xff]
    %v1846 = vld [vmem:[#allocation9 + $0x880] sm:$0xff]
    %v1847 = vld [vmem:[#allocation9 + $0x888] sm:$0xff]
    %v1848 = vld [vmem:[#allocation9 + $0x890] sm:$0xff]
    %v1849 = vld [vmem:[#allocation9 + $0x898] sm:$0xf]
    %v1850 = vld [vmem:[#allocation9 + $0x89c] sm:$0xff]
    %v1851 = vld [vmem:[#allocation9 + $0x8a4] sm:$0xff]
    %v1852 = vld [vmem:[#allocation9 + $0x8ac] sm:$0xff]
    %v1853 = vld [vmem:[#allocation9 + $0x8b4] sm:$0xff]
    %v1854 = vld [vmem:[#allocation9 + $0x8bc] sm:$0xff]
    %v1855 = vld [vmem:[#allocation9 + $0x8c4] sm:$0xff]
    %v1856 = vld [vmem:[#allocation9 + $0x8cc] sm:$0xff]
    %v1857 = vld [vmem:[#allocation9 + $0x8d4] sm:$0xff]
    %v1858 = vld [vmem:[#allocation9 + $0x8dc] sm:$0xff]
    %v1859 = vld [vmem:[#allocation9 + $0x8e4] sm:$0xff]
    %v1860 = vld [vmem:[#allocation9 + $0x8ec] sm:$0xff]
    %v1861 = vld [vmem:[#allocation9 + $0x8f4] sm:$0xff]
    %v1862 = vld [vmem:[#allocation9 + $0x8fc] sm:$0xff]
    %v1863 = vld [vmem:[#allocation9 + $0x904] sm:$0xff]
    %v1864 = vld [vmem:[#allocation9 + $0x90c] sm:$0xf]
    %v1865 = vld [vmem:[#allocation9 + $0x910] sm:$0xff]
    %v1866 = vld [vmem:[#allocation9 + $0x918] sm:$0xff]
    %v1867 = vld [vmem:[#allocation9 + $0x920] sm:$0xff]
    %v1868 = vld [vmem:[#allocation9 + $0x928] sm:$0xff]
    %v1869 = vld [vmem:[#allocation9 + $0x930] sm:$0xff]
    %v1870 = vld [vmem:[#allocation9 + $0x938] sm:$0xff]
    %v1871 = vld [vmem:[#allocation9 + $0x940] sm:$0xff]
    %v1872 = vld [vmem:[#allocation9 + $0x948] sm:$0xff]
    %v1873 = vld [vmem:[#allocation9 + $0x950] sm:$0xff]
    %v1874 = vld [vmem:[#allocation9 + $0x958] sm:$0xff]
    %v1875 = vld [vmem:[#allocation9 + $0x960] sm:$0xff]
    %v1876 = vld [vmem:[#allocation9 + $0x968] sm:$0xff]
    %v1877 = vld [vmem:[#allocation9 + $0x970] sm:$0xff]
    %v1878 = vld [vmem:[#allocation9 + $0x978] sm:$0xff]
    %v1879 = vld [vmem:[#allocation9 + $0x980] sm:$0xf]
    %v1880 = vld [vmem:[#allocation9 + $0x984] sm:$0xff]
    %v1881 = vld [vmem:[#allocation9 + $0x98c] sm:$0xff]
    %v1882 = vld [vmem:[#allocation9 + $0x994] sm:$0xff]
    %v1883 = vld [vmem:[#allocation9 + $0x99c] sm:$0xff]
    %v1884 = vld [vmem:[#allocation9 + $0x9a4] sm:$0xff]
    %v1885 = vld [vmem:[#allocation9 + $0x9ac] sm:$0xff]
    %v1886 = vld [vmem:[#allocation9 + $0x9b4] sm:$0xff]
    %v1887 = vld [vmem:[#allocation9 + $0x9bc] sm:$0xff]
    %v1888 = vld [vmem:[#allocation9 + $0x9c4] sm:$0xff]
    %v1889 = vld [vmem:[#allocation9 + $0x9cc] sm:$0xff]
    %v1890 = vld [vmem:[#allocation9 + $0x9d4] sm:$0xff]
    %v1891 = vld [vmem:[#allocation9 + $0x9dc] sm:$0xff]
    %v1892 = vld [vmem:[#allocation9 + $0x9e4] sm:$0xff]
    %v1893 = vld [vmem:[#allocation9 + $0x9ec] sm:$0xff]
    %v1894 = vld [vmem:[#allocation9 + $0x9f4] sm:$0xf]
    %v1895 = vld [vmem:[#allocation9 + $0x9f8] sm:$0xff]
    %v1896 = vld [vmem:[#allocation9 + $0xa00] sm:$0xff]
    %v1897 = vld [vmem:[#allocation9 + $0xa08] sm:$0xff]
    %v1898 = vld [vmem:[#allocation9 + $0xa10] sm:$0xff]
    %v1899 = vld [vmem:[#allocation9 + $0xa18] sm:$0xff]
    %v1900 = vld [vmem:[#allocation9 + $0xa20] sm:$0xff]
    %v1901 = vld [vmem:[#allocation9 + $0xa28] sm:$0xff]
    %v1902 = vld [vmem:[#allocation9 + $0xa30] sm:$0xff]
    %v1903 = vld [vmem:[#allocation9 + $0xa38] sm:$0xff]
    %v1904 = vld [vmem:[#allocation9 + $0xa40] sm:$0xff]
    %v1905 = vld [vmem:[#allocation9 + $0xa48] sm:$0xff]
    %v1906 = vld [vmem:[#allocation9 + $0xa50] sm:$0xff]
    %v1907 = vld [vmem:[#allocation9 + $0xa58] sm:$0xff]
    %v1908 = vld [vmem:[#allocation9 + $0xa60] sm:$0xff]
    %v1909 = vld [vmem:[#allocation9 + $0xa68] sm:$0xf]
    %v1910 = vld [vmem:[#allocation9 + $0xa6c] sm:$0xff]
    %v1911 = vld [vmem:[#allocation9 + $0xa74] sm:$0xff]
    %v1912 = vld [vmem:[#allocation9 + $0xa7c] sm:$0xff]
    %v1913 = vld [vmem:[#allocation9 + $0xa84] sm:$0xff]
    %v1914 = vld [vmem:[#allocation9 + $0xa8c] sm:$0xff]
    %v1915 = vld [vmem:[#allocation9 + $0xa94] sm:$0xff]
    %v1916 = vld [vmem:[#allocation9 + $0xa9c] sm:$0xff]
    %v1917 = vld [vmem:[#allocation9 + $0xaa4] sm:$0xff]
    %v1918 = vld [vmem:[#allocation9 + $0xaac] sm:$0xff]
    %v1919 = vld [vmem:[#allocation9 + $0xab4] sm:$0xff]
    %v1920 = vld [vmem:[#allocation9 + $0xabc] sm:$0xff]
    %v1921 = vld [vmem:[#allocation9 + $0xac4] sm:$0xff]
    %v1922 = vld [vmem:[#allocation9 + $0xacc] sm:$0xff]
    %v1923 = vld [vmem:[#allocation9 + $0xad4] sm:$0xff]
    %v1924 = vld [vmem:[#allocation9 + $0xadc] sm:$0xf]
    %v1925 = vld [vmem:[#allocation9 + $0xae0] sm:$0xff]
    %v1926 = vld [vmem:[#allocation9 + $0xae8] sm:$0xff]
    %v1927 = vld [vmem:[#allocation9 + $0xaf0] sm:$0xff]
    %v1928 = vld [vmem:[#allocation9 + $0xaf8] sm:$0xff]
    %v1929 = vld [vmem:[#allocation9 + $0xb00] sm:$0xff]
    %v1930 = vld [vmem:[#allocation9 + $0xb08] sm:$0xff]
    %v1931 = vld [vmem:[#allocation9 + $0xb10] sm:$0xff]
    %v1932 = vld [vmem:[#allocation9 + $0xb18] sm:$0xff]
    %v1933 = vld [vmem:[#allocation9 + $0xb20] sm:$0xff]
    %v1934 = vld [vmem:[#allocation9 + $0xb28] sm:$0xff]
    %v1935 = vld [vmem:[#allocation9 + $0xb30] sm:$0xff]
    %v1936 = vld [vmem:[#allocation9 + $0xb38] sm:$0xff]
    %v1937 = vld [vmem:[#allocation9 + $0xb40] sm:$0xff]
    %v1938 = vld [vmem:[#allocation9 + $0xb48] sm:$0xff]
    %v1939 = vld [vmem:[#allocation9 + $0xb50] sm:$0xf]
    %v1940 = vld [vmem:[#allocation9 + $0xb54] sm:$0xff]
    %v1941 = vld [vmem:[#allocation9 + $0xb5c] sm:$0xff]
    %v1942 = vld [vmem:[#allocation9 + $0xb64] sm:$0xff]
    %v1943 = vld [vmem:[#allocation9 + $0xb6c] sm:$0xff]
    %v1944 = vld [vmem:[#allocation9 + $0xb74] sm:$0xff]
    %v1945 = vld [vmem:[#allocation9 + $0xb7c] sm:$0xff]
    %v1946 = vld [vmem:[#allocation9 + $0xb84] sm:$0xff]
    %v1947 = vld [vmem:[#allocation9 + $0xb8c] sm:$0xff]
    %v1948 = vld [vmem:[#allocation9 + $0xb94] sm:$0xff]
    %v1949 = vld [vmem:[#allocation9 + $0xb9c] sm:$0xff]
    %v1950 = vld [vmem:[#allocation9 + $0xba4] sm:$0xff]
    %v1951 = vld [vmem:[#allocation9 + $0xbac] sm:$0xff]
    %v1952 = vld [vmem:[#allocation9 + $0xbb4] sm:$0xff]
    %v1953 = vld [vmem:[#allocation9 + $0xbbc] sm:$0xff]
    %v1954 = vld [vmem:[#allocation9 + $0xbc4] sm:$0xf]
    %v1955 = vld [vmem:[#allocation9 + $0xbc8] sm:$0xff]
    %v1956 = vld [vmem:[#allocation9 + $0xbd0] sm:$0xff]
    %v1957 = vld [vmem:[#allocation9 + $0xbd8] sm:$0xff]
    %v1958 = vld [vmem:[#allocation9 + $0xbe0] sm:$0xff]
    %v1959 = vld [vmem:[#allocation9 + $0xbe8] sm:$0xff]
    %v1960 = vld [vmem:[#allocation9 + $0xbf0] sm:$0xff]
    %v1961 = vld [vmem:[#allocation9 + $0xbf8] sm:$0xff]
    %v1962 = vld [vmem:[#allocation9 + $0xc00] sm:$0xff]
    %v1963 = vld [vmem:[#allocation9 + $0xc08] sm:$0xff]
    %v1964 = vld [vmem:[#allocation9 + $0xc10] sm:$0xff]
    %v1965 = vld [vmem:[#allocation9 + $0xc18] sm:$0xff]
    %v1966 = vld [vmem:[#allocation9 + $0xc20] sm:$0xff]
    %v1967 = vld [vmem:[#allocation9 + $0xc28] sm:$0xff]
    %v1968 = vld [vmem:[#allocation9 + $0xc30] sm:$0xff]
    %v1969 = vld [vmem:[#allocation9 + $0xc38] sm:$0xf]
    %v1970 = vld [vmem:[#allocation9 + $0xc3c] sm:$0xff]
    %v1971 = vld [vmem:[#allocation9 + $0xc44] sm:$0xff]
    %v1972 = vld [vmem:[#allocation9 + $0xc4c] sm:$0xff]
    %v1973 = vld [vmem:[#allocation9 + $0xc54] sm:$0xff]
    %v1974 = vld [vmem:[#allocation9 + $0xc5c] sm:$0xff]
    %v1975 = vld [vmem:[#allocation9 + $0xc64] sm:$0xff]
    %v1976 = vld [vmem:[#allocation9 + $0xc6c] sm:$0xff]
    %v1977 = vld [vmem:[#allocation9 + $0xc74] sm:$0xff]
    %v1978 = vld [vmem:[#allocation9 + $0xc7c] sm:$0xff]
    %v1979 = vld [vmem:[#allocation9 + $0xc84] sm:$0xff]
    %v1980 = vld [vmem:[#allocation9 + $0xc8c] sm:$0xff]
    %v1981 = vld [vmem:[#allocation9 + $0xc94] sm:$0xff]
    %v1982 = vld [vmem:[#allocation9 + $0xc9c] sm:$0xff]
    %v1983 = vld [vmem:[#allocation9 + $0xca4] sm:$0xff]
    %v1984 = vld [vmem:[#allocation9 + $0xcac] sm:$0xf]
    %v1985 = vld [vmem:[#allocation9 + $0xcb0] sm:$0xff]
    %v1986 = vld [vmem:[#allocation9 + $0xcb8] sm:$0xff]
    %v1987 = vld [vmem:[#allocation9 + $0xcc0] sm:$0xff]
    %v1988 = vld [vmem:[#allocation9 + $0xcc8] sm:$0xff]
    %v1989 = vld [vmem:[#allocation9 + $0xcd0] sm:$0xff]
    %v1990 = vld [vmem:[#allocation9 + $0xcd8] sm:$0xff]
    %v1991 = vld [vmem:[#allocation9 + $0xce0] sm:$0xff]
    %v1992 = vld [vmem:[#allocation9 + $0xce8] sm:$0xff]
    %v1993 = vld [vmem:[#allocation9 + $0xcf0] sm:$0xff]
    %v1994 = vld [vmem:[#allocation9 + $0xcf8] sm:$0xff]
    %v1995 = vld [vmem:[#allocation9 + $0xd00] sm:$0xff]
    %v1996 = vld [vmem:[#allocation9 + $0xd08] sm:$0xff]
    %v1997 = vld [vmem:[#allocation9 + $0xd10] sm:$0xff]
    %v1998 = vld [vmem:[#allocation9 + $0xd18] sm:$0xff]
    %v1999 = vld [vmem:[#allocation9 + $0xd20] sm:$0xf]
    %v2000 = vld [vmem:[#allocation9 + $0xd24] sm:$0xff]
    %v2001 = vld [vmem:[#allocation9 + $0xd2c] sm:$0xff]
    %v2002 = vld [vmem:[#allocation9 + $0xd34] sm:$0xff]
    %v2003 = vld [vmem:[#allocation9 + $0xd3c] sm:$0xff]
    %v2004 = vld [vmem:[#allocation9 + $0xd44] sm:$0xff]
    %v2005 = vld [vmem:[#allocation9 + $0xd4c] sm:$0xff]
    %v2006 = vld [vmem:[#allocation9 + $0xd54] sm:$0xff]
    %v2007 = vld [vmem:[#allocation9 + $0xd5c] sm:$0xff]
    %v2008 = vld [vmem:[#allocation9 + $0xd64] sm:$0xff]
    %v2009 = vld [vmem:[#allocation9 + $0xd6c] sm:$0xff]
    %v2010 = vld [vmem:[#allocation9 + $0xd74] sm:$0xff]
    %v2011 = vld [vmem:[#allocation9 + $0xd7c] sm:$0xff]
    %v2012 = vld [vmem:[#allocation9 + $0xd84] sm:$0xff]
    %v2013 = vld [vmem:[#allocation9 + $0xd8c] sm:$0xff]
    %v2014 = vld [vmem:[#allocation9 + $0xd94] sm:$0xf]
    %v2015 = vld [vmem:[#allocation9 + $0xd98] sm:$0xff]
    %v2016 = vld [vmem:[#allocation9 + $0xda0] sm:$0xff]
    %v2017 = vld [vmem:[#allocation9 + $0xda8] sm:$0xff]
    %v2018 = vld [vmem:[#allocation9 + $0xdb0] sm:$0xff]
    %v2019 = vld [vmem:[#allocation9 + $0xdb8] sm:$0xff]
    %v2020 = vld [vmem:[#allocation9 + $0xdc0] sm:$0xff]
    %v2021 = vld [vmem:[#allocation9 + $0xdc8] sm:$0xff]
    %v2022 = vld [vmem:[#allocation9 + $0xdd0] sm:$0xff]
    %v2023 = vld [vmem:[#allocation9 + $0xdd8] sm:$0xff]
    %v2024 = vld [vmem:[#allocation9 + $0xde0] sm:$0xff]
    %v2025 = vld [vmem:[#allocation9 + $0xde8] sm:$0xff]
    %v2026 = vld [vmem:[#allocation9 + $0xdf0] sm:$0xff]
    %v2027 = vld [vmem:[#allocation9 + $0xdf8] sm:$0xff]
    %v2028 = vld [vmem:[#allocation9 + $0xe00] sm:$0xff]
    %v2029 = vld [vmem:[#allocation9 + $0xe08] sm:$0xf]
    %v2030 = vld [vmem:[#allocation9 + $0xe0c] sm:$0xff]
    %v2031 = vld [vmem:[#allocation9 + $0xe14] sm:$0xff]
    %v2032 = vld [vmem:[#allocation9 + $0xe1c] sm:$0xff]
    %v2033 = vld [vmem:[#allocation9 + $0xe24] sm:$0xff]
    %v2034 = vld [vmem:[#allocation9 + $0xe2c] sm:$0xff]
    %v2035 = vld [vmem:[#allocation9 + $0xe34] sm:$0xff]
    %v2036 = vld [vmem:[#allocation9 + $0xe3c] sm:$0xff]
    %v2037 = vld [vmem:[#allocation9 + $0xe44] sm:$0xff]
    %v2038 = vld [vmem:[#allocation9 + $0xe4c] sm:$0xff]
    %v2039 = vld [vmem:[#allocation9 + $0xe54] sm:$0xff]
    %v2040 = vld [vmem:[#allocation9 + $0xe5c] sm:$0xff]
    %v2041 = vld [vmem:[#allocation9 + $0xe64] sm:$0xff]
    %v2042 = vld [vmem:[#allocation9 + $0xe6c] sm:$0xff]
    %v2043 = vld [vmem:[#allocation9 + $0xe74] sm:$0xff]
    %v2044 = vld [vmem:[#allocation9 + $0xe7c] sm:$0xf]
    %v2045 = vld [vmem:[#allocation9 + $0xe80] sm:$0xff]
    %v2046 = vld [vmem:[#allocation9 + $0xe88] sm:$0xff]
    %v2047 = vld [vmem:[#allocation9 + $0xe90] sm:$0xff]
    %v2048 = vld [vmem:[#allocation9 + $0xe98] sm:$0xff]
    %v2049 = vld [vmem:[#allocation9 + $0xea0] sm:$0xff]
    %v2050 = vld [vmem:[#allocation9 + $0xea8] sm:$0xff]
    %v2051 = vld [vmem:[#allocation9 + $0xeb0] sm:$0xff]
    %v2052 = vld [vmem:[#allocation9 + $0xeb8] sm:$0xff]
    %v2053 = vld [vmem:[#allocation9 + $0xec0] sm:$0xff]
    %v2054 = vld [vmem:[#allocation9 + $0xec8] sm:$0xff]
    %v2055 = vld [vmem:[#allocation9 + $0xed0] sm:$0xff]
    %v2056 = vld [vmem:[#allocation9 + $0xed8] sm:$0xff]
    %v2057 = vld [vmem:[#allocation9 + $0xee0] sm:$0xff]
    %v2058 = vld [vmem:[#allocation9 + $0xee8] sm:$0xff]
    %v2059 = vld [vmem:[#allocation9 + $0xef0] sm:$0xf]
    %v2060 = vld [vmem:[#allocation9 + $0xef4] sm:$0xff]
    %v2061 = vld [vmem:[#allocation9 + $0xefc] sm:$0xff]
    %v2062 = vld [vmem:[#allocation9 + $0xf04] sm:$0xff]
    %v2063 = vld [vmem:[#allocation9 + $0xf0c] sm:$0xff]
    %v2064 = vld [vmem:[#allocation9 + $0xf14] sm:$0xff]
    %v2065 = vld [vmem:[#allocation9 + $0xf1c] sm:$0xff]
    %v2066 = vld [vmem:[#allocation9 + $0xf24] sm:$0xff]
    %v2067 = vld [vmem:[#allocation9 + $0xf2c] sm:$0xff]
    %v2068 = vld [vmem:[#allocation9 + $0xf34] sm:$0xff]
    %v2069 = vld [vmem:[#allocation9 + $0xf3c] sm:$0xff]
    %v2070 = vld [vmem:[#allocation9 + $0xf44] sm:$0xff]
    %v2071 = vld [vmem:[#allocation9 + $0xf4c] sm:$0xff]
    %v2072 = vld [vmem:[#allocation9 + $0xf54] sm:$0xff]
    %v2073 = vld [vmem:[#allocation9 + $0xf5c] sm:$0xff]
    %v2074 = vld [vmem:[#allocation9 + $0xf64] sm:$0xf]
    %v2075 = vld [vmem:[#allocation9 + $0xf68] sm:$0xff]
    %v2076 = vld [vmem:[#allocation9 + $0xf70] sm:$0xff]
    %v2077 = vld [vmem:[#allocation9 + $0xf78] sm:$0xff]
    %v2078 = vld [vmem:[#allocation9 + $0xf80] sm:$0xff]
    %v2079 = vld [vmem:[#allocation9 + $0xf88] sm:$0xff]
    %v2080 = vld [vmem:[#allocation9 + $0xf90] sm:$0xff]
    %v2081 = vld [vmem:[#allocation9 + $0xf98] sm:$0xff]
    %v2082 = vld [vmem:[#allocation9 + $0xfa0] sm:$0xff]
    %v2083 = vld [vmem:[#allocation9 + $0xfa8] sm:$0xff]
    %v2084 = vld [vmem:[#allocation9 + $0xfb0] sm:$0xff]
    %v2085 = vld [vmem:[#allocation9 + $0xfb8] sm:$0xff]
    %v2086 = vld [vmem:[#allocation9 + $0xfc0] sm:$0xff]
    %v2087 = vld [vmem:[#allocation9 + $0xfc8] sm:$0xff]
    %v2088 = vld [vmem:[#allocation9 + $0xfd0] sm:$0xff]
    %v2089 = vld [vmem:[#allocation9 + $0xfd8] sm:$0xf]
    %v2090 = vld [vmem:[#allocation9 + $0xfdc] sm:$0xff]
    %v2091 = vld [vmem:[#allocation9 + $0xfe4] sm:$0xff]
    %v2092 = vld [vmem:[#allocation9 + $0xfec] sm:$0xff]
    %v2093 = vld [vmem:[#allocation9 + $0xff4] sm:$0xff]
    %v2094 = vld [vmem:[#allocation9 + $0xffc] sm:$0xff]
    %v2095 = vld [vmem:[#allocation9 + $0x1004] sm:$0xff]
    %v2096 = vld [vmem:[#allocation9 + $0x100c] sm:$0xff]
    %v2097 = vld [vmem:[#allocation9 + $0x1014] sm:$0xff]
    %v2098 = vld [vmem:[#allocation9 + $0x101c] sm:$0xff]
    %v2099 = vld [vmem:[#allocation9 + $0x1024] sm:$0xff]
    %v2100 = vld [vmem:[#allocation9 + $0x102c] sm:$0xff]
    %v2101 = vld [vmem:[#allocation9 + $0x1034] sm:$0xff]
    %v2102 = vld [vmem:[#allocation9 + $0x103c] sm:$0xff]
    %v2103 = vld [vmem:[#allocation9 + $0x1044] sm:$0xff]
    %v2104 = vld [vmem:[#allocation9 + $0x104c] sm:$0xf]
    %v2105 = vld [vmem:[#allocation9 + $0x1050] sm:$0xff]
    %v2106 = vld [vmem:[#allocation9 + $0x1058] sm:$0xff]
    %v2107 = vld [vmem:[#allocation9 + $0x1060] sm:$0xff]
    %v2108 = vld [vmem:[#allocation9 + $0x1068] sm:$0xff]
    %v2109 = vld [vmem:[#allocation9 + $0x1070] sm:$0xff]
    %v2110 = vld [vmem:[#allocation9 + $0x1078] sm:$0xff]
    %v2111 = vld [vmem:[#allocation9 + $0x1080] sm:$0xff]
    %v2112 = vld [vmem:[#allocation9 + $0x1088] sm:$0xff]
    %v2113 = vld [vmem:[#allocation9 + $0x1090] sm:$0xff]
    %v2114 = vld [vmem:[#allocation9 + $0x1098] sm:$0xff]
    %v2115 = vld [vmem:[#allocation9 + $0x10a0] sm:$0xff]
    %v2116 = vld [vmem:[#allocation9 + $0x10a8] sm:$0xff]
    %v2117 = vld [vmem:[#allocation9 + $0x10b0] sm:$0xff]
    %v2118 = vld [vmem:[#allocation9 + $0x10b8] sm:$0xff]
    %v2119 = vld [vmem:[#allocation9 + $0x10c0] sm:$0xf]
    %v2120 = vld [vmem:[#allocation9 + $0x10c4] sm:$0xff]
    %v2121 = vld [vmem:[#allocation9 + $0x10cc] sm:$0xff]
    %v2122 = vld [vmem:[#allocation9 + $0x10d4] sm:$0xff]
    %v2123 = vld [vmem:[#allocation9 + $0x10dc] sm:$0xff]
    %v2124 = vld [vmem:[#allocation9 + $0x10e4] sm:$0xff]
    %v2125 = vld [vmem:[#allocation9 + $0x10ec] sm:$0xff]
    %v2126 = vld [vmem:[#allocation9 + $0x10f4] sm:$0xff]
    %v2127 = vld [vmem:[#allocation9 + $0x10fc] sm:$0xff]
    %v2128 = vld [vmem:[#allocation9 + $0x1104] sm:$0xff]
    %v2129 = vld [vmem:[#allocation9 + $0x110c] sm:$0xff]
    %v2130 = vld [vmem:[#allocation9 + $0x1114] sm:$0xff]
    %v2131 = vld [vmem:[#allocation9 + $0x111c] sm:$0xff]
    %v2132 = vld [vmem:[#allocation9 + $0x1124] sm:$0xff]
    %v2133 = vld [vmem:[#allocation9 + $0x112c] sm:$0xff]
    %v2134 = vld [vmem:[#allocation9 + $0x1134] sm:$0xf]
    %v2135 = vld [vmem:[#allocation9 + $0x1138] sm:$0xff]
    %v2136 = vld [vmem:[#allocation9 + $0x1140] sm:$0xff]
    %v2137 = vld [vmem:[#allocation9 + $0x1148] sm:$0xff]
    %v2138 = vld [vmem:[#allocation9 + $0x1150] sm:$0xff]
    %v2139 = vld [vmem:[#allocation9 + $0x1158] sm:$0xff]
    %v2140 = vld [vmem:[#allocation9 + $0x1160] sm:$0xff]
    %v2141 = vld [vmem:[#allocation9 + $0x1168] sm:$0xff]
    %v2142 = vld [vmem:[#allocation9 + $0x1170] sm:$0xff]
    %v2143 = vld [vmem:[#allocation9 + $0x1178] sm:$0xff]
    %v2144 = vld [vmem:[#allocation9 + $0x1180] sm:$0xff]
    %v2145 = vld [vmem:[#allocation9 + $0x1188] sm:$0xff]
    %v2146 = vld [vmem:[#allocation9 + $0x1190] sm:$0xff]
    %v2147 = vld [vmem:[#allocation9 + $0x1198] sm:$0xff]
    %v2148 = vld [vmem:[#allocation9 + $0x11a0] sm:$0xff]
    %v2149 = vld [vmem:[#allocation9 + $0x11a8] sm:$0xf]
    %v2150 = vld [vmem:[#allocation9 + $0x11ac] sm:$0xff]
    %v2151 = vld [vmem:[#allocation9 + $0x11b4] sm:$0xff]
    %v2152 = vld [vmem:[#allocation9 + $0x11bc] sm:$0xff]
    %v2153 = vld [vmem:[#allocation9 + $0x11c4] sm:$0xff]
    %v2154 = vld [vmem:[#allocation9 + $0x11cc] sm:$0xff]
    %v2155 = vld [vmem:[#allocation9 + $0x11d4] sm:$0xff]
    %v2156 = vld [vmem:[#allocation9 + $0x11dc] sm:$0xff]
    %v2157 = vld [vmem:[#allocation9 + $0x11e4] sm:$0xff]
    %v2158 = vld [vmem:[#allocation9 + $0x11ec] sm:$0xff]
    %v2159 = vld [vmem:[#allocation9 + $0x11f4] sm:$0xff]
    %v2160 = vld [vmem:[#allocation9 + $0x11fc] sm:$0xff]
    %v2161 = vld [vmem:[#allocation9 + $0x1204] sm:$0xff]
    %v2162 = vld [vmem:[#allocation9 + $0x120c] sm:$0xff]
    %v2163 = vld [vmem:[#allocation9 + $0x1214] sm:$0xff]
    %v2164 = vld [vmem:[#allocation9 + $0x121c] sm:$0xf]
    %v2165 = vld [vmem:[#allocation9 + $0x1220] sm:$0xff]
    %v2166 = vld [vmem:[#allocation9 + $0x1228] sm:$0xff]
    %v2167 = vld [vmem:[#allocation9 + $0x1230] sm:$0xff]
    %v2168 = vld [vmem:[#allocation9 + $0x1238] sm:$0xff]
    %v2169 = vld [vmem:[#allocation9 + $0x1240] sm:$0xff]
    %v2170 = vld [vmem:[#allocation9 + $0x1248] sm:$0xff]
    %v2171 = vld [vmem:[#allocation9 + $0x1250] sm:$0xff]
    %v2172 = vld [vmem:[#allocation9 + $0x1258] sm:$0xff]
    %v2173 = vld [vmem:[#allocation9 + $0x1260] sm:$0xff]
    %v2174 = vld [vmem:[#allocation9 + $0x1268] sm:$0xff]
    %v2175 = vld [vmem:[#allocation9 + $0x1270] sm:$0xff]
    %v2176 = vld [vmem:[#allocation9 + $0x1278] sm:$0xff]
    %v2177 = vld [vmem:[#allocation9 + $0x1280] sm:$0xff]
    %v2178 = vld [vmem:[#allocation9 + $0x1288] sm:$0xff]
    %v2179 = vld [vmem:[#allocation9 + $0x1290] sm:$0xf]
    %v2180 = vld [vmem:[#allocation9 + $0x1294] sm:$0xff]
    %v2181 = vld [vmem:[#allocation9 + $0x129c] sm:$0xff]
    %v2182 = vld [vmem:[#allocation9 + $0x12a4] sm:$0xff]
    %v2183 = vld [vmem:[#allocation9 + $0x12ac] sm:$0xff]
    %v2184 = vld [vmem:[#allocation9 + $0x12b4] sm:$0xff]
    %v2185 = vld [vmem:[#allocation9 + $0x12bc] sm:$0xff]
    %v2186 = vld [vmem:[#allocation9 + $0x12c4] sm:$0xff]
    %v2187 = vld [vmem:[#allocation9 + $0x12cc] sm:$0xff]
    %v2188 = vld [vmem:[#allocation9 + $0x12d4] sm:$0xff]
    %v2189 = vld [vmem:[#allocation9 + $0x12dc] sm:$0xff]
    %v2190 = vld [vmem:[#allocation9 + $0x12e4] sm:$0xff]
    %v2191 = vld [vmem:[#allocation9 + $0x12ec] sm:$0xff]
    %v2192 = vld [vmem:[#allocation9 + $0x12f4] sm:$0xff]
    %v2193 = vld [vmem:[#allocation9 + $0x12fc] sm:$0xff]
    %v2194 = vld [vmem:[#allocation9 + $0x1304] sm:$0xf]
    %v2195 = vld [vmem:[#allocation9 + $0x1308] sm:$0xff]
    %v2196 = vld [vmem:[#allocation9 + $0x1310] sm:$0xff]
    %v2197 = vld [vmem:[#allocation9 + $0x1318] sm:$0xff]
    %v2198 = vld [vmem:[#allocation9 + $0x1320] sm:$0xff]
    %v2199 = vld [vmem:[#allocation9 + $0x1328] sm:$0xff]
    %v2200 = vld [vmem:[#allocation9 + $0x1330] sm:$0xff]
    %v2201 = vld [vmem:[#allocation9 + $0x1338] sm:$0xff]
    %v2202 = vld [vmem:[#allocation9 + $0x1340] sm:$0xff]
    %v2203 = vld [vmem:[#allocation9 + $0x1348] sm:$0xff]
    %v2204 = vld [vmem:[#allocation9 + $0x1350] sm:$0xff]
    %v2205 = vld [vmem:[#allocation9 + $0x1358] sm:$0xff]
    %v2206 = vld [vmem:[#allocation9 + $0x1360] sm:$0xff]
    %v2207 = vld [vmem:[#allocation9 + $0x1368] sm:$0xff]
    %v2208 = vld [vmem:[#allocation9 + $0x1370] sm:$0xff]
    %v2209 = vld [vmem:[#allocation9 + $0x1378] sm:$0xf]
    %v2210 = vld [vmem:[#allocation9 + $0x137c] sm:$0xff]
    %v2211 = vld [vmem:[#allocation9 + $0x1384] sm:$0xff]
    %v2212 = vld [vmem:[#allocation9 + $0x138c] sm:$0xff]
    %v2213 = vld [vmem:[#allocation9 + $0x1394] sm:$0xff]
    %v2214 = vld [vmem:[#allocation9 + $0x139c] sm:$0xff]
    %v2215 = vld [vmem:[#allocation9 + $0x13a4] sm:$0xff]
    %v2216 = vld [vmem:[#allocation9 + $0x13ac] sm:$0xff]
    %v2217 = vld [vmem:[#allocation9 + $0x13b4] sm:$0xff]
    %v2218 = vld [vmem:[#allocation9 + $0x13bc] sm:$0xff]
    %v2219 = vld [vmem:[#allocation9 + $0x13c4] sm:$0xff]
    %v2220 = vld [vmem:[#allocation9 + $0x13cc] sm:$0xff]
    %v2221 = vld [vmem:[#allocation9 + $0x13d4] sm:$0xff]
    %v2222 = vld [vmem:[#allocation9 + $0x13dc] sm:$0xff]
    %v2223 = vld [vmem:[#allocation9 + $0x13e4] sm:$0xff]
    %v2224 = vld [vmem:[#allocation9 + $0x13ec] sm:$0xf]
    %v2225 = vld [vmem:[#allocation9 + $0x13f0] sm:$0xff]
    %v2226 = vld [vmem:[#allocation9 + $0x13f8] sm:$0xff]
    %v2227 = vld [vmem:[#allocation9 + $0x1400] sm:$0xff]
    %v2228 = vld [vmem:[#allocation9 + $0x1408] sm:$0xff]
    %v2229 = vld [vmem:[#allocation9 + $0x1410] sm:$0xff]
    %v2230 = vld [vmem:[#allocation9 + $0x1418] sm:$0xff]
    %v2231 = vld [vmem:[#allocation9 + $0x1420] sm:$0xff]
    %v2232 = vld [vmem:[#allocation9 + $0x1428] sm:$0xff]
    %v2233 = vld [vmem:[#allocation9 + $0x1430] sm:$0xff]
    %v2234 = vld [vmem:[#allocation9 + $0x1438] sm:$0xff]
    %v2235 = vld [vmem:[#allocation9 + $0x1440] sm:$0xff]
    %v2236 = vld [vmem:[#allocation9 + $0x1448] sm:$0xff]
    %v2237 = vld [vmem:[#allocation9 + $0x1450] sm:$0xff]
    %v2238 = vld [vmem:[#allocation9 + $0x1458] sm:$0xff]
    %v2239 = vld [vmem:[#allocation9 + $0x1460] sm:$0xf]
    %v2240 = vld [vmem:[#allocation9 + $0x1464] sm:$0xff]
    %v2241 = vld [vmem:[#allocation9 + $0x146c] sm:$0xff]
    %v2242 = vld [vmem:[#allocation9 + $0x1474] sm:$0xff]
    %v2243 = vld [vmem:[#allocation9 + $0x147c] sm:$0xff]
    %v2244 = vld [vmem:[#allocation9 + $0x1484] sm:$0xff]
    %v2245 = vld [vmem:[#allocation9 + $0x148c] sm:$0xff]
    %v2246 = vld [vmem:[#allocation9 + $0x1494] sm:$0xff]
    %v2247 = vld [vmem:[#allocation9 + $0x149c] sm:$0xff]
    %v2248 = vld [vmem:[#allocation9 + $0x14a4] sm:$0xff]
    %v2249 = vld [vmem:[#allocation9 + $0x14ac] sm:$0xff]
    %v2250 = vld [vmem:[#allocation9 + $0x14b4] sm:$0xff]
    %v2251 = vld [vmem:[#allocation9 + $0x14bc] sm:$0xff]
    %v2252 = vld [vmem:[#allocation9 + $0x14c4] sm:$0xff]
    %v2253 = vld [vmem:[#allocation9 + $0x14cc] sm:$0xff]
    %v2254 = vld [vmem:[#allocation9 + $0x14d4] sm:$0xf]
    %v2255 = vld [vmem:[#allocation9 + $0x14d8] sm:$0xff]
    %v2256 = vld [vmem:[#allocation9 + $0x14e0] sm:$0xff]
    %v2257 = vld [vmem:[#allocation9 + $0x14e8] sm:$0xff]
    %v2258 = vld [vmem:[#allocation9 + $0x14f0] sm:$0xff]
    %v2259 = vld [vmem:[#allocation9 + $0x14f8] sm:$0xff]
    %v2260 = vld [vmem:[#allocation9 + $0x1500] sm:$0xff]
    %v2261 = vld [vmem:[#allocation9 + $0x1508] sm:$0xff]
    %v2262 = vld [vmem:[#allocation9 + $0x1510] sm:$0xff]
    %v2263 = vld [vmem:[#allocation9 + $0x1518] sm:$0xff]
    %v2264 = vld [vmem:[#allocation9 + $0x1520] sm:$0xff]
    %v2265 = vld [vmem:[#allocation9 + $0x1528] sm:$0xff]
    %v2266 = vld [vmem:[#allocation9 + $0x1530] sm:$0xff]
    %v2267 = vld [vmem:[#allocation9 + $0x1538] sm:$0xff]
    %v2268 = vld [vmem:[#allocation9 + $0x1540] sm:$0xff]
    %v2269 = vld [vmem:[#allocation9 + $0x1548] sm:$0xf]
    %v2270 = vld [vmem:[#allocation9 + $0x154c] sm:$0xff]
    %v2271 = vld [vmem:[#allocation9 + $0x1554] sm:$0xff]
    %v2272 = vld [vmem:[#allocation9 + $0x155c] sm:$0xff]
    %v2273 = vld [vmem:[#allocation9 + $0x1564] sm:$0xff]
    %v2274 = vld [vmem:[#allocation9 + $0x156c] sm:$0xff]
    %v2275 = vld [vmem:[#allocation9 + $0x1574] sm:$0xff]
    %v2276 = vld [vmem:[#allocation9 + $0x157c] sm:$0xff]
    %v2277 = vld [vmem:[#allocation9 + $0x1584] sm:$0xff]
    %v2278 = vld [vmem:[#allocation9 + $0x158c] sm:$0xff]
    %v2279 = vld [vmem:[#allocation9 + $0x1594] sm:$0xff]
    %v2280 = vld [vmem:[#allocation9 + $0x159c] sm:$0xff]
    %v2281 = vld [vmem:[#allocation9 + $0x15a4] sm:$0xff]
    %v2282 = vld [vmem:[#allocation9 + $0x15ac] sm:$0xff]
    %v2283 = vld [vmem:[#allocation9 + $0x15b4] sm:$0xff]
    %v2284 = vld [vmem:[#allocation9 + $0x15bc] sm:$0xf]
    %v2285 = vld [vmem:[#allocation9 + $0x15c0] sm:$0xff]
    %v2286 = vld [vmem:[#allocation9 + $0x15c8] sm:$0xff]
    %v2287 = vld [vmem:[#allocation9 + $0x15d0] sm:$0xff]
    %v2288 = vld [vmem:[#allocation9 + $0x15d8] sm:$0xff]
    %v2289 = vld [vmem:[#allocation9 + $0x15e0] sm:$0xff]
    %v2290 = vld [vmem:[#allocation9 + $0x15e8] sm:$0xff]
    %v2291 = vld [vmem:[#allocation9 + $0x15f0] sm:$0xff]
    %v2292 = vld [vmem:[#allocation9 + $0x15f8] sm:$0xff]
    %v2293 = vld [vmem:[#allocation9 + $0x1600] sm:$0xff]
    %v2294 = vld [vmem:[#allocation9 + $0x1608] sm:$0xff]
    %v2295 = vld [vmem:[#allocation9 + $0x1610] sm:$0xff]
    %v2296 = vld [vmem:[#allocation9 + $0x1618] sm:$0xff]
    %v2297 = vld [vmem:[#allocation9 + $0x1620] sm:$0xff]
    %v2298 = vld [vmem:[#allocation9 + $0x1628] sm:$0xff]
    %v2299 = vld [vmem:[#allocation9 + $0x1630] sm:$0xf]
    %v2300 = vld [vmem:[#allocation9 + $0x1634] sm:$0xff]
    %v2301 = vld [vmem:[#allocation9 + $0x163c] sm:$0xff]
    %v2302 = vld [vmem:[#allocation9 + $0x1644] sm:$0xff]
    %v2303 = vld [vmem:[#allocation9 + $0x164c] sm:$0xff]
    %v2304 = vld [vmem:[#allocation9 + $0x1654] sm:$0xff]
    %v2305 = vld [vmem:[#allocation9 + $0x165c] sm:$0xff]
    %v2306 = vld [vmem:[#allocation9 + $0x1664] sm:$0xff]
    %v2307 = vld [vmem:[#allocation9 + $0x166c] sm:$0xff]
    %v2308 = vld [vmem:[#allocation9 + $0x1674] sm:$0xff]
    %v2309 = vld [vmem:[#allocation9 + $0x167c] sm:$0xff]
    %v2310 = vld [vmem:[#allocation9 + $0x1684] sm:$0xff]
    %v2311 = vld [vmem:[#allocation9 + $0x168c] sm:$0xff]
    %v2312 = vld [vmem:[#allocation9 + $0x1694] sm:$0xff]
    %v2313 = vld [vmem:[#allocation9 + $0x169c] sm:$0xff]
    %v2314 = vld [vmem:[#allocation9 + $0x16a4] sm:$0xf]
    %v2315 = vld [vmem:[#allocation9 + $0x16a8] sm:$0xff]
    %v2316 = vld [vmem:[#allocation9 + $0x16b0] sm:$0xff]
    %v2317 = vld [vmem:[#allocation9 + $0x16b8] sm:$0xff]
    %v2318 = vld [vmem:[#allocation9 + $0x16c0] sm:$0xff]
    %v2319 = vld [vmem:[#allocation9 + $0x16c8] sm:$0xff]
    %v2320 = vld [vmem:[#allocation9 + $0x16d0] sm:$0xff]
    %v2321 = vld [vmem:[#allocation9 + $0x16d8] sm:$0xff]
    %v2322 = vld [vmem:[#allocation9 + $0x16e0] sm:$0xff]
    %v2323 = vld [vmem:[#allocation9 + $0x16e8] sm:$0xff]
    %v2324 = vld [vmem:[#allocation9 + $0x16f0] sm:$0xff]
    %v2325 = vld [vmem:[#allocation9 + $0x16f8] sm:$0xff]
    %v2326 = vld [vmem:[#allocation9 + $0x1700] sm:$0xff]
    %v2327 = vld [vmem:[#allocation9 + $0x1708] sm:$0xff]
    %v2328 = vld [vmem:[#allocation9 + $0x1710] sm:$0xff]
    %v2329 = vld [vmem:[#allocation9 + $0x1718] sm:$0xf]
    %v2330 = vld [vmem:[#allocation9 + $0x171c] sm:$0xff]
    %v2331 = vld [vmem:[#allocation9 + $0x1724] sm:$0xff]
    %v2332 = vld [vmem:[#allocation9 + $0x172c] sm:$0xff]
    %v2333 = vld [vmem:[#allocation9 + $0x1734] sm:$0xff]
    %v2334 = vld [vmem:[#allocation9 + $0x173c] sm:$0xff]
    %v2335 = vld [vmem:[#allocation9 + $0x1744] sm:$0xff]
    %v2336 = vld [vmem:[#allocation9 + $0x174c] sm:$0xff]
    %v2337 = vld [vmem:[#allocation9 + $0x1754] sm:$0xff]
    %v2338 = vld [vmem:[#allocation9 + $0x175c] sm:$0xff]
    %v2339 = vld [vmem:[#allocation9 + $0x1764] sm:$0xff]
    %v2340 = vld [vmem:[#allocation9 + $0x176c] sm:$0xff]
    %v2341 = vld [vmem:[#allocation9 + $0x1774] sm:$0xff]
    %v2342 = vld [vmem:[#allocation9 + $0x177c] sm:$0xff]
    %v2343 = vld [vmem:[#allocation9 + $0x1784] sm:$0xff]
    %v2344 = vld [vmem:[#allocation9 + $0x178c] sm:$0xf]
    %v2345 = vld [vmem:[#allocation9 + $0x1790] sm:$0xff]
    %v2346 = vld [vmem:[#allocation9 + $0x1798] sm:$0xff]
    %v2347 = vld [vmem:[#allocation9 + $0x17a0] sm:$0xff]
    %v2348 = vld [vmem:[#allocation9 + $0x17a8] sm:$0xff]
    %v2349 = vld [vmem:[#allocation9 + $0x17b0] sm:$0xff]
    %v2350 = vld [vmem:[#allocation9 + $0x17b8] sm:$0xff]
    %v2351 = vld [vmem:[#allocation9 + $0x17c0] sm:$0xff]
    %v2352 = vld [vmem:[#allocation9 + $0x17c8] sm:$0xff]
    %v2353 = vld [vmem:[#allocation9 + $0x17d0] sm:$0xff]
    %v2354 = vld [vmem:[#allocation9 + $0x17d8] sm:$0xff]
    %v2355 = vld [vmem:[#allocation9 + $0x17e0] sm:$0xff]
    %v2356 = vld [vmem:[#allocation9 + $0x17e8] sm:$0xff]
    %v2357 = vld [vmem:[#allocation9 + $0x17f0] sm:$0xff]
    %v2358 = vld [vmem:[#allocation9 + $0x17f8] sm:$0xff]
    %v2359 = vld [vmem:[#allocation9 + $0x1800] sm:$0xf]
    %v2360 = vld [vmem:[#allocation9 + $0x1804] sm:$0xff]
    %v2361 = vld [vmem:[#allocation9 + $0x180c] sm:$0xff]
    %v2362 = vld [vmem:[#allocation9 + $0x1814] sm:$0xff]
    %v2363 = vld [vmem:[#allocation9 + $0x181c] sm:$0xff]
    %v2364 = vld [vmem:[#allocation9 + $0x1824] sm:$0xff]
    %v2365 = vld [vmem:[#allocation9 + $0x182c] sm:$0xff]
    %v2366 = vld [vmem:[#allocation9 + $0x1834] sm:$0xff]
    %v2367 = vld [vmem:[#allocation9 + $0x183c] sm:$0xff]
    %v2368 = vld [vmem:[#allocation9 + $0x1844] sm:$0xff]
    %v2369 = vld [vmem:[#allocation9 + $0x184c] sm:$0xff]
    %v2370 = vld [vmem:[#allocation9 + $0x1854] sm:$0xff]
    %v2371 = vld [vmem:[#allocation9 + $0x185c] sm:$0xff]
    %v2372 = vld [vmem:[#allocation9 + $0x1864] sm:$0xff]
    %v2373 = vld [vmem:[#allocation9 + $0x186c] sm:$0xff]
    %v2374 = vld [vmem:[#allocation9 + $0x1874] sm:$0xf]
    %v2375 = vld [vmem:[#allocation9 + $0x1878] sm:$0xff]
    %v2376 = vld [vmem:[#allocation9 + $0x1880] sm:$0xff]
    %v2377 = vld [vmem:[#allocation9 + $0x1888] sm:$0xff]
    %v2378 = vld [vmem:[#allocation9 + $0x1890] sm:$0xff]
    %v2379 = vld [vmem:[#allocation9 + $0x1898] sm:$0xff]
    %v2380 = vld [vmem:[#allocation9 + $0x18a0] sm:$0xff]
    %v2381 = vld [vmem:[#allocation9 + $0x18a8] sm:$0xff]
    %v2382 = vld [vmem:[#allocation9 + $0x18b0] sm:$0xff]
    %v2383 = vld [vmem:[#allocation9 + $0x18b8] sm:$0xff]
    %v2384 = vld [vmem:[#allocation9 + $0x18c0] sm:$0xff]
    %v2385 = vld [vmem:[#allocation9 + $0x18c8] sm:$0xff]
    %v2386 = vld [vmem:[#allocation9 + $0x18d0] sm:$0xff]
    %v2387 = vld [vmem:[#allocation9 + $0x18d8] sm:$0xff]
    %v2388 = vld [vmem:[#allocation9 + $0x18e0] sm:$0xff]
    %v2389 = vld [vmem:[#allocation9 + $0x18e8] sm:$0xf]
    %v2390 = vld [vmem:[#allocation9 + $0x18ec] sm:$0xff]
    %v2391 = vld [vmem:[#allocation9 + $0x18f4] sm:$0xff]
    %v2392 = vld [vmem:[#allocation9 + $0x18fc] sm:$0xff]
    %v2393 = vld [vmem:[#allocation9 + $0x1904] sm:$0xff]
    %v2394 = vld [vmem:[#allocation9 + $0x190c] sm:$0xff]
    %v2395 = vld [vmem:[#allocation9 + $0x1914] sm:$0xff]
    %v2396 = vld [vmem:[#allocation9 + $0x191c] sm:$0xff]
    %v2397 = vld [vmem:[#allocation9 + $0x1924] sm:$0xff]
    %v2398 = vld [vmem:[#allocation9 + $0x192c] sm:$0xff]
    %v2399 = vld [vmem:[#allocation9 + $0x1934] sm:$0xff]
    %v2400 = vld [vmem:[#allocation9 + $0x193c] sm:$0xff]
    %v2401 = vld [vmem:[#allocation9 + $0x1944] sm:$0xff]
    %v2402 = vld [vmem:[#allocation9 + $0x194c] sm:$0xff]
    %v2403 = vld [vmem:[#allocation9 + $0x1954] sm:$0xff]
    %v2404 = vld [vmem:[#allocation9 + $0x195c] sm:$0xf]
    %v2405 = vld [vmem:[#allocation9 + $0x1960] sm:$0xff]
    %v2406 = vld [vmem:[#allocation9 + $0x1968] sm:$0xff]
    %v2407 = vld [vmem:[#allocation9 + $0x1970] sm:$0xff]
    %v2408 = vld [vmem:[#allocation9 + $0x1978] sm:$0xff]
    %v2409 = vld [vmem:[#allocation9 + $0x1980] sm:$0xff]
    %v2410 = vld [vmem:[#allocation9 + $0x1988] sm:$0xff]
    %v2411 = vld [vmem:[#allocation9 + $0x1990] sm:$0xff]
    %v2412 = vld [vmem:[#allocation9 + $0x1998] sm:$0xff]
    %v2413 = vld [vmem:[#allocation9 + $0x19a0] sm:$0xff]
    %v2414 = vld [vmem:[#allocation9 + $0x19a8] sm:$0xff]
    %v2415 = vld [vmem:[#allocation9 + $0x19b0] sm:$0xff]
    %v2416 = vld [vmem:[#allocation9 + $0x19b8] sm:$0xff]
    %v2417 = vld [vmem:[#allocation9 + $0x19c0] sm:$0xff]
    %v2418 = vld [vmem:[#allocation9 + $0x19c8] sm:$0xff]
    %v2419 = vld [vmem:[#allocation9 + $0x19d0] sm:$0xf]
    %v2420 = vld [vmem:[#allocation9 + $0x19d4] sm:$0xff]
    %v2421 = vld [vmem:[#allocation9 + $0x19dc] sm:$0xff]
    %v2422 = vld [vmem:[#allocation9 + $0x19e4] sm:$0xff]
    %v2423 = vld [vmem:[#allocation9 + $0x19ec] sm:$0xff]
    %v2424 = vld [vmem:[#allocation9 + $0x19f4] sm:$0xff]
    %v2425 = vld [vmem:[#allocation9 + $0x19fc] sm:$0xff]
    %v2426 = vld [vmem:[#allocation9 + $0x1a04] sm:$0xff]
    %v2427 = vld [vmem:[#allocation9 + $0x1a0c] sm:$0xff]
    %v2428 = vld [vmem:[#allocation9 + $0x1a14] sm:$0xff]
    %v2429 = vld [vmem:[#allocation9 + $0x1a1c] sm:$0xff]
    %v2430 = vld [vmem:[#allocation9 + $0x1a24] sm:$0xff]
    %v2431 = vld [vmem:[#allocation9 + $0x1a2c] sm:$0xff]
    %v2432 = vld [vmem:[#allocation9 + $0x1a34] sm:$0xff]
    %v2433 = vld [vmem:[#allocation9 + $0x1a3c] sm:$0xff]
    %v2434 = vld [vmem:[#allocation9 + $0x1a44] sm:$0xf]
    %v2435 = vld [vmem:[#allocation9 + $0x1a48] sm:$0xff]
    %v2436 = vld [vmem:[#allocation9 + $0x1a50] sm:$0xff]
    %v2437 = vld [vmem:[#allocation9 + $0x1a58] sm:$0xff]
    %v2438 = vld [vmem:[#allocation9 + $0x1a60] sm:$0xff]
    %v2439 = vld [vmem:[#allocation9 + $0x1a68] sm:$0xff]
    %v2440 = vld [vmem:[#allocation9 + $0x1a70] sm:$0xff]
    %v2441 = vld [vmem:[#allocation9 + $0x1a78] sm:$0xff]
    %v2442 = vld [vmem:[#allocation9 + $0x1a80] sm:$0xff]
    %v2443 = vld [vmem:[#allocation9 + $0x1a88] sm:$0xff]
    %v2444 = vld [vmem:[#allocation9 + $0x1a90] sm:$0xff]
    %v2445 = vld [vmem:[#allocation9 + $0x1a98] sm:$0xff]
    %v2446 = vld [vmem:[#allocation9 + $0x1aa0] sm:$0xff]
    %v2447 = vld [vmem:[#allocation9 + $0x1aa8] sm:$0xff]
    %v2448 = vld [vmem:[#allocation9 + $0x1ab0] sm:$0xff]
    %v2449 = vld [vmem:[#allocation9 + $0x1ab8] sm:$0xf]
    %v2450 = vld [vmem:[#allocation9 + $0x1abc] sm:$0xff]
    %v2451 = vld [vmem:[#allocation9 + $0x1ac4] sm:$0xff]
    %v2452 = vld [vmem:[#allocation9 + $0x1acc] sm:$0xff]
    %v2453 = vld [vmem:[#allocation9 + $0x1ad4] sm:$0xff]
    %v2454 = vld [vmem:[#allocation9 + $0x1adc] sm:$0xff]
    %v2455 = vld [vmem:[#allocation9 + $0x1ae4] sm:$0xff]
    %v2456 = vld [vmem:[#allocation9 + $0x1aec] sm:$0xff]
    %v2457 = vld [vmem:[#allocation9 + $0x1af4] sm:$0xff]
    %v2458 = vld [vmem:[#allocation9 + $0x1afc] sm:$0xff]
    %v2459 = vld [vmem:[#allocation9 + $0x1b04] sm:$0xff]
    %v2460 = vld [vmem:[#allocation9 + $0x1b0c] sm:$0xff]
    %v2461 = vld [vmem:[#allocation9 + $0x1b14] sm:$0xff]
    %v2462 = vld [vmem:[#allocation9 + $0x1b1c] sm:$0xff]
    %v2463 = vld [vmem:[#allocation9 + $0x1b24] sm:$0xff]
    %v2464 = vld [vmem:[#allocation9 + $0x1b2c] sm:$0xf]
    %v2465 = vld [vmem:[#allocation9 + $0x1b30] sm:$0xff]
    %v2466 = vld [vmem:[#allocation9 + $0x1b38] sm:$0xff]
    %v2467 = vld [vmem:[#allocation9 + $0x1b40] sm:$0xff]
    %v2468 = vld [vmem:[#allocation9 + $0x1b48] sm:$0xff]
    %v2469 = vld [vmem:[#allocation9 + $0x1b50] sm:$0xff]
    %v2470 = vld [vmem:[#allocation9 + $0x1b58] sm:$0xff]
    %v2471 = vld [vmem:[#allocation9 + $0x1b60] sm:$0xff]
    %v2472 = vld [vmem:[#allocation9 + $0x1b68] sm:$0xff]
    %v2473 = vld [vmem:[#allocation9 + $0x1b70] sm:$0xff]
    %v2474 = vld [vmem:[#allocation9 + $0x1b78] sm:$0xff]
    %v2475 = vld [vmem:[#allocation9 + $0x1b80] sm:$0xff]
    %v2476 = vld [vmem:[#allocation9 + $0x1b88] sm:$0xff]
    %v2477 = vld [vmem:[#allocation9 + $0x1b90] sm:$0xff]
    %v2478 = vld [vmem:[#allocation9 + $0x1b98] sm:$0xff]
    %v2479 = vld [vmem:[#allocation9 + $0x1ba0] sm:$0xf]
    %v2480 = vld [vmem:[#allocation9 + $0x1ba4] sm:$0xff]
    %v2481 = vld [vmem:[#allocation9 + $0x1bac] sm:$0xff]
    %v2482 = vld [vmem:[#allocation9 + $0x1bb4] sm:$0xff]
    %v2483 = vld [vmem:[#allocation9 + $0x1bbc] sm:$0xff]
    %v2484 = vld [vmem:[#allocation9 + $0x1bc4] sm:$0xff]
    %v2485 = vld [vmem:[#allocation9 + $0x1bcc] sm:$0xff]
    %v2486 = vld [vmem:[#allocation9 + $0x1bd4] sm:$0xff]
    %v2487 = vld [vmem:[#allocation9 + $0x1bdc] sm:$0xff]
    %v2488 = vld [vmem:[#allocation9 + $0x1be4] sm:$0xff]
    %v2489 = vld [vmem:[#allocation9 + $0x1bec] sm:$0xff]
    %v2490 = vld [vmem:[#allocation9 + $0x1bf4] sm:$0xff]
    %v2491 = vld [vmem:[#allocation9 + $0x1bfc] sm:$0xff]
    %v2492 = vld [vmem:[#allocation9 + $0x1c04] sm:$0xff]
    %v2493 = vld [vmem:[#allocation9 + $0x1c0c] sm:$0xff]
    %v2494 = vld [vmem:[#allocation9 + $0x1c14] sm:$0xf]
    %v2495 = vld [vmem:[#allocation9 + $0x1c18] sm:$0xff]
    %v2496 = vld [vmem:[#allocation9 + $0x1c20] sm:$0xff]
    %v2497 = vld [vmem:[#allocation9 + $0x1c28] sm:$0xff]
    %v2498 = vld [vmem:[#allocation9 + $0x1c30] sm:$0xff]
    %v2499 = vld [vmem:[#allocation9 + $0x1c38] sm:$0xff]
    %v2500 = vld [vmem:[#allocation9 + $0x1c40] sm:$0xff]
    %v2501 = vld [vmem:[#allocation9 + $0x1c48] sm:$0xff]
    %v2502 = vld [vmem:[#allocation9 + $0x1c50] sm:$0xff]
    %v2503 = vld [vmem:[#allocation9 + $0x1c58] sm:$0xff]
    %v2504 = vld [vmem:[#allocation9 + $0x1c60] sm:$0xff]
    %v2505 = vld [vmem:[#allocation9 + $0x1c68] sm:$0xff]
    %v2506 = vld [vmem:[#allocation9 + $0x1c70] sm:$0xff]
    %v2507 = vld [vmem:[#allocation9 + $0x1c78] sm:$0xff]
    %v2508 = vld [vmem:[#allocation9 + $0x1c80] sm:$0xff]
    %v2509 = vld [vmem:[#allocation9 + $0x1c88] sm:$0xf]
    %v2510 = vld [vmem:[#allocation9 + $0x1c8c] sm:$0xff]
    %v2511 = vld [vmem:[#allocation9 + $0x1c94] sm:$0xff]
    %v2512 = vld [vmem:[#allocation9 + $0x1c9c] sm:$0xff]
    %v2513 = vld [vmem:[#allocation9 + $0x1ca4] sm:$0xff]
    %v2514 = vld [vmem:[#allocation9 + $0x1cac] sm:$0xff]
    %v2515 = vld [vmem:[#allocation9 + $0x1cb4] sm:$0xff]
    %v2516 = vld [vmem:[#allocation9 + $0x1cbc] sm:$0xff]
    %v2517 = vld [vmem:[#allocation9 + $0x1cc4] sm:$0xff]
    %v2518 = vld [vmem:[#allocation9 + $0x1ccc] sm:$0xff]
    %v2519 = vld [vmem:[#allocation9 + $0x1cd4] sm:$0xff]
    %v2520 = vld [vmem:[#allocation9 + $0x1cdc] sm:$0xff]
    %v2521 = vld [vmem:[#allocation9 + $0x1ce4] sm:$0xff]
    %v2522 = vld [vmem:[#allocation9 + $0x1cec] sm:$0xff]
    %v2523 = vld [vmem:[#allocation9 + $0x1cf4] sm:$0xff]
    %v2524 = vld [vmem:[#allocation9 + $0x1cfc] sm:$0xf]
    %v2525 = vld [vmem:[#allocation10] sm:$0xff]
    %v2526 = vld [vmem:[#allocation10 + $0x8] sm:$0xff]
    %v2527 = vld [vmem:[#allocation10 + $0x10] sm:$0xff]
    %v2528 = vld [vmem:[#allocation10 + $0x18] sm:$0x1f]
    %v2533 = vlaneseq
    %v2534 = vshrl.u32 %v2533, 7
    %v2535 = vsub.s32 0, %v2534
    %v2536 = vrot.slane %v2525, %v2535
    %v2537 = vlaneseq
    %v2538 = vshrl.u32 %v2537, 7
    %v2539 = vsub.s32 1, %v2538
    %v2540 = vrot.slane %v2525, %v2539
    %v2541 = vlaneseq
    %v2542 = vshrl.u32 %v2541, 7
    %v2543 = vsub.s32 2, %v2542
    %v2544 = vrot.slane %v2525, %v2543
    %v2545 = vlaneseq
    %v2546 = vshrl.u32 %v2545, 7
    %v2547 = vsub.s32 3, %v2546
    %v2548 = vrot.slane %v2525, %v2547
    %v2549 = vlaneseq
    %v2550 = vshrl.u32 %v2549, 7
    %v2551 = vsub.s32 4, %v2550
    %v2552 = vrot.slane %v2525, %v2551
    %v2553 = vlaneseq
    %v2554 = vshrl.u32 %v2553, 7
    %v2555 = vsub.s32 5, %v2554
    %v2556 = vrot.slane %v2525, %v2555
    %v2557 = vlaneseq
    %v2558 = vshrl.u32 %v2557, 7
    %v2559 = vsub.s32 6, %v2558
    %v2560 = vrot.slane %v2525, %v2559
    %v2561 = vlaneseq
    %v2562 = vshrl.u32 %v2561, 7
    %v2563 = vsub.s32 7, %v2562
    %v2564 = vrot.slane %v2525, %v2563
    %v2565 = vlaneseq
    %v2566 = vshrl.u32 %v2565, 7
    %v2567 = vsub.s32 0, %v2566
    %v2568 = vrot.slane %v2526, %v2567
    %v2569 = vlaneseq
    %v2570 = vshrl.u32 %v2569, 7
    %v2571 = vsub.s32 1, %v2570
    %v2572 = vrot.slane %v2526, %v2571
    %v2573 = vlaneseq
    %v2574 = vshrl.u32 %v2573, 7
    %v2575 = vsub.s32 2, %v2574
    %v2576 = vrot.slane %v2526, %v2575
    %v2577 = vlaneseq
    %v2578 = vshrl.u32 %v2577, 7
    %v2579 = vsub.s32 3, %v2578
    %v2580 = vrot.slane %v2526, %v2579
    %v2581 = vlaneseq
    %v2582 = vshrl.u32 %v2581, 7
    %v2583 = vsub.s32 4, %v2582
    %v2584 = vrot.slane %v2526, %v2583
    %v2585 = vlaneseq
    %v2586 = vshrl.u32 %v2585, 7
    %v2587 = vsub.s32 5, %v2586
    %v2588 = vrot.slane %v2526, %v2587
    %v2589 = vlaneseq
    %v2590 = vshrl.u32 %v2589, 7
    %v2591 = vsub.s32 6, %v2590
    %v2592 = vrot.slane %v2526, %v2591
    %v2593 = vlaneseq
    %v2594 = vshrl.u32 %v2593, 7
    %v2595 = vsub.s32 7, %v2594
    %v2596 = vrot.slane %v2526, %v2595
    %v2597 = vlaneseq
    %v2598 = vshrl.u32 %v2597, 7
    %v2599 = vsub.s32 0, %v2598
    %v2600 = vrot.slane %v2527, %v2599
    %v2601 = vlaneseq
    %v2602 = vshrl.u32 %v2601, 7
    %v2603 = vsub.s32 1, %v2602
    %v2604 = vrot.slane %v2527, %v2603
    %v2605 = vlaneseq
    %v2606 = vshrl.u32 %v2605, 7
    %v2607 = vsub.s32 2, %v2606
    %v2608 = vrot.slane %v2527, %v2607
    %v2609 = vlaneseq
    %v2610 = vshrl.u32 %v2609, 7
    %v2611 = vsub.s32 3, %v2610
    %v2612 = vrot.slane %v2527, %v2611
    %v2613 = vlaneseq
    %v2614 = vshrl.u32 %v2613, 7
    %v2615 = vsub.s32 4, %v2614
    %v2616 = vrot.slane %v2527, %v2615
    %v2617 = vlaneseq
    %v2618 = vshrl.u32 %v2617, 7
    %v2619 = vsub.s32 5, %v2618
    %v2620 = vrot.slane %v2527, %v2619
    %v2621 = vlaneseq
    %v2622 = vshrl.u32 %v2621, 7
    %v2623 = vsub.s32 6, %v2622
    %v2624 = vrot.slane %v2527, %v2623
    %v2625 = vlaneseq
    %v2626 = vshrl.u32 %v2625, 7
    %v2627 = vsub.s32 7, %v2626
    %v2628 = vrot.slane %v2527, %v2627
    %v2629 = vlaneseq
    %v2630 = vshrl.u32 %v2629, 7
    %v2631 = vsub.s32 0, %v2630
    %v2632 = vrot.slane %v2528, %v2631
    %v2633 = vlaneseq
    %v2634 = vshrl.u32 %v2633, 7
    %v2635 = vsub.s32 1, %v2634
    %v2636 = vrot.slane %v2528, %v2635
    %v2637 = vlaneseq
    %v2638 = vshrl.u32 %v2637, 7
    %v2639 = vsub.s32 2, %v2638
    %v2640 = vrot.slane %v2528, %v2639
    %v2641 = vlaneseq
    %v2642 = vshrl.u32 %v2641, 7
    %v2643 = vsub.s32 3, %v2642
    %v2644 = vrot.slane %v2528, %v2643
    %v2645 = vlaneseq
    %v2646 = vshrl.u32 %v2645, 7
    %v2647 = vsub.s32 4, %v2646
    %v2648 = vrot.slane %v2528, %v2647
    %v3638 = vunpack.c.l.b16 %v1565
    %v3639 = vunpack.c.h.b16 %v1565
    %v3640 = vunpack.c.l.b16 %v1566
    %v3641 = vunpack.c.h.b16 %v1566
    %v3642 = vunpack.c.l.b16 %v1567
    %v3643 = vunpack.c.h.b16 %v1567
    %v3644 = vunpack.c.l.b16 %v1568
    %v3645 = vunpack.c.h.b16 %v1568
    %v3646 = vunpack.c.l.b16 %v1569
    %v3647 = vunpack.c.h.b16 %v1569
    %v3648 = vunpack.c.l.b16 %v1570
    %v3649 = vunpack.c.h.b16 %v1570
    %v3650 = vunpack.c.l.b16 %v1571
    %v3651 = vunpack.c.h.b16 %v1571
    %v3652 = vunpack.c.l.b16 %v1572
    %v3653 = vunpack.c.h.b16 %v1572
    %v3654 = vunpack.c.l.b16 %v1573
    %v3655 = vunpack.c.h.b16 %v1573
    %v3656 = vunpack.c.l.b16 %v1574
    %v3657 = vunpack.c.h.b16 %v1574
    %v3658 = vunpack.c.l.b16 %v1575
    %v3659 = vunpack.c.h.b16 %v1575
    %v3660 = vunpack.c.l.b16 %v1576
    %v3661 = vunpack.c.h.b16 %v1576
    %v3662 = vunpack.c.l.b16 %v1577
    %v3663 = vunpack.c.h.b16 %v1577
    %v3664 = vunpack.c.l.b16 %v1578
    %v3665 = vunpack.c.h.b16 %v1578
    %v3666 = vunpack.c.l.b16 %v1579
    %v3667 = vunpack.c.l.b16 %v1580
    %v3668 = vunpack.c.h.b16 %v1580
    %v3669 = vunpack.c.l.b16 %v1581
    %v3670 = vunpack.c.h.b16 %v1581
    %v3671 = vunpack.c.l.b16 %v1582
    %v3672 = vunpack.c.h.b16 %v1582
    %v3673 = vunpack.c.l.b16 %v1583
    %v3674 = vunpack.c.h.b16 %v1583
    %v3675 = vunpack.c.l.b16 %v1584
    %v3676 = vunpack.c.h.b16 %v1584
    %v3677 = vunpack.c.l.b16 %v1585
    %v3678 = vunpack.c.h.b16 %v1585
    %v3679 = vunpack.c.l.b16 %v1586
    %v3680 = vunpack.c.h.b16 %v1586
    %v3681 = vunpack.c.l.b16 %v1587
    %v3682 = vunpack.c.h.b16 %v1587
    %v3683 = vunpack.c.l.b16 %v1588
    %v3684 = vunpack.c.h.b16 %v1588
    %v3685 = vunpack.c.l.b16 %v1589
    %v3686 = vunpack.c.h.b16 %v1589
    %v3687 = vunpack.c.l.b16 %v1590
    %v3688 = vunpack.c.h.b16 %v1590
    %v3689 = vunpack.c.l.b16 %v1591
    %v3690 = vunpack.c.h.b16 %v1591
    %v3691 = vunpack.c.l.b16 %v1592
    %v3692 = vunpack.c.h.b16 %v1592
    %v3693 = vunpack.c.l.b16 %v1593
    %v3694 = vunpack.c.h.b16 %v1593
    %v3695 = vunpack.c.l.b16 %v1594
    %v3696 = vunpack.c.l.b16 %v1595
    %v3697 = vunpack.c.h.b16 %v1595
    %v3698 = vunpack.c.l.b16 %v1596
    %v3699 = vunpack.c.h.b16 %v1596
    %v3700 = vunpack.c.l.b16 %v1597
    %v3701 = vunpack.c.h.b16 %v1597
    %v3702 = vunpack.c.l.b16 %v1598
    %v3703 = vunpack.c.h.b16 %v1598
    %v3704 = vunpack.c.l.b16 %v1599
    %v3705 = vunpack.c.h.b16 %v1599
    %v3706 = vunpack.c.l.b16 %v1600
    %v3707 = vunpack.c.h.b16 %v1600
    %v3708 = vunpack.c.l.b16 %v1601
    %v3709 = vunpack.c.h.b16 %v1601
    %v3710 = vunpack.c.l.b16 %v1602
    %v3711 = vunpack.c.h.b16 %v1602
    %v3712 = vunpack.c.l.b16 %v1603
    %v3713 = vunpack.c.h.b16 %v1603
    %v3714 = vunpack.c.l.b16 %v1604
    %v3715 = vunpack.c.h.b16 %v1604
    %v3716 = vunpack.c.l.b16 %v1605
    %v3717 = vunpack.c.h.b16 %v1605
    %v3718 = vunpack.c.l.b16 %v1606
    %v3719 = vunpack.c.h.b16 %v1606
    %v3720 = vunpack.c.l.b16 %v1607
    %v3721 = vunpack.c.h.b16 %v1607
    %v3722 = vunpack.c.l.b16 %v1608
    %v3723 = vunpack.c.h.b16 %v1608
    %v3724 = vunpack.c.l.b16 %v1609
    %v3725 = vunpack.c.l.b16 %v1610
    %v3726 = vunpack.c.h.b16 %v1610
    %v3727 = vunpack.c.l.b16 %v1611
    %v3728 = vunpack.c.h.b16 %v1611
    %v3729 = vunpack.c.l.b16 %v1612
    %v3730 = vunpack.c.h.b16 %v1612
    %v3731 = vunpack.c.l.b16 %v1613
    %v3732 = vunpack.c.h.b16 %v1613
    %v3733 = vunpack.c.l.b16 %v1614
    %v3734 = vunpack.c.h.b16 %v1614
    %v3735 = vunpack.c.l.b16 %v1615
    %v3736 = vunpack.c.h.b16 %v1615
    %v3737 = vunpack.c.l.b16 %v1616
    %v3738 = vunpack.c.h.b16 %v1616
    %v3739 = vunpack.c.l.b16 %v1617
    %v3740 = vunpack.c.h.b16 %v1617
    %v3741 = vunpack.c.l.b16 %v1618
    %v3742 = vunpack.c.h.b16 %v1618
    %v3743 = vunpack.c.l.b16 %v1619
    %v3744 = vunpack.c.h.b16 %v1619
    %v3745 = vunpack.c.l.b16 %v1620
    %v3746 = vunpack.c.h.b16 %v1620
    %v3747 = vunpack.c.l.b16 %v1621
    %v3748 = vunpack.c.h.b16 %v1621
    %v3749 = vunpack.c.l.b16 %v1622
    %v3750 = vunpack.c.h.b16 %v1622
    %v3751 = vunpack.c.l.b16 %v1623
    %v3752 = vunpack.c.h.b16 %v1623
    %v3753 = vunpack.c.l.b16 %v1624
    %v3754 = vunpack.c.l.b16 %v1625
    %v3755 = vunpack.c.h.b16 %v1625
    %v3756 = vunpack.c.l.b16 %v1626
    %v3757 = vunpack.c.h.b16 %v1626
    %v3758 = vunpack.c.l.b16 %v1627
    %v3759 = vunpack.c.h.b16 %v1627
    %v3760 = vunpack.c.l.b16 %v1628
    %v3761 = vunpack.c.h.b16 %v1628
    %v3762 = vunpack.c.l.b16 %v1629
    %v3763 = vunpack.c.h.b16 %v1629
    %v3764 = vunpack.c.l.b16 %v1630
    %v3765 = vunpack.c.h.b16 %v1630
    %v3766 = vunpack.c.l.b16 %v1631
    %v3767 = vunpack.c.h.b16 %v1631
    %v3768 = vunpack.c.l.b16 %v1632
    %v3769 = vunpack.c.h.b16 %v1632
    %v3770 = vunpack.c.l.b16 %v1633
    %v3771 = vunpack.c.h.b16 %v1633
    %v3772 = vunpack.c.l.b16 %v1634
    %v3773 = vunpack.c.h.b16 %v1634
    %v3774 = vunpack.c.l.b16 %v1635
    %v3775 = vunpack.c.h.b16 %v1635
    %v3776 = vunpack.c.l.b16 %v1636
    %v3777 = vunpack.c.h.b16 %v1636
    %v3778 = vunpack.c.l.b16 %v1637
    %v3779 = vunpack.c.h.b16 %v1637
    %v3780 = vunpack.c.l.b16 %v1638
    %v3781 = vunpack.c.h.b16 %v1638
    %v3782 = vunpack.c.l.b16 %v1639
    %v3783 = vunpack.c.l.b16 %v1640
    %v3784 = vunpack.c.h.b16 %v1640
    %v3785 = vunpack.c.l.b16 %v1641
    %v3786 = vunpack.c.h.b16 %v1641
    %v3787 = vunpack.c.l.b16 %v1642
    %v3788 = vunpack.c.h.b16 %v1642
    %v3789 = vunpack.c.l.b16 %v1643
    %v3790 = vunpack.c.h.b16 %v1643
    %v3791 = vunpack.c.l.b16 %v1644
    %v3792 = vunpack.c.h.b16 %v1644
    %v3793 = vunpack.c.l.b16 %v1645
    %v3794 = vunpack.c.h.b16 %v1645
    %v3795 = vunpack.c.l.b16 %v1646
    %v3796 = vunpack.c.h.b16 %v1646
    %v3797 = vunpack.c.l.b16 %v1647
    %v3798 = vunpack.c.h.b16 %v1647
    %v3799 = vunpack.c.l.b16 %v1648
    %v3800 = vunpack.c.h.b16 %v1648
    %v3801 = vunpack.c.l.b16 %v1649
    %v3802 = vunpack.c.h.b16 %v1649
    %v3803 = vunpack.c.l.b16 %v1650
    %v3804 = vunpack.c.h.b16 %v1650
    %v3805 = vunpack.c.l.b16 %v1651
    %v3806 = vunpack.c.h.b16 %v1651
    %v3807 = vunpack.c.l.b16 %v1652
    %v3808 = vunpack.c.h.b16 %v1652
    %v3809 = vunpack.c.l.b16 %v1653
    %v3810 = vunpack.c.h.b16 %v1653
    %v3811 = vunpack.c.l.b16 %v1654
    %v3812 = vunpack.c.l.b16 %v1655
    %v3813 = vunpack.c.h.b16 %v1655
    %v3814 = vunpack.c.l.b16 %v1656
    %v3815 = vunpack.c.h.b16 %v1656
    %v3816 = vunpack.c.l.b16 %v1657
    %v3817 = vunpack.c.h.b16 %v1657
    %v3818 = vunpack.c.l.b16 %v1658
    %v3819 = vunpack.c.h.b16 %v1658
    %v3820 = vunpack.c.l.b16 %v1659
    %v3821 = vunpack.c.h.b16 %v1659
    %v3822 = vunpack.c.l.b16 %v1660
    %v3823 = vunpack.c.h.b16 %v1660
    %v3824 = vunpack.c.l.b16 %v1661
    %v3825 = vunpack.c.h.b16 %v1661
    %v3826 = vunpack.c.l.b16 %v1662
    %v3827 = vunpack.c.h.b16 %v1662
    %v3828 = vunpack.c.l.b16 %v1663
    %v3829 = vunpack.c.h.b16 %v1663
    %v3830 = vunpack.c.l.b16 %v1664
    %v3831 = vunpack.c.h.b16 %v1664
    %v3832 = vunpack.c.l.b16 %v1665
    %v3833 = vunpack.c.h.b16 %v1665
    %v3834 = vunpack.c.l.b16 %v1666
    %v3835 = vunpack.c.h.b16 %v1666
    %v3836 = vunpack.c.l.b16 %v1667
    %v3837 = vunpack.c.h.b16 %v1667
    %v3838 = vunpack.c.l.b16 %v1668
    %v3839 = vunpack.c.h.b16 %v1668
    %v3840 = vunpack.c.l.b16 %v1669
    %v3841 = vunpack.c.l.b16 %v1670
    %v3842 = vunpack.c.h.b16 %v1670
    %v3843 = vunpack.c.l.b16 %v1671
    %v3844 = vunpack.c.h.b16 %v1671
    %v3845 = vunpack.c.l.b16 %v1672
    %v3846 = vunpack.c.h.b16 %v1672
    %v3847 = vunpack.c.l.b16 %v1673
    %v3848 = vunpack.c.h.b16 %v1673
    %v3849 = vunpack.c.l.b16 %v1674
    %v3850 = vunpack.c.h.b16 %v1674
    %v3851 = vunpack.c.l.b16 %v1675
    %v3852 = vunpack.c.h.b16 %v1675
    %v3853 = vunpack.c.l.b16 %v1676
    %v3854 = vunpack.c.h.b16 %v1676
    %v3855 = vunpack.c.l.b16 %v1677
    %v3856 = vunpack.c.h.b16 %v1677
    %v3857 = vunpack.c.l.b16 %v1678
    %v3858 = vunpack.c.h.b16 %v1678
    %v3859 = vunpack.c.l.b16 %v1679
    %v3860 = vunpack.c.h.b16 %v1679
    %v3861 = vunpack.c.l.b16 %v1680
    %v3862 = vunpack.c.h.b16 %v1680
    %v3863 = vunpack.c.l.b16 %v1681
    %v3864 = vunpack.c.h.b16 %v1681
    %v3865 = vunpack.c.l.b16 %v1682
    %v3866 = vunpack.c.h.b16 %v1682
    %v3867 = vunpack.c.l.b16 %v1683
    %v3868 = vunpack.c.h.b16 %v1683
    %v3869 = vunpack.c.l.b16 %v1684
    %v3870 = vunpack.c.l.b16 %v1685
    %v3871 = vunpack.c.h.b16 %v1685
    %v3872 = vunpack.c.l.b16 %v1686
    %v3873 = vunpack.c.h.b16 %v1686
    %v3874 = vunpack.c.l.b16 %v1687
    %v3875 = vunpack.c.h.b16 %v1687
    %v3876 = vunpack.c.l.b16 %v1688
    %v3877 = vunpack.c.h.b16 %v1688
    %v3878 = vunpack.c.l.b16 %v1689
    %v3879 = vunpack.c.h.b16 %v1689
    %v3880 = vunpack.c.l.b16 %v1690
    %v3881 = vunpack.c.h.b16 %v1690
    %v3882 = vunpack.c.l.b16 %v1691
    %v3883 = vunpack.c.h.b16 %v1691
    %v3884 = vunpack.c.l.b16 %v1692
    %v3885 = vunpack.c.h.b16 %v1692
    %v3886 = vunpack.c.l.b16 %v1693
    %v3887 = vunpack.c.h.b16 %v1693
    %v3888 = vunpack.c.l.b16 %v1694
    %v3889 = vunpack.c.h.b16 %v1694
    %v3890 = vunpack.c.l.b16 %v1695
    %v3891 = vunpack.c.h.b16 %v1695
    %v3892 = vunpack.c.l.b16 %v1696
    %v3893 = vunpack.c.h.b16 %v1696
    %v3894 = vunpack.c.l.b16 %v1697
    %v3895 = vunpack.c.h.b16 %v1697
    %v3896 = vunpack.c.l.b16 %v1698
    %v3897 = vunpack.c.h.b16 %v1698
    %v3898 = vunpack.c.l.b16 %v1699
    %v3899 = vunpack.c.l.b16 %v1700
    %v3900 = vunpack.c.h.b16 %v1700
    %v3901 = vunpack.c.l.b16 %v1701
    %v3902 = vunpack.c.h.b16 %v1701
    %v3903 = vunpack.c.l.b16 %v1702
    %v3904 = vunpack.c.h.b16 %v1702
    %v3905 = vunpack.c.l.b16 %v1703
    %v3906 = vunpack.c.h.b16 %v1703
    %v3907 = vunpack.c.l.b16 %v1704
    %v3908 = vunpack.c.h.b16 %v1704
    %v3909 = vunpack.c.l.b16 %v1705
    %v3910 = vunpack.c.h.b16 %v1705
    %v3911 = vunpack.c.l.b16 %v1706
    %v3912 = vunpack.c.h.b16 %v1706
    %v3913 = vunpack.c.l.b16 %v1707
    %v3914 = vunpack.c.h.b16 %v1707
    %v3915 = vunpack.c.l.b16 %v1708
    %v3916 = vunpack.c.h.b16 %v1708
    %v3917 = vunpack.c.l.b16 %v1709
    %v3918 = vunpack.c.h.b16 %v1709
    %v3919 = vunpack.c.l.b16 %v1710
    %v3920 = vunpack.c.h.b16 %v1710
    %v3921 = vunpack.c.l.b16 %v1711
    %v3922 = vunpack.c.h.b16 %v1711
    %v3923 = vunpack.c.l.b16 %v1712
    %v3924 = vunpack.c.h.b16 %v1712
    %v3925 = vunpack.c.l.b16 %v1713
    %v3926 = vunpack.c.h.b16 %v1713
    %v3927 = vunpack.c.l.b16 %v1714
    %v3928 = vunpack.c.l.b16 %v1715
    %v3929 = vunpack.c.h.b16 %v1715
    %v3930 = vunpack.c.l.b16 %v1716
    %v3931 = vunpack.c.h.b16 %v1716
    %v3932 = vunpack.c.l.b16 %v1717
    %v3933 = vunpack.c.h.b16 %v1717
    %v3934 = vunpack.c.l.b16 %v1718
    %v3935 = vunpack.c.h.b16 %v1718
    %v3936 = vunpack.c.l.b16 %v1719
    %v3937 = vunpack.c.h.b16 %v1719
    %v3938 = vunpack.c.l.b16 %v1720
    %v3939 = vunpack.c.h.b16 %v1720
    %v3940 = vunpack.c.l.b16 %v1721
    %v3941 = vunpack.c.h.b16 %v1721
    %v3942 = vunpack.c.l.b16 %v1722
    %v3943 = vunpack.c.h.b16 %v1722
    %v3944 = vunpack.c.l.b16 %v1723
    %v3945 = vunpack.c.h.b16 %v1723
    %v3946 = vunpack.c.l.b16 %v1724
    %v3947 = vunpack.c.h.b16 %v1724
    %v3948 = vunpack.c.l.b16 %v1725
    %v3949 = vunpack.c.h.b16 %v1725
    %v3950 = vunpack.c.l.b16 %v1726
    %v3951 = vunpack.c.h.b16 %v1726
    %v3952 = vunpack.c.l.b16 %v1727
    %v3953 = vunpack.c.h.b16 %v1727
    %v3954 = vunpack.c.l.b16 %v1728
    %v3955 = vunpack.c.h.b16 %v1728
    %v3956 = vunpack.c.l.b16 %v1729
    %v3957 = vunpack.c.l.b16 %v1730
    %v3958 = vunpack.c.h.b16 %v1730
    %v3959 = vunpack.c.l.b16 %v1731
    %v3960 = vunpack.c.h.b16 %v1731
    %v3961 = vunpack.c.l.b16 %v1732
    %v3962 = vunpack.c.h.b16 %v1732
    %v3963 = vunpack.c.l.b16 %v1733
    %v3964 = vunpack.c.h.b16 %v1733
    %v3965 = vunpack.c.l.b16 %v1734
    %v3966 = vunpack.c.h.b16 %v1734
    %v3967 = vunpack.c.l.b16 %v1735
    %v3968 = vunpack.c.h.b16 %v1735
    %v3969 = vunpack.c.l.b16 %v1736
    %v3970 = vunpack.c.h.b16 %v1736
    %v3971 = vunpack.c.l.b16 %v1737
    %v3972 = vunpack.c.h.b16 %v1737
    %v3973 = vunpack.c.l.b16 %v1738
    %v3974 = vunpack.c.h.b16 %v1738
    %v3975 = vunpack.c.l.b16 %v1739
    %v3976 = vunpack.c.h.b16 %v1739
    %v3977 = vunpack.c.l.b16 %v1740
    %v3978 = vunpack.c.h.b16 %v1740
    %v3979 = vunpack.c.l.b16 %v1741
    %v3980 = vunpack.c.h.b16 %v1741
    %v3981 = vunpack.c.l.b16 %v1742
    %v3982 = vunpack.c.h.b16 %v1742
    %v3983 = vunpack.c.l.b16 %v1743
    %v3984 = vunpack.c.h.b16 %v1743
    %v3985 = vunpack.c.l.b16 %v1744
    %v3986 = vunpack.c.l.b16 %v1745
    %v3987 = vunpack.c.h.b16 %v1745
    %v3988 = vunpack.c.l.b16 %v1746
    %v3989 = vunpack.c.h.b16 %v1746
    %v3990 = vunpack.c.l.b16 %v1747
    %v3991 = vunpack.c.h.b16 %v1747
    %v3992 = vunpack.c.l.b16 %v1748
    %v3993 = vunpack.c.h.b16 %v1748
    %v3994 = vunpack.c.l.b16 %v1749
    %v3995 = vunpack.c.h.b16 %v1749
    %v3996 = vunpack.c.l.b16 %v1750
    %v3997 = vunpack.c.h.b16 %v1750
    %v3998 = vunpack.c.l.b16 %v1751
    %v3999 = vunpack.c.h.b16 %v1751
    %v4000 = vunpack.c.l.b16 %v1752
    %v4001 = vunpack.c.h.b16 %v1752
    %v4002 = vunpack.c.l.b16 %v1753
    %v4003 = vunpack.c.h.b16 %v1753
    %v4004 = vunpack.c.l.b16 %v1754
    %v4005 = vunpack.c.h.b16 %v1754
    %v4006 = vunpack.c.l.b16 %v1755
    %v4007 = vunpack.c.h.b16 %v1755
    %v4008 = vunpack.c.l.b16 %v1756
    %v4009 = vunpack.c.h.b16 %v1756
    %v4010 = vunpack.c.l.b16 %v1757
    %v4011 = vunpack.c.h.b16 %v1757
    %v4012 = vunpack.c.l.b16 %v1758
    %v4013 = vunpack.c.h.b16 %v1758
    %v4014 = vunpack.c.l.b16 %v1759
    %v4015 = vunpack.c.l.b16 %v1760
    %v4016 = vunpack.c.h.b16 %v1760
    %v4017 = vunpack.c.l.b16 %v1761
    %v4018 = vunpack.c.h.b16 %v1761
    %v4019 = vunpack.c.l.b16 %v1762
    %v4020 = vunpack.c.h.b16 %v1762
    %v4021 = vunpack.c.l.b16 %v1763
    %v4022 = vunpack.c.h.b16 %v1763
    %v4023 = vunpack.c.l.b16 %v1764
    %v4024 = vunpack.c.h.b16 %v1764
    %v4025 = vunpack.c.l.b16 %v1765
    %v4026 = vunpack.c.h.b16 %v1765
    %v4027 = vunpack.c.l.b16 %v1766
    %v4028 = vunpack.c.h.b16 %v1766
    %v4029 = vunpack.c.l.b16 %v1767
    %v4030 = vunpack.c.h.b16 %v1767
    %v4031 = vunpack.c.l.b16 %v1768
    %v4032 = vunpack.c.h.b16 %v1768
    %v4033 = vunpack.c.l.b16 %v1769
    %v4034 = vunpack.c.h.b16 %v1769
    %v4035 = vunpack.c.l.b16 %v1770
    %v4036 = vunpack.c.h.b16 %v1770
    %v4037 = vunpack.c.l.b16 %v1771
    %v4038 = vunpack.c.h.b16 %v1771
    %v4039 = vunpack.c.l.b16 %v1772
    %v4040 = vunpack.c.h.b16 %v1772
    %v4041 = vunpack.c.l.b16 %v1773
    %v4042 = vunpack.c.h.b16 %v1773
    %v4043 = vunpack.c.l.b16 %v1774
    %v4044 = vunpack.c.l.b16 %v1775
    %v4045 = vunpack.c.h.b16 %v1775
    %v4046 = vunpack.c.l.b16 %v1776
    %v4047 = vunpack.c.h.b16 %v1776
    %v4048 = vunpack.c.l.b16 %v1777
    %v4049 = vunpack.c.h.b16 %v1777
    %v4050 = vunpack.c.l.b16 %v1778
    %v4051 = vunpack.c.h.b16 %v1778
    %v4052 = vunpack.c.l.b16 %v1779
    %v4053 = vunpack.c.h.b16 %v1779
    %v4054 = vunpack.c.l.b16 %v1780
    %v4055 = vunpack.c.h.b16 %v1780
    %v4056 = vunpack.c.l.b16 %v1781
    %v4057 = vunpack.c.h.b16 %v1781
    %v4058 = vunpack.c.l.b16 %v1782
    %v4059 = vunpack.c.h.b16 %v1782
    %v4060 = vunpack.c.l.b16 %v1783
    %v4061 = vunpack.c.h.b16 %v1783
    %v4062 = vunpack.c.l.b16 %v1784
    %v4063 = vunpack.c.h.b16 %v1784
    %v4064 = vunpack.c.l.b16 %v1785
    %v4065 = vunpack.c.h.b16 %v1785
    %v4066 = vunpack.c.l.b16 %v1786
    %v4067 = vunpack.c.h.b16 %v1786
    %v4068 = vunpack.c.l.b16 %v1787
    %v4069 = vunpack.c.h.b16 %v1787
    %v4070 = vunpack.c.l.b16 %v1788
    %v4071 = vunpack.c.h.b16 %v1788
    %v4072 = vunpack.c.l.b16 %v1789
    %v4073 = vunpack.c.l.b16 %v1790
    %v4074 = vunpack.c.h.b16 %v1790
    %v4075 = vunpack.c.l.b16 %v1791
    %v4076 = vunpack.c.h.b16 %v1791
    %v4077 = vunpack.c.l.b16 %v1792
    %v4078 = vunpack.c.h.b16 %v1792
    %v4079 = vunpack.c.l.b16 %v1793
    %v4080 = vunpack.c.h.b16 %v1793
    %v4081 = vunpack.c.l.b16 %v1794
    %v4082 = vunpack.c.h.b16 %v1794
    %v4083 = vunpack.c.l.b16 %v1795
    %v4084 = vunpack.c.h.b16 %v1795
    %v4085 = vunpack.c.l.b16 %v1796
    %v4086 = vunpack.c.h.b16 %v1796
    %v4087 = vunpack.c.l.b16 %v1797
    %v4088 = vunpack.c.h.b16 %v1797
    %v4089 = vunpack.c.l.b16 %v1798
    %v4090 = vunpack.c.h.b16 %v1798
    %v4091 = vunpack.c.l.b16 %v1799
    %v4092 = vunpack.c.h.b16 %v1799
    %v4093 = vunpack.c.l.b16 %v1800
    %v4094 = vunpack.c.h.b16 %v1800
    %v4095 = vunpack.c.l.b16 %v1801
    %v4096 = vunpack.c.h.b16 %v1801
    %v4097 = vunpack.c.l.b16 %v1802
    %v4098 = vunpack.c.h.b16 %v1802
    %v4099 = vunpack.c.l.b16 %v1803
    %v4100 = vunpack.c.h.b16 %v1803
    %v4101 = vunpack.c.l.b16 %v1804
    %v4102 = vunpack.c.l.b16 %v1805
    %v4103 = vunpack.c.h.b16 %v1805
    %v4104 = vunpack.c.l.b16 %v1806
    %v4105 = vunpack.c.h.b16 %v1806
    %v4106 = vunpack.c.l.b16 %v1807
    %v4107 = vunpack.c.h.b16 %v1807
    %v4108 = vunpack.c.l.b16 %v1808
    %v4109 = vunpack.c.h.b16 %v1808
    %v4110 = vunpack.c.l.b16 %v1809
    %v4111 = vunpack.c.h.b16 %v1809
    %v4112 = vunpack.c.l.b16 %v1810
    %v4113 = vunpack.c.h.b16 %v1810
    %v4114 = vunpack.c.l.b16 %v1811
    %v4115 = vunpack.c.h.b16 %v1811
    %v4116 = vunpack.c.l.b16 %v1812
    %v4117 = vunpack.c.h.b16 %v1812
    %v4118 = vunpack.c.l.b16 %v1813
    %v4119 = vunpack.c.h.b16 %v1813
    %v4120 = vunpack.c.l.b16 %v1814
    %v4121 = vunpack.c.h.b16 %v1814
    %v4122 = vunpack.c.l.b16 %v1815
    %v4123 = vunpack.c.h.b16 %v1815
    %v4124 = vunpack.c.l.b16 %v1816
    %v4125 = vunpack.c.h.b16 %v1816
    %v4126 = vunpack.c.l.b16 %v1817
    %v4127 = vunpack.c.h.b16 %v1817
    %v4128 = vunpack.c.l.b16 %v1818
    %v4129 = vunpack.c.h.b16 %v1818
    %v4130 = vunpack.c.l.b16 %v1819
    %v4131 = vunpack.c.l.b16 %v1820
    %v4132 = vunpack.c.h.b16 %v1820
    %v4133 = vunpack.c.l.b16 %v1821
    %v4134 = vunpack.c.h.b16 %v1821
    %v4135 = vunpack.c.l.b16 %v1822
    %v4136 = vunpack.c.h.b16 %v1822
    %v4137 = vunpack.c.l.b16 %v1823
    %v4138 = vunpack.c.h.b16 %v1823
    %v4139 = vunpack.c.l.b16 %v1824
    %v4140 = vunpack.c.h.b16 %v1824
    %v4141 = vunpack.c.l.b16 %v1825
    %v4142 = vunpack.c.h.b16 %v1825
    %v4143 = vunpack.c.l.b16 %v1826
    %v4144 = vunpack.c.h.b16 %v1826
    %v4145 = vunpack.c.l.b16 %v1827
    %v4146 = vunpack.c.h.b16 %v1827
    %v4147 = vunpack.c.l.b16 %v1828
    %v4148 = vunpack.c.h.b16 %v1828
    %v4149 = vunpack.c.l.b16 %v1829
    %v4150 = vunpack.c.h.b16 %v1829
    %v4151 = vunpack.c.l.b16 %v1830
    %v4152 = vunpack.c.h.b16 %v1830
    %v4153 = vunpack.c.l.b16 %v1831
    %v4154 = vunpack.c.h.b16 %v1831
    %v4155 = vunpack.c.l.b16 %v1832
    %v4156 = vunpack.c.h.b16 %v1832
    %v4157 = vunpack.c.l.b16 %v1833
    %v4158 = vunpack.c.h.b16 %v1833
    %v4159 = vunpack.c.l.b16 %v1834
    %v4160 = vunpack.c.l.b16 %v1835
    %v4161 = vunpack.c.h.b16 %v1835
    %v4162 = vunpack.c.l.b16 %v1836
    %v4163 = vunpack.c.h.b16 %v1836
    %v4164 = vunpack.c.l.b16 %v1837
    %v4165 = vunpack.c.h.b16 %v1837
    %v4166 = vunpack.c.l.b16 %v1838
    %v4167 = vunpack.c.h.b16 %v1838
    %v4168 = vunpack.c.l.b16 %v1839
    %v4169 = vunpack.c.h.b16 %v1839
    %v4170 = vunpack.c.l.b16 %v1840
    %v4171 = vunpack.c.h.b16 %v1840
    %v4172 = vunpack.c.l.b16 %v1841
    %v4173 = vunpack.c.h.b16 %v1841
    %v4174 = vunpack.c.l.b16 %v1842
    %v4175 = vunpack.c.h.b16 %v1842
    %v4176 = vunpack.c.l.b16 %v1843
    %v4177 = vunpack.c.h.b16 %v1843
    %v4178 = vunpack.c.l.b16 %v1844
    %v4179 = vunpack.c.h.b16 %v1844
    %v4180 = vunpack.c.l.b16 %v1845
    %v4181 = vunpack.c.h.b16 %v1845
    %v4182 = vunpack.c.l.b16 %v1846
    %v4183 = vunpack.c.h.b16 %v1846
    %v4184 = vunpack.c.l.b16 %v1847
    %v4185 = vunpack.c.h.b16 %v1847
    %v4186 = vunpack.c.l.b16 %v1848
    %v4187 = vunpack.c.h.b16 %v1848
    %v4188 = vunpack.c.l.b16 %v1849
    %v4189 = vunpack.c.l.b16 %v1850
    %v4190 = vunpack.c.h.b16 %v1850
    %v4191 = vunpack.c.l.b16 %v1851
    %v4192 = vunpack.c.h.b16 %v1851
    %v4193 = vunpack.c.l.b16 %v1852
    %v4194 = vunpack.c.h.b16 %v1852
    %v4195 = vunpack.c.l.b16 %v1853
    %v4196 = vunpack.c.h.b16 %v1853
    %v4197 = vunpack.c.l.b16 %v1854
    %v4198 = vunpack.c.h.b16 %v1854
    %v4199 = vunpack.c.l.b16 %v1855
    %v4200 = vunpack.c.h.b16 %v1855
    %v4201 = vunpack.c.l.b16 %v1856
    %v4202 = vunpack.c.h.b16 %v1856
    %v4203 = vunpack.c.l.b16 %v1857
    %v4204 = vunpack.c.h.b16 %v1857
    %v4205 = vunpack.c.l.b16 %v1858
    %v4206 = vunpack.c.h.b16 %v1858
    %v4207 = vunpack.c.l.b16 %v1859
    %v4208 = vunpack.c.h.b16 %v1859
    %v4209 = vunpack.c.l.b16 %v1860
    %v4210 = vunpack.c.h.b16 %v1860
    %v4211 = vunpack.c.l.b16 %v1861
    %v4212 = vunpack.c.h.b16 %v1861
    %v4213 = vunpack.c.l.b16 %v1862
    %v4214 = vunpack.c.h.b16 %v1862
    %v4215 = vunpack.c.l.b16 %v1863
    %v4216 = vunpack.c.h.b16 %v1863
    %v4217 = vunpack.c.l.b16 %v1864
    %v4218 = vunpack.c.l.b16 %v1865
    %v4219 = vunpack.c.h.b16 %v1865
    %v4220 = vunpack.c.l.b16 %v1866
    %v4221 = vunpack.c.h.b16 %v1866
    %v4222 = vunpack.c.l.b16 %v1867
    %v4223 = vunpack.c.h.b16 %v1867
    %v4224 = vunpack.c.l.b16 %v1868
    %v4225 = vunpack.c.h.b16 %v1868
    %v4226 = vunpack.c.l.b16 %v1869
    %v4227 = vunpack.c.h.b16 %v1869
    %v4228 = vunpack.c.l.b16 %v1870
    %v4229 = vunpack.c.h.b16 %v1870
    %v4230 = vunpack.c.l.b16 %v1871
    %v4231 = vunpack.c.h.b16 %v1871
    %v4232 = vunpack.c.l.b16 %v1872
    %v4233 = vunpack.c.h.b16 %v1872
    %v4234 = vunpack.c.l.b16 %v1873
    %v4235 = vunpack.c.h.b16 %v1873
    %v4236 = vunpack.c.l.b16 %v1874
    %v4237 = vunpack.c.h.b16 %v1874
    %v4238 = vunpack.c.l.b16 %v1875
    %v4239 = vunpack.c.h.b16 %v1875
    %v4240 = vunpack.c.l.b16 %v1876
    %v4241 = vunpack.c.h.b16 %v1876
    %v4242 = vunpack.c.l.b16 %v1877
    %v4243 = vunpack.c.h.b16 %v1877
    %v4244 = vunpack.c.l.b16 %v1878
    %v4245 = vunpack.c.h.b16 %v1878
    %v4246 = vunpack.c.l.b16 %v1879
    %v4247 = vunpack.c.l.b16 %v1880
    %v4248 = vunpack.c.h.b16 %v1880
    %v4249 = vunpack.c.l.b16 %v1881
    %v4250 = vunpack.c.h.b16 %v1881
    %v4251 = vunpack.c.l.b16 %v1882
    %v4252 = vunpack.c.h.b16 %v1882
    %v4253 = vunpack.c.l.b16 %v1883
    %v4254 = vunpack.c.h.b16 %v1883
    %v4255 = vunpack.c.l.b16 %v1884
    %v4256 = vunpack.c.h.b16 %v1884
    %v4257 = vunpack.c.l.b16 %v1885
    %v4258 = vunpack.c.h.b16 %v1885
    %v4259 = vunpack.c.l.b16 %v1886
    %v4260 = vunpack.c.h.b16 %v1886
    %v4261 = vunpack.c.l.b16 %v1887
    %v4262 = vunpack.c.h.b16 %v1887
    %v4263 = vunpack.c.l.b16 %v1888
    %v4264 = vunpack.c.h.b16 %v1888
    %v4265 = vunpack.c.l.b16 %v1889
    %v4266 = vunpack.c.h.b16 %v1889
    %v4267 = vunpack.c.l.b16 %v1890
    %v4268 = vunpack.c.h.b16 %v1890
    %v4269 = vunpack.c.l.b16 %v1891
    %v4270 = vunpack.c.h.b16 %v1891
    %v4271 = vunpack.c.l.b16 %v1892
    %v4272 = vunpack.c.h.b16 %v1892
    %v4273 = vunpack.c.l.b16 %v1893
    %v4274 = vunpack.c.h.b16 %v1893
    %v4275 = vunpack.c.l.b16 %v1894
    %v4276 = vunpack.c.l.b16 %v1895
    %v4277 = vunpack.c.h.b16 %v1895
    %v4278 = vunpack.c.l.b16 %v1896
    %v4279 = vunpack.c.h.b16 %v1896
    %v4280 = vunpack.c.l.b16 %v1897
    %v4281 = vunpack.c.h.b16 %v1897
    %v4282 = vunpack.c.l.b16 %v1898
    %v4283 = vunpack.c.h.b16 %v1898
    %v4284 = vunpack.c.l.b16 %v1899
    %v4285 = vunpack.c.h.b16 %v1899
    %v4286 = vunpack.c.l.b16 %v1900
    %v4287 = vunpack.c.h.b16 %v1900
    %v4288 = vunpack.c.l.b16 %v1901
    %v4289 = vunpack.c.h.b16 %v1901
    %v4290 = vunpack.c.l.b16 %v1902
    %v4291 = vunpack.c.h.b16 %v1902
    %v4292 = vunpack.c.l.b16 %v1903
    %v4293 = vunpack.c.h.b16 %v1903
    %v4294 = vunpack.c.l.b16 %v1904
    %v4295 = vunpack.c.h.b16 %v1904
    %v4296 = vunpack.c.l.b16 %v1905
    %v4297 = vunpack.c.h.b16 %v1905
    %v4298 = vunpack.c.l.b16 %v1906
    %v4299 = vunpack.c.h.b16 %v1906
    %v4300 = vunpack.c.l.b16 %v1907
    %v4301 = vunpack.c.h.b16 %v1907
    %v4302 = vunpack.c.l.b16 %v1908
    %v4303 = vunpack.c.h.b16 %v1908
    %v4304 = vunpack.c.l.b16 %v1909
    %v4305 = vunpack.c.l.b16 %v1910
    %v4306 = vunpack.c.h.b16 %v1910
    %v4307 = vunpack.c.l.b16 %v1911
    %v4308 = vunpack.c.h.b16 %v1911
    %v4309 = vunpack.c.l.b16 %v1912
    %v4310 = vunpack.c.h.b16 %v1912
    %v4311 = vunpack.c.l.b16 %v1913
    %v4312 = vunpack.c.h.b16 %v1913
    %v4313 = vunpack.c.l.b16 %v1914
    %v4314 = vunpack.c.h.b16 %v1914
    %v4315 = vunpack.c.l.b16 %v1915
    %v4316 = vunpack.c.h.b16 %v1915
    %v4317 = vunpack.c.l.b16 %v1916
    %v4318 = vunpack.c.h.b16 %v1916
    %v4319 = vunpack.c.l.b16 %v1917
    %v4320 = vunpack.c.h.b16 %v1917
    %v4321 = vunpack.c.l.b16 %v1918
    %v4322 = vunpack.c.h.b16 %v1918
    %v4323 = vunpack.c.l.b16 %v1919
    %v4324 = vunpack.c.h.b16 %v1919
    %v4325 = vunpack.c.l.b16 %v1920
    %v4326 = vunpack.c.h.b16 %v1920
    %v4327 = vunpack.c.l.b16 %v1921
    %v4328 = vunpack.c.h.b16 %v1921
    %v4329 = vunpack.c.l.b16 %v1922
    %v4330 = vunpack.c.h.b16 %v1922
    %v4331 = vunpack.c.l.b16 %v1923
    %v4332 = vunpack.c.h.b16 %v1923
    %v4333 = vunpack.c.l.b16 %v1924
    %v4334 = vunpack.c.l.b16 %v1925
    %v4335 = vunpack.c.h.b16 %v1925
    %v4336 = vunpack.c.l.b16 %v1926
    %v4337 = vunpack.c.h.b16 %v1926
    %v4338 = vunpack.c.l.b16 %v1927
    %v4339 = vunpack.c.h.b16 %v1927
    %v4340 = vunpack.c.l.b16 %v1928
    %v4341 = vunpack.c.h.b16 %v1928
    %v4342 = vunpack.c.l.b16 %v1929
    %v4343 = vunpack.c.h.b16 %v1929
    %v4344 = vunpack.c.l.b16 %v1930
    %v4345 = vunpack.c.h.b16 %v1930
    %v4346 = vunpack.c.l.b16 %v1931
    %v4347 = vunpack.c.h.b16 %v1931
    %v4348 = vunpack.c.l.b16 %v1932
    %v4349 = vunpack.c.h.b16 %v1932
    %v4350 = vunpack.c.l.b16 %v1933
    %v4351 = vunpack.c.h.b16 %v1933
    %v4352 = vunpack.c.l.b16 %v1934
    %v4353 = vunpack.c.h.b16 %v1934
    %v4354 = vunpack.c.l.b16 %v1935
    %v4355 = vunpack.c.h.b16 %v1935
    %v4356 = vunpack.c.l.b16 %v1936
    %v4357 = vunpack.c.h.b16 %v1936
    %v4358 = vunpack.c.l.b16 %v1937
    %v4359 = vunpack.c.h.b16 %v1937
    %v4360 = vunpack.c.l.b16 %v1938
    %v4361 = vunpack.c.h.b16 %v1938
    %v4362 = vunpack.c.l.b16 %v1939
    %v4363 = vunpack.c.l.b16 %v1940
    %v4364 = vunpack.c.h.b16 %v1940
    %v4365 = vunpack.c.l.b16 %v1941
    %v4366 = vunpack.c.h.b16 %v1941
    %v4367 = vunpack.c.l.b16 %v1942
    %v4368 = vunpack.c.h.b16 %v1942
    %v4369 = vunpack.c.l.b16 %v1943
    %v4370 = vunpack.c.h.b16 %v1943
    %v4371 = vunpack.c.l.b16 %v1944
    %v4372 = vunpack.c.h.b16 %v1944
    %v4373 = vunpack.c.l.b16 %v1945
    %v4374 = vunpack.c.h.b16 %v1945
    %v4375 = vunpack.c.l.b16 %v1946
    %v4376 = vunpack.c.h.b16 %v1946
    %v4377 = vunpack.c.l.b16 %v1947
    %v4378 = vunpack.c.h.b16 %v1947
    %v4379 = vunpack.c.l.b16 %v1948
    %v4380 = vunpack.c.h.b16 %v1948
    %v4381 = vunpack.c.l.b16 %v1949
    %v4382 = vunpack.c.h.b16 %v1949
    %v4383 = vunpack.c.l.b16 %v1950
    %v4384 = vunpack.c.h.b16 %v1950
    %v4385 = vunpack.c.l.b16 %v1951
    %v4386 = vunpack.c.h.b16 %v1951
    %v4387 = vunpack.c.l.b16 %v1952
    %v4388 = vunpack.c.h.b16 %v1952
    %v4389 = vunpack.c.l.b16 %v1953
    %v4390 = vunpack.c.h.b16 %v1953
    %v4391 = vunpack.c.l.b16 %v1954
    %v4392 = vunpack.c.l.b16 %v1955
    %v4393 = vunpack.c.h.b16 %v1955
    %v4394 = vunpack.c.l.b16 %v1956
    %v4395 = vunpack.c.h.b16 %v1956
    %v4396 = vunpack.c.l.b16 %v1957
    %v4397 = vunpack.c.h.b16 %v1957
    %v4398 = vunpack.c.l.b16 %v1958
    %v4399 = vunpack.c.h.b16 %v1958
    %v4400 = vunpack.c.l.b16 %v1959
    %v4401 = vunpack.c.h.b16 %v1959
    %v4402 = vunpack.c.l.b16 %v1960
    %v4403 = vunpack.c.h.b16 %v1960
    %v4404 = vunpack.c.l.b16 %v1961
    %v4405 = vunpack.c.h.b16 %v1961
    %v4406 = vunpack.c.l.b16 %v1962
    %v4407 = vunpack.c.h.b16 %v1962
    %v4408 = vunpack.c.l.b16 %v1963
    %v4409 = vunpack.c.h.b16 %v1963
    %v4410 = vunpack.c.l.b16 %v1964
    %v4411 = vunpack.c.h.b16 %v1964
    %v4412 = vunpack.c.l.b16 %v1965
    %v4413 = vunpack.c.h.b16 %v1965
    %v4414 = vunpack.c.l.b16 %v1966
    %v4415 = vunpack.c.h.b16 %v1966
    %v4416 = vunpack.c.l.b16 %v1967
    %v4417 = vunpack.c.h.b16 %v1967
    %v4418 = vunpack.c.l.b16 %v1968
    %v4419 = vunpack.c.h.b16 %v1968
    %v4420 = vunpack.c.l.b16 %v1969
    %v4421 = vunpack.c.l.b16 %v1970
    %v4422 = vunpack.c.h.b16 %v1970
    %v4423 = vunpack.c.l.b16 %v1971
    %v4424 = vunpack.c.h.b16 %v1971
    %v4425 = vunpack.c.l.b16 %v1972
    %v4426 = vunpack.c.h.b16 %v1972
    %v4427 = vunpack.c.l.b16 %v1973
    %v4428 = vunpack.c.h.b16 %v1973
    %v4429 = vunpack.c.l.b16 %v1974
    %v4430 = vunpack.c.h.b16 %v1974
    %v4431 = vunpack.c.l.b16 %v1975
    %v4432 = vunpack.c.h.b16 %v1975
    %v4433 = vunpack.c.l.b16 %v1976
    %v4434 = vunpack.c.h.b16 %v1976
    %v4435 = vunpack.c.l.b16 %v1977
    %v4436 = vunpack.c.h.b16 %v1977
    %v4437 = vunpack.c.l.b16 %v1978
    %v4438 = vunpack.c.h.b16 %v1978
    %v4439 = vunpack.c.l.b16 %v1979
    %v4440 = vunpack.c.h.b16 %v1979
    %v4441 = vunpack.c.l.b16 %v1980
    %v4442 = vunpack.c.h.b16 %v1980
    %v4443 = vunpack.c.l.b16 %v1981
    %v4444 = vunpack.c.h.b16 %v1981
    %v4445 = vunpack.c.l.b16 %v1982
    %v4446 = vunpack.c.h.b16 %v1982
    %v4447 = vunpack.c.l.b16 %v1983
    %v4448 = vunpack.c.h.b16 %v1983
    %v4449 = vunpack.c.l.b16 %v1984
    %v4450 = vunpack.c.l.b16 %v1985
    %v4451 = vunpack.c.h.b16 %v1985
    %v4452 = vunpack.c.l.b16 %v1986
    %v4453 = vunpack.c.h.b16 %v1986
    %v4454 = vunpack.c.l.b16 %v1987
    %v4455 = vunpack.c.h.b16 %v1987
    %v4456 = vunpack.c.l.b16 %v1988
    %v4457 = vunpack.c.h.b16 %v1988
    %v4458 = vunpack.c.l.b16 %v1989
    %v4459 = vunpack.c.h.b16 %v1989
    %v4460 = vunpack.c.l.b16 %v1990
    %v4461 = vunpack.c.h.b16 %v1990
    %v4462 = vunpack.c.l.b16 %v1991
    %v4463 = vunpack.c.h.b16 %v1991
    %v4464 = vunpack.c.l.b16 %v1992
    %v4465 = vunpack.c.h.b16 %v1992
    %v4466 = vunpack.c.l.b16 %v1993
    %v4467 = vunpack.c.h.b16 %v1993
    %v4468 = vunpack.c.l.b16 %v1994
    %v4469 = vunpack.c.h.b16 %v1994
    %v4470 = vunpack.c.l.b16 %v1995
    %v4471 = vunpack.c.h.b16 %v1995
    %v4472 = vunpack.c.l.b16 %v1996
    %v4473 = vunpack.c.h.b16 %v1996
    %v4474 = vunpack.c.l.b16 %v1997
    %v4475 = vunpack.c.h.b16 %v1997
    %v4476 = vunpack.c.l.b16 %v1998
    %v4477 = vunpack.c.h.b16 %v1998
    %v4478 = vunpack.c.l.b16 %v1999
    %v4479 = vunpack.c.l.b16 %v2000
    %v4480 = vunpack.c.h.b16 %v2000
    %v4481 = vunpack.c.l.b16 %v2001
    %v4482 = vunpack.c.h.b16 %v2001
    %v4483 = vunpack.c.l.b16 %v2002
    %v4484 = vunpack.c.h.b16 %v2002
    %v4485 = vunpack.c.l.b16 %v2003
    %v4486 = vunpack.c.h.b16 %v2003
    %v4487 = vunpack.c.l.b16 %v2004
    %v4488 = vunpack.c.h.b16 %v2004
    %v4489 = vunpack.c.l.b16 %v2005
    %v4490 = vunpack.c.h.b16 %v2005
    %v4491 = vunpack.c.l.b16 %v2006
    %v4492 = vunpack.c.h.b16 %v2006
    %v4493 = vunpack.c.l.b16 %v2007
    %v4494 = vunpack.c.h.b16 %v2007
    %v4495 = vunpack.c.l.b16 %v2008
    %v4496 = vunpack.c.h.b16 %v2008
    %v4497 = vunpack.c.l.b16 %v2009
    %v4498 = vunpack.c.h.b16 %v2009
    %v4499 = vunpack.c.l.b16 %v2010
    %v4500 = vunpack.c.h.b16 %v2010
    %v4501 = vunpack.c.l.b16 %v2011
    %v4502 = vunpack.c.h.b16 %v2011
    %v4503 = vunpack.c.l.b16 %v2012
    %v4504 = vunpack.c.h.b16 %v2012
    %v4505 = vunpack.c.l.b16 %v2013
    %v4506 = vunpack.c.h.b16 %v2013
    %v4507 = vunpack.c.l.b16 %v2014
    %v4508 = vunpack.c.l.b16 %v2015
    %v4509 = vunpack.c.h.b16 %v2015
    %v4510 = vunpack.c.l.b16 %v2016
    %v4511 = vunpack.c.h.b16 %v2016
    %v4512 = vunpack.c.l.b16 %v2017
    %v4513 = vunpack.c.h.b16 %v2017
    %v4514 = vunpack.c.l.b16 %v2018
    %v4515 = vunpack.c.h.b16 %v2018
    %v4516 = vunpack.c.l.b16 %v2019
    %v4517 = vunpack.c.h.b16 %v2019
    %v4518 = vunpack.c.l.b16 %v2020
    %v4519 = vunpack.c.h.b16 %v2020
    %v4520 = vunpack.c.l.b16 %v2021
    %v4521 = vunpack.c.h.b16 %v2021
    %v4522 = vunpack.c.l.b16 %v2022
    %v4523 = vunpack.c.h.b16 %v2022
    %v4524 = vunpack.c.l.b16 %v2023
    %v4525 = vunpack.c.h.b16 %v2023
    %v4526 = vunpack.c.l.b16 %v2024
    %v4527 = vunpack.c.h.b16 %v2024
    %v4528 = vunpack.c.l.b16 %v2025
    %v4529 = vunpack.c.h.b16 %v2025
    %v4530 = vunpack.c.l.b16 %v2026
    %v4531 = vunpack.c.h.b16 %v2026
    %v4532 = vunpack.c.l.b16 %v2027
    %v4533 = vunpack.c.h.b16 %v2027
    %v4534 = vunpack.c.l.b16 %v2028
    %v4535 = vunpack.c.h.b16 %v2028
    %v4536 = vunpack.c.l.b16 %v2029
    %v4537 = vunpack.c.l.b16 %v2030
    %v4538 = vunpack.c.h.b16 %v2030
    %v4539 = vunpack.c.l.b16 %v2031
    %v4540 = vunpack.c.h.b16 %v2031
    %v4541 = vunpack.c.l.b16 %v2032
    %v4542 = vunpack.c.h.b16 %v2032
    %v4543 = vunpack.c.l.b16 %v2033
    %v4544 = vunpack.c.h.b16 %v2033
    %v4545 = vunpack.c.l.b16 %v2034
    %v4546 = vunpack.c.h.b16 %v2034
    %v4547 = vunpack.c.l.b16 %v2035
    %v4548 = vunpack.c.h.b16 %v2035
    %v4549 = vunpack.c.l.b16 %v2036
    %v4550 = vunpack.c.h.b16 %v2036
    %v4551 = vunpack.c.l.b16 %v2037
    %v4552 = vunpack.c.h.b16 %v2037
    %v4553 = vunpack.c.l.b16 %v2038
    %v4554 = vunpack.c.h.b16 %v2038
    %v4555 = vunpack.c.l.b16 %v2039
    %v4556 = vunpack.c.h.b16 %v2039
    %v4557 = vunpack.c.l.b16 %v2040
    %v4558 = vunpack.c.h.b16 %v2040
    %v4559 = vunpack.c.l.b16 %v2041
    %v4560 = vunpack.c.h.b16 %v2041
    %v4561 = vunpack.c.l.b16 %v2042
    %v4562 = vunpack.c.h.b16 %v2042
    %v4563 = vunpack.c.l.b16 %v2043
    %v4564 = vunpack.c.h.b16 %v2043
    %v4565 = vunpack.c.l.b16 %v2044
    %v4566 = vunpack.c.l.b16 %v2045
    %v4567 = vunpack.c.h.b16 %v2045
    %v4568 = vunpack.c.l.b16 %v2046
    %v4569 = vunpack.c.h.b16 %v2046
    %v4570 = vunpack.c.l.b16 %v2047
    %v4571 = vunpack.c.h.b16 %v2047
    %v4572 = vunpack.c.l.b16 %v2048
    %v4573 = vunpack.c.h.b16 %v2048
    %v4574 = vunpack.c.l.b16 %v2049
    %v4575 = vunpack.c.h.b16 %v2049
    %v4576 = vunpack.c.l.b16 %v2050
    %v4577 = vunpack.c.h.b16 %v2050
    %v4578 = vunpack.c.l.b16 %v2051
    %v4579 = vunpack.c.h.b16 %v2051
    %v4580 = vunpack.c.l.b16 %v2052
    %v4581 = vunpack.c.h.b16 %v2052
    %v4582 = vunpack.c.l.b16 %v2053
    %v4583 = vunpack.c.h.b16 %v2053
    %v4584 = vunpack.c.l.b16 %v2054
    %v4585 = vunpack.c.h.b16 %v2054
    %v4586 = vunpack.c.l.b16 %v2055
    %v4587 = vunpack.c.h.b16 %v2055
    %v4588 = vunpack.c.l.b16 %v2056
    %v4589 = vunpack.c.h.b16 %v2056
    %v4590 = vunpack.c.l.b16 %v2057
    %v4591 = vunpack.c.h.b16 %v2057
    %v4592 = vunpack.c.l.b16 %v2058
    %v4593 = vunpack.c.h.b16 %v2058
    %v4594 = vunpack.c.l.b16 %v2059
    %v4595 = vunpack.c.l.b16 %v2060
    %v4596 = vunpack.c.h.b16 %v2060
    %v4597 = vunpack.c.l.b16 %v2061
    %v4598 = vunpack.c.h.b16 %v2061
    %v4599 = vunpack.c.l.b16 %v2062
    %v4600 = vunpack.c.h.b16 %v2062
    %v4601 = vunpack.c.l.b16 %v2063
    %v4602 = vunpack.c.h.b16 %v2063
    %v4603 = vunpack.c.l.b16 %v2064
    %v4604 = vunpack.c.h.b16 %v2064
    %v4605 = vunpack.c.l.b16 %v2065
    %v4606 = vunpack.c.h.b16 %v2065
    %v4607 = vunpack.c.l.b16 %v2066
    %v4608 = vunpack.c.h.b16 %v2066
    %v4609 = vunpack.c.l.b16 %v2067
    %v4610 = vunpack.c.h.b16 %v2067
    %v4611 = vunpack.c.l.b16 %v2068
    %v4612 = vunpack.c.h.b16 %v2068
    %v4613 = vunpack.c.l.b16 %v2069
    %v4614 = vunpack.c.h.b16 %v2069
    %v4615 = vunpack.c.l.b16 %v2070
    %v4616 = vunpack.c.h.b16 %v2070
    %v4617 = vunpack.c.l.b16 %v2071
    %v4618 = vunpack.c.h.b16 %v2071
    %v4619 = vunpack.c.l.b16 %v2072
    %v4620 = vunpack.c.h.b16 %v2072
    %v4621 = vunpack.c.l.b16 %v2073
    %v4622 = vunpack.c.h.b16 %v2073
    %v4623 = vunpack.c.l.b16 %v2074
    %v4624 = vunpack.c.l.b16 %v2075
    %v4625 = vunpack.c.h.b16 %v2075
    %v4626 = vunpack.c.l.b16 %v2076
    %v4627 = vunpack.c.h.b16 %v2076
    %v4628 = vunpack.c.l.b16 %v2077
    %v4629 = vunpack.c.h.b16 %v2077
    %v4630 = vunpack.c.l.b16 %v2078
    %v4631 = vunpack.c.h.b16 %v2078
    %v4632 = vunpack.c.l.b16 %v2079
    %v4633 = vunpack.c.h.b16 %v2079
    %v4634 = vunpack.c.l.b16 %v2080
    %v4635 = vunpack.c.h.b16 %v2080
    %v4636 = vunpack.c.l.b16 %v2081
    %v4637 = vunpack.c.h.b16 %v2081
    %v4638 = vunpack.c.l.b16 %v2082
    %v4639 = vunpack.c.h.b16 %v2082
    %v4640 = vunpack.c.l.b16 %v2083
    %v4641 = vunpack.c.h.b16 %v2083
    %v4642 = vunpack.c.l.b16 %v2084
    %v4643 = vunpack.c.h.b16 %v2084
    %v4644 = vunpack.c.l.b16 %v2085
    %v4645 = vunpack.c.h.b16 %v2085
    %v4646 = vunpack.c.l.b16 %v2086
    %v4647 = vunpack.c.h.b16 %v2086
    %v4648 = vunpack.c.l.b16 %v2087
    %v4649 = vunpack.c.h.b16 %v2087
    %v4650 = vunpack.c.l.b16 %v2088
    %v4651 = vunpack.c.h.b16 %v2088
    %v4652 = vunpack.c.l.b16 %v2089
    %v4653 = vunpack.c.l.b16 %v2090
    %v4654 = vunpack.c.h.b16 %v2090
    %v4655 = vunpack.c.l.b16 %v2091
    %v4656 = vunpack.c.h.b16 %v2091
    %v4657 = vunpack.c.l.b16 %v2092
    %v4658 = vunpack.c.h.b16 %v2092
    %v4659 = vunpack.c.l.b16 %v2093
    %v4660 = vunpack.c.h.b16 %v2093
    %v4661 = vunpack.c.l.b16 %v2094
    %v4662 = vunpack.c.h.b16 %v2094
    %v4663 = vunpack.c.l.b16 %v2095
    %v4664 = vunpack.c.h.b16 %v2095
    %v4665 = vunpack.c.l.b16 %v2096
    %v4666 = vunpack.c.h.b16 %v2096
    %v4667 = vunpack.c.l.b16 %v2097
    %v4668 = vunpack.c.h.b16 %v2097
    %v4669 = vunpack.c.l.b16 %v2098
    %v4670 = vunpack.c.h.b16 %v2098
    %v4671 = vunpack.c.l.b16 %v2099
    %v4672 = vunpack.c.h.b16 %v2099
    %v4673 = vunpack.c.l.b16 %v2100
    %v4674 = vunpack.c.h.b16 %v2100
    %v4675 = vunpack.c.l.b16 %v2101
    %v4676 = vunpack.c.h.b16 %v2101
    %v4677 = vunpack.c.l.b16 %v2102
    %v4678 = vunpack.c.h.b16 %v2102
    %v4679 = vunpack.c.l.b16 %v2103
    %v4680 = vunpack.c.h.b16 %v2103
    %v4681 = vunpack.c.l.b16 %v2104
    %v4682 = vunpack.c.l.b16 %v2105
    %v4683 = vunpack.c.h.b16 %v2105
    %v4684 = vunpack.c.l.b16 %v2106
    %v4685 = vunpack.c.h.b16 %v2106
    %v4686 = vunpack.c.l.b16 %v2107
    %v4687 = vunpack.c.h.b16 %v2107
    %v4688 = vunpack.c.l.b16 %v2108
    %v4689 = vunpack.c.h.b16 %v2108
    %v4690 = vunpack.c.l.b16 %v2109
    %v4691 = vunpack.c.h.b16 %v2109
    %v4692 = vunpack.c.l.b16 %v2110
    %v4693 = vunpack.c.h.b16 %v2110
    %v4694 = vunpack.c.l.b16 %v2111
    %v4695 = vunpack.c.h.b16 %v2111
    %v4696 = vunpack.c.l.b16 %v2112
    %v4697 = vunpack.c.h.b16 %v2112
    %v4698 = vunpack.c.l.b16 %v2113
    %v4699 = vunpack.c.h.b16 %v2113
    %v4700 = vunpack.c.l.b16 %v2114
    %v4701 = vunpack.c.h.b16 %v2114
    %v4702 = vunpack.c.l.b16 %v2115
    %v4703 = vunpack.c.h.b16 %v2115
    %v4704 = vunpack.c.l.b16 %v2116
    %v4705 = vunpack.c.h.b16 %v2116
    %v4706 = vunpack.c.l.b16 %v2117
    %v4707 = vunpack.c.h.b16 %v2117
    %v4708 = vunpack.c.l.b16 %v2118
    %v4709 = vunpack.c.h.b16 %v2118
    %v4710 = vunpack.c.l.b16 %v2119
    %v4711 = vunpack.c.l.b16 %v2120
    %v4712 = vunpack.c.h.b16 %v2120
    %v4713 = vunpack.c.l.b16 %v2121
    %v4714 = vunpack.c.h.b16 %v2121
    %v4715 = vunpack.c.l.b16 %v2122
    %v4716 = vunpack.c.h.b16 %v2122
    %v4717 = vunpack.c.l.b16 %v2123
    %v4718 = vunpack.c.h.b16 %v2123
    %v4719 = vunpack.c.l.b16 %v2124
    %v4720 = vunpack.c.h.b16 %v2124
    %v4721 = vunpack.c.l.b16 %v2125
    %v4722 = vunpack.c.h.b16 %v2125
    %v4723 = vunpack.c.l.b16 %v2126
    %v4724 = vunpack.c.h.b16 %v2126
    %v4725 = vunpack.c.l.b16 %v2127
    %v4726 = vunpack.c.h.b16 %v2127
    %v4727 = vunpack.c.l.b16 %v2128
    %v4728 = vunpack.c.h.b16 %v2128
    %v4729 = vunpack.c.l.b16 %v2129
    %v4730 = vunpack.c.h.b16 %v2129
    %v4731 = vunpack.c.l.b16 %v2130
    %v4732 = vunpack.c.h.b16 %v2130
    %v4733 = vunpack.c.l.b16 %v2131
    %v4734 = vunpack.c.h.b16 %v2131
    %v4735 = vunpack.c.l.b16 %v2132
    %v4736 = vunpack.c.h.b16 %v2132
    %v4737 = vunpack.c.l.b16 %v2133
    %v4738 = vunpack.c.h.b16 %v2133
    %v4739 = vunpack.c.l.b16 %v2134
    %v4740 = vunpack.c.l.b16 %v2135
    %v4741 = vunpack.c.h.b16 %v2135
    %v4742 = vunpack.c.l.b16 %v2136
    %v4743 = vunpack.c.h.b16 %v2136
    %v4744 = vunpack.c.l.b16 %v2137
    %v4745 = vunpack.c.h.b16 %v2137
    %v4746 = vunpack.c.l.b16 %v2138
    %v4747 = vunpack.c.h.b16 %v2138
    %v4748 = vunpack.c.l.b16 %v2139
    %v4749 = vunpack.c.h.b16 %v2139
    %v4750 = vunpack.c.l.b16 %v2140
    %v4751 = vunpack.c.h.b16 %v2140
    %v4752 = vunpack.c.l.b16 %v2141
    %v4753 = vunpack.c.h.b16 %v2141
    %v4754 = vunpack.c.l.b16 %v2142
    %v4755 = vunpack.c.h.b16 %v2142
    %v4756 = vunpack.c.l.b16 %v2143
    %v4757 = vunpack.c.h.b16 %v2143
    %v4758 = vunpack.c.l.b16 %v2144
    %v4759 = vunpack.c.h.b16 %v2144
    %v4760 = vunpack.c.l.b16 %v2145
    %v4761 = vunpack.c.h.b16 %v2145
    %v4762 = vunpack.c.l.b16 %v2146
    %v4763 = vunpack.c.h.b16 %v2146
    %v4764 = vunpack.c.l.b16 %v2147
    %v4765 = vunpack.c.h.b16 %v2147
    %v4766 = vunpack.c.l.b16 %v2148
    %v4767 = vunpack.c.h.b16 %v2148
    %v4768 = vunpack.c.l.b16 %v2149
    %v4769 = vunpack.c.l.b16 %v2150
    %v4770 = vunpack.c.h.b16 %v2150
    %v4771 = vunpack.c.l.b16 %v2151
    %v4772 = vunpack.c.h.b16 %v2151
    %v4773 = vunpack.c.l.b16 %v2152
    %v4774 = vunpack.c.h.b16 %v2152
    %v4775 = vunpack.c.l.b16 %v2153
    %v4776 = vunpack.c.h.b16 %v2153
    %v4777 = vunpack.c.l.b16 %v2154
    %v4778 = vunpack.c.h.b16 %v2154
    %v4779 = vunpack.c.l.b16 %v2155
    %v4780 = vunpack.c.h.b16 %v2155
    %v4781 = vunpack.c.l.b16 %v2156
    %v4782 = vunpack.c.h.b16 %v2156
    %v4783 = vunpack.c.l.b16 %v2157
    %v4784 = vunpack.c.h.b16 %v2157
    %v4785 = vunpack.c.l.b16 %v2158
    %v4786 = vunpack.c.h.b16 %v2158
    %v4787 = vunpack.c.l.b16 %v2159
    %v4788 = vunpack.c.h.b16 %v2159
    %v4789 = vunpack.c.l.b16 %v2160
    %v4790 = vunpack.c.h.b16 %v2160
    %v4791 = vunpack.c.l.b16 %v2161
    %v4792 = vunpack.c.h.b16 %v2161
    %v4793 = vunpack.c.l.b16 %v2162
    %v4794 = vunpack.c.h.b16 %v2162
    %v4795 = vunpack.c.l.b16 %v2163
    %v4796 = vunpack.c.h.b16 %v2163
    %v4797 = vunpack.c.l.b16 %v2164
    %v4798 = vunpack.c.l.b16 %v2165
    %v4799 = vunpack.c.h.b16 %v2165
    %v4800 = vunpack.c.l.b16 %v2166
    %v4801 = vunpack.c.h.b16 %v2166
    %v4802 = vunpack.c.l.b16 %v2167
    %v4803 = vunpack.c.h.b16 %v2167
    %v4804 = vunpack.c.l.b16 %v2168
    %v4805 = vunpack.c.h.b16 %v2168
    %v4806 = vunpack.c.l.b16 %v2169
    %v4807 = vunpack.c.h.b16 %v2169
    %v4808 = vunpack.c.l.b16 %v2170
    %v4809 = vunpack.c.h.b16 %v2170
    %v4810 = vunpack.c.l.b16 %v2171
    %v4811 = vunpack.c.h.b16 %v2171
    %v4812 = vunpack.c.l.b16 %v2172
    %v4813 = vunpack.c.h.b16 %v2172
    %v4814 = vunpack.c.l.b16 %v2173
    %v4815 = vunpack.c.h.b16 %v2173
    %v4816 = vunpack.c.l.b16 %v2174
    %v4817 = vunpack.c.h.b16 %v2174
    %v4818 = vunpack.c.l.b16 %v2175
    %v4819 = vunpack.c.h.b16 %v2175
    %v4820 = vunpack.c.l.b16 %v2176
    %v4821 = vunpack.c.h.b16 %v2176
    %v4822 = vunpack.c.l.b16 %v2177
    %v4823 = vunpack.c.h.b16 %v2177
    %v4824 = vunpack.c.l.b16 %v2178
    %v4825 = vunpack.c.h.b16 %v2178
    %v4826 = vunpack.c.l.b16 %v2179
    %v4827 = vunpack.c.l.b16 %v2180
    %v4828 = vunpack.c.h.b16 %v2180
    %v4829 = vunpack.c.l.b16 %v2181
    %v4830 = vunpack.c.h.b16 %v2181
    %v4831 = vunpack.c.l.b16 %v2182
    %v4832 = vunpack.c.h.b16 %v2182
    %v4833 = vunpack.c.l.b16 %v2183
    %v4834 = vunpack.c.h.b16 %v2183
    %v4835 = vunpack.c.l.b16 %v2184
    %v4836 = vunpack.c.h.b16 %v2184
    %v4837 = vunpack.c.l.b16 %v2185
    %v4838 = vunpack.c.h.b16 %v2185
    %v4839 = vunpack.c.l.b16 %v2186
    %v4840 = vunpack.c.h.b16 %v2186
    %v4841 = vunpack.c.l.b16 %v2187
    %v4842 = vunpack.c.h.b16 %v2187
    %v4843 = vunpack.c.l.b16 %v2188
    %v4844 = vunpack.c.h.b16 %v2188
    %v4845 = vunpack.c.l.b16 %v2189
    %v4846 = vunpack.c.h.b16 %v2189
    %v4847 = vunpack.c.l.b16 %v2190
    %v4848 = vunpack.c.h.b16 %v2190
    %v4849 = vunpack.c.l.b16 %v2191
    %v4850 = vunpack.c.h.b16 %v2191
    %v4851 = vunpack.c.l.b16 %v2192
    %v4852 = vunpack.c.h.b16 %v2192
    %v4853 = vunpack.c.l.b16 %v2193
    %v4854 = vunpack.c.h.b16 %v2193
    %v4855 = vunpack.c.l.b16 %v2194
    %v4856 = vunpack.c.l.b16 %v2195
    %v4857 = vunpack.c.h.b16 %v2195
    %v4858 = vunpack.c.l.b16 %v2196
    %v4859 = vunpack.c.h.b16 %v2196
    %v4860 = vunpack.c.l.b16 %v2197
    %v4861 = vunpack.c.h.b16 %v2197
    %v4862 = vunpack.c.l.b16 %v2198
    %v4863 = vunpack.c.h.b16 %v2198
    %v4864 = vunpack.c.l.b16 %v2199
    %v4865 = vunpack.c.h.b16 %v2199
    %v4866 = vunpack.c.l.b16 %v2200
    %v4867 = vunpack.c.h.b16 %v2200
    %v4868 = vunpack.c.l.b16 %v2201
    %v4869 = vunpack.c.h.b16 %v2201
    %v4870 = vunpack.c.l.b16 %v2202
    %v4871 = vunpack.c.h.b16 %v2202
    %v4872 = vunpack.c.l.b16 %v2203
    %v4873 = vunpack.c.h.b16 %v2203
    %v4874 = vunpack.c.l.b16 %v2204
    %v4875 = vunpack.c.h.b16 %v2204
    %v4876 = vunpack.c.l.b16 %v2205
    %v4877 = vunpack.c.h.b16 %v2205
    %v4878 = vunpack.c.l.b16 %v2206
    %v4879 = vunpack.c.h.b16 %v2206
    %v4880 = vunpack.c.l.b16 %v2207
    %v4881 = vunpack.c.h.b16 %v2207
    %v4882 = vunpack.c.l.b16 %v2208
    %v4883 = vunpack.c.h.b16 %v2208
    %v4884 = vunpack.c.l.b16 %v2209
    %v4885 = vunpack.c.l.b16 %v2210
    %v4886 = vunpack.c.h.b16 %v2210
    %v4887 = vunpack.c.l.b16 %v2211
    %v4888 = vunpack.c.h.b16 %v2211
    %v4889 = vunpack.c.l.b16 %v2212
    %v4890 = vunpack.c.h.b16 %v2212
    %v4891 = vunpack.c.l.b16 %v2213
    %v4892 = vunpack.c.h.b16 %v2213
    %v4893 = vunpack.c.l.b16 %v2214
    %v4894 = vunpack.c.h.b16 %v2214
    %v4895 = vunpack.c.l.b16 %v2215
    %v4896 = vunpack.c.h.b16 %v2215
    %v4897 = vunpack.c.l.b16 %v2216
    %v4898 = vunpack.c.h.b16 %v2216
    %v4899 = vunpack.c.l.b16 %v2217
    %v4900 = vunpack.c.h.b16 %v2217
    %v4901 = vunpack.c.l.b16 %v2218
    %v4902 = vunpack.c.h.b16 %v2218
    %v4903 = vunpack.c.l.b16 %v2219
    %v4904 = vunpack.c.h.b16 %v2219
    %v4905 = vunpack.c.l.b16 %v2220
    %v4906 = vunpack.c.h.b16 %v2220
    %v4907 = vunpack.c.l.b16 %v2221
    %v4908 = vunpack.c.h.b16 %v2221
    %v4909 = vunpack.c.l.b16 %v2222
    %v4910 = vunpack.c.h.b16 %v2222
    %v4911 = vunpack.c.l.b16 %v2223
    %v4912 = vunpack.c.h.b16 %v2223
    %v4913 = vunpack.c.l.b16 %v2224
    %v4914 = vunpack.c.l.b16 %v2225
    %v4915 = vunpack.c.h.b16 %v2225
    %v4916 = vunpack.c.l.b16 %v2226
    %v4917 = vunpack.c.h.b16 %v2226
    %v4918 = vunpack.c.l.b16 %v2227
    %v4919 = vunpack.c.h.b16 %v2227
    %v4920 = vunpack.c.l.b16 %v2228
    %v4921 = vunpack.c.h.b16 %v2228
    %v4922 = vunpack.c.l.b16 %v2229
    %v4923 = vunpack.c.h.b16 %v2229
    %v4924 = vunpack.c.l.b16 %v2230
    %v4925 = vunpack.c.h.b16 %v2230
    %v4926 = vunpack.c.l.b16 %v2231
    %v4927 = vunpack.c.h.b16 %v2231
    %v4928 = vunpack.c.l.b16 %v2232
    %v4929 = vunpack.c.h.b16 %v2232
    %v4930 = vunpack.c.l.b16 %v2233
    %v4931 = vunpack.c.h.b16 %v2233
    %v4932 = vunpack.c.l.b16 %v2234
    %v4933 = vunpack.c.h.b16 %v2234
    %v4934 = vunpack.c.l.b16 %v2235
    %v4935 = vunpack.c.h.b16 %v2235
    %v4936 = vunpack.c.l.b16 %v2236
    %v4937 = vunpack.c.h.b16 %v2236
    %v4938 = vunpack.c.l.b16 %v2237
    %v4939 = vunpack.c.h.b16 %v2237
    %v4940 = vunpack.c.l.b16 %v2238
    %v4941 = vunpack.c.h.b16 %v2238
    %v4942 = vunpack.c.l.b16 %v2239
    %v4943 = vunpack.c.l.b16 %v2240
    %v4944 = vunpack.c.h.b16 %v2240
    %v4945 = vunpack.c.l.b16 %v2241
    %v4946 = vunpack.c.h.b16 %v2241
    %v4947 = vunpack.c.l.b16 %v2242
    %v4948 = vunpack.c.h.b16 %v2242
    %v4949 = vunpack.c.l.b16 %v2243
    %v4950 = vunpack.c.h.b16 %v2243
    %v4951 = vunpack.c.l.b16 %v2244
    %v4952 = vunpack.c.h.b16 %v2244
    %v4953 = vunpack.c.l.b16 %v2245
    %v4954 = vunpack.c.h.b16 %v2245
    %v4955 = vunpack.c.l.b16 %v2246
    %v4956 = vunpack.c.h.b16 %v2246
    %v4957 = vunpack.c.l.b16 %v2247
    %v4958 = vunpack.c.h.b16 %v2247
    %v4959 = vunpack.c.l.b16 %v2248
    %v4960 = vunpack.c.h.b16 %v2248
    %v4961 = vunpack.c.l.b16 %v2249
    %v4962 = vunpack.c.h.b16 %v2249
    %v4963 = vunpack.c.l.b16 %v2250
    %v4964 = vunpack.c.h.b16 %v2250
    %v4965 = vunpack.c.l.b16 %v2251
    %v4966 = vunpack.c.h.b16 %v2251
    %v4967 = vunpack.c.l.b16 %v2252
    %v4968 = vunpack.c.h.b16 %v2252
    %v4969 = vunpack.c.l.b16 %v2253
    %v4970 = vunpack.c.h.b16 %v2253
    %v4971 = vunpack.c.l.b16 %v2254
    %v4972 = vunpack.c.l.b16 %v2255
    %v4973 = vunpack.c.h.b16 %v2255
    %v4974 = vunpack.c.l.b16 %v2256
    %v4975 = vunpack.c.h.b16 %v2256
    %v4976 = vunpack.c.l.b16 %v2257
    %v4977 = vunpack.c.h.b16 %v2257
    %v4978 = vunpack.c.l.b16 %v2258
    %v4979 = vunpack.c.h.b16 %v2258
    %v4980 = vunpack.c.l.b16 %v2259
    %v4981 = vunpack.c.h.b16 %v2259
    %v4982 = vunpack.c.l.b16 %v2260
    %v4983 = vunpack.c.h.b16 %v2260
    %v4984 = vunpack.c.l.b16 %v2261
    %v4985 = vunpack.c.h.b16 %v2261
    %v4986 = vunpack.c.l.b16 %v2262
    %v4987 = vunpack.c.h.b16 %v2262
    %v4988 = vunpack.c.l.b16 %v2263
    %v4989 = vunpack.c.h.b16 %v2263
    %v4990 = vunpack.c.l.b16 %v2264
    %v4991 = vunpack.c.h.b16 %v2264
    %v4992 = vunpack.c.l.b16 %v2265
    %v4993 = vunpack.c.h.b16 %v2265
    %v4994 = vunpack.c.l.b16 %v2266
    %v4995 = vunpack.c.h.b16 %v2266
    %v4996 = vunpack.c.l.b16 %v2267
    %v4997 = vunpack.c.h.b16 %v2267
    %v4998 = vunpack.c.l.b16 %v2268
    %v4999 = vunpack.c.h.b16 %v2268
    %v5000 = vunpack.c.l.b16 %v2269
    %v5001 = vunpack.c.l.b16 %v2270
    %v5002 = vunpack.c.h.b16 %v2270
    %v5003 = vunpack.c.l.b16 %v2271
    %v5004 = vunpack.c.h.b16 %v2271
    %v5005 = vunpack.c.l.b16 %v2272
    %v5006 = vunpack.c.h.b16 %v2272
    %v5007 = vunpack.c.l.b16 %v2273
    %v5008 = vunpack.c.h.b16 %v2273
    %v5009 = vunpack.c.l.b16 %v2274
    %v5010 = vunpack.c.h.b16 %v2274
    %v5011 = vunpack.c.l.b16 %v2275
    %v5012 = vunpack.c.h.b16 %v2275
    %v5013 = vunpack.c.l.b16 %v2276
    %v5014 = vunpack.c.h.b16 %v2276
    %v5015 = vunpack.c.l.b16 %v2277
    %v5016 = vunpack.c.h.b16 %v2277
    %v5017 = vunpack.c.l.b16 %v2278
    %v5018 = vunpack.c.h.b16 %v2278
    %v5019 = vunpack.c.l.b16 %v2279
    %v5020 = vunpack.c.h.b16 %v2279
    %v5021 = vunpack.c.l.b16 %v2280
    %v5022 = vunpack.c.h.b16 %v2280
    %v5023 = vunpack.c.l.b16 %v2281
    %v5024 = vunpack.c.h.b16 %v2281
    %v5025 = vunpack.c.l.b16 %v2282
    %v5026 = vunpack.c.h.b16 %v2282
    %v5027 = vunpack.c.l.b16 %v2283
    %v5028 = vunpack.c.h.b16 %v2283
    %v5029 = vunpack.c.l.b16 %v2284
    %v5030 = vunpack.c.l.b16 %v2285
    %v5031 = vunpack.c.h.b16 %v2285
    %v5032 = vunpack.c.l.b16 %v2286
    %v5033 = vunpack.c.h.b16 %v2286
    %v5034 = vunpack.c.l.b16 %v2287
    %v5035 = vunpack.c.h.b16 %v2287
    %v5036 = vunpack.c.l.b16 %v2288
    %v5037 = vunpack.c.h.b16 %v2288
    %v5038 = vunpack.c.l.b16 %v2289
    %v5039 = vunpack.c.h.b16 %v2289
    %v5040 = vunpack.c.l.b16 %v2290
    %v5041 = vunpack.c.h.b16 %v2290
    %v5042 = vunpack.c.l.b16 %v2291
    %v5043 = vunpack.c.h.b16 %v2291
    %v5044 = vunpack.c.l.b16 %v2292
    %v5045 = vunpack.c.h.b16 %v2292
    %v5046 = vunpack.c.l.b16 %v2293
    %v5047 = vunpack.c.h.b16 %v2293
    %v5048 = vunpack.c.l.b16 %v2294
    %v5049 = vunpack.c.h.b16 %v2294
    %v5050 = vunpack.c.l.b16 %v2295
    %v5051 = vunpack.c.h.b16 %v2295
    %v5052 = vunpack.c.l.b16 %v2296
    %v5053 = vunpack.c.h.b16 %v2296
    %v5054 = vunpack.c.l.b16 %v2297
    %v5055 = vunpack.c.h.b16 %v2297
    %v5056 = vunpack.c.l.b16 %v2298
    %v5057 = vunpack.c.h.b16 %v2298
    %v5058 = vunpack.c.l.b16 %v2299
    %v5059 = vunpack.c.l.b16 %v2300
    %v5060 = vunpack.c.h.b16 %v2300
    %v5061 = vunpack.c.l.b16 %v2301
    %v5062 = vunpack.c.h.b16 %v2301
    %v5063 = vunpack.c.l.b16 %v2302
    %v5064 = vunpack.c.h.b16 %v2302
    %v5065 = vunpack.c.l.b16 %v2303
    %v5066 = vunpack.c.h.b16 %v2303
    %v5067 = vunpack.c.l.b16 %v2304
    %v5068 = vunpack.c.h.b16 %v2304
    %v5069 = vunpack.c.l.b16 %v2305
    %v5070 = vunpack.c.h.b16 %v2305
    %v5071 = vunpack.c.l.b16 %v2306
    %v5072 = vunpack.c.h.b16 %v2306
    %v5073 = vunpack.c.l.b16 %v2307
    %v5074 = vunpack.c.h.b16 %v2307
    %v5075 = vunpack.c.l.b16 %v2308
    %v5076 = vunpack.c.h.b16 %v2308
    %v5077 = vunpack.c.l.b16 %v2309
    %v5078 = vunpack.c.h.b16 %v2309
    %v5079 = vunpack.c.l.b16 %v2310
    %v5080 = vunpack.c.h.b16 %v2310
    %v5081 = vunpack.c.l.b16 %v2311
    %v5082 = vunpack.c.h.b16 %v2311
    %v5083 = vunpack.c.l.b16 %v2312
    %v5084 = vunpack.c.h.b16 %v2312
    %v5085 = vunpack.c.l.b16 %v2313
    %v5086 = vunpack.c.h.b16 %v2313
    %v5087 = vunpack.c.l.b16 %v2314
    %v5088 = vunpack.c.l.b16 %v2315
    %v5089 = vunpack.c.h.b16 %v2315
    %v5090 = vunpack.c.l.b16 %v2316
    %v5091 = vunpack.c.h.b16 %v2316
    %v5092 = vunpack.c.l.b16 %v2317
    %v5093 = vunpack.c.h.b16 %v2317
    %v5094 = vunpack.c.l.b16 %v2318
    %v5095 = vunpack.c.h.b16 %v2318
    %v5096 = vunpack.c.l.b16 %v2319
    %v5097 = vunpack.c.h.b16 %v2319
    %v5098 = vunpack.c.l.b16 %v2320
    %v5099 = vunpack.c.h.b16 %v2320
    %v5100 = vunpack.c.l.b16 %v2321
    %v5101 = vunpack.c.h.b16 %v2321
    %v5102 = vunpack.c.l.b16 %v2322
    %v5103 = vunpack.c.h.b16 %v2322
    %v5104 = vunpack.c.l.b16 %v2323
    %v5105 = vunpack.c.h.b16 %v2323
    %v5106 = vunpack.c.l.b16 %v2324
    %v5107 = vunpack.c.h.b16 %v2324
    %v5108 = vunpack.c.l.b16 %v2325
    %v5109 = vunpack.c.h.b16 %v2325
    %v5110 = vunpack.c.l.b16 %v2326
    %v5111 = vunpack.c.h.b16 %v2326
    %v5112 = vunpack.c.l.b16 %v2327
    %v5113 = vunpack.c.h.b16 %v2327
    %v5114 = vunpack.c.l.b16 %v2328
    %v5115 = vunpack.c.h.b16 %v2328
    %v5116 = vunpack.c.l.b16 %v2329
    %v5117 = vunpack.c.l.b16 %v2330
    %v5118 = vunpack.c.h.b16 %v2330
    %v5119 = vunpack.c.l.b16 %v2331
    %v5120 = vunpack.c.h.b16 %v2331
    %v5121 = vunpack.c.l.b16 %v2332
    %v5122 = vunpack.c.h.b16 %v2332
    %v5123 = vunpack.c.l.b16 %v2333
    %v5124 = vunpack.c.h.b16 %v2333
    %v5125 = vunpack.c.l.b16 %v2334
    %v5126 = vunpack.c.h.b16 %v2334
    %v5127 = vunpack.c.l.b16 %v2335
    %v5128 = vunpack.c.h.b16 %v2335
    %v5129 = vunpack.c.l.b16 %v2336
    %v5130 = vunpack.c.h.b16 %v2336
    %v5131 = vunpack.c.l.b16 %v2337
    %v5132 = vunpack.c.h.b16 %v2337
    %v5133 = vunpack.c.l.b16 %v2338
    %v5134 = vunpack.c.h.b16 %v2338
    %v5135 = vunpack.c.l.b16 %v2339
    %v5136 = vunpack.c.h.b16 %v2339
    %v5137 = vunpack.c.l.b16 %v2340
    %v5138 = vunpack.c.h.b16 %v2340
    %v5139 = vunpack.c.l.b16 %v2341
    %v5140 = vunpack.c.h.b16 %v2341
    %v5141 = vunpack.c.l.b16 %v2342
    %v5142 = vunpack.c.h.b16 %v2342
    %v5143 = vunpack.c.l.b16 %v2343
    %v5144 = vunpack.c.h.b16 %v2343
    %v5145 = vunpack.c.l.b16 %v2344
    %v5146 = vunpack.c.l.b16 %v2345
    %v5147 = vunpack.c.h.b16 %v2345
    %v5148 = vunpack.c.l.b16 %v2346
    %v5149 = vunpack.c.h.b16 %v2346
    %v5150 = vunpack.c.l.b16 %v2347
    %v5151 = vunpack.c.h.b16 %v2347
    %v5152 = vunpack.c.l.b16 %v2348
    %v5153 = vunpack.c.h.b16 %v2348
    %v5154 = vunpack.c.l.b16 %v2349
    %v5155 = vunpack.c.h.b16 %v2349
    %v5156 = vunpack.c.l.b16 %v2350
    %v5157 = vunpack.c.h.b16 %v2350
    %v5158 = vunpack.c.l.b16 %v2351
    %v5159 = vunpack.c.h.b16 %v2351
    %v5160 = vunpack.c.l.b16 %v2352
    %v5161 = vunpack.c.h.b16 %v2352
    %v5162 = vunpack.c.l.b16 %v2353
    %v5163 = vunpack.c.h.b16 %v2353
    %v5164 = vunpack.c.l.b16 %v2354
    %v5165 = vunpack.c.h.b16 %v2354
    %v5166 = vunpack.c.l.b16 %v2355
    %v5167 = vunpack.c.h.b16 %v2355
    %v5168 = vunpack.c.l.b16 %v2356
    %v5169 = vunpack.c.h.b16 %v2356
    %v5170 = vunpack.c.l.b16 %v2357
    %v5171 = vunpack.c.h.b16 %v2357
    %v5172 = vunpack.c.l.b16 %v2358
    %v5173 = vunpack.c.h.b16 %v2358
    %v5174 = vunpack.c.l.b16 %v2359
    %v5175 = vunpack.c.l.b16 %v2360
    %v5176 = vunpack.c.h.b16 %v2360
    %v5177 = vunpack.c.l.b16 %v2361
    %v5178 = vunpack.c.h.b16 %v2361
    %v5179 = vunpack.c.l.b16 %v2362
    %v5180 = vunpack.c.h.b16 %v2362
    %v5181 = vunpack.c.l.b16 %v2363
    %v5182 = vunpack.c.h.b16 %v2363
    %v5183 = vunpack.c.l.b16 %v2364
    %v5184 = vunpack.c.h.b16 %v2364
    %v5185 = vunpack.c.l.b16 %v2365
    %v5186 = vunpack.c.h.b16 %v2365
    %v5187 = vunpack.c.l.b16 %v2366
    %v5188 = vunpack.c.h.b16 %v2366
    %v5189 = vunpack.c.l.b16 %v2367
    %v5190 = vunpack.c.h.b16 %v2367
    %v5191 = vunpack.c.l.b16 %v2368
    %v5192 = vunpack.c.h.b16 %v2368
    %v5193 = vunpack.c.l.b16 %v2369
    %v5194 = vunpack.c.h.b16 %v2369
    %v5195 = vunpack.c.l.b16 %v2370
    %v5196 = vunpack.c.h.b16 %v2370
    %v5197 = vunpack.c.l.b16 %v2371
    %v5198 = vunpack.c.h.b16 %v2371
    %v5199 = vunpack.c.l.b16 %v2372
    %v5200 = vunpack.c.h.b16 %v2372
    %v5201 = vunpack.c.l.b16 %v2373
    %v5202 = vunpack.c.h.b16 %v2373
    %v5203 = vunpack.c.l.b16 %v2374
    %v5204 = vunpack.c.l.b16 %v2375
    %v5205 = vunpack.c.h.b16 %v2375
    %v5206 = vunpack.c.l.b16 %v2376
    %v5207 = vunpack.c.h.b16 %v2376
    %v5208 = vunpack.c.l.b16 %v2377
    %v5209 = vunpack.c.h.b16 %v2377
    %v5210 = vunpack.c.l.b16 %v2378
    %v5211 = vunpack.c.h.b16 %v2378
    %v5212 = vunpack.c.l.b16 %v2379
    %v5213 = vunpack.c.h.b16 %v2379
    %v5214 = vunpack.c.l.b16 %v2380
    %v5215 = vunpack.c.h.b16 %v2380
    %v5216 = vunpack.c.l.b16 %v2381
    %v5217 = vunpack.c.h.b16 %v2381
    %v5218 = vunpack.c.l.b16 %v2382
    %v5219 = vunpack.c.h.b16 %v2382
    %v5220 = vunpack.c.l.b16 %v2383
    %v5221 = vunpack.c.h.b16 %v2383
    %v5222 = vunpack.c.l.b16 %v2384
    %v5223 = vunpack.c.h.b16 %v2384
    %v5224 = vunpack.c.l.b16 %v2385
    %v5225 = vunpack.c.h.b16 %v2385
    %v5226 = vunpack.c.l.b16 %v2386
    %v5227 = vunpack.c.h.b16 %v2386
    %v5228 = vunpack.c.l.b16 %v2387
    %v5229 = vunpack.c.h.b16 %v2387
    %v5230 = vunpack.c.l.b16 %v2388
    %v5231 = vunpack.c.h.b16 %v2388
    %v5232 = vunpack.c.l.b16 %v2389
    %v5233 = vunpack.c.l.b16 %v2390
    %v5234 = vunpack.c.h.b16 %v2390
    %v5235 = vunpack.c.l.b16 %v2391
    %v5236 = vunpack.c.h.b16 %v2391
    %v5237 = vunpack.c.l.b16 %v2392
    %v5238 = vunpack.c.h.b16 %v2392
    %v5239 = vunpack.c.l.b16 %v2393
    %v5240 = vunpack.c.h.b16 %v2393
    %v5241 = vunpack.c.l.b16 %v2394
    %v5242 = vunpack.c.h.b16 %v2394
    %v5243 = vunpack.c.l.b16 %v2395
    %v5244 = vunpack.c.h.b16 %v2395
    %v5245 = vunpack.c.l.b16 %v2396
    %v5246 = vunpack.c.h.b16 %v2396
    %v5247 = vunpack.c.l.b16 %v2397
    %v5248 = vunpack.c.h.b16 %v2397
    %v5249 = vunpack.c.l.b16 %v2398
    %v5250 = vunpack.c.h.b16 %v2398
    %v5251 = vunpack.c.l.b16 %v2399
    %v5252 = vunpack.c.h.b16 %v2399
    %v5253 = vunpack.c.l.b16 %v2400
    %v5254 = vunpack.c.h.b16 %v2400
    %v5255 = vunpack.c.l.b16 %v2401
    %v5256 = vunpack.c.h.b16 %v2401
    %v5257 = vunpack.c.l.b16 %v2402
    %v5258 = vunpack.c.h.b16 %v2402
    %v5259 = vunpack.c.l.b16 %v2403
    %v5260 = vunpack.c.h.b16 %v2403
    %v5261 = vunpack.c.l.b16 %v2404
    %v5262 = vunpack.c.l.b16 %v2405
    %v5263 = vunpack.c.h.b16 %v2405
    %v5264 = vunpack.c.l.b16 %v2406
    %v5265 = vunpack.c.h.b16 %v2406
    %v5266 = vunpack.c.l.b16 %v2407
    %v5267 = vunpack.c.h.b16 %v2407
    %v5268 = vunpack.c.l.b16 %v2408
    %v5269 = vunpack.c.h.b16 %v2408
    %v5270 = vunpack.c.l.b16 %v2409
    %v5271 = vunpack.c.h.b16 %v2409
    %v5272 = vunpack.c.l.b16 %v2410
    %v5273 = vunpack.c.h.b16 %v2410
    %v5274 = vunpack.c.l.b16 %v2411
    %v5275 = vunpack.c.h.b16 %v2411
    %v5276 = vunpack.c.l.b16 %v2412
    %v5277 = vunpack.c.h.b16 %v2412
    %v5278 = vunpack.c.l.b16 %v2413
    %v5279 = vunpack.c.h.b16 %v2413
    %v5280 = vunpack.c.l.b16 %v2414
    %v5281 = vunpack.c.h.b16 %v2414
    %v5282 = vunpack.c.l.b16 %v2415
    %v5283 = vunpack.c.h.b16 %v2415
    %v5284 = vunpack.c.l.b16 %v2416
    %v5285 = vunpack.c.h.b16 %v2416
    %v5286 = vunpack.c.l.b16 %v2417
    %v5287 = vunpack.c.h.b16 %v2417
    %v5288 = vunpack.c.l.b16 %v2418
    %v5289 = vunpack.c.h.b16 %v2418
    %v5290 = vunpack.c.l.b16 %v2419
    %v5291 = vunpack.c.l.b16 %v2420
    %v5292 = vunpack.c.h.b16 %v2420
    %v5293 = vunpack.c.l.b16 %v2421
    %v5294 = vunpack.c.h.b16 %v2421
    %v5295 = vunpack.c.l.b16 %v2422
    %v5296 = vunpack.c.h.b16 %v2422
    %v5297 = vunpack.c.l.b16 %v2423
    %v5298 = vunpack.c.h.b16 %v2423
    %v5299 = vunpack.c.l.b16 %v2424
    %v5300 = vunpack.c.h.b16 %v2424
    %v5301 = vunpack.c.l.b16 %v2425
    %v5302 = vunpack.c.h.b16 %v2425
    %v5303 = vunpack.c.l.b16 %v2426
    %v5304 = vunpack.c.h.b16 %v2426
    %v5305 = vunpack.c.l.b16 %v2427
    %v5306 = vunpack.c.h.b16 %v2427
    %v5307 = vunpack.c.l.b16 %v2428
    %v5308 = vunpack.c.h.b16 %v2428
    %v5309 = vunpack.c.l.b16 %v2429
    %v5310 = vunpack.c.h.b16 %v2429
    %v5311 = vunpack.c.l.b16 %v2430
    %v5312 = vunpack.c.h.b16 %v2430
    %v5313 = vunpack.c.l.b16 %v2431
    %v5314 = vunpack.c.h.b16 %v2431
    %v5315 = vunpack.c.l.b16 %v2432
    %v5316 = vunpack.c.h.b16 %v2432
    %v5317 = vunpack.c.l.b16 %v2433
    %v5318 = vunpack.c.h.b16 %v2433
    %v5319 = vunpack.c.l.b16 %v2434
    %v5320 = vunpack.c.l.b16 %v2435
    %v5321 = vunpack.c.h.b16 %v2435
    %v5322 = vunpack.c.l.b16 %v2436
    %v5323 = vunpack.c.h.b16 %v2436
    %v5324 = vunpack.c.l.b16 %v2437
    %v5325 = vunpack.c.h.b16 %v2437
    %v5326 = vunpack.c.l.b16 %v2438
    %v5327 = vunpack.c.h.b16 %v2438
    %v5328 = vunpack.c.l.b16 %v2439
    %v5329 = vunpack.c.h.b16 %v2439
    %v5330 = vunpack.c.l.b16 %v2440
    %v5331 = vunpack.c.h.b16 %v2440
    %v5332 = vunpack.c.l.b16 %v2441
    %v5333 = vunpack.c.h.b16 %v2441
    %v5334 = vunpack.c.l.b16 %v2442
    %v5335 = vunpack.c.h.b16 %v2442
    %v5336 = vunpack.c.l.b16 %v2443
    %v5337 = vunpack.c.h.b16 %v2443
    %v5338 = vunpack.c.l.b16 %v2444
    %v5339 = vunpack.c.h.b16 %v2444
    %v5340 = vunpack.c.l.b16 %v2445
    %v5341 = vunpack.c.h.b16 %v2445
    %v5342 = vunpack.c.l.b16 %v2446
    %v5343 = vunpack.c.h.b16 %v2446
    %v5344 = vunpack.c.l.b16 %v2447
    %v5345 = vunpack.c.h.b16 %v2447
    %v5346 = vunpack.c.l.b16 %v2448
    %v5347 = vunpack.c.h.b16 %v2448
    %v5348 = vunpack.c.l.b16 %v2449
    %v5349 = vunpack.c.l.b16 %v2450
    %v5350 = vunpack.c.h.b16 %v2450
    %v5351 = vunpack.c.l.b16 %v2451
    %v5352 = vunpack.c.h.b16 %v2451
    %v5353 = vunpack.c.l.b16 %v2452
    %v5354 = vunpack.c.h.b16 %v2452
    %v5355 = vunpack.c.l.b16 %v2453
    %v5356 = vunpack.c.h.b16 %v2453
    %v5357 = vunpack.c.l.b16 %v2454
    %v5358 = vunpack.c.h.b16 %v2454
    %v5359 = vunpack.c.l.b16 %v2455
    %v5360 = vunpack.c.h.b16 %v2455
    %v5361 = vunpack.c.l.b16 %v2456
    %v5362 = vunpack.c.h.b16 %v2456
    %v5363 = vunpack.c.l.b16 %v2457
    %v5364 = vunpack.c.h.b16 %v2457
    %v5365 = vunpack.c.l.b16 %v2458
    %v5366 = vunpack.c.h.b16 %v2458
    %v5367 = vunpack.c.l.b16 %v2459
    %v5368 = vunpack.c.h.b16 %v2459
    %v5369 = vunpack.c.l.b16 %v2460
    %v5370 = vunpack.c.h.b16 %v2460
    %v5371 = vunpack.c.l.b16 %v2461
    %v5372 = vunpack.c.h.b16 %v2461
    %v5373 = vunpack.c.l.b16 %v2462
    %v5374 = vunpack.c.h.b16 %v2462
    %v5375 = vunpack.c.l.b16 %v2463
    %v5376 = vunpack.c.h.b16 %v2463
    %v5377 = vunpack.c.l.b16 %v2464
    %v5378 = vunpack.c.l.b16 %v2465
    %v5379 = vunpack.c.h.b16 %v2465
    %v5380 = vunpack.c.l.b16 %v2466
    %v5381 = vunpack.c.h.b16 %v2466
    %v5382 = vunpack.c.l.b16 %v2467
    %v5383 = vunpack.c.h.b16 %v2467
    %v5384 = vunpack.c.l.b16 %v2468
    %v5385 = vunpack.c.h.b16 %v2468
    %v5386 = vunpack.c.l.b16 %v2469
    %v5387 = vunpack.c.h.b16 %v2469
    %v5388 = vunpack.c.l.b16 %v2470
    %v5389 = vunpack.c.h.b16 %v2470
    %v5390 = vunpack.c.l.b16 %v2471
    %v5391 = vunpack.c.h.b16 %v2471
    %v5392 = vunpack.c.l.b16 %v2472
    %v5393 = vunpack.c.h.b16 %v2472
    %v5394 = vunpack.c.l.b16 %v2473
    %v5395 = vunpack.c.h.b16 %v2473
    %v5396 = vunpack.c.l.b16 %v2474
    %v5397 = vunpack.c.h.b16 %v2474
    %v5398 = vunpack.c.l.b16 %v2475
    %v5399 = vunpack.c.h.b16 %v2475
    %v5400 = vunpack.c.l.b16 %v2476
    %v5401 = vunpack.c.h.b16 %v2476
    %v5402 = vunpack.c.l.b16 %v2477
    %v5403 = vunpack.c.h.b16 %v2477
    %v5404 = vunpack.c.l.b16 %v2478
    %v5405 = vunpack.c.h.b16 %v2478
    %v5406 = vunpack.c.l.b16 %v2479
    %v5407 = vunpack.c.l.b16 %v2480
    %v5408 = vunpack.c.h.b16 %v2480
    %v5409 = vunpack.c.l.b16 %v2481
    %v5410 = vunpack.c.h.b16 %v2481
    %v5411 = vunpack.c.l.b16 %v2482
    %v5412 = vunpack.c.h.b16 %v2482
    %v5413 = vunpack.c.l.b16 %v2483
    %v5414 = vunpack.c.h.b16 %v2483
    %v5415 = vunpack.c.l.b16 %v2484
    %v5416 = vunpack.c.h.b16 %v2484
    %v5417 = vunpack.c.l.b16 %v2485
    %v5418 = vunpack.c.h.b16 %v2485
    %v5419 = vunpack.c.l.b16 %v2486
    %v5420 = vunpack.c.h.b16 %v2486
    %v5421 = vunpack.c.l.b16 %v2487
    %v5422 = vunpack.c.h.b16 %v2487
    %v5423 = vunpack.c.l.b16 %v2488
    %v5424 = vunpack.c.h.b16 %v2488
    %v5425 = vunpack.c.l.b16 %v2489
    %v5426 = vunpack.c.h.b16 %v2489
    %v5427 = vunpack.c.l.b16 %v2490
    %v5428 = vunpack.c.h.b16 %v2490
    %v5429 = vunpack.c.l.b16 %v2491
    %v5430 = vunpack.c.h.b16 %v2491
    %v5431 = vunpack.c.l.b16 %v2492
    %v5432 = vunpack.c.h.b16 %v2492
    %v5433 = vunpack.c.l.b16 %v2493
    %v5434 = vunpack.c.h.b16 %v2493
    %v5435 = vunpack.c.l.b16 %v2494
    %v5436 = vunpack.c.l.b16 %v2495
    %v5437 = vunpack.c.h.b16 %v2495
    %v5438 = vunpack.c.l.b16 %v2496
    %v5439 = vunpack.c.h.b16 %v2496
    %v5440 = vunpack.c.l.b16 %v2497
    %v5441 = vunpack.c.h.b16 %v2497
    %v5442 = vunpack.c.l.b16 %v2498
    %v5443 = vunpack.c.h.b16 %v2498
    %v5444 = vunpack.c.l.b16 %v2499
    %v5445 = vunpack.c.h.b16 %v2499
    %v5446 = vunpack.c.l.b16 %v2500
    %v5447 = vunpack.c.h.b16 %v2500
    %v5448 = vunpack.c.l.b16 %v2501
    %v5449 = vunpack.c.h.b16 %v2501
    %v5450 = vunpack.c.l.b16 %v2502
    %v5451 = vunpack.c.h.b16 %v2502
    %v5452 = vunpack.c.l.b16 %v2503
    %v5453 = vunpack.c.h.b16 %v2503
    %v5454 = vunpack.c.l.b16 %v2504
    %v5455 = vunpack.c.h.b16 %v2504
    %v5456 = vunpack.c.l.b16 %v2505
    %v5457 = vunpack.c.h.b16 %v2505
    %v5458 = vunpack.c.l.b16 %v2506
    %v5459 = vunpack.c.h.b16 %v2506
    %v5460 = vunpack.c.l.b16 %v2507
    %v5461 = vunpack.c.h.b16 %v2507
    %v5462 = vunpack.c.l.b16 %v2508
    %v5463 = vunpack.c.h.b16 %v2508
    %v5464 = vunpack.c.l.b16 %v2509
    %v5465 = vunpack.c.l.b16 %v2510
    %v5466 = vunpack.c.h.b16 %v2510
    %v5467 = vunpack.c.l.b16 %v2511
    %v5468 = vunpack.c.h.b16 %v2511
    %v5469 = vunpack.c.l.b16 %v2512
    %v5470 = vunpack.c.h.b16 %v2512
    %v5471 = vunpack.c.l.b16 %v2513
    %v5472 = vunpack.c.h.b16 %v2513
    %v5473 = vunpack.c.l.b16 %v2514
    %v5474 = vunpack.c.h.b16 %v2514
    %v5475 = vunpack.c.l.b16 %v2515
    %v5476 = vunpack.c.h.b16 %v2515
    %v5477 = vunpack.c.l.b16 %v2516
    %v5478 = vunpack.c.h.b16 %v2516
    %v5479 = vunpack.c.l.b16 %v2517
    %v5480 = vunpack.c.h.b16 %v2517
    %v5481 = vunpack.c.l.b16 %v2518
    %v5482 = vunpack.c.h.b16 %v2518
    %v5483 = vunpack.c.l.b16 %v2519
    %v5484 = vunpack.c.h.b16 %v2519
    %v5485 = vunpack.c.l.b16 %v2520
    %v5486 = vunpack.c.h.b16 %v2520
    %v5487 = vunpack.c.l.b16 %v2521
    %v5488 = vunpack.c.h.b16 %v2521
    %v5489 = vunpack.c.l.b16 %v2522
    %v5490 = vunpack.c.h.b16 %v2522
    %v5491 = vunpack.c.l.b16 %v2523
    %v5492 = vunpack.c.h.b16 %v2523
    %v5493 = vunpack.c.l.b16 %v2524
    %v5494 = vpack.c.b16 %v3667, %v3638
    %v5495 = vpack.c.b16 %v3668, %v3639
    %v5496 = vpack.c.b16 %v3669, %v3640
    %v5497 = vpack.c.b16 %v3670, %v3641
    %v5498 = vpack.c.b16 %v3671, %v3642
    %v5499 = vpack.c.b16 %v3672, %v3643
    %v5500 = vpack.c.b16 %v3673, %v3644
    %v5501 = vpack.c.b16 %v3674, %v3645
    %v5502 = vpack.c.b16 %v3675, %v3646
    %v5503 = vpack.c.b16 %v3676, %v3647
    %v5504 = vpack.c.b16 %v3677, %v3648
    %v5505 = vpack.c.b16 %v3678, %v3649
    %v5506 = vpack.c.b16 %v3679, %v3650
    %v5507 = vpack.c.b16 %v3680, %v3651
    %v5508 = vpack.c.b16 %v3681, %v3652
    %v5509 = vpack.c.b16 %v3682, %v3653
    %v5510 = vpack.c.b16 %v3683, %v3654
    %v5511 = vpack.c.b16 %v3684, %v3655
    %v5512 = vpack.c.b16 %v3685, %v3656
    %v5513 = vpack.c.b16 %v3686, %v3657
    %v5514 = vpack.c.b16 %v3687, %v3658
    %v5515 = vpack.c.b16 %v3688, %v3659
    %v5516 = vpack.c.b16 %v3689, %v3660
    %v5517 = vpack.c.b16 %v3690, %v3661
    %v5518 = vpack.c.b16 %v3691, %v3662
    %v5519 = vpack.c.b16 %v3692, %v3663
    %v5520 = vpack.c.b16 %v3693, %v3664
    %v5521 = vpack.c.b16 %v3694, %v3665
    %v5522 = vpack.c.b16 %v3695, %v3666
    %v5523 = vpack.c.b16 %v3725, %v3696
    %v5524 = vpack.c.b16 %v3726, %v3697
    %v5525 = vpack.c.b16 %v3727, %v3698
    %v5526 = vpack.c.b16 %v3728, %v3699
    %v5527 = vpack.c.b16 %v3729, %v3700
    %v5528 = vpack.c.b16 %v3730, %v3701
    %v5529 = vpack.c.b16 %v3731, %v3702
    %v5530 = vpack.c.b16 %v3732, %v3703
    %v5531 = vpack.c.b16 %v3733, %v3704
    %v5532 = vpack.c.b16 %v3734, %v3705
    %v5533 = vpack.c.b16 %v3735, %v3706
    %v5534 = vpack.c.b16 %v3736, %v3707
    %v5535 = vpack.c.b16 %v3737, %v3708
    %v5536 = vpack.c.b16 %v3738, %v3709
    %v5537 = vpack.c.b16 %v3739, %v3710
    %v5538 = vpack.c.b16 %v3740, %v3711
    %v5539 = vpack.c.b16 %v3741, %v3712
    %v5540 = vpack.c.b16 %v3742, %v3713
    %v5541 = vpack.c.b16 %v3743, %v3714
    %v5542 = vpack.c.b16 %v3744, %v3715
    %v5543 = vpack.c.b16 %v3745, %v3716
    %v5544 = vpack.c.b16 %v3746, %v3717
    %v5545 = vpack.c.b16 %v3747, %v3718
    %v5546 = vpack.c.b16 %v3748, %v3719
    %v5547 = vpack.c.b16 %v3749, %v3720
    %v5548 = vpack.c.b16 %v3750, %v3721
    %v5549 = vpack.c.b16 %v3751, %v3722
    %v5550 = vpack.c.b16 %v3752, %v3723
    %v5551 = vpack.c.b16 %v3753, %v3724
    %v5552 = vpack.c.b16 %v3783, %v3754
    %v5553 = vpack.c.b16 %v3784, %v3755
    %v5554 = vpack.c.b16 %v3785, %v3756
    %v5555 = vpack.c.b16 %v3786, %v3757
    %v5556 = vpack.c.b16 %v3787, %v3758
    %v5557 = vpack.c.b16 %v3788, %v3759
    %v5558 = vpack.c.b16 %v3789, %v3760
    %v5559 = vpack.c.b16 %v3790, %v3761
    %v5560 = vpack.c.b16 %v3791, %v3762
    %v5561 = vpack.c.b16 %v3792, %v3763
    %v5562 = vpack.c.b16 %v3793, %v3764
    %v5563 = vpack.c.b16 %v3794, %v3765
    %v5564 = vpack.c.b16 %v3795, %v3766
    %v5565 = vpack.c.b16 %v3796, %v3767
    %v5566 = vpack.c.b16 %v3797, %v3768
    %v5567 = vpack.c.b16 %v3798, %v3769
    %v5568 = vpack.c.b16 %v3799, %v3770
    %v5569 = vpack.c.b16 %v3800, %v3771
    %v5570 = vpack.c.b16 %v3801, %v3772
    %v5571 = vpack.c.b16 %v3802, %v3773
    %v5572 = vpack.c.b16 %v3803, %v3774
    %v5573 = vpack.c.b16 %v3804, %v3775
    %v5574 = vpack.c.b16 %v3805, %v3776
    %v5575 = vpack.c.b16 %v3806, %v3777
    %v5576 = vpack.c.b16 %v3807, %v3778
    %v5577 = vpack.c.b16 %v3808, %v3779
    %v5578 = vpack.c.b16 %v3809, %v3780
    %v5579 = vpack.c.b16 %v3810, %v3781
    %v5580 = vpack.c.b16 %v3811, %v3782
    %v5581 = vpack.c.b16 %v3841, %v3812
    %v5582 = vpack.c.b16 %v3842, %v3813
    %v5583 = vpack.c.b16 %v3843, %v3814
    %v5584 = vpack.c.b16 %v3844, %v3815
    %v5585 = vpack.c.b16 %v3845, %v3816
    %v5586 = vpack.c.b16 %v3846, %v3817
    %v5587 = vpack.c.b16 %v3847, %v3818
    %v5588 = vpack.c.b16 %v3848, %v3819
    %v5589 = vpack.c.b16 %v3849, %v3820
    %v5590 = vpack.c.b16 %v3850, %v3821
    %v5591 = vpack.c.b16 %v3851, %v3822
    %v5592 = vpack.c.b16 %v3852, %v3823
    %v5593 = vpack.c.b16 %v3853, %v3824
    %v5594 = vpack.c.b16 %v3854, %v3825
    %v5595 = vpack.c.b16 %v3855, %v3826
    %v5596 = vpack.c.b16 %v3856, %v3827
    %v5597 = vpack.c.b16 %v3857, %v3828
    %v5598 = vpack.c.b16 %v3858, %v3829
    %v5599 = vpack.c.b16 %v3859, %v3830
    %v5600 = vpack.c.b16 %v3860, %v3831
    %v5601 = vpack.c.b16 %v3861, %v3832
    %v5602 = vpack.c.b16 %v3862, %v3833
    %v5603 = vpack.c.b16 %v3863, %v3834
    %v5604 = vpack.c.b16 %v3864, %v3835
    %v5605 = vpack.c.b16 %v3865, %v3836
    %v5606 = vpack.c.b16 %v3866, %v3837
    %v5607 = vpack.c.b16 %v3867, %v3838
    %v5608 = vpack.c.b16 %v3868, %v3839
    %v5609 = vpack.c.b16 %v3869, %v3840
    %v5610 = vpack.c.b16 %v3899, %v3870
    %v5611 = vpack.c.b16 %v3900, %v3871
    %v5612 = vpack.c.b16 %v3901, %v3872
    %v5613 = vpack.c.b16 %v3902, %v3873
    %v5614 = vpack.c.b16 %v3903, %v3874
    %v5615 = vpack.c.b16 %v3904, %v3875
    %v5616 = vpack.c.b16 %v3905, %v3876
    %v5617 = vpack.c.b16 %v3906, %v3877
    %v5618 = vpack.c.b16 %v3907, %v3878
    %v5619 = vpack.c.b16 %v3908, %v3879
    %v5620 = vpack.c.b16 %v3909, %v3880
    %v5621 = vpack.c.b16 %v3910, %v3881
    %v5622 = vpack.c.b16 %v3911, %v3882
    %v5623 = vpack.c.b16 %v3912, %v3883
    %v5624 = vpack.c.b16 %v3913, %v3884
    %v5625 = vpack.c.b16 %v3914, %v3885
    %v5626 = vpack.c.b16 %v3915, %v3886
    %v5627 = vpack.c.b16 %v3916, %v3887
    %v5628 = vpack.c.b16 %v3917, %v3888
    %v5629 = vpack.c.b16 %v3918, %v3889
    %v5630 = vpack.c.b16 %v3919, %v3890
    %v5631 = vpack.c.b16 %v3920, %v3891
    %v5632 = vpack.c.b16 %v3921, %v3892
    %v5633 = vpack.c.b16 %v3922, %v3893
    %v5634 = vpack.c.b16 %v3923, %v3894
    %v5635 = vpack.c.b16 %v3924, %v3895
    %v5636 = vpack.c.b16 %v3925, %v3896
    %v5637 = vpack.c.b16 %v3926, %v3897
    %v5638 = vpack.c.b16 %v3927, %v3898
    %v5639 = vpack.c.b16 %v3957, %v3928
    %v5640 = vpack.c.b16 %v3958, %v3929
    %v5641 = vpack.c.b16 %v3959, %v3930
    %v5642 = vpack.c.b16 %v3960, %v3931
    %v5643 = vpack.c.b16 %v3961, %v3932
    %v5644 = vpack.c.b16 %v3962, %v3933
    %v5645 = vpack.c.b16 %v3963, %v3934
    %v5646 = vpack.c.b16 %v3964, %v3935
    %v5647 = vpack.c.b16 %v3965, %v3936
    %v5648 = vpack.c.b16 %v3966, %v3937
    %v5649 = vpack.c.b16 %v3967, %v3938
    %v5650 = vpack.c.b16 %v3968, %v3939
    %v5651 = vpack.c.b16 %v3969, %v3940
    %v5652 = vpack.c.b16 %v3970, %v3941
    %v5653 = vpack.c.b16 %v3971, %v3942
    %v5654 = vpack.c.b16 %v3972, %v3943
    %v5655 = vpack.c.b16 %v3973, %v3944
    %v5656 = vpack.c.b16 %v3974, %v3945
    %v5657 = vpack.c.b16 %v3975, %v3946
    %v5658 = vpack.c.b16 %v3976, %v3947
    %v5659 = vpack.c.b16 %v3977, %v3948
    %v5660 = vpack.c.b16 %v3978, %v3949
    %v5661 = vpack.c.b16 %v3979, %v3950
    %v5662 = vpack.c.b16 %v3980, %v3951
    %v5663 = vpack.c.b16 %v3981, %v3952
    %v5664 = vpack.c.b16 %v3982, %v3953
    %v5665 = vpack.c.b16 %v3983, %v3954
    %v5666 = vpack.c.b16 %v3984, %v3955
    %v5667 = vpack.c.b16 %v3985, %v3956
    %v5668 = vpack.c.b16 %v4015, %v3986
    %v5669 = vpack.c.b16 %v4016, %v3987
    %v5670 = vpack.c.b16 %v4017, %v3988
    %v5671 = vpack.c.b16 %v4018, %v3989
    %v5672 = vpack.c.b16 %v4019, %v3990
    %v5673 = vpack.c.b16 %v4020, %v3991
    %v5674 = vpack.c.b16 %v4021, %v3992
    %v5675 = vpack.c.b16 %v4022, %v3993
    %v5676 = vpack.c.b16 %v4023, %v3994
    %v5677 = vpack.c.b16 %v4024, %v3995
    %v5678 = vpack.c.b16 %v4025, %v3996
    %v5679 = vpack.c.b16 %v4026, %v3997
    %v5680 = vpack.c.b16 %v4027, %v3998
    %v5681 = vpack.c.b16 %v4028, %v3999
    %v5682 = vpack.c.b16 %v4029, %v4000
    %v5683 = vpack.c.b16 %v4030, %v4001
    %v5684 = vpack.c.b16 %v4031, %v4002
    %v5685 = vpack.c.b16 %v4032, %v4003
    %v5686 = vpack.c.b16 %v4033, %v4004
    %v5687 = vpack.c.b16 %v4034, %v4005
    %v5688 = vpack.c.b16 %v4035, %v4006
    %v5689 = vpack.c.b16 %v4036, %v4007
    %v5690 = vpack.c.b16 %v4037, %v4008
    %v5691 = vpack.c.b16 %v4038, %v4009
    %v5692 = vpack.c.b16 %v4039, %v4010
    %v5693 = vpack.c.b16 %v4040, %v4011
    %v5694 = vpack.c.b16 %v4041, %v4012
    %v5695 = vpack.c.b16 %v4042, %v4013
    %v5696 = vpack.c.b16 %v4043, %v4014
    %v5697 = vpack.c.b16 %v4073, %v4044
    %v5698 = vpack.c.b16 %v4074, %v4045
    %v5699 = vpack.c.b16 %v4075, %v4046
    %v5700 = vpack.c.b16 %v4076, %v4047
    %v5701 = vpack.c.b16 %v4077, %v4048
    %v5702 = vpack.c.b16 %v4078, %v4049
    %v5703 = vpack.c.b16 %v4079, %v4050
    %v5704 = vpack.c.b16 %v4080, %v4051
    %v5705 = vpack.c.b16 %v4081, %v4052
    %v5706 = vpack.c.b16 %v4082, %v4053
    %v5707 = vpack.c.b16 %v4083, %v4054
    %v5708 = vpack.c.b16 %v4084, %v4055
    %v5709 = vpack.c.b16 %v4085, %v4056
    %v5710 = vpack.c.b16 %v4086, %v4057
    %v5711 = vpack.c.b16 %v4087, %v4058
    %v5712 = vpack.c.b16 %v4088, %v4059
    %v5713 = vpack.c.b16 %v4089, %v4060
    %v5714 = vpack.c.b16 %v4090, %v4061
    %v5715 = vpack.c.b16 %v4091, %v4062
    %v5716 = vpack.c.b16 %v4092, %v4063
    %v5717 = vpack.c.b16 %v4093, %v4064
    %v5718 = vpack.c.b16 %v4094, %v4065
    %v5719 = vpack.c.b16 %v4095, %v4066
    %v5720 = vpack.c.b16 %v4096, %v4067
    %v5721 = vpack.c.b16 %v4097, %v4068
    %v5722 = vpack.c.b16 %v4098, %v4069
    %v5723 = vpack.c.b16 %v4099, %v4070
    %v5724 = vpack.c.b16 %v4100, %v4071
    %v5725 = vpack.c.b16 %v4101, %v4072
    %v5726 = vpack.c.b16 %v4131, %v4102
    %v5727 = vpack.c.b16 %v4132, %v4103
    %v5728 = vpack.c.b16 %v4133, %v4104
    %v5729 = vpack.c.b16 %v4134, %v4105
    %v5730 = vpack.c.b16 %v4135, %v4106
    %v5731 = vpack.c.b16 %v4136, %v4107
    %v5732 = vpack.c.b16 %v4137, %v4108
    %v5733 = vpack.c.b16 %v4138, %v4109
    %v5734 = vpack.c.b16 %v4139, %v4110
    %v5735 = vpack.c.b16 %v4140, %v4111
    %v5736 = vpack.c.b16 %v4141, %v4112
    %v5737 = vpack.c.b16 %v4142, %v4113
    %v5738 = vpack.c.b16 %v4143, %v4114
    %v5739 = vpack.c.b16 %v4144, %v4115
    %v5740 = vpack.c.b16 %v4145, %v4116
    %v5741 = vpack.c.b16 %v4146, %v4117
    %v5742 = vpack.c.b16 %v4147, %v4118
    %v5743 = vpack.c.b16 %v4148, %v4119
    %v5744 = vpack.c.b16 %v4149, %v4120
    %v5745 = vpack.c.b16 %v4150, %v4121
    %v5746 = vpack.c.b16 %v4151, %v4122
    %v5747 = vpack.c.b16 %v4152, %v4123
    %v5748 = vpack.c.b16 %v4153, %v4124
    %v5749 = vpack.c.b16 %v4154, %v4125
    %v5750 = vpack.c.b16 %v4155, %v4126
    %v5751 = vpack.c.b16 %v4156, %v4127
    %v5752 = vpack.c.b16 %v4157, %v4128
    %v5753 = vpack.c.b16 %v4158, %v4129
    %v5754 = vpack.c.b16 %v4159, %v4130
    %v5755 = vpack.c.b16 %v4189, %v4160
    %v5756 = vpack.c.b16 %v4190, %v4161
    %v5757 = vpack.c.b16 %v4191, %v4162
    %v5758 = vpack.c.b16 %v4192, %v4163
    %v5759 = vpack.c.b16 %v4193, %v4164
    %v5760 = vpack.c.b16 %v4194, %v4165
    %v5761 = vpack.c.b16 %v4195, %v4166
    %v5762 = vpack.c.b16 %v4196, %v4167
    %v5763 = vpack.c.b16 %v4197, %v4168
    %v5764 = vpack.c.b16 %v4198, %v4169
    %v5765 = vpack.c.b16 %v4199, %v4170
    %v5766 = vpack.c.b16 %v4200, %v4171
    %v5767 = vpack.c.b16 %v4201, %v4172
    %v5768 = vpack.c.b16 %v4202, %v4173
    %v5769 = vpack.c.b16 %v4203, %v4174
    %v5770 = vpack.c.b16 %v4204, %v4175
    %v5771 = vpack.c.b16 %v4205, %v4176
    %v5772 = vpack.c.b16 %v4206, %v4177
    %v5773 = vpack.c.b16 %v4207, %v4178
    %v5774 = vpack.c.b16 %v4208, %v4179
    %v5775 = vpack.c.b16 %v4209, %v4180
    %v5776 = vpack.c.b16 %v4210, %v4181
    %v5777 = vpack.c.b16 %v4211, %v4182
    %v5778 = vpack.c.b16 %v4212, %v4183
    %v5779 = vpack.c.b16 %v4213, %v4184
    %v5780 = vpack.c.b16 %v4214, %v4185
    %v5781 = vpack.c.b16 %v4215, %v4186
    %v5782 = vpack.c.b16 %v4216, %v4187
    %v5783 = vpack.c.b16 %v4217, %v4188
    %v5784 = vpack.c.b16 %v4247, %v4218
    %v5785 = vpack.c.b16 %v4248, %v4219
    %v5786 = vpack.c.b16 %v4249, %v4220
    %v5787 = vpack.c.b16 %v4250, %v4221
    %v5788 = vpack.c.b16 %v4251, %v4222
    %v5789 = vpack.c.b16 %v4252, %v4223
    %v5790 = vpack.c.b16 %v4253, %v4224
    %v5791 = vpack.c.b16 %v4254, %v4225
    %v5792 = vpack.c.b16 %v4255, %v4226
    %v5793 = vpack.c.b16 %v4256, %v4227
    %v5794 = vpack.c.b16 %v4257, %v4228
    %v5795 = vpack.c.b16 %v4258, %v4229
    %v5796 = vpack.c.b16 %v4259, %v4230
    %v5797 = vpack.c.b16 %v4260, %v4231
    %v5798 = vpack.c.b16 %v4261, %v4232
    %v5799 = vpack.c.b16 %v4262, %v4233
    %v5800 = vpack.c.b16 %v4263, %v4234
    %v5801 = vpack.c.b16 %v4264, %v4235
    %v5802 = vpack.c.b16 %v4265, %v4236
    %v5803 = vpack.c.b16 %v4266, %v4237
    %v5804 = vpack.c.b16 %v4267, %v4238
    %v5805 = vpack.c.b16 %v4268, %v4239
    %v5806 = vpack.c.b16 %v4269, %v4240
    %v5807 = vpack.c.b16 %v4270, %v4241
    %v5808 = vpack.c.b16 %v4271, %v4242
    %v5809 = vpack.c.b16 %v4272, %v4243
    %v5810 = vpack.c.b16 %v4273, %v4244
    %v5811 = vpack.c.b16 %v4274, %v4245
    %v5812 = vpack.c.b16 %v4275, %v4246
    %v5813 = vpack.c.b16 %v4305, %v4276
    %v5814 = vpack.c.b16 %v4306, %v4277
    %v5815 = vpack.c.b16 %v4307, %v4278
    %v5816 = vpack.c.b16 %v4308, %v4279
    %v5817 = vpack.c.b16 %v4309, %v4280
    %v5818 = vpack.c.b16 %v4310, %v4281
    %v5819 = vpack.c.b16 %v4311, %v4282
    %v5820 = vpack.c.b16 %v4312, %v4283
    %v5821 = vpack.c.b16 %v4313, %v4284
    %v5822 = vpack.c.b16 %v4314, %v4285
    %v5823 = vpack.c.b16 %v4315, %v4286
    %v5824 = vpack.c.b16 %v4316, %v4287
    %v5825 = vpack.c.b16 %v4317, %v4288
    %v5826 = vpack.c.b16 %v4318, %v4289
    %v5827 = vpack.c.b16 %v4319, %v4290
    %v5828 = vpack.c.b16 %v4320, %v4291
    %v5829 = vpack.c.b16 %v4321, %v4292
    %v5830 = vpack.c.b16 %v4322, %v4293
    %v5831 = vpack.c.b16 %v4323, %v4294
    %v5832 = vpack.c.b16 %v4324, %v4295
    %v5833 = vpack.c.b16 %v4325, %v4296
    %v5834 = vpack.c.b16 %v4326, %v4297
    %v5835 = vpack.c.b16 %v4327, %v4298
    %v5836 = vpack.c.b16 %v4328, %v4299
    %v5837 = vpack.c.b16 %v4329, %v4300
    %v5838 = vpack.c.b16 %v4330, %v4301
    %v5839 = vpack.c.b16 %v4331, %v4302
    %v5840 = vpack.c.b16 %v4332, %v4303
    %v5841 = vpack.c.b16 %v4333, %v4304
    %v5842 = vpack.c.b16 %v4363, %v4334
    %v5843 = vpack.c.b16 %v4364, %v4335
    %v5844 = vpack.c.b16 %v4365, %v4336
    %v5845 = vpack.c.b16 %v4366, %v4337
    %v5846 = vpack.c.b16 %v4367, %v4338
    %v5847 = vpack.c.b16 %v4368, %v4339
    %v5848 = vpack.c.b16 %v4369, %v4340
    %v5849 = vpack.c.b16 %v4370, %v4341
    %v5850 = vpack.c.b16 %v4371, %v4342
    %v5851 = vpack.c.b16 %v4372, %v4343
    %v5852 = vpack.c.b16 %v4373, %v4344
    %v5853 = vpack.c.b16 %v4374, %v4345
    %v5854 = vpack.c.b16 %v4375, %v4346
    %v5855 = vpack.c.b16 %v4376, %v4347
    %v5856 = vpack.c.b16 %v4377, %v4348
    %v5857 = vpack.c.b16 %v4378, %v4349
    %v5858 = vpack.c.b16 %v4379, %v4350
    %v5859 = vpack.c.b16 %v4380, %v4351
    %v5860 = vpack.c.b16 %v4381, %v4352
    %v5861 = vpack.c.b16 %v4382, %v4353
    %v5862 = vpack.c.b16 %v4383, %v4354
    %v5863 = vpack.c.b16 %v4384, %v4355
    %v5864 = vpack.c.b16 %v4385, %v4356
    %v5865 = vpack.c.b16 %v4386, %v4357
    %v5866 = vpack.c.b16 %v4387, %v4358
    %v5867 = vpack.c.b16 %v4388, %v4359
    %v5868 = vpack.c.b16 %v4389, %v4360
    %v5869 = vpack.c.b16 %v4390, %v4361
    %v5870 = vpack.c.b16 %v4391, %v4362
    %v5871 = vpack.c.b16 %v4421, %v4392
    %v5872 = vpack.c.b16 %v4422, %v4393
    %v5873 = vpack.c.b16 %v4423, %v4394
    %v5874 = vpack.c.b16 %v4424, %v4395
    %v5875 = vpack.c.b16 %v4425, %v4396
    %v5876 = vpack.c.b16 %v4426, %v4397
    %v5877 = vpack.c.b16 %v4427, %v4398
    %v5878 = vpack.c.b16 %v4428, %v4399
    %v5879 = vpack.c.b16 %v4429, %v4400
    %v5880 = vpack.c.b16 %v4430, %v4401
    %v5881 = vpack.c.b16 %v4431, %v4402
    %v5882 = vpack.c.b16 %v4432, %v4403
    %v5883 = vpack.c.b16 %v4433, %v4404
    %v5884 = vpack.c.b16 %v4434, %v4405
    %v5885 = vpack.c.b16 %v4435, %v4406
    %v5886 = vpack.c.b16 %v4436, %v4407
    %v5887 = vpack.c.b16 %v4437, %v4408
    %v5888 = vpack.c.b16 %v4438, %v4409
    %v5889 = vpack.c.b16 %v4439, %v4410
    %v5890 = vpack.c.b16 %v4440, %v4411
    %v5891 = vpack.c.b16 %v4441, %v4412
    %v5892 = vpack.c.b16 %v4442, %v4413
    %v5893 = vpack.c.b16 %v4443, %v4414
    %v5894 = vpack.c.b16 %v4444, %v4415
    %v5895 = vpack.c.b16 %v4445, %v4416
    %v5896 = vpack.c.b16 %v4446, %v4417
    %v5897 = vpack.c.b16 %v4447, %v4418
    %v5898 = vpack.c.b16 %v4448, %v4419
    %v5899 = vpack.c.b16 %v4449, %v4420
    %v5900 = vpack.c.b16 %v4479, %v4450
    %v5901 = vpack.c.b16 %v4480, %v4451
    %v5902 = vpack.c.b16 %v4481, %v4452
    %v5903 = vpack.c.b16 %v4482, %v4453
    %v5904 = vpack.c.b16 %v4483, %v4454
    %v5905 = vpack.c.b16 %v4484, %v4455
    %v5906 = vpack.c.b16 %v4485, %v4456
    %v5907 = vpack.c.b16 %v4486, %v4457
    %v5908 = vpack.c.b16 %v4487, %v4458
    %v5909 = vpack.c.b16 %v4488, %v4459
    %v5910 = vpack.c.b16 %v4489, %v4460
    %v5911 = vpack.c.b16 %v4490, %v4461
    %v5912 = vpack.c.b16 %v4491, %v4462
    %v5913 = vpack.c.b16 %v4492, %v4463
    %v5914 = vpack.c.b16 %v4493, %v4464
    %v5915 = vpack.c.b16 %v4494, %v4465
    %v5916 = vpack.c.b16 %v4495, %v4466
    %v5917 = vpack.c.b16 %v4496, %v4467
    %v5918 = vpack.c.b16 %v4497, %v4468
    %v5919 = vpack.c.b16 %v4498, %v4469
    %v5920 = vpack.c.b16 %v4499, %v4470
    %v5921 = vpack.c.b16 %v4500, %v4471
    %v5922 = vpack.c.b16 %v4501, %v4472
    %v5923 = vpack.c.b16 %v4502, %v4473
    %v5924 = vpack.c.b16 %v4503, %v4474
    %v5925 = vpack.c.b16 %v4504, %v4475
    %v5926 = vpack.c.b16 %v4505, %v4476
    %v5927 = vpack.c.b16 %v4506, %v4477
    %v5928 = vpack.c.b16 %v4507, %v4478
    %v5929 = vpack.c.b16 %v4537, %v4508
    %v5930 = vpack.c.b16 %v4538, %v4509
    %v5931 = vpack.c.b16 %v4539, %v4510
    %v5932 = vpack.c.b16 %v4540, %v4511
    %v5933 = vpack.c.b16 %v4541, %v4512
    %v5934 = vpack.c.b16 %v4542, %v4513
    %v5935 = vpack.c.b16 %v4543, %v4514
    %v5936 = vpack.c.b16 %v4544, %v4515
    %v5937 = vpack.c.b16 %v4545, %v4516
    %v5938 = vpack.c.b16 %v4546, %v4517
    %v5939 = vpack.c.b16 %v4547, %v4518
    %v5940 = vpack.c.b16 %v4548, %v4519
    %v5941 = vpack.c.b16 %v4549, %v4520
    %v5942 = vpack.c.b16 %v4550, %v4521
    %v5943 = vpack.c.b16 %v4551, %v4522
    %v5944 = vpack.c.b16 %v4552, %v4523
    %v5945 = vpack.c.b16 %v4553, %v4524
    %v5946 = vpack.c.b16 %v4554, %v4525
    %v5947 = vpack.c.b16 %v4555, %v4526
    %v5948 = vpack.c.b16 %v4556, %v4527
    %v5949 = vpack.c.b16 %v4557, %v4528
    %v5950 = vpack.c.b16 %v4558, %v4529
    %v5951 = vpack.c.b16 %v4559, %v4530
    %v5952 = vpack.c.b16 %v4560, %v4531
    %v5953 = vpack.c.b16 %v4561, %v4532
    %v5954 = vpack.c.b16 %v4562, %v4533
    %v5955 = vpack.c.b16 %v4563, %v4534
    %v5956 = vpack.c.b16 %v4564, %v4535
    %v5957 = vpack.c.b16 %v4565, %v4536
    %v5958 = vpack.c.b16 %v4595, %v4566
    %v5959 = vpack.c.b16 %v4596, %v4567
    %v5960 = vpack.c.b16 %v4597, %v4568
    %v5961 = vpack.c.b16 %v4598, %v4569
    %v5962 = vpack.c.b16 %v4599, %v4570
    %v5963 = vpack.c.b16 %v4600, %v4571
    %v5964 = vpack.c.b16 %v4601, %v4572
    %v5965 = vpack.c.b16 %v4602, %v4573
    %v5966 = vpack.c.b16 %v4603, %v4574
    %v5967 = vpack.c.b16 %v4604, %v4575
    %v5968 = vpack.c.b16 %v4605, %v4576
    %v5969 = vpack.c.b16 %v4606, %v4577
    %v5970 = vpack.c.b16 %v4607, %v4578
    %v5971 = vpack.c.b16 %v4608, %v4579
    %v5972 = vpack.c.b16 %v4609, %v4580
    %v5973 = vpack.c.b16 %v4610, %v4581
    %v5974 = vpack.c.b16 %v4611, %v4582
    %v5975 = vpack.c.b16 %v4612, %v4583
    %v5976 = vpack.c.b16 %v4613, %v4584
    %v5977 = vpack.c.b16 %v4614, %v4585
    %v5978 = vpack.c.b16 %v4615, %v4586
    %v5979 = vpack.c.b16 %v4616, %v4587
    %v5980 = vpack.c.b16 %v4617, %v4588
    %v5981 = vpack.c.b16 %v4618, %v4589
    %v5982 = vpack.c.b16 %v4619, %v4590
    %v5983 = vpack.c.b16 %v4620, %v4591
    %v5984 = vpack.c.b16 %v4621, %v4592
    %v5985 = vpack.c.b16 %v4622, %v4593
    %v5986 = vpack.c.b16 %v4623, %v4594
    %v5987 = vpack.c.b16 %v4653, %v4624
    %v5988 = vpack.c.b16 %v4654, %v4625
    %v5989 = vpack.c.b16 %v4655, %v4626
    %v5990 = vpack.c.b16 %v4656, %v4627
    %v5991 = vpack.c.b16 %v4657, %v4628
    %v5992 = vpack.c.b16 %v4658, %v4629
    %v5993 = vpack.c.b16 %v4659, %v4630
    %v5994 = vpack.c.b16 %v4660, %v4631
    %v5995 = vpack.c.b16 %v4661, %v4632
    %v5996 = vpack.c.b16 %v4662, %v4633
    %v5997 = vpack.c.b16 %v4663, %v4634
    %v5998 = vpack.c.b16 %v4664, %v4635
    %v5999 = vpack.c.b16 %v4665, %v4636
    %v6000 = vpack.c.b16 %v4666, %v4637
    %v6001 = vpack.c.b16 %v4667, %v4638
    %v6002 = vpack.c.b16 %v4668, %v4639
    %v6003 = vpack.c.b16 %v4669, %v4640
    %v6004 = vpack.c.b16 %v4670, %v4641
    %v6005 = vpack.c.b16 %v4671, %v4642
    %v6006 = vpack.c.b16 %v4672, %v4643
    %v6007 = vpack.c.b16 %v4673, %v4644
    %v6008 = vpack.c.b16 %v4674, %v4645
    %v6009 = vpack.c.b16 %v4675, %v4646
    %v6010 = vpack.c.b16 %v4676, %v4647
    %v6011 = vpack.c.b16 %v4677, %v4648
    %v6012 = vpack.c.b16 %v4678, %v4649
    %v6013 = vpack.c.b16 %v4679, %v4650
    %v6014 = vpack.c.b16 %v4680, %v4651
    %v6015 = vpack.c.b16 %v4681, %v4652
    %v6016 = vpack.c.b16 %v4711, %v4682
    %v6017 = vpack.c.b16 %v4712, %v4683
    %v6018 = vpack.c.b16 %v4713, %v4684
    %v6019 = vpack.c.b16 %v4714, %v4685
    %v6020 = vpack.c.b16 %v4715, %v4686
    %v6021 = vpack.c.b16 %v4716, %v4687
    %v6022 = vpack.c.b16 %v4717, %v4688
    %v6023 = vpack.c.b16 %v4718, %v4689
    %v6024 = vpack.c.b16 %v4719, %v4690
    %v6025 = vpack.c.b16 %v4720, %v4691
    %v6026 = vpack.c.b16 %v4721, %v4692
    %v6027 = vpack.c.b16 %v4722, %v4693
    %v6028 = vpack.c.b16 %v4723, %v4694
    %v6029 = vpack.c.b16 %v4724, %v4695
    %v6030 = vpack.c.b16 %v4725, %v4696
    %v6031 = vpack.c.b16 %v4726, %v4697
    %v6032 = vpack.c.b16 %v4727, %v4698
    %v6033 = vpack.c.b16 %v4728, %v4699
    %v6034 = vpack.c.b16 %v4729, %v4700
    %v6035 = vpack.c.b16 %v4730, %v4701
    %v6036 = vpack.c.b16 %v4731, %v4702
    %v6037 = vpack.c.b16 %v4732, %v4703
    %v6038 = vpack.c.b16 %v4733, %v4704
    %v6039 = vpack.c.b16 %v4734, %v4705
    %v6040 = vpack.c.b16 %v4735, %v4706
    %v6041 = vpack.c.b16 %v4736, %v4707
    %v6042 = vpack.c.b16 %v4737, %v4708
    %v6043 = vpack.c.b16 %v4738, %v4709
    %v6044 = vpack.c.b16 %v4739, %v4710
    %v6045 = vpack.c.b16 %v4769, %v4740
    %v6046 = vpack.c.b16 %v4770, %v4741
    %v6047 = vpack.c.b16 %v4771, %v4742
    %v6048 = vpack.c.b16 %v4772, %v4743
    %v6049 = vpack.c.b16 %v4773, %v4744
    %v6050 = vpack.c.b16 %v4774, %v4745
    %v6051 = vpack.c.b16 %v4775, %v4746
    %v6052 = vpack.c.b16 %v4776, %v4747
    %v6053 = vpack.c.b16 %v4777, %v4748
    %v6054 = vpack.c.b16 %v4778, %v4749
    %v6055 = vpack.c.b16 %v4779, %v4750
    %v6056 = vpack.c.b16 %v4780, %v4751
    %v6057 = vpack.c.b16 %v4781, %v4752
    %v6058 = vpack.c.b16 %v4782, %v4753
    %v6059 = vpack.c.b16 %v4783, %v4754
    %v6060 = vpack.c.b16 %v4784, %v4755
    %v6061 = vpack.c.b16 %v4785, %v4756
    %v6062 = vpack.c.b16 %v4786, %v4757
    %v6063 = vpack.c.b16 %v4787, %v4758
    %v6064 = vpack.c.b16 %v4788, %v4759
    %v6065 = vpack.c.b16 %v4789, %v4760
    %v6066 = vpack.c.b16 %v4790, %v4761
    %v6067 = vpack.c.b16 %v4791, %v4762
    %v6068 = vpack.c.b16 %v4792, %v4763
    %v6069 = vpack.c.b16 %v4793, %v4764
    %v6070 = vpack.c.b16 %v4794, %v4765
    %v6071 = vpack.c.b16 %v4795, %v4766
    %v6072 = vpack.c.b16 %v4796, %v4767
    %v6073 = vpack.c.b16 %v4797, %v4768
    %v6074 = vpack.c.b16 %v4827, %v4798
    %v6075 = vpack.c.b16 %v4828, %v4799
    %v6076 = vpack.c.b16 %v4829, %v4800
    %v6077 = vpack.c.b16 %v4830, %v4801
    %v6078 = vpack.c.b16 %v4831, %v4802
    %v6079 = vpack.c.b16 %v4832, %v4803
    %v6080 = vpack.c.b16 %v4833, %v4804
    %v6081 = vpack.c.b16 %v4834, %v4805
    %v6082 = vpack.c.b16 %v4835, %v4806
    %v6083 = vpack.c.b16 %v4836, %v4807
    %v6084 = vpack.c.b16 %v4837, %v4808
    %v6085 = vpack.c.b16 %v4838, %v4809
    %v6086 = vpack.c.b16 %v4839, %v4810
    %v6087 = vpack.c.b16 %v4840, %v4811
    %v6088 = vpack.c.b16 %v4841, %v4812
    %v6089 = vpack.c.b16 %v4842, %v4813
    %v6090 = vpack.c.b16 %v4843, %v4814
    %v6091 = vpack.c.b16 %v4844, %v4815
    %v6092 = vpack.c.b16 %v4845, %v4816
    %v6093 = vpack.c.b16 %v4846, %v4817
    %v6094 = vpack.c.b16 %v4847, %v4818
    %v6095 = vpack.c.b16 %v4848, %v4819
    %v6096 = vpack.c.b16 %v4849, %v4820
    %v6097 = vpack.c.b16 %v4850, %v4821
    %v6098 = vpack.c.b16 %v4851, %v4822
    %v6099 = vpack.c.b16 %v4852, %v4823
    %v6100 = vpack.c.b16 %v4853, %v4824
    %v6101 = vpack.c.b16 %v4854, %v4825
    %v6102 = vpack.c.b16 %v4855, %v4826
    %v6103 = vpack.c.b16 %v4885, %v4856
    %v6104 = vpack.c.b16 %v4886, %v4857
    %v6105 = vpack.c.b16 %v4887, %v4858
    %v6106 = vpack.c.b16 %v4888, %v4859
    %v6107 = vpack.c.b16 %v4889, %v4860
    %v6108 = vpack.c.b16 %v4890, %v4861
    %v6109 = vpack.c.b16 %v4891, %v4862
    %v6110 = vpack.c.b16 %v4892, %v4863
    %v6111 = vpack.c.b16 %v4893, %v4864
    %v6112 = vpack.c.b16 %v4894, %v4865
    %v6113 = vpack.c.b16 %v4895, %v4866
    %v6114 = vpack.c.b16 %v4896, %v4867
    %v6115 = vpack.c.b16 %v4897, %v4868
    %v6116 = vpack.c.b16 %v4898, %v4869
    %v6117 = vpack.c.b16 %v4899, %v4870
    %v6118 = vpack.c.b16 %v4900, %v4871
    %v6119 = vpack.c.b16 %v4901, %v4872
    %v6120 = vpack.c.b16 %v4902, %v4873
    %v6121 = vpack.c.b16 %v4903, %v4874
    %v6122 = vpack.c.b16 %v4904, %v4875
    %v6123 = vpack.c.b16 %v4905, %v4876
    %v6124 = vpack.c.b16 %v4906, %v4877
    %v6125 = vpack.c.b16 %v4907, %v4878
    %v6126 = vpack.c.b16 %v4908, %v4879
    %v6127 = vpack.c.b16 %v4909, %v4880
    %v6128 = vpack.c.b16 %v4910, %v4881
    %v6129 = vpack.c.b16 %v4911, %v4882
    %v6130 = vpack.c.b16 %v4912, %v4883
    %v6131 = vpack.c.b16 %v4913, %v4884
    %v6132 = vpack.c.b16 %v4943, %v4914
    %v6133 = vpack.c.b16 %v4944, %v4915
    %v6134 = vpack.c.b16 %v4945, %v4916
    %v6135 = vpack.c.b16 %v4946, %v4917
    %v6136 = vpack.c.b16 %v4947, %v4918
    %v6137 = vpack.c.b16 %v4948, %v4919
    %v6138 = vpack.c.b16 %v4949, %v4920
    %v6139 = vpack.c.b16 %v4950, %v4921
    %v6140 = vpack.c.b16 %v4951, %v4922
    %v6141 = vpack.c.b16 %v4952, %v4923
    %v6142 = vpack.c.b16 %v4953, %v4924
    %v6143 = vpack.c.b16 %v4954, %v4925
    %v6144 = vpack.c.b16 %v4955, %v4926
    %v6145 = vpack.c.b16 %v4956, %v4927
    %v6146 = vpack.c.b16 %v4957, %v4928
    %v6147 = vpack.c.b16 %v4958, %v4929
    %v6148 = vpack.c.b16 %v4959, %v4930
    %v6149 = vpack.c.b16 %v4960, %v4931
    %v6150 = vpack.c.b16 %v4961, %v4932
    %v6151 = vpack.c.b16 %v4962, %v4933
    %v6152 = vpack.c.b16 %v4963, %v4934
    %v6153 = vpack.c.b16 %v4964, %v4935
    %v6154 = vpack.c.b16 %v4965, %v4936
    %v6155 = vpack.c.b16 %v4966, %v4937
    %v6156 = vpack.c.b16 %v4967, %v4938
    %v6157 = vpack.c.b16 %v4968, %v4939
    %v6158 = vpack.c.b16 %v4969, %v4940
    %v6159 = vpack.c.b16 %v4970, %v4941
    %v6160 = vpack.c.b16 %v4971, %v4942
    %v6161 = vpack.c.b16 %v5001, %v4972
    %v6162 = vpack.c.b16 %v5002, %v4973
    %v6163 = vpack.c.b16 %v5003, %v4974
    %v6164 = vpack.c.b16 %v5004, %v4975
    %v6165 = vpack.c.b16 %v5005, %v4976
    %v6166 = vpack.c.b16 %v5006, %v4977
    %v6167 = vpack.c.b16 %v5007, %v4978
    %v6168 = vpack.c.b16 %v5008, %v4979
    %v6169 = vpack.c.b16 %v5009, %v4980
    %v6170 = vpack.c.b16 %v5010, %v4981
    %v6171 = vpack.c.b16 %v5011, %v4982
    %v6172 = vpack.c.b16 %v5012, %v4983
    %v6173 = vpack.c.b16 %v5013, %v4984
    %v6174 = vpack.c.b16 %v5014, %v4985
    %v6175 = vpack.c.b16 %v5015, %v4986
    %v6176 = vpack.c.b16 %v5016, %v4987
    %v6177 = vpack.c.b16 %v5017, %v4988
    %v6178 = vpack.c.b16 %v5018, %v4989
    %v6179 = vpack.c.b16 %v5019, %v4990
    %v6180 = vpack.c.b16 %v5020, %v4991
    %v6181 = vpack.c.b16 %v5021, %v4992
    %v6182 = vpack.c.b16 %v5022, %v4993
    %v6183 = vpack.c.b16 %v5023, %v4994
    %v6184 = vpack.c.b16 %v5024, %v4995
    %v6185 = vpack.c.b16 %v5025, %v4996
    %v6186 = vpack.c.b16 %v5026, %v4997
    %v6187 = vpack.c.b16 %v5027, %v4998
    %v6188 = vpack.c.b16 %v5028, %v4999
    %v6189 = vpack.c.b16 %v5029, %v5000
    %v6190 = vpack.c.b16 %v5059, %v5030
    %v6191 = vpack.c.b16 %v5060, %v5031
    %v6192 = vpack.c.b16 %v5061, %v5032
    %v6193 = vpack.c.b16 %v5062, %v5033
    %v6194 = vpack.c.b16 %v5063, %v5034
    %v6195 = vpack.c.b16 %v5064, %v5035
    %v6196 = vpack.c.b16 %v5065, %v5036
    %v6197 = vpack.c.b16 %v5066, %v5037
    %v6198 = vpack.c.b16 %v5067, %v5038
    %v6199 = vpack.c.b16 %v5068, %v5039
    %v6200 = vpack.c.b16 %v5069, %v5040
    %v6201 = vpack.c.b16 %v5070, %v5041
    %v6202 = vpack.c.b16 %v5071, %v5042
    %v6203 = vpack.c.b16 %v5072, %v5043
    %v6204 = vpack.c.b16 %v5073, %v5044
    %v6205 = vpack.c.b16 %v5074, %v5045
    %v6206 = vpack.c.b16 %v5075, %v5046
    %v6207 = vpack.c.b16 %v5076, %v5047
    %v6208 = vpack.c.b16 %v5077, %v5048
    %v6209 = vpack.c.b16 %v5078, %v5049
    %v6210 = vpack.c.b16 %v5079, %v5050
    %v6211 = vpack.c.b16 %v5080, %v5051
    %v6212 = vpack.c.b16 %v5081, %v5052
    %v6213 = vpack.c.b16 %v5082, %v5053
    %v6214 = vpack.c.b16 %v5083, %v5054
    %v6215 = vpack.c.b16 %v5084, %v5055
    %v6216 = vpack.c.b16 %v5085, %v5056
    %v6217 = vpack.c.b16 %v5086, %v5057
    %v6218 = vpack.c.b16 %v5087, %v5058
    %v6219 = vpack.c.b16 %v5117, %v5088
    %v6220 = vpack.c.b16 %v5118, %v5089
    %v6221 = vpack.c.b16 %v5119, %v5090
    %v6222 = vpack.c.b16 %v5120, %v5091
    %v6223 = vpack.c.b16 %v5121, %v5092
    %v6224 = vpack.c.b16 %v5122, %v5093
    %v6225 = vpack.c.b16 %v5123, %v5094
    %v6226 = vpack.c.b16 %v5124, %v5095
    %v6227 = vpack.c.b16 %v5125, %v5096
    %v6228 = vpack.c.b16 %v5126, %v5097
    %v6229 = vpack.c.b16 %v5127, %v5098
    %v6230 = vpack.c.b16 %v5128, %v5099
    %v6231 = vpack.c.b16 %v5129, %v5100
    %v6232 = vpack.c.b16 %v5130, %v5101
    %v6233 = vpack.c.b16 %v5131, %v5102
    %v6234 = vpack.c.b16 %v5132, %v5103
    %v6235 = vpack.c.b16 %v5133, %v5104
    %v6236 = vpack.c.b16 %v5134, %v5105
    %v6237 = vpack.c.b16 %v5135, %v5106
    %v6238 = vpack.c.b16 %v5136, %v5107
    %v6239 = vpack.c.b16 %v5137, %v5108
    %v6240 = vpack.c.b16 %v5138, %v5109
    %v6241 = vpack.c.b16 %v5139, %v5110
    %v6242 = vpack.c.b16 %v5140, %v5111
    %v6243 = vpack.c.b16 %v5141, %v5112
    %v6244 = vpack.c.b16 %v5142, %v5113
    %v6245 = vpack.c.b16 %v5143, %v5114
    %v6246 = vpack.c.b16 %v5144, %v5115
    %v6247 = vpack.c.b16 %v5145, %v5116
    %v6248 = vpack.c.b16 %v5175, %v5146
    %v6249 = vpack.c.b16 %v5176, %v5147
    %v6250 = vpack.c.b16 %v5177, %v5148
    %v6251 = vpack.c.b16 %v5178, %v5149
    %v6252 = vpack.c.b16 %v5179, %v5150
    %v6253 = vpack.c.b16 %v5180, %v5151
    %v6254 = vpack.c.b16 %v5181, %v5152
    %v6255 = vpack.c.b16 %v5182, %v5153
    %v6256 = vpack.c.b16 %v5183, %v5154
    %v6257 = vpack.c.b16 %v5184, %v5155
    %v6258 = vpack.c.b16 %v5185, %v5156
    %v6259 = vpack.c.b16 %v5186, %v5157
    %v6260 = vpack.c.b16 %v5187, %v5158
    %v6261 = vpack.c.b16 %v5188, %v5159
    %v6262 = vpack.c.b16 %v5189, %v5160
    %v6263 = vpack.c.b16 %v5190, %v5161
    %v6264 = vpack.c.b16 %v5191, %v5162
    %v6265 = vpack.c.b16 %v5192, %v5163
    %v6266 = vpack.c.b16 %v5193, %v5164
    %v6267 = vpack.c.b16 %v5194, %v5165
    %v6268 = vpack.c.b16 %v5195, %v5166
    %v6269 = vpack.c.b16 %v5196, %v5167
    %v6270 = vpack.c.b16 %v5197, %v5168
    %v6271 = vpack.c.b16 %v5198, %v5169
    %v6272 = vpack.c.b16 %v5199, %v5170
    %v6273 = vpack.c.b16 %v5200, %v5171
    %v6274 = vpack.c.b16 %v5201, %v5172
    %v6275 = vpack.c.b16 %v5202, %v5173
    %v6276 = vpack.c.b16 %v5203, %v5174
    %v6277 = vpack.c.b16 %v5233, %v5204
    %v6278 = vpack.c.b16 %v5234, %v5205
    %v6279 = vpack.c.b16 %v5235, %v5206
    %v6280 = vpack.c.b16 %v5236, %v5207
    %v6281 = vpack.c.b16 %v5237, %v5208
    %v6282 = vpack.c.b16 %v5238, %v5209
    %v6283 = vpack.c.b16 %v5239, %v5210
    %v6284 = vpack.c.b16 %v5240, %v5211
    %v6285 = vpack.c.b16 %v5241, %v5212
    %v6286 = vpack.c.b16 %v5242, %v5213
    %v6287 = vpack.c.b16 %v5243, %v5214
    %v6288 = vpack.c.b16 %v5244, %v5215
    %v6289 = vpack.c.b16 %v5245, %v5216
    %v6290 = vpack.c.b16 %v5246, %v5217
    %v6291 = vpack.c.b16 %v5247, %v5218
    %v6292 = vpack.c.b16 %v5248, %v5219
    %v6293 = vpack.c.b16 %v5249, %v5220
    %v6294 = vpack.c.b16 %v5250, %v5221
    %v6295 = vpack.c.b16 %v5251, %v5222
    %v6296 = vpack.c.b16 %v5252, %v5223
    %v6297 = vpack.c.b16 %v5253, %v5224
    %v6298 = vpack.c.b16 %v5254, %v5225
    %v6299 = vpack.c.b16 %v5255, %v5226
    %v6300 = vpack.c.b16 %v5256, %v5227
    %v6301 = vpack.c.b16 %v5257, %v5228
    %v6302 = vpack.c.b16 %v5258, %v5229
    %v6303 = vpack.c.b16 %v5259, %v5230
    %v6304 = vpack.c.b16 %v5260, %v5231
    %v6305 = vpack.c.b16 %v5261, %v5232
    %v6306 = vpack.c.b16 %v5291, %v5262
    %v6307 = vpack.c.b16 %v5292, %v5263
    %v6308 = vpack.c.b16 %v5293, %v5264
    %v6309 = vpack.c.b16 %v5294, %v5265
    %v6310 = vpack.c.b16 %v5295, %v5266
    %v6311 = vpack.c.b16 %v5296, %v5267
    %v6312 = vpack.c.b16 %v5297, %v5268
    %v6313 = vpack.c.b16 %v5298, %v5269
    %v6314 = vpack.c.b16 %v5299, %v5270
    %v6315 = vpack.c.b16 %v5300, %v5271
    %v6316 = vpack.c.b16 %v5301, %v5272
    %v6317 = vpack.c.b16 %v5302, %v5273
    %v6318 = vpack.c.b16 %v5303, %v5274
    %v6319 = vpack.c.b16 %v5304, %v5275
    %v6320 = vpack.c.b16 %v5305, %v5276
    %v6321 = vpack.c.b16 %v5306, %v5277
    %v6322 = vpack.c.b16 %v5307, %v5278
    %v6323 = vpack.c.b16 %v5308, %v5279
    %v6324 = vpack.c.b16 %v5309, %v5280
    %v6325 = vpack.c.b16 %v5310, %v5281
    %v6326 = vpack.c.b16 %v5311, %v5282
    %v6327 = vpack.c.b16 %v5312, %v5283
    %v6328 = vpack.c.b16 %v5313, %v5284
    %v6329 = vpack.c.b16 %v5314, %v5285
    %v6330 = vpack.c.b16 %v5315, %v5286
    %v6331 = vpack.c.b16 %v5316, %v5287
    %v6332 = vpack.c.b16 %v5317, %v5288
    %v6333 = vpack.c.b16 %v5318, %v5289
    %v6334 = vpack.c.b16 %v5319, %v5290
    %v6335 = vpack.c.b16 %v5349, %v5320
    %v6336 = vpack.c.b16 %v5350, %v5321
    %v6337 = vpack.c.b16 %v5351, %v5322
    %v6338 = vpack.c.b16 %v5352, %v5323
    %v6339 = vpack.c.b16 %v5353, %v5324
    %v6340 = vpack.c.b16 %v5354, %v5325
    %v6341 = vpack.c.b16 %v5355, %v5326
    %v6342 = vpack.c.b16 %v5356, %v5327
    %v6343 = vpack.c.b16 %v5357, %v5328
    %v6344 = vpack.c.b16 %v5358, %v5329
    %v6345 = vpack.c.b16 %v5359, %v5330
    %v6346 = vpack.c.b16 %v5360, %v5331
    %v6347 = vpack.c.b16 %v5361, %v5332
    %v6348 = vpack.c.b16 %v5362, %v5333
    %v6349 = vpack.c.b16 %v5363, %v5334
    %v6350 = vpack.c.b16 %v5364, %v5335
    %v6351 = vpack.c.b16 %v5365, %v5336
    %v6352 = vpack.c.b16 %v5366, %v5337
    %v6353 = vpack.c.b16 %v5367, %v5338
    %v6354 = vpack.c.b16 %v5368, %v5339
    %v6355 = vpack.c.b16 %v5369, %v5340
    %v6356 = vpack.c.b16 %v5370, %v5341
    %v6357 = vpack.c.b16 %v5371, %v5342
    %v6358 = vpack.c.b16 %v5372, %v5343
    %v6359 = vpack.c.b16 %v5373, %v5344
    %v6360 = vpack.c.b16 %v5374, %v5345
    %v6361 = vpack.c.b16 %v5375, %v5346
    %v6362 = vpack.c.b16 %v5376, %v5347
    %v6363 = vpack.c.b16 %v5377, %v5348
    %v6364 = vpack.c.b16 %v5407, %v5378
    %v6365 = vpack.c.b16 %v5408, %v5379
    %v6366 = vpack.c.b16 %v5409, %v5380
    %v6367 = vpack.c.b16 %v5410, %v5381
    %v6368 = vpack.c.b16 %v5411, %v5382
    %v6369 = vpack.c.b16 %v5412, %v5383
    %v6370 = vpack.c.b16 %v5413, %v5384
    %v6371 = vpack.c.b16 %v5414, %v5385
    %v6372 = vpack.c.b16 %v5415, %v5386
    %v6373 = vpack.c.b16 %v5416, %v5387
    %v6374 = vpack.c.b16 %v5417, %v5388
    %v6375 = vpack.c.b16 %v5418, %v5389
    %v6376 = vpack.c.b16 %v5419, %v5390
    %v6377 = vpack.c.b16 %v5420, %v5391
    %v6378 = vpack.c.b16 %v5421, %v5392
    %v6379 = vpack.c.b16 %v5422, %v5393
    %v6380 = vpack.c.b16 %v5423, %v5394
    %v6381 = vpack.c.b16 %v5424, %v5395
    %v6382 = vpack.c.b16 %v5425, %v5396
    %v6383 = vpack.c.b16 %v5426, %v5397
    %v6384 = vpack.c.b16 %v5427, %v5398
    %v6385 = vpack.c.b16 %v5428, %v5399
    %v6386 = vpack.c.b16 %v5429, %v5400
    %v6387 = vpack.c.b16 %v5430, %v5401
    %v6388 = vpack.c.b16 %v5431, %v5402
    %v6389 = vpack.c.b16 %v5432, %v5403
    %v6390 = vpack.c.b16 %v5433, %v5404
    %v6391 = vpack.c.b16 %v5434, %v5405
    %v6392 = vpack.c.b16 %v5435, %v5406
    %v6393 = vpack.c.b16 %v5465, %v5436
    %v6394 = vpack.c.b16 %v5466, %v5437
    %v6395 = vpack.c.b16 %v5467, %v5438
    %v6396 = vpack.c.b16 %v5468, %v5439
    %v6397 = vpack.c.b16 %v5469, %v5440
    %v6398 = vpack.c.b16 %v5470, %v5441
    %v6399 = vpack.c.b16 %v5471, %v5442
    %v6400 = vpack.c.b16 %v5472, %v5443
    %v6401 = vpack.c.b16 %v5473, %v5444
    %v6402 = vpack.c.b16 %v5474, %v5445
    %v6403 = vpack.c.b16 %v5475, %v5446
    %v6404 = vpack.c.b16 %v5476, %v5447
    %v6405 = vpack.c.b16 %v5477, %v5448
    %v6406 = vpack.c.b16 %v5478, %v5449
    %v6407 = vpack.c.b16 %v5479, %v5450
    %v6408 = vpack.c.b16 %v5480, %v5451
    %v6409 = vpack.c.b16 %v5481, %v5452
    %v6410 = vpack.c.b16 %v5482, %v5453
    %v6411 = vpack.c.b16 %v5483, %v5454
    %v6412 = vpack.c.b16 %v5484, %v5455
    %v6413 = vpack.c.b16 %v5485, %v5456
    %v6414 = vpack.c.b16 %v5486, %v5457
    %v6415 = vpack.c.b16 %v5487, %v5458
    %v6416 = vpack.c.b16 %v5488, %v5459
    %v6417 = vpack.c.b16 %v5489, %v5460
    %v6418 = vpack.c.b16 %v5490, %v5461
    %v6419 = vpack.c.b16 %v5491, %v5462
    %v6420 = vpack.c.b16 %v5492, %v5463
    %v6421 = vpack.c.b16 %v5493, %v5464
    %7350 = vmatprep.subr.bf16.mxu0 %v5698
    %7351 = vmatpush1.bf16.msra.mxu0 %v5697
    %7352 = vmatprep.subr.bf16.mxu0 %v5669
    %7353 = vmatpush1.bf16.msra.mxu0 %v5668
    %7354 = vmatprep.subr.bf16.mxu0 %v5640
    %7355 = vmatpush1.bf16.msra.mxu0 %v5639
    %7356 = vmatprep.subr.bf16.mxu0 %v5611
    %7357 = vmatpush1.bf16.msra.mxu0 %v5610
    %7358 = vmatprep.subr.bf16.mxu0 %v5582
    %7359 = vmatpush1.bf16.msra.mxu0 %v5581
    %7360 = vmatprep.subr.bf16.mxu0 %v5553
    %7361 = vmatpush1.bf16.msra.mxu0 %v5552
    %7362 = vmatprep.subr.bf16.mxu0 %v5524
    %7363 = vmatpush1.bf16.msra.mxu0 %v5523
    %7364 = vmatprep.subr.bf16.mxu0 %v5495
    %7365 = vmatpush1.bf16.msra.mxu0 %v5494
    %7366 = vmatprep.subr.bf16.mxu0 %v5930
    %7367 = vmatpush2.bf16.msra.mxu0 %v5929
    %7368 = vmatprep.subr.bf16.mxu0 %v5901
    %7369 = vmatpush2.bf16.msra.mxu0 %v5900
    %7370 = vmatprep.subr.bf16.mxu0 %v5872
    %7371 = vmatpush2.bf16.msra.mxu0 %v5871
    %7372 = vmatprep.subr.bf16.mxu0 %v5843
    %7373 = vmatpush2.bf16.msra.mxu0 %v5842
    %7374 = vmatprep.subr.bf16.mxu0 %v5814
    %7375 = vmatpush2.bf16.msra.mxu0 %v5813
    %7376 = vmatprep.subr.bf16.mxu0 %v5785
    %7377 = vmatpush2.bf16.msra.mxu0 %v5784
    %7378 = vmatprep.subr.bf16.mxu0 %v5756
    %7379 = vmatpush2.bf16.msra.mxu0 %v5755
    %7380 = vmatprep.subr.bf16.mxu0 %v5727
    %7381 = vmatpush2.bf16.msra.mxu0 %v5726
    %7382 = vmatprep.mubr.bf16.mxu0 %v1562
    %7383 = vmatmul.mubr.bf16.gmra.mxu0 %v1561
    %v7384 = vpop.f32.mrf.mxu0
    %v7385 = vadd.f32 %v2536, %v7384
    %v7386 = vpop.f32.mrf.mxu0
    %v7387 = vadd.f32 %v2540, %v7386
    %v7388 = vpop.f32.mrf.mxu0
    %v7389 = vpop.f32.mrf.mxu0
    %7390 = vdwg.mxu0
    %7391 = vmatprep.subr.bf16.mxu0 %v6162
    %7392 = vmatpush1.bf16.msra.mxu0 %v6161
    %7393 = vmatprep.subr.bf16.mxu0 %v6133
    %7394 = vmatpush1.bf16.msra.mxu0 %v6132
    %7395 = vmatprep.subr.bf16.mxu0 %v6104
    %7396 = vmatpush1.bf16.msra.mxu0 %v6103
    %7397 = vmatprep.subr.bf16.mxu0 %v6075
    %7398 = vmatpush1.bf16.msra.mxu0 %v6074
    %7399 = vmatprep.subr.bf16.mxu0 %v6046
    %7400 = vmatpush1.bf16.msra.mxu0 %v6045
    %7401 = vmatprep.subr.bf16.mxu0 %v6017
    %7402 = vmatpush1.bf16.msra.mxu0 %v6016
    %7403 = vmatprep.subr.bf16.mxu0 %v5988
    %7404 = vmatpush1.bf16.msra.mxu0 %v5987
    %7405 = vmatprep.subr.bf16.mxu0 %v5959
    %7406 = vmatpush1.bf16.msra.mxu0 %v5958
    %7407 = vmatprep.subr.bf16.mxu0 %v6394
    %7408 = vmatpush2.bf16.msra.mxu0 %v6393
    %7409 = vmatprep.subr.bf16.mxu0 %v6365
    %7410 = vmatpush2.bf16.msra.mxu0 %v6364
    %7411 = vmatprep.subr.bf16.mxu0 %v6336
    %7412 = vmatpush2.bf16.msra.mxu0 %v6335
    %7413 = vmatprep.subr.bf16.mxu0 %v6307
    %7414 = vmatpush2.bf16.msra.mxu0 %v6306
    %7415 = vmatprep.subr.bf16.mxu0 %v6278
    %7416 = vmatpush2.bf16.msra.mxu0 %v6277
    %7417 = vmatprep.subr.bf16.mxu0 %v6249
    %7418 = vmatpush2.bf16.msra.mxu0 %v6248
    %7419 = vmatprep.subr.bf16.mxu0 %v6220
    %7420 = vmatpush2.bf16.msra.mxu0 %v6219
    %7421 = vmatprep.subr.bf16.mxu0 %v6191
    %7422 = vmatpush2.bf16.msra.mxu0 %v6190
    %7423 = vmatprep.mubr.bf16.mxu0 %v1564
    %7424 = vmatmul.mubr.bf16.gmra.mxu0 %v1563
    %v7425 = vpop.f32.mrf.mxu0
    %v7426 = vadd.f32 %v7385, %v7425
    %v7427 = vpop.f32.mrf.mxu0
    %v7428 = vadd.f32 %v7387, %v7427
    %v7429 = vpop.f32.mrf.mxu0
    %v7430 = vpop.f32.mrf.mxu0
    %7431 = vdwg.mxu0
    %7432 = vmatprep.subr.bf16.mxu0 %v5700
    %7433 = vmatpush1.bf16.msra.mxu0 %v5699
    %7434 = vmatprep.subr.bf16.mxu0 %v5671
    %7435 = vmatpush1.bf16.msra.mxu0 %v5670
    %7436 = vmatprep.subr.bf16.mxu0 %v5642
    %7437 = vmatpush1.bf16.msra.mxu0 %v5641
    %7438 = vmatprep.subr.bf16.mxu0 %v5613
    %7439 = vmatpush1.bf16.msra.mxu0 %v5612
    %7440 = vmatprep.subr.bf16.mxu0 %v5584
    %7441 = vmatpush1.bf16.msra.mxu0 %v5583
    %7442 = vmatprep.subr.bf16.mxu0 %v5555
    %7443 = vmatpush1.bf16.msra.mxu0 %v5554
    %7444 = vmatprep.subr.bf16.mxu0 %v5526
    %7445 = vmatpush1.bf16.msra.mxu0 %v5525
    %7446 = vmatprep.subr.bf16.mxu0 %v5497
    %7447 = vmatpush1.bf16.msra.mxu0 %v5496
    %7448 = vmatprep.subr.bf16.mxu0 %v5932
    %7449 = vmatpush2.bf16.msra.mxu0 %v5931
    %7450 = vmatprep.subr.bf16.mxu0 %v5903
    %7451 = vmatpush2.bf16.msra.mxu0 %v5902
    %7452 = vmatprep.subr.bf16.mxu0 %v5874
    %7453 = vmatpush2.bf16.msra.mxu0 %v5873
    %7454 = vmatprep.subr.bf16.mxu0 %v5845
    %7455 = vmatpush2.bf16.msra.mxu0 %v5844
    %7456 = vmatprep.subr.bf16.mxu0 %v5816
    %7457 = vmatpush2.bf16.msra.mxu0 %v5815
    %7458 = vmatprep.subr.bf16.mxu0 %v5787
    %7459 = vmatpush2.bf16.msra.mxu0 %v5786
    %7460 = vmatprep.subr.bf16.mxu0 %v5758
    %7461 = vmatpush2.bf16.msra.mxu0 %v5757
    %7462 = vmatprep.subr.bf16.mxu0 %v5729
    %7463 = vmatpush2.bf16.msra.mxu0 %v5728
    %7464 = vmatprep.mubr.bf16.mxu0 %v1562
    %7465 = vmatmul.mubr.bf16.gmra.mxu0 %v1561
    %v7466 = vpop.f32.mrf.mxu0
    %v7467 = vadd.f32 %v2544, %v7466
    %v7468 = vpop.f32.mrf.mxu0
    %v7469 = vadd.f32 %v2548, %v7468
    %v7470 = vpop.f32.mrf.mxu0
    %v7471 = vpop.f32.mrf.mxu0
    %7472 = vdwg.mxu0
    %7473 = vmatprep.subr.bf16.mxu0 %v6164
    %7474 = vmatpush1.bf16.msra.mxu0 %v6163
    %7475 = vmatprep.subr.bf16.mxu0 %v6135
    %7476 = vmatpush1.bf16.msra.mxu0 %v6134
    %7477 = vmatprep.subr.bf16.mxu0 %v6106
    %7478 = vmatpush1.bf16.msra.mxu0 %v6105
    %7479 = vmatprep.subr.bf16.mxu0 %v6077
    %7480 = vmatpush1.bf16.msra.mxu0 %v6076
    %7481 = vmatprep.subr.bf16.mxu0 %v6048
    %7482 = vmatpush1.bf16.msra.mxu0 %v6047
    %7483 = vmatprep.subr.bf16.mxu0 %v6019
    %7484 = vmatpush1.bf16.msra.mxu0 %v6018
    %7485 = vmatprep.subr.bf16.mxu0 %v5990
    %7486 = vmatpush1.bf16.msra.mxu0 %v5989
    %7487 = vmatprep.subr.bf16.mxu0 %v5961
    %7488 = vmatpush1.bf16.msra.mxu0 %v5960
    %7489 = vmatprep.subr.bf16.mxu0 %v6396
    %7490 = vmatpush2.bf16.msra.mxu0 %v6395
    %7491 = vmatprep.subr.bf16.mxu0 %v6367
    %7492 = vmatpush2.bf16.msra.mxu0 %v6366
    %7493 = vmatprep.subr.bf16.mxu0 %v6338
    %7494 = vmatpush2.bf16.msra.mxu0 %v6337
    %7495 = vmatprep.subr.bf16.mxu0 %v6309
    %7496 = vmatpush2.bf16.msra.mxu0 %v6308
    %7497 = vmatprep.subr.bf16.mxu0 %v6280
    %7498 = vmatpush2.bf16.msra.mxu0 %v6279
    %7499 = vmatprep.subr.bf16.mxu0 %v6251
    %7500 = vmatpush2.bf16.msra.mxu0 %v6250
    %7501 = vmatprep.subr.bf16.mxu0 %v6222
    %7502 = vmatpush2.bf16.msra.mxu0 %v6221
    %7503 = vmatprep.subr.bf16.mxu0 %v6193
    %7504 = vmatpush2.bf16.msra.mxu0 %v6192
    %7505 = vmatprep.mubr.bf16.mxu0 %v1564
    %7506 = vmatmul.mubr.bf16.gmra.mxu0 %v1563
    %v7507 = vpop.f32.mrf.mxu0
    %v7508 = vadd.f32 %v7467, %v7507
    %v7509 = vpop.f32.mrf.mxu0
    %v7510 = vadd.f32 %v7469, %v7509
    %v7511 = vpop.f32.mrf.mxu0
    %v7512 = vpop.f32.mrf.mxu0
    %7513 = vdwg.mxu0
    %7514 = vmatprep.subr.bf16.mxu0 %v5702
    %7515 = vmatpush1.bf16.msra.mxu0 %v5701
    %7516 = vmatprep.subr.bf16.mxu0 %v5673
    %7517 = vmatpush1.bf16.msra.mxu0 %v5672
    %7518 = vmatprep.subr.bf16.mxu0 %v5644
    %7519 = vmatpush1.bf16.msra.mxu0 %v5643
    %7520 = vmatprep.subr.bf16.mxu0 %v5615
    %7521 = vmatpush1.bf16.msra.mxu0 %v5614
    %7522 = vmatprep.subr.bf16.mxu0 %v5586
    %7523 = vmatpush1.bf16.msra.mxu0 %v5585
    %7524 = vmatprep.subr.bf16.mxu0 %v5557
    %7525 = vmatpush1.bf16.msra.mxu0 %v5556
    %7526 = vmatprep.subr.bf16.mxu0 %v5528
    %7527 = vmatpush1.bf16.msra.mxu0 %v5527
    %7528 = vmatprep.subr.bf16.mxu0 %v5499
    %7529 = vmatpush1.bf16.msra.mxu0 %v5498
    %7530 = vmatprep.subr.bf16.mxu0 %v5934
    %7531 = vmatpush2.bf16.msra.mxu0 %v5933
    %7532 = vmatprep.subr.bf16.mxu0 %v5905
    %7533 = vmatpush2.bf16.msra.mxu0 %v5904
    %7534 = vmatprep.subr.bf16.mxu0 %v5876
    %7535 = vmatpush2.bf16.msra.mxu0 %v5875
    %7536 = vmatprep.subr.bf16.mxu0 %v5847
    %7537 = vmatpush2.bf16.msra.mxu0 %v5846
    %7538 = vmatprep.subr.bf16.mxu0 %v5818
    %7539 = vmatpush2.bf16.msra.mxu0 %v5817
    %7540 = vmatprep.subr.bf16.mxu0 %v5789
    %7541 = vmatpush2.bf16.msra.mxu0 %v5788
    %7542 = vmatprep.subr.bf16.mxu0 %v5760
    %7543 = vmatpush2.bf16.msra.mxu0 %v5759
    %7544 = vmatprep.subr.bf16.mxu0 %v5731
    %7545 = vmatpush2.bf16.msra.mxu0 %v5730
    %7546 = vmatprep.mubr.bf16.mxu0 %v1562
    %7547 = vmatmul.mubr.bf16.gmra.mxu0 %v1561
    %v7548 = vpop.f32.mrf.mxu0
    %v7549 = vadd.f32 %v2552, %v7548
    %v7550 = vpop.f32.mrf.mxu0
    %v7551 = vadd.f32 %v2556, %v7550
    %v7552 = vpop.f32.mrf.mxu0
    %v7553 = vpop.f32.mrf.mxu0
    %7554 = vdwg.mxu0
    %7555 = vmatprep.subr.bf16.mxu0 %v6166
    %7556 = vmatpush1.bf16.msra.mxu0 %v6165
    %7557 = vmatprep.subr.bf16.mxu0 %v6137
    %7558 = vmatpush1.bf16.msra.mxu0 %v6136
    %7559 = vmatprep.subr.bf16.mxu0 %v6108
    %7560 = vmatpush1.bf16.msra.mxu0 %v6107
    %7561 = vmatprep.subr.bf16.mxu0 %v6079
    %7562 = vmatpush1.bf16.msra.mxu0 %v6078
    %7563 = vmatprep.subr.bf16.mxu0 %v6050
    %7564 = vmatpush1.bf16.msra.mxu0 %v6049
    %7565 = vmatprep.subr.bf16.mxu0 %v6021
    %7566 = vmatpush1.bf16.msra.mxu0 %v6020
    %7567 = vmatprep.subr.bf16.mxu0 %v5992
    %7568 = vmatpush1.bf16.msra.mxu0 %v5991
    %7569 = vmatprep.subr.bf16.mxu0 %v5963
    %7570 = vmatpush1.bf16.msra.mxu0 %v5962
    %7571 = vmatprep.subr.bf16.mxu0 %v6398
    %7572 = vmatpush2.bf16.msra.mxu0 %v6397
    %7573 = vmatprep.subr.bf16.mxu0 %v6369
    %7574 = vmatpush2.bf16.msra.mxu0 %v6368
    %7575 = vmatprep.subr.bf16.mxu0 %v6340
    %7576 = vmatpush2.bf16.msra.mxu0 %v6339
    %7577 = vmatprep.subr.bf16.mxu0 %v6311
    %7578 = vmatpush2.bf16.msra.mxu0 %v6310
    %7579 = vmatprep.subr.bf16.mxu0 %v6282
    %7580 = vmatpush2.bf16.msra.mxu0 %v6281
    %7581 = vmatprep.subr.bf16.mxu0 %v6253
    %7582 = vmatpush2.bf16.msra.mxu0 %v6252
    %7583 = vmatprep.subr.bf16.mxu0 %v6224
    %7584 = vmatpush2.bf16.msra.mxu0 %v6223
    %7585 = vmatprep.subr.bf16.mxu0 %v6195
    %7586 = vmatpush2.bf16.msra.mxu0 %v6194
    %7587 = vmatprep.mubr.bf16.mxu0 %v1564
    %7588 = vmatmul.mubr.bf16.gmra.mxu0 %v1563
    %v7589 = vpop.f32.mrf.mxu0
    %v7590 = vadd.f32 %v7549, %v7589
    %v7591 = vpop.f32.mrf.mxu0
    %v7592 = vadd.f32 %v7551, %v7591
    %v7593 = vpop.f32.mrf.mxu0
    %v7594 = vpop.f32.mrf.mxu0
    %7595 = vdwg.mxu0
    %7596 = vmatprep.subr.bf16.mxu0 %v5704
    %7597 = vmatpush1.bf16.msra.mxu0 %v5703
    %7598 = vmatprep.subr.bf16.mxu0 %v5675
    %7599 = vmatpush1.bf16.msra.mxu0 %v5674
    %7600 = vmatprep.subr.bf16.mxu0 %v5646
    %7601 = vmatpush1.bf16.msra.mxu0 %v5645
    %7602 = vmatprep.subr.bf16.mxu0 %v5617
    %7603 = vmatpush1.bf16.msra.mxu0 %v5616
    %7604 = vmatprep.subr.bf16.mxu0 %v5588
    %7605 = vmatpush1.bf16.msra.mxu0 %v5587
    %7606 = vmatprep.subr.bf16.mxu0 %v5559
    %7607 = vmatpush1.bf16.msra.mxu0 %v5558
    %7608 = vmatprep.subr.bf16.mxu0 %v5530
    %7609 = vmatpush1.bf16.msra.mxu0 %v5529
    %7610 = vmatprep.subr.bf16.mxu0 %v5501
    %7611 = vmatpush1.bf16.msra.mxu0 %v5500
    %7612 = vmatprep.subr.bf16.mxu0 %v5936
    %7613 = vmatpush2.bf16.msra.mxu0 %v5935
    %7614 = vmatprep.subr.bf16.mxu0 %v5907
    %7615 = vmatpush2.bf16.msra.mxu0 %v5906
    %7616 = vmatprep.subr.bf16.mxu0 %v5878
    %7617 = vmatpush2.bf16.msra.mxu0 %v5877
    %7618 = vmatprep.subr.bf16.mxu0 %v5849
    %7619 = vmatpush2.bf16.msra.mxu0 %v5848
    %7620 = vmatprep.subr.bf16.mxu0 %v5820
    %7621 = vmatpush2.bf16.msra.mxu0 %v5819
    %7622 = vmatprep.subr.bf16.mxu0 %v5791
    %7623 = vmatpush2.bf16.msra.mxu0 %v5790
    %7624 = vmatprep.subr.bf16.mxu0 %v5762
    %7625 = vmatpush2.bf16.msra.mxu0 %v5761
    %7626 = vmatprep.subr.bf16.mxu0 %v5733
    %7627 = vmatpush2.bf16.msra.mxu0 %v5732
    %7628 = vmatprep.mubr.bf16.mxu0 %v1562
    %7629 = vmatmul.mubr.bf16.gmra.mxu0 %v1561
    %v7630 = vpop.f32.mrf.mxu0
    %v7631 = vadd.f32 %v2560, %v7630
    %v7632 = vpop.f32.mrf.mxu0
    %v7633 = vadd.f32 %v2564, %v7632
    %v7634 = vpop.f32.mrf.mxu0
    %v7635 = vpop.f32.mrf.mxu0
    %7636 = vdwg.mxu0
    %7637 = vmatprep.subr.bf16.mxu0 %v6168
    %7638 = vmatpush1.bf16.msra.mxu0 %v6167
    %7639 = vmatprep.subr.bf16.mxu0 %v6139
    %7640 = vmatpush1.bf16.msra.mxu0 %v6138
    %7641 = vmatprep.subr.bf16.mxu0 %v6110
    %7642 = vmatpush1.bf16.msra.mxu0 %v6109
    %7643 = vmatprep.subr.bf16.mxu0 %v6081
    %7644 = vmatpush1.bf16.msra.mxu0 %v6080
    %7645 = vmatprep.subr.bf16.mxu0 %v6052
    %7646 = vmatpush1.bf16.msra.mxu0 %v6051
    %7647 = vmatprep.subr.bf16.mxu0 %v6023
    %7648 = vmatpush1.bf16.msra.mxu0 %v6022
    %7649 = vmatprep.subr.bf16.mxu0 %v5994
    %7650 = vmatpush1.bf16.msra.mxu0 %v5993
    %7651 = vmatprep.subr.bf16.mxu0 %v5965
    %7652 = vmatpush1.bf16.msra.mxu0 %v5964
    %7653 = vmatprep.subr.bf16.mxu0 %v6400
    %7654 = vmatpush2.bf16.msra.mxu0 %v6399
    %7655 = vmatprep.subr.bf16.mxu0 %v6371
    %7656 = vmatpush2.bf16.msra.mxu0 %v6370
    %7657 = vmatprep.subr.bf16.mxu0 %v6342
    %7658 = vmatpush2.bf16.msra.mxu0 %v6341
    %7659 = vmatprep.subr.bf16.mxu0 %v6313
    %7660 = vmatpush2.bf16.msra.mxu0 %v6312
    %7661 = vmatprep.subr.bf16.mxu0 %v6284
    %7662 = vmatpush2.bf16.msra.mxu0 %v6283
    %7663 = vmatprep.subr.bf16.mxu0 %v6255
    %7664 = vmatpush2.bf16.msra.mxu0 %v6254
    %7665 = vmatprep.subr.bf16.mxu0 %v6226
    %7666 = vmatpush2.bf16.msra.mxu0 %v6225
    %7667 = vmatprep.subr.bf16.mxu0 %v6197
    %7668 = vmatpush2.bf16.msra.mxu0 %v6196
    %7669 = vmatprep.mubr.bf16.mxu0 %v1564
    %7670 = vmatmul.mubr.bf16.gmra.mxu0 %v1563
    %v7671 = vpop.f32.mrf.mxu0
    %v7672 = vadd.f32 %v7631, %v7671
    %v7673 = vpop.f32.mrf.mxu0
    %v7674 = vadd.f32 %v7633, %v7673
    %v7675 = vpop.f32.mrf.mxu0
    %v7676 = vpop.f32.mrf.mxu0
    %7677 = vdwg.mxu0
    %7678 = vmatprep.subr.bf16.mxu0 %v5706
    %7679 = vmatpush1.bf16.msra.mxu0 %v5705
    %7680 = vmatprep.subr.bf16.mxu0 %v5677
    %7681 = vmatpush1.bf16.msra.mxu0 %v5676
    %7682 = vmatprep.subr.bf16.mxu0 %v5648
    %7683 = vmatpush1.bf16.msra.mxu0 %v5647
    %7684 = vmatprep.subr.bf16.mxu0 %v5619
    %7685 = vmatpush1.bf16.msra.mxu0 %v5618
    %7686 = vmatprep.subr.bf16.mxu0 %v5590
    %7687 = vmatpush1.bf16.msra.mxu0 %v5589
    %7688 = vmatprep.subr.bf16.mxu0 %v5561
    %7689 = vmatpush1.bf16.msra.mxu0 %v5560
    %7690 = vmatprep.subr.bf16.mxu0 %v5532
    %7691 = vmatpush1.bf16.msra.mxu0 %v5531
    %7692 = vmatprep.subr.bf16.mxu0 %v5503
    %7693 = vmatpush1.bf16.msra.mxu0 %v5502
    %7694 = vmatprep.subr.bf16.mxu0 %v5938
    %7695 = vmatpush2.bf16.msra.mxu0 %v5937
    %7696 = vmatprep.subr.bf16.mxu0 %v5909
    %7697 = vmatpush2.bf16.msra.mxu0 %v5908
    %7698 = vmatprep.subr.bf16.mxu0 %v5880
    %7699 = vmatpush2.bf16.msra.mxu0 %v5879
    %7700 = vmatprep.subr.bf16.mxu0 %v5851
    %7701 = vmatpush2.bf16.msra.mxu0 %v5850
    %7702 = vmatprep.subr.bf16.mxu0 %v5822
    %7703 = vmatpush2.bf16.msra.mxu0 %v5821
    %7704 = vmatprep.subr.bf16.mxu0 %v5793
    %7705 = vmatpush2.bf16.msra.mxu0 %v5792
    %7706 = vmatprep.subr.bf16.mxu0 %v5764
    %7707 = vmatpush2.bf16.msra.mxu0 %v5763
    %7708 = vmatprep.subr.bf16.mxu0 %v5735
    %7709 = vmatpush2.bf16.msra.mxu0 %v5734
    %7710 = vmatprep.mubr.bf16.mxu0 %v1562
    %7711 = vmatmul.mubr.bf16.gmra.mxu0 %v1561
    %v7712 = vpop.f32.mrf.mxu0
    %v7713 = vadd.f32 %v2568, %v7712
    %v7714 = vpop.f32.mrf.mxu0
    %v7715 = vadd.f32 %v2572, %v7714
    %v7716 = vpop.f32.mrf.mxu0
    %v7717 = vpop.f32.mrf.mxu0
    %7718 = vdwg.mxu0
    %7719 = vmatprep.subr.bf16.mxu0 %v6170
    %7720 = vmatpush1.bf16.msra.mxu0 %v6169
    %7721 = vmatprep.subr.bf16.mxu0 %v6141
    %7722 = vmatpush1.bf16.msra.mxu0 %v6140
    %7723 = vmatprep.subr.bf16.mxu0 %v6112
    %7724 = vmatpush1.bf16.msra.mxu0 %v6111
    %7725 = vmatprep.subr.bf16.mxu0 %v6083
    %7726 = vmatpush1.bf16.msra.mxu0 %v6082
    %7727 = vmatprep.subr.bf16.mxu0 %v6054
    %7728 = vmatpush1.bf16.msra.mxu0 %v6053
    %7729 = vmatprep.subr.bf16.mxu0 %v6025
    %7730 = vmatpush1.bf16.msra.mxu0 %v6024
    %7731 = vmatprep.subr.bf16.mxu0 %v5996
    %7732 = vmatpush1.bf16.msra.mxu0 %v5995
    %7733 = vmatprep.subr.bf16.mxu0 %v5967
    %7734 = vmatpush1.bf16.msra.mxu0 %v5966
    %7735 = vmatprep.subr.bf16.mxu0 %v6402
    %7736 = vmatpush2.bf16.msra.mxu0 %v6401
    %7737 = vmatprep.subr.bf16.mxu0 %v6373
    %7738 = vmatpush2.bf16.msra.mxu0 %v6372
    %7739 = vmatprep.subr.bf16.mxu0 %v6344
    %7740 = vmatpush2.bf16.msra.mxu0 %v6343
    %7741 = vmatprep.subr.bf16.mxu0 %v6315
    %7742 = vmatpush2.bf16.msra.mxu0 %v6314
    %7743 = vmatprep.subr.bf16.mxu0 %v6286
    %7744 = vmatpush2.bf16.msra.mxu0 %v6285
    %7745 = vmatprep.subr.bf16.mxu0 %v6257
    %7746 = vmatpush2.bf16.msra.mxu0 %v6256
    %7747 = vmatprep.subr.bf16.mxu0 %v6228
    %7748 = vmatpush2.bf16.msra.mxu0 %v6227
    %7749 = vmatprep.subr.bf16.mxu0 %v6199
    %7750 = vmatpush2.bf16.msra.mxu0 %v6198
    %7751 = vmatprep.mubr.bf16.mxu0 %v1564
    %7752 = vmatmul.mubr.bf16.gmra.mxu0 %v1563
    %v7753 = vpop.f32.mrf.mxu0
    %v7754 = vadd.f32 %v7713, %v7753
    %v7755 = vpop.f32.mrf.mxu0
    %v7756 = vadd.f32 %v7715, %v7755
    %v7757 = vpop.f32.mrf.mxu0
    %v7758 = vpop.f32.mrf.mxu0
    %7759 = vdwg.mxu0
    %7760 = vmatprep.subr.bf16.mxu0 %v5708
    %7761 = vmatpush1.bf16.msra.mxu0 %v5707
    %7762 = vmatprep.subr.bf16.mxu0 %v5679
    %7763 = vmatpush1.bf16.msra.mxu0 %v5678
    %7764 = vmatprep.subr.bf16.mxu0 %v5650
    %7765 = vmatpush1.bf16.msra.mxu0 %v5649
    %7766 = vmatprep.subr.bf16.mxu0 %v5621
    %7767 = vmatpush1.bf16.msra.mxu0 %v5620
    %7768 = vmatprep.subr.bf16.mxu0 %v5592
    %7769 = vmatpush1.bf16.msra.mxu0 %v5591
    %7770 = vmatprep.subr.bf16.mxu0 %v5563
    %7771 = vmatpush1.bf16.msra.mxu0 %v5562
    %7772 = vmatprep.subr.bf16.mxu0 %v5534
    %7773 = vmatpush1.bf16.msra.mxu0 %v5533
    %7774 = vmatprep.subr.bf16.mxu0 %v5505
    %7775 = vmatpush1.bf16.msra.mxu0 %v5504
    %7776 = vmatprep.subr.bf16.mxu0 %v5940
    %7777 = vmatpush2.bf16.msra.mxu0 %v5939
    %7778 = vmatprep.subr.bf16.mxu0 %v5911
    %7779 = vmatpush2.bf16.msra.mxu0 %v5910
    %7780 = vmatprep.subr.bf16.mxu0 %v5882
    %7781 = vmatpush2.bf16.msra.mxu0 %v5881
    %7782 = vmatprep.subr.bf16.mxu0 %v5853
    %7783 = vmatpush2.bf16.msra.mxu0 %v5852
    %7784 = vmatprep.subr.bf16.mxu0 %v5824
    %7785 = vmatpush2.bf16.msra.mxu0 %v5823
    %7786 = vmatprep.subr.bf16.mxu0 %v5795
    %7787 = vmatpush2.bf16.msra.mxu0 %v5794
    %7788 = vmatprep.subr.bf16.mxu0 %v5766
    %7789 = vmatpush2.bf16.msra.mxu0 %v5765
    %7790 = vmatprep.subr.bf16.mxu0 %v5737
    %7791 = vmatpush2.bf16.msra.mxu0 %v5736
    %7792 = vmatprep.mubr.bf16.mxu0 %v1562
    %7793 = vmatmul.mubr.bf16.gmra.mxu0 %v1561
    %v7794 = vpop.f32.mrf.mxu0
    %v7795 = vadd.f32 %v2576, %v7794
    %v7796 = vpop.f32.mrf.mxu0
    %v7797 = vadd.f32 %v2580, %v7796
    %v7798 = vpop.f32.mrf.mxu0
    %v7799 = vpop.f32.mrf.mxu0
    %7800 = vdwg.mxu0
    %7801 = vmatprep.subr.bf16.mxu0 %v6172
    %7802 = vmatpush1.bf16.msra.mxu0 %v6171
    %7803 = vmatprep.subr.bf16.mxu0 %v6143
    %7804 = vmatpush1.bf16.msra.mxu0 %v6142
    %7805 = vmatprep.subr.bf16.mxu0 %v6114
    %7806 = vmatpush1.bf16.msra.mxu0 %v6113
    %7807 = vmatprep.subr.bf16.mxu0 %v6085
    %7808 = vmatpush1.bf16.msra.mxu0 %v6084
    %7809 = vmatprep.subr.bf16.mxu0 %v6056
    %7810 = vmatpush1.bf16.msra.mxu0 %v6055
    %7811 = vmatprep.subr.bf16.mxu0 %v6027
    %7812 = vmatpush1.bf16.msra.mxu0 %v6026
    %7813 = vmatprep.subr.bf16.mxu0 %v5998
    %7814 = vmatpush1.bf16.msra.mxu0 %v5997
    %7815 = vmatprep.subr.bf16.mxu0 %v5969
    %7816 = vmatpush1.bf16.msra.mxu0 %v5968
    %7817 = vmatprep.subr.bf16.mxu0 %v6404
    %7818 = vmatpush2.bf16.msra.mxu0 %v6403
    %7819 = vmatprep.subr.bf16.mxu0 %v6375
    %7820 = vmatpush2.bf16.msra.mxu0 %v6374
    %7821 = vmatprep.subr.bf16.mxu0 %v6346
    %7822 = vmatpush2.bf16.msra.mxu0 %v6345
    %7823 = vmatprep.subr.bf16.mxu0 %v6317
    %7824 = vmatpush2.bf16.msra.mxu0 %v6316
    %7825 = vmatprep.subr.bf16.mxu0 %v6288
    %7826 = vmatpush2.bf16.msra.mxu0 %v6287
    %7827 = vmatprep.subr.bf16.mxu0 %v6259
    %7828 = vmatpush2.bf16.msra.mxu0 %v6258
    %7829 = vmatprep.subr.bf16.mxu0 %v6230
    %7830 = vmatpush2.bf16.msra.mxu0 %v6229
    %7831 = vmatprep.subr.bf16.mxu0 %v6201
    %7832 = vmatpush2.bf16.msra.mxu0 %v6200
    %7833 = vmatprep.mubr.bf16.mxu0 %v1564
    %7834 = vmatmul.mubr.bf16.gmra.mxu0 %v1563
    %v7835 = vpop.f32.mrf.mxu0
    %v7836 = vadd.f32 %v7795, %v7835
    %v7837 = vpop.f32.mrf.mxu0
    %v7838 = vadd.f32 %v7797, %v7837
    %v7839 = vpop.f32.mrf.mxu0
    %v7840 = vpop.f32.mrf.mxu0
    %7841 = vdwg.mxu0
    %7842 = vmatprep.subr.bf16.mxu0 %v5710
    %7843 = vmatpush1.bf16.msra.mxu0 %v5709
    %7844 = vmatprep.subr.bf16.mxu0 %v5681
    %7845 = vmatpush1.bf16.msra.mxu0 %v5680
    %7846 = vmatprep.subr.bf16.mxu0 %v5652
    %7847 = vmatpush1.bf16.msra.mxu0 %v5651
    %7848 = vmatprep.subr.bf16.mxu0 %v5623
    %7849 = vmatpush1.bf16.msra.mxu0 %v5622
    %7850 = vmatprep.subr.bf16.mxu0 %v5594
    %7851 = vmatpush1.bf16.msra.mxu0 %v5593
    %7852 = vmatprep.subr.bf16.mxu0 %v5565
    %7853 = vmatpush1.bf16.msra.mxu0 %v5564
    %7854 = vmatprep.subr.bf16.mxu0 %v5536
    %7855 = vmatpush1.bf16.msra.mxu0 %v5535
    %7856 = vmatprep.subr.bf16.mxu0 %v5507
    %7857 = vmatpush1.bf16.msra.mxu0 %v5506
    %7858 = vmatprep.subr.bf16.mxu0 %v5942
    %7859 = vmatpush2.bf16.msra.mxu0 %v5941
    %7860 = vmatprep.subr.bf16.mxu0 %v5913
    %7861 = vmatpush2.bf16.msra.mxu0 %v5912
    %7862 = vmatprep.subr.bf16.mxu0 %v5884
    %7863 = vmatpush2.bf16.msra.mxu0 %v5883
    %7864 = vmatprep.subr.bf16.mxu0 %v5855
    %7865 = vmatpush2.bf16.msra.mxu0 %v5854
    %7866 = vmatprep.subr.bf16.mxu0 %v5826
    %7867 = vmatpush2.bf16.msra.mxu0 %v5825
    %7868 = vmatprep.subr.bf16.mxu0 %v5797
    %7869 = vmatpush2.bf16.msra.mxu0 %v5796
    %7870 = vmatprep.subr.bf16.mxu0 %v5768
    %7871 = vmatpush2.bf16.msra.mxu0 %v5767
    %7872 = vmatprep.subr.bf16.mxu0 %v5739
    %7873 = vmatpush2.bf16.msra.mxu0 %v5738
    %7874 = vmatprep.mubr.bf16.mxu0 %v1562
    %7875 = vmatmul.mubr.bf16.gmra.mxu0 %v1561
    %v7876 = vpop.f32.mrf.mxu0
    %v7877 = vadd.f32 %v2584, %v7876
    %v7878 = vpop.f32.mrf.mxu0
    %v7879 = vadd.f32 %v2588, %v7878
    %v7880 = vpop.f32.mrf.mxu0
    %v7881 = vpop.f32.mrf.mxu0
    %7882 = vdwg.mxu0
    %7883 = vmatprep.subr.bf16.mxu0 %v6174
    %7884 = vmatpush1.bf16.msra.mxu0 %v6173
    %7885 = vmatprep.subr.bf16.mxu0 %v6145
    %7886 = vmatpush1.bf16.msra.mxu0 %v6144
    %7887 = vmatprep.subr.bf16.mxu0 %v6116
    %7888 = vmatpush1.bf16.msra.mxu0 %v6115
    %7889 = vmatprep.subr.bf16.mxu0 %v6087
    %7890 = vmatpush1.bf16.msra.mxu0 %v6086
    %7891 = vmatprep.subr.bf16.mxu0 %v6058
    %7892 = vmatpush1.bf16.msra.mxu0 %v6057
    %7893 = vmatprep.subr.bf16.mxu0 %v6029
    %7894 = vmatpush1.bf16.msra.mxu0 %v6028
    %7895 = vmatprep.subr.bf16.mxu0 %v6000
    %7896 = vmatpush1.bf16.msra.mxu0 %v5999
    %7897 = vmatprep.subr.bf16.mxu0 %v5971
    %7898 = vmatpush1.bf16.msra.mxu0 %v5970
    %7899 = vmatprep.subr.bf16.mxu0 %v6406
    %7900 = vmatpush2.bf16.msra.mxu0 %v6405
    %7901 = vmatprep.subr.bf16.mxu0 %v6377
    %7902 = vmatpush2.bf16.msra.mxu0 %v6376
    %7903 = vmatprep.subr.bf16.mxu0 %v6348
    %7904 = vmatpush2.bf16.msra.mxu0 %v6347
    %7905 = vmatprep.subr.bf16.mxu0 %v6319
    %7906 = vmatpush2.bf16.msra.mxu0 %v6318
    %7907 = vmatprep.subr.bf16.mxu0 %v6290
    %7908 = vmatpush2.bf16.msra.mxu0 %v6289
    %7909 = vmatprep.subr.bf16.mxu0 %v6261
    %7910 = vmatpush2.bf16.msra.mxu0 %v6260
    %7911 = vmatprep.subr.bf16.mxu0 %v6232
    %7912 = vmatpush2.bf16.msra.mxu0 %v6231
    %7913 = vmatprep.subr.bf16.mxu0 %v6203
    %7914 = vmatpush2.bf16.msra.mxu0 %v6202
    %7915 = vmatprep.mubr.bf16.mxu0 %v1564
    %7916 = vmatmul.mubr.bf16.gmra.mxu0 %v1563
    %v7917 = vpop.f32.mrf.mxu0
    %v7918 = vadd.f32 %v7877, %v7917
    %v7919 = vpop.f32.mrf.mxu0
    %v7920 = vadd.f32 %v7879, %v7919
    %v7921 = vpop.f32.mrf.mxu0
    %v7922 = vpop.f32.mrf.mxu0
    %7923 = vdwg.mxu0
    %7924 = vmatprep.subr.bf16.mxu0 %v5712
    %7925 = vmatpush1.bf16.msra.mxu0 %v5711
    %7926 = vmatprep.subr.bf16.mxu0 %v5683
    %7927 = vmatpush1.bf16.msra.mxu0 %v5682
    %7928 = vmatprep.subr.bf16.mxu0 %v5654
    %7929 = vmatpush1.bf16.msra.mxu0 %v5653
    %7930 = vmatprep.subr.bf16.mxu0 %v5625
    %7931 = vmatpush1.bf16.msra.mxu0 %v5624
    %7932 = vmatprep.subr.bf16.mxu0 %v5596
    %7933 = vmatpush1.bf16.msra.mxu0 %v5595
    %7934 = vmatprep.subr.bf16.mxu0 %v5567
    %7935 = vmatpush1.bf16.msra.mxu0 %v5566
    %7936 = vmatprep.subr.bf16.mxu0 %v5538
    %7937 = vmatpush1.bf16.msra.mxu0 %v5537
    %7938 = vmatprep.subr.bf16.mxu0 %v5509
    %7939 = vmatpush1.bf16.msra.mxu0 %v5508
    %7940 = vmatprep.subr.bf16.mxu0 %v5944
    %7941 = vmatpush2.bf16.msra.mxu0 %v5943
    %7942 = vmatprep.subr.bf16.mxu0 %v5915
    %7943 = vmatpush2.bf16.msra.mxu0 %v5914
    %7944 = vmatprep.subr.bf16.mxu0 %v5886
    %7945 = vmatpush2.bf16.msra.mxu0 %v5885
    %7946 = vmatprep.subr.bf16.mxu0 %v5857
    %7947 = vmatpush2.bf16.msra.mxu0 %v5856
    %7948 = vmatprep.subr.bf16.mxu0 %v5828
    %7949 = vmatpush2.bf16.msra.mxu0 %v5827
    %7950 = vmatprep.subr.bf16.mxu0 %v5799
    %7951 = vmatpush2.bf16.msra.mxu0 %v5798
    %7952 = vmatprep.subr.bf16.mxu0 %v5770
    %7953 = vmatpush2.bf16.msra.mxu0 %v5769
    %7954 = vmatprep.subr.bf16.mxu0 %v5741
    %7955 = vmatpush2.bf16.msra.mxu0 %v5740
    %7956 = vmatprep.mubr.bf16.mxu0 %v1562
    %7957 = vmatmul.mubr.bf16.gmra.mxu0 %v1561
    %v7958 = vpop.f32.mrf.mxu0
    %v7959 = vadd.f32 %v2592, %v7958
    %v7960 = vpop.f32.mrf.mxu0
    %v7961 = vadd.f32 %v2596, %v7960
    %v7962 = vpop.f32.mrf.mxu0
    %v7963 = vpop.f32.mrf.mxu0
    %7964 = vdwg.mxu0
    %7965 = vmatprep.subr.bf16.mxu0 %v6176
    %7966 = vmatpush1.bf16.msra.mxu0 %v6175
    %7967 = vmatprep.subr.bf16.mxu0 %v6147
    %7968 = vmatpush1.bf16.msra.mxu0 %v6146
    %7969 = vmatprep.subr.bf16.mxu0 %v6118
    %7970 = vmatpush1.bf16.msra.mxu0 %v6117
    %7971 = vmatprep.subr.bf16.mxu0 %v6089
    %7972 = vmatpush1.bf16.msra.mxu0 %v6088
    %7973 = vmatprep.subr.bf16.mxu0 %v6060
    %7974 = vmatpush1.bf16.msra.mxu0 %v6059
    %7975 = vmatprep.subr.bf16.mxu0 %v6031
    %7976 = vmatpush1.bf16.msra.mxu0 %v6030
    %7977 = vmatprep.subr.bf16.mxu0 %v6002
    %7978 = vmatpush1.bf16.msra.mxu0 %v6001
    %7979 = vmatprep.subr.bf16.mxu0 %v5973
    %7980 = vmatpush1.bf16.msra.mxu0 %v5972
    %7981 = vmatprep.subr.bf16.mxu0 %v6408
    %7982 = vmatpush2.bf16.msra.mxu0 %v6407
    %7983 = vmatprep.subr.bf16.mxu0 %v6379
    %7984 = vmatpush2.bf16.msra.mxu0 %v6378
    %7985 = vmatprep.subr.bf16.mxu0 %v6350
    %7986 = vmatpush2.bf16.msra.mxu0 %v6349
    %7987 = vmatprep.subr.bf16.mxu0 %v6321
    %7988 = vmatpush2.bf16.msra.mxu0 %v6320
    %7989 = vmatprep.subr.bf16.mxu0 %v6292
    %7990 = vmatpush2.bf16.msra.mxu0 %v6291
    %7991 = vmatprep.subr.bf16.mxu0 %v6263
    %7992 = vmatpush2.bf16.msra.mxu0 %v6262
    %7993 = vmatprep.subr.bf16.mxu0 %v6234
    %7994 = vmatpush2.bf16.msra.mxu0 %v6233
    %7995 = vmatprep.subr.bf16.mxu0 %v6205
    %7996 = vmatpush2.bf16.msra.mxu0 %v6204
    %7997 = vmatprep.mubr.bf16.mxu0 %v1564
    %7998 = vmatmul.mubr.bf16.gmra.mxu0 %v1563
    %v7999 = vpop.f32.mrf.mxu0
    %v8000 = vadd.f32 %v7959, %v7999
    %v8001 = vpop.f32.mrf.mxu0
    %v8002 = vadd.f32 %v7961, %v8001
    %v8003 = vpop.f32.mrf.mxu0
    %v8004 = vpop.f32.mrf.mxu0
    %8005 = vdwg.mxu0
    %8006 = vmatprep.subr.bf16.mxu0 %v5714
    %8007 = vmatpush1.bf16.msra.mxu0 %v5713
    %8008 = vmatprep.subr.bf16.mxu0 %v5685
    %8009 = vmatpush1.bf16.msra.mxu0 %v5684
    %8010 = vmatprep.subr.bf16.mxu0 %v5656
    %8011 = vmatpush1.bf16.msra.mxu0 %v5655
    %8012 = vmatprep.subr.bf16.mxu0 %v5627
    %8013 = vmatpush1.bf16.msra.mxu0 %v5626
    %8014 = vmatprep.subr.bf16.mxu0 %v5598
    %8015 = vmatpush1.bf16.msra.mxu0 %v5597
    %8016 = vmatprep.subr.bf16.mxu0 %v5569
    %8017 = vmatpush1.bf16.msra.mxu0 %v5568
    %8018 = vmatprep.subr.bf16.mxu0 %v5540
    %8019 = vmatpush1.bf16.msra.mxu0 %v5539
    %8020 = vmatprep.subr.bf16.mxu0 %v5511
    %8021 = vmatpush1.bf16.msra.mxu0 %v5510
    %8022 = vmatprep.subr.bf16.mxu0 %v5946
    %8023 = vmatpush2.bf16.msra.mxu0 %v5945
    %8024 = vmatprep.subr.bf16.mxu0 %v5917
    %8025 = vmatpush2.bf16.msra.mxu0 %v5916
    %8026 = vmatprep.subr.bf16.mxu0 %v5888
    %8027 = vmatpush2.bf16.msra.mxu0 %v5887
    %8028 = vmatprep.subr.bf16.mxu0 %v5859
    %8029 = vmatpush2.bf16.msra.mxu0 %v5858
    %8030 = vmatprep.subr.bf16.mxu0 %v5830
    %8031 = vmatpush2.bf16.msra.mxu0 %v5829
    %8032 = vmatprep.subr.bf16.mxu0 %v5801
    %8033 = vmatpush2.bf16.msra.mxu0 %v5800
    %8034 = vmatprep.subr.bf16.mxu0 %v5772
    %8035 = vmatpush2.bf16.msra.mxu0 %v5771
    %8036 = vmatprep.subr.bf16.mxu0 %v5743
    %8037 = vmatpush2.bf16.msra.mxu0 %v5742
    %8038 = vmatprep.mubr.bf16.mxu0 %v1562
    %8039 = vmatmul.mubr.bf16.gmra.mxu0 %v1561
    %v8040 = vpop.f32.mrf.mxu0
    %v8041 = vadd.f32 %v2600, %v8040
    %v8042 = vpop.f32.mrf.mxu0
    %v8043 = vadd.f32 %v2604, %v8042
    %v8044 = vpop.f32.mrf.mxu0
    %v8045 = vpop.f32.mrf.mxu0
    %8046 = vdwg.mxu0
    %8047 = vmatprep.subr.bf16.mxu0 %v6178
    %8048 = vmatpush1.bf16.msra.mxu0 %v6177
    %8049 = vmatprep.subr.bf16.mxu0 %v6149
    %8050 = vmatpush1.bf16.msra.mxu0 %v6148
    %8051 = vmatprep.subr.bf16.mxu0 %v6120
    %8052 = vmatpush1.bf16.msra.mxu0 %v6119
    %8053 = vmatprep.subr.bf16.mxu0 %v6091
    %8054 = vmatpush1.bf16.msra.mxu0 %v6090
    %8055 = vmatprep.subr.bf16.mxu0 %v6062
    %8056 = vmatpush1.bf16.msra.mxu0 %v6061
    %8057 = vmatprep.subr.bf16.mxu0 %v6033
    %8058 = vmatpush1.bf16.msra.mxu0 %v6032
    %8059 = vmatprep.subr.bf16.mxu0 %v6004
    %8060 = vmatpush1.bf16.msra.mxu0 %v6003
    %8061 = vmatprep.subr.bf16.mxu0 %v5975
    %8062 = vmatpush1.bf16.msra.mxu0 %v5974
    %8063 = vmatprep.subr.bf16.mxu0 %v6410
    %8064 = vmatpush2.bf16.msra.mxu0 %v6409
    %8065 = vmatprep.subr.bf16.mxu0 %v6381
    %8066 = vmatpush2.bf16.msra.mxu0 %v6380
    %8067 = vmatprep.subr.bf16.mxu0 %v6352
    %8068 = vmatpush2.bf16.msra.mxu0 %v6351
    %8069 = vmatprep.subr.bf16.mxu0 %v6323
    %8070 = vmatpush2.bf16.msra.mxu0 %v6322
    %8071 = vmatprep.subr.bf16.mxu0 %v6294
    %8072 = vmatpush2.bf16.msra.mxu0 %v6293
    %8073 = vmatprep.subr.bf16.mxu0 %v6265
    %8074 = vmatpush2.bf16.msra.mxu0 %v6264
    %8075 = vmatprep.subr.bf16.mxu0 %v6236
    %8076 = vmatpush2.bf16.msra.mxu0 %v6235
    %8077 = vmatprep.subr.bf16.mxu0 %v6207
    %8078 = vmatpush2.bf16.msra.mxu0 %v6206
    %8079 = vmatprep.mubr.bf16.mxu0 %v1564
    %8080 = vmatmul.mubr.bf16.gmra.mxu0 %v1563
    %v8081 = vpop.f32.mrf.mxu0
    %v8082 = vadd.f32 %v8041, %v8081
    %v8083 = vpop.f32.mrf.mxu0
    %v8084 = vadd.f32 %v8043, %v8083
    %v8085 = vpop.f32.mrf.mxu0
    %v8086 = vpop.f32.mrf.mxu0
    %8087 = vdwg.mxu0
    %8088 = vmatprep.subr.bf16.mxu0 %v5716
    %8089 = vmatpush1.bf16.msra.mxu0 %v5715
    %8090 = vmatprep.subr.bf16.mxu0 %v5687
    %8091 = vmatpush1.bf16.msra.mxu0 %v5686
    %8092 = vmatprep.subr.bf16.mxu0 %v5658
    %8093 = vmatpush1.bf16.msra.mxu0 %v5657
    %8094 = vmatprep.subr.bf16.mxu0 %v5629
    %8095 = vmatpush1.bf16.msra.mxu0 %v5628
    %8096 = vmatprep.subr.bf16.mxu0 %v5600
    %8097 = vmatpush1.bf16.msra.mxu0 %v5599
    %8098 = vmatprep.subr.bf16.mxu0 %v5571
    %8099 = vmatpush1.bf16.msra.mxu0 %v5570
    %8100 = vmatprep.subr.bf16.mxu0 %v5542
    %8101 = vmatpush1.bf16.msra.mxu0 %v5541
    %8102 = vmatprep.subr.bf16.mxu0 %v5513
    %8103 = vmatpush1.bf16.msra.mxu0 %v5512
    %8104 = vmatprep.subr.bf16.mxu0 %v5948
    %8105 = vmatpush2.bf16.msra.mxu0 %v5947
    %8106 = vmatprep.subr.bf16.mxu0 %v5919
    %8107 = vmatpush2.bf16.msra.mxu0 %v5918
    %8108 = vmatprep.subr.bf16.mxu0 %v5890
    %8109 = vmatpush2.bf16.msra.mxu0 %v5889
    %8110 = vmatprep.subr.bf16.mxu0 %v5861
    %8111 = vmatpush2.bf16.msra.mxu0 %v5860
    %8112 = vmatprep.subr.bf16.mxu0 %v5832
    %8113 = vmatpush2.bf16.msra.mxu0 %v5831
    %8114 = vmatprep.subr.bf16.mxu0 %v5803
    %8115 = vmatpush2.bf16.msra.mxu0 %v5802
    %8116 = vmatprep.subr.bf16.mxu0 %v5774
    %8117 = vmatpush2.bf16.msra.mxu0 %v5773
    %8118 = vmatprep.subr.bf16.mxu0 %v5745
    %8119 = vmatpush2.bf16.msra.mxu0 %v5744
    %8120 = vmatprep.mubr.bf16.mxu0 %v1562
    %8121 = vmatmul.mubr.bf16.gmra.mxu0 %v1561
    %v8122 = vpop.f32.mrf.mxu0
    %v8123 = vadd.f32 %v2608, %v8122
    %v8124 = vpop.f32.mrf.mxu0
    %v8125 = vadd.f32 %v2612, %v8124
    %v8126 = vpop.f32.mrf.mxu0
    %v8127 = vpop.f32.mrf.mxu0
    %8128 = vdwg.mxu0
    %8129 = vmatprep.subr.bf16.mxu0 %v6180
    %8130 = vmatpush1.bf16.msra.mxu0 %v6179
    %8131 = vmatprep.subr.bf16.mxu0 %v6151
    %8132 = vmatpush1.bf16.msra.mxu0 %v6150
    %8133 = vmatprep.subr.bf16.mxu0 %v6122
    %8134 = vmatpush1.bf16.msra.mxu0 %v6121
    %8135 = vmatprep.subr.bf16.mxu0 %v6093
    %8136 = vmatpush1.bf16.msra.mxu0 %v6092
    %8137 = vmatprep.subr.bf16.mxu0 %v6064
    %8138 = vmatpush1.bf16.msra.mxu0 %v6063
    %8139 = vmatprep.subr.bf16.mxu0 %v6035
    %8140 = vmatpush1.bf16.msra.mxu0 %v6034
    %8141 = vmatprep.subr.bf16.mxu0 %v6006
    %8142 = vmatpush1.bf16.msra.mxu0 %v6005
    %8143 = vmatprep.subr.bf16.mxu0 %v5977
    %8144 = vmatpush1.bf16.msra.mxu0 %v5976
    %8145 = vmatprep.subr.bf16.mxu0 %v6412
    %8146 = vmatpush2.bf16.msra.mxu0 %v6411
    %8147 = vmatprep.subr.bf16.mxu0 %v6383
    %8148 = vmatpush2.bf16.msra.mxu0 %v6382
    %8149 = vmatprep.subr.bf16.mxu0 %v6354
    %8150 = vmatpush2.bf16.msra.mxu0 %v6353
    %8151 = vmatprep.subr.bf16.mxu0 %v6325
    %8152 = vmatpush2.bf16.msra.mxu0 %v6324
    %8153 = vmatprep.subr.bf16.mxu0 %v6296
    %8154 = vmatpush2.bf16.msra.mxu0 %v6295
    %8155 = vmatprep.subr.bf16.mxu0 %v6267
    %8156 = vmatpush2.bf16.msra.mxu0 %v6266
    %8157 = vmatprep.subr.bf16.mxu0 %v6238
    %8158 = vmatpush2.bf16.msra.mxu0 %v6237
    %8159 = vmatprep.subr.bf16.mxu0 %v6209
    %8160 = vmatpush2.bf16.msra.mxu0 %v6208
    %8161 = vmatprep.mubr.bf16.mxu0 %v1564
    %8162 = vmatmul.mubr.bf16.gmra.mxu0 %v1563
    %v8163 = vpop.f32.mrf.mxu0
    %v8164 = vadd.f32 %v8123, %v8163
    %v8165 = vpop.f32.mrf.mxu0
    %v8166 = vadd.f32 %v8125, %v8165
    %v8167 = vpop.f32.mrf.mxu0
    %v8168 = vpop.f32.mrf.mxu0
    %8169 = vdwg.mxu0
    %8170 = vmatprep.subr.bf16.mxu0 %v5718
    %8171 = vmatpush1.bf16.msra.mxu0 %v5717
    %8172 = vmatprep.subr.bf16.mxu0 %v5689
    %8173 = vmatpush1.bf16.msra.mxu0 %v5688
    %8174 = vmatprep.subr.bf16.mxu0 %v5660
    %8175 = vmatpush1.bf16.msra.mxu0 %v5659
    %8176 = vmatprep.subr.bf16.mxu0 %v5631
    %8177 = vmatpush1.bf16.msra.mxu0 %v5630
    %8178 = vmatprep.subr.bf16.mxu0 %v5602
    %8179 = vmatpush1.bf16.msra.mxu0 %v5601
    %8180 = vmatprep.subr.bf16.mxu0 %v5573
    %8181 = vmatpush1.bf16.msra.mxu0 %v5572
    %8182 = vmatprep.subr.bf16.mxu0 %v5544
    %8183 = vmatpush1.bf16.msra.mxu0 %v5543
    %8184 = vmatprep.subr.bf16.mxu0 %v5515
    %8185 = vmatpush1.bf16.msra.mxu0 %v5514
    %8186 = vmatprep.subr.bf16.mxu0 %v5950
    %8187 = vmatpush2.bf16.msra.mxu0 %v5949
    %8188 = vmatprep.subr.bf16.mxu0 %v5921
    %8189 = vmatpush2.bf16.msra.mxu0 %v5920
    %8190 = vmatprep.subr.bf16.mxu0 %v5892
    %8191 = vmatpush2.bf16.msra.mxu0 %v5891
    %8192 = vmatprep.subr.bf16.mxu0 %v5863
    %8193 = vmatpush2.bf16.msra.mxu0 %v5862
    %8194 = vmatprep.subr.bf16.mxu0 %v5834
    %8195 = vmatpush2.bf16.msra.mxu0 %v5833
    %8196 = vmatprep.subr.bf16.mxu0 %v5805
    %8197 = vmatpush2.bf16.msra.mxu0 %v5804
    %8198 = vmatprep.subr.bf16.mxu0 %v5776
    %8199 = vmatpush2.bf16.msra.mxu0 %v5775
    %8200 = vmatprep.subr.bf16.mxu0 %v5747
    %8201 = vmatpush2.bf16.msra.mxu0 %v5746
    %8202 = vmatprep.mubr.bf16.mxu0 %v1562
    %8203 = vmatmul.mubr.bf16.gmra.mxu0 %v1561
    %v8204 = vpop.f32.mrf.mxu0
    %v8205 = vadd.f32 %v2616, %v8204
    %v8206 = vpop.f32.mrf.mxu0
    %v8207 = vadd.f32 %v2620, %v8206
    %v8208 = vpop.f32.mrf.mxu0
    %v8209 = vpop.f32.mrf.mxu0
    %8210 = vdwg.mxu0
    %8211 = vmatprep.subr.bf16.mxu0 %v6182
    %8212 = vmatpush1.bf16.msra.mxu0 %v6181
    %8213 = vmatprep.subr.bf16.mxu0 %v6153
    %8214 = vmatpush1.bf16.msra.mxu0 %v6152
    %8215 = vmatprep.subr.bf16.mxu0 %v6124
    %8216 = vmatpush1.bf16.msra.mxu0 %v6123
    %8217 = vmatprep.subr.bf16.mxu0 %v6095
    %8218 = vmatpush1.bf16.msra.mxu0 %v6094
    %8219 = vmatprep.subr.bf16.mxu0 %v6066
    %8220 = vmatpush1.bf16.msra.mxu0 %v6065
    %8221 = vmatprep.subr.bf16.mxu0 %v6037
    %8222 = vmatpush1.bf16.msra.mxu0 %v6036
    %8223 = vmatprep.subr.bf16.mxu0 %v6008
    %8224 = vmatpush1.bf16.msra.mxu0 %v6007
    %8225 = vmatprep.subr.bf16.mxu0 %v5979
    %8226 = vmatpush1.bf16.msra.mxu0 %v5978
    %8227 = vmatprep.subr.bf16.mxu0 %v6414
    %8228 = vmatpush2.bf16.msra.mxu0 %v6413
    %8229 = vmatprep.subr.bf16.mxu0 %v6385
    %8230 = vmatpush2.bf16.msra.mxu0 %v6384
    %8231 = vmatprep.subr.bf16.mxu0 %v6356
    %8232 = vmatpush2.bf16.msra.mxu0 %v6355
    %8233 = vmatprep.subr.bf16.mxu0 %v6327
    %8234 = vmatpush2.bf16.msra.mxu0 %v6326
    %8235 = vmatprep.subr.bf16.mxu0 %v6298
    %8236 = vmatpush2.bf16.msra.mxu0 %v6297
    %8237 = vmatprep.subr.bf16.mxu0 %v6269
    %8238 = vmatpush2.bf16.msra.mxu0 %v6268
    %8239 = vmatprep.subr.bf16.mxu0 %v6240
    %8240 = vmatpush2.bf16.msra.mxu0 %v6239
    %8241 = vmatprep.subr.bf16.mxu0 %v6211
    %8242 = vmatpush2.bf16.msra.mxu0 %v6210
    %8243 = vmatprep.mubr.bf16.mxu0 %v1564
    %8244 = vmatmul.mubr.bf16.gmra.mxu0 %v1563
    %v8245 = vpop.f32.mrf.mxu0
    %v8246 = vadd.f32 %v8205, %v8245
    %v8247 = vpop.f32.mrf.mxu0
    %v8248 = vadd.f32 %v8207, %v8247
    %v8249 = vpop.f32.mrf.mxu0
    %v8250 = vpop.f32.mrf.mxu0
    %8251 = vdwg.mxu0
    %8252 = vmatprep.subr.bf16.mxu0 %v5720
    %8253 = vmatpush1.bf16.msra.mxu0 %v5719
    %8254 = vmatprep.subr.bf16.mxu0 %v5691
    %8255 = vmatpush1.bf16.msra.mxu0 %v5690
    %8256 = vmatprep.subr.bf16.mxu0 %v5662
    %8257 = vmatpush1.bf16.msra.mxu0 %v5661
    %8258 = vmatprep.subr.bf16.mxu0 %v5633
    %8259 = vmatpush1.bf16.msra.mxu0 %v5632
    %8260 = vmatprep.subr.bf16.mxu0 %v5604
    %8261 = vmatpush1.bf16.msra.mxu0 %v5603
    %8262 = vmatprep.subr.bf16.mxu0 %v5575
    %8263 = vmatpush1.bf16.msra.mxu0 %v5574
    %8264 = vmatprep.subr.bf16.mxu0 %v5546
    %8265 = vmatpush1.bf16.msra.mxu0 %v5545
    %8266 = vmatprep.subr.bf16.mxu0 %v5517
    %8267 = vmatpush1.bf16.msra.mxu0 %v5516
    %8268 = vmatprep.subr.bf16.mxu0 %v5952
    %8269 = vmatpush2.bf16.msra.mxu0 %v5951
    %8270 = vmatprep.subr.bf16.mxu0 %v5923
    %8271 = vmatpush2.bf16.msra.mxu0 %v5922
    %8272 = vmatprep.subr.bf16.mxu0 %v5894
    %8273 = vmatpush2.bf16.msra.mxu0 %v5893
    %8274 = vmatprep.subr.bf16.mxu0 %v5865
    %8275 = vmatpush2.bf16.msra.mxu0 %v5864
    %8276 = vmatprep.subr.bf16.mxu0 %v5836
    %8277 = vmatpush2.bf16.msra.mxu0 %v5835
    %8278 = vmatprep.subr.bf16.mxu0 %v5807
    %8279 = vmatpush2.bf16.msra.mxu0 %v5806
    %8280 = vmatprep.subr.bf16.mxu0 %v5778
    %8281 = vmatpush2.bf16.msra.mxu0 %v5777
    %8282 = vmatprep.subr.bf16.mxu0 %v5749
    %8283 = vmatpush2.bf16.msra.mxu0 %v5748
    %8284 = vmatprep.mubr.bf16.mxu0 %v1562
    %8285 = vmatmul.mubr.bf16.gmra.mxu0 %v1561
    %v8286 = vpop.f32.mrf.mxu0
    %v8287 = vadd.f32 %v2624, %v8286
    %v8288 = vpop.f32.mrf.mxu0
    %v8289 = vadd.f32 %v2628, %v8288
    %v8290 = vpop.f32.mrf.mxu0
    %v8291 = vpop.f32.mrf.mxu0
    %8292 = vdwg.mxu0
    %8293 = vmatprep.subr.bf16.mxu0 %v6184
    %8294 = vmatpush1.bf16.msra.mxu0 %v6183
    %8295 = vmatprep.subr.bf16.mxu0 %v6155
    %8296 = vmatpush1.bf16.msra.mxu0 %v6154
    %8297 = vmatprep.subr.bf16.mxu0 %v6126
    %8298 = vmatpush1.bf16.msra.mxu0 %v6125
    %8299 = vmatprep.subr.bf16.mxu0 %v6097
    %8300 = vmatpush1.bf16.msra.mxu0 %v6096
    %8301 = vmatprep.subr.bf16.mxu0 %v6068
    %8302 = vmatpush1.bf16.msra.mxu0 %v6067
    %8303 = vmatprep.subr.bf16.mxu0 %v6039
    %8304 = vmatpush1.bf16.msra.mxu0 %v6038
    %8305 = vmatprep.subr.bf16.mxu0 %v6010
    %8306 = vmatpush1.bf16.msra.mxu0 %v6009
    %8307 = vmatprep.subr.bf16.mxu0 %v5981
    %8308 = vmatpush1.bf16.msra.mxu0 %v5980
    %8309 = vmatprep.subr.bf16.mxu0 %v6416
    %8310 = vmatpush2.bf16.msra.mxu0 %v6415
    %8311 = vmatprep.subr.bf16.mxu0 %v6387
    %8312 = vmatpush2.bf16.msra.mxu0 %v6386
    %8313 = vmatprep.subr.bf16.mxu0 %v6358
    %8314 = vmatpush2.bf16.msra.mxu0 %v6357
    %8315 = vmatprep.subr.bf16.mxu0 %v6329
    %8316 = vmatpush2.bf16.msra.mxu0 %v6328
    %8317 = vmatprep.subr.bf16.mxu0 %v6300
    %8318 = vmatpush2.bf16.msra.mxu0 %v6299
    %8319 = vmatprep.subr.bf16.mxu0 %v6271
    %8320 = vmatpush2.bf16.msra.mxu0 %v6270
    %8321 = vmatprep.subr.bf16.mxu0 %v6242
    %8322 = vmatpush2.bf16.msra.mxu0 %v6241
    %8323 = vmatprep.subr.bf16.mxu0 %v6213
    %8324 = vmatpush2.bf16.msra.mxu0 %v6212
    %8325 = vmatprep.mubr.bf16.mxu0 %v1564
    %8326 = vmatmul.mubr.bf16.gmra.mxu0 %v1563
    %v8327 = vpop.f32.mrf.mxu0
    %v8328 = vadd.f32 %v8287, %v8327
    %v8329 = vpop.f32.mrf.mxu0
    %v8330 = vadd.f32 %v8289, %v8329
    %v8331 = vpop.f32.mrf.mxu0
    %v8332 = vpop.f32.mrf.mxu0
    %8333 = vdwg.mxu0
    %8334 = vmatprep.subr.bf16.mxu0 %v5722
    %8335 = vmatpush1.bf16.msra.mxu0 %v5721
    %8336 = vmatprep.subr.bf16.mxu0 %v5693
    %8337 = vmatpush1.bf16.msra.mxu0 %v5692
    %8338 = vmatprep.subr.bf16.mxu0 %v5664
    %8339 = vmatpush1.bf16.msra.mxu0 %v5663
    %8340 = vmatprep.subr.bf16.mxu0 %v5635
    %8341 = vmatpush1.bf16.msra.mxu0 %v5634
    %8342 = vmatprep.subr.bf16.mxu0 %v5606
    %8343 = vmatpush1.bf16.msra.mxu0 %v5605
    %8344 = vmatprep.subr.bf16.mxu0 %v5577
    %8345 = vmatpush1.bf16.msra.mxu0 %v5576
    %8346 = vmatprep.subr.bf16.mxu0 %v5548
    %8347 = vmatpush1.bf16.msra.mxu0 %v5547
    %8348 = vmatprep.subr.bf16.mxu0 %v5519
    %8349 = vmatpush1.bf16.msra.mxu0 %v5518
    %8350 = vmatprep.subr.bf16.mxu0 %v5954
    %8351 = vmatpush2.bf16.msra.mxu0 %v5953
    %8352 = vmatprep.subr.bf16.mxu0 %v5925
    %8353 = vmatpush2.bf16.msra.mxu0 %v5924
    %8354 = vmatprep.subr.bf16.mxu0 %v5896
    %8355 = vmatpush2.bf16.msra.mxu0 %v5895
    %8356 = vmatprep.subr.bf16.mxu0 %v5867
    %8357 = vmatpush2.bf16.msra.mxu0 %v5866
    %8358 = vmatprep.subr.bf16.mxu0 %v5838
    %8359 = vmatpush2.bf16.msra.mxu0 %v5837
    %8360 = vmatprep.subr.bf16.mxu0 %v5809
    %8361 = vmatpush2.bf16.msra.mxu0 %v5808
    %8362 = vmatprep.subr.bf16.mxu0 %v5780
    %8363 = vmatpush2.bf16.msra.mxu0 %v5779
    %8364 = vmatprep.subr.bf16.mxu0 %v5751
    %8365 = vmatpush2.bf16.msra.mxu0 %v5750
    %8366 = vmatprep.mubr.bf16.mxu0 %v1562
    %8367 = vmatmul.mubr.bf16.gmra.mxu0 %v1561
    %v8368 = vpop.f32.mrf.mxu0
    %v8369 = vadd.f32 %v2632, %v8368
    %v8370 = vpop.f32.mrf.mxu0
    %v8371 = vadd.f32 %v2636, %v8370
    %v8372 = vpop.f32.mrf.mxu0
    %v8373 = vpop.f32.mrf.mxu0
    %8374 = vdwg.mxu0
    %8375 = vmatprep.subr.bf16.mxu0 %v6186
    %8376 = vmatpush1.bf16.msra.mxu0 %v6185
    %8377 = vmatprep.subr.bf16.mxu0 %v6157
    %8378 = vmatpush1.bf16.msra.mxu0 %v6156
    %8379 = vmatprep.subr.bf16.mxu0 %v6128
    %8380 = vmatpush1.bf16.msra.mxu0 %v6127
    %8381 = vmatprep.subr.bf16.mxu0 %v6099
    %8382 = vmatpush1.bf16.msra.mxu0 %v6098
    %8383 = vmatprep.subr.bf16.mxu0 %v6070
    %8384 = vmatpush1.bf16.msra.mxu0 %v6069
    %8385 = vmatprep.subr.bf16.mxu0 %v6041
    %8386 = vmatpush1.bf16.msra.mxu0 %v6040
    %8387 = vmatprep.subr.bf16.mxu0 %v6012
    %8388 = vmatpush1.bf16.msra.mxu0 %v6011
    %8389 = vmatprep.subr.bf16.mxu0 %v5983
    %8390 = vmatpush1.bf16.msra.mxu0 %v5982
    %8391 = vmatprep.subr.bf16.mxu0 %v6418
    %8392 = vmatpush2.bf16.msra.mxu0 %v6417
    %8393 = vmatprep.subr.bf16.mxu0 %v6389
    %8394 = vmatpush2.bf16.msra.mxu0 %v6388
    %8395 = vmatprep.subr.bf16.mxu0 %v6360
    %8396 = vmatpush2.bf16.msra.mxu0 %v6359
    %8397 = vmatprep.subr.bf16.mxu0 %v6331
    %8398 = vmatpush2.bf16.msra.mxu0 %v6330
    %8399 = vmatprep.subr.bf16.mxu0 %v6302
    %8400 = vmatpush2.bf16.msra.mxu0 %v6301
    %8401 = vmatprep.subr.bf16.mxu0 %v6273
    %8402 = vmatpush2.bf16.msra.mxu0 %v6272
    %8403 = vmatprep.subr.bf16.mxu0 %v6244
    %8404 = vmatpush2.bf16.msra.mxu0 %v6243
    %8405 = vmatprep.subr.bf16.mxu0 %v6215
    %8406 = vmatpush2.bf16.msra.mxu0 %v6214
    %8407 = vmatprep.mubr.bf16.mxu0 %v1564
    %8408 = vmatmul.mubr.bf16.gmra.mxu0 %v1563
    %v8409 = vpop.f32.mrf.mxu0
    %v8410 = vadd.f32 %v8369, %v8409
    %v8411 = vpop.f32.mrf.mxu0
    %v8412 = vadd.f32 %v8371, %v8411
    %v8413 = vpop.f32.mrf.mxu0
    %v8414 = vpop.f32.mrf.mxu0
    %8415 = vdwg.mxu0
    %8416 = vmatprep.subr.bf16.mxu0 %v5724
    %8417 = vmatpush1.bf16.msra.mxu0 %v5723
    %8418 = vmatprep.subr.bf16.mxu0 %v5695
    %8419 = vmatpush1.bf16.msra.mxu0 %v5694
    %8420 = vmatprep.subr.bf16.mxu0 %v5666
    %8421 = vmatpush1.bf16.msra.mxu0 %v5665
    %8422 = vmatprep.subr.bf16.mxu0 %v5637
    %8423 = vmatpush1.bf16.msra.mxu0 %v5636
    %8424 = vmatprep.subr.bf16.mxu0 %v5608
    %8425 = vmatpush1.bf16.msra.mxu0 %v5607
    %8426 = vmatprep.subr.bf16.mxu0 %v5579
    %8427 = vmatpush1.bf16.msra.mxu0 %v5578
    %8428 = vmatprep.subr.bf16.mxu0 %v5550
    %8429 = vmatpush1.bf16.msra.mxu0 %v5549
    %8430 = vmatprep.subr.bf16.mxu0 %v5521
    %8431 = vmatpush1.bf16.msra.mxu0 %v5520
    %8432 = vmatprep.subr.bf16.mxu0 %v5956
    %8433 = vmatpush2.bf16.msra.mxu0 %v5955
    %8434 = vmatprep.subr.bf16.mxu0 %v5927
    %8435 = vmatpush2.bf16.msra.mxu0 %v5926
    %8436 = vmatprep.subr.bf16.mxu0 %v5898
    %8437 = vmatpush2.bf16.msra.mxu0 %v5897
    %8438 = vmatprep.subr.bf16.mxu0 %v5869
    %8439 = vmatpush2.bf16.msra.mxu0 %v5868
    %8440 = vmatprep.subr.bf16.mxu0 %v5840
    %8441 = vmatpush2.bf16.msra.mxu0 %v5839
    %8442 = vmatprep.subr.bf16.mxu0 %v5811
    %8443 = vmatpush2.bf16.msra.mxu0 %v5810
    %8444 = vmatprep.subr.bf16.mxu0 %v5782
    %8445 = vmatpush2.bf16.msra.mxu0 %v5781
    %8446 = vmatprep.subr.bf16.mxu0 %v5753
    %8447 = vmatpush2.bf16.msra.mxu0 %v5752
    %8448 = vmatprep.mubr.bf16.mxu0 %v1562
    %8449 = vmatmul.mubr.bf16.gmra.mxu0 %v1561
    %v8450 = vpop.f32.mrf.mxu0
    %v8451 = vadd.f32 %v2640, %v8450
    %v8452 = vpop.f32.mrf.mxu0
    %v8453 = vadd.f32 %v2644, %v8452
    %v8454 = vpop.f32.mrf.mxu0
    %v8455 = vpop.f32.mrf.mxu0
    %8456 = vdwg.mxu0
    %8457 = vmatprep.subr.bf16.mxu0 %v6188
    %8458 = vmatpush1.bf16.msra.mxu0 %v6187
    %8459 = vmatprep.subr.bf16.mxu0 %v6159
    %8460 = vmatpush1.bf16.msra.mxu0 %v6158
    %8461 = vmatprep.subr.bf16.mxu0 %v6130
    %8462 = vmatpush1.bf16.msra.mxu0 %v6129
    %8463 = vmatprep.subr.bf16.mxu0 %v6101
    %8464 = vmatpush1.bf16.msra.mxu0 %v6100
    %8465 = vmatprep.subr.bf16.mxu0 %v6072
    %8466 = vmatpush1.bf16.msra.mxu0 %v6071
    %8467 = vmatprep.subr.bf16.mxu0 %v6043
    %8468 = vmatpush1.bf16.msra.mxu0 %v6042
    %8469 = vmatprep.subr.bf16.mxu0 %v6014
    %8470 = vmatpush1.bf16.msra.mxu0 %v6013
    %8471 = vmatprep.subr.bf16.mxu0 %v5985
    %8472 = vmatpush1.bf16.msra.mxu0 %v5984
    %8473 = vmatprep.subr.bf16.mxu0 %v6420
    %8474 = vmatpush2.bf16.msra.mxu0 %v6419
    %8475 = vmatprep.subr.bf16.mxu0 %v6391
    %8476 = vmatpush2.bf16.msra.mxu0 %v6390
    %8477 = vmatprep.subr.bf16.mxu0 %v6362
    %8478 = vmatpush2.bf16.msra.mxu0 %v6361
    %8479 = vmatprep.subr.bf16.mxu0 %v6333
    %8480 = vmatpush2.bf16.msra.mxu0 %v6332
    %8481 = vmatprep.subr.bf16.mxu0 %v6304
    %8482 = vmatpush2.bf16.msra.mxu0 %v6303
    %8483 = vmatprep.subr.bf16.mxu0 %v6275
    %8484 = vmatpush2.bf16.msra.mxu0 %v6274
    %8485 = vmatprep.subr.bf16.mxu0 %v6246
    %8486 = vmatpush2.bf16.msra.mxu0 %v6245
    %8487 = vmatprep.subr.bf16.mxu0 %v6217
    %8488 = vmatpush2.bf16.msra.mxu0 %v6216
    %8489 = vmatprep.mubr.bf16.mxu0 %v1564
    %8490 = vmatmul.mubr.bf16.gmra.mxu0 %v1563
    %v8491 = vpop.f32.mrf.mxu0
    %v8492 = vadd.f32 %v8451, %v8491
    %v8493 = vpop.f32.mrf.mxu0
    %v8494 = vadd.f32 %v8453, %v8493
    %v8495 = vpop.f32.mrf.mxu0
    %v8496 = vpop.f32.mrf.mxu0
    %8497 = vdwg.mxu0
    %8498 = vmatprep.subr.bf16.mxu0 0
    %8499 = vmatpush1.bf16.msra.mxu0 %v5725
    %8500 = vmatprep.subr.bf16.mxu0 0
    %8501 = vmatpush1.bf16.msra.mxu0 %v5696
    %8502 = vmatprep.subr.bf16.mxu0 0
    %8503 = vmatpush1.bf16.msra.mxu0 %v5667
    %8504 = vmatprep.subr.bf16.mxu0 0
    %8505 = vmatpush1.bf16.msra.mxu0 %v5638
    %8506 = vmatprep.subr.bf16.mxu0 0
    %8507 = vmatpush1.bf16.msra.mxu0 %v5609
    %8508 = vmatprep.subr.bf16.mxu0 0
    %8509 = vmatpush1.bf16.msra.mxu0 %v5580
    %8510 = vmatprep.subr.bf16.mxu0 0
    %8511 = vmatpush1.bf16.msra.mxu0 %v5551
    %8512 = vmatprep.subr.bf16.mxu0 0
    %8513 = vmatpush1.bf16.msra.mxu0 %v5522
    %8514 = vmatprep.subr.bf16.mxu0 0
    %8515 = vmatpush2.bf16.msra.mxu0 %v5957
    %8516 = vmatprep.subr.bf16.mxu0 0
    %8517 = vmatpush2.bf16.msra.mxu0 %v5928
    %8518 = vmatprep.subr.bf16.mxu0 0
    %8519 = vmatpush2.bf16.msra.mxu0 %v5899
    %8520 = vmatprep.subr.bf16.mxu0 0
    %8521 = vmatpush2.bf16.msra.mxu0 %v5870
    %8522 = vmatprep.subr.bf16.mxu0 0
    %8523 = vmatpush2.bf16.msra.mxu0 %v5841
    %8524 = vmatprep.subr.bf16.mxu0 0
    %8525 = vmatpush2.bf16.msra.mxu0 %v5812
    %8526 = vmatprep.subr.bf16.mxu0 0
    %8527 = vmatpush2.bf16.msra.mxu0 %v5783
    %8528 = vmatprep.subr.bf16.mxu0 0
    %8529 = vmatpush2.bf16.msra.mxu0 %v5754
    %8530 = vmatprep.mubr.bf16.mxu0 %v1562
    %8531 = vmatmul.mubr.bf16.gmra.mxu0 %v1561
    %v8532 = vpop.f32.mrf.mxu0
    %v8533 = vadd.f32 %v2648, %v8532
    %v8534 = vpop.f32.mrf.mxu0
    %v8535 = vpop.f32.mrf.mxu0
    %v8536 = vpop.f32.mrf.mxu0
    %8537 = vdwg.mxu0
    %8538 = vmatprep.subr.bf16.mxu0 0
    %8539 = vmatpush1.bf16.msra.mxu0 %v6189
    %8540 = vmatprep.subr.bf16.mxu0 0
    %8541 = vmatpush1.bf16.msra.mxu0 %v6160
    %8542 = vmatprep.subr.bf16.mxu0 0
    %8543 = vmatpush1.bf16.msra.mxu0 %v6131
    %8544 = vmatprep.subr.bf16.mxu0 0
    %8545 = vmatpush1.bf16.msra.mxu0 %v6102
    %8546 = vmatprep.subr.bf16.mxu0 0
    %8547 = vmatpush1.bf16.msra.mxu0 %v6073
    %8548 = vmatprep.subr.bf16.mxu0 0
    %8549 = vmatpush1.bf16.msra.mxu0 %v6044
    %8550 = vmatprep.subr.bf16.mxu0 0
    %8551 = vmatpush1.bf16.msra.mxu0 %v6015
    %8552 = vmatprep.subr.bf16.mxu0 0
    %8553 = vmatpush1.bf16.msra.mxu0 %v5986
    %8554 = vmatprep.subr.bf16.mxu0 0
    %8555 = vmatpush2.bf16.msra.mxu0 %v6421
    %8556 = vmatprep.subr.bf16.mxu0 0
    %8557 = vmatpush2.bf16.msra.mxu0 %v6392
    %8558 = vmatprep.subr.bf16.mxu0 0
    %8559 = vmatpush2.bf16.msra.mxu0 %v6363
    %8560 = vmatprep.subr.bf16.mxu0 0
    %8561 = vmatpush2.bf16.msra.mxu0 %v6334
    %8562 = vmatprep.subr.bf16.mxu0 0
    %8563 = vmatpush2.bf16.msra.mxu0 %v6305
    %8564 = vmatprep.subr.bf16.mxu0 0
    %8565 = vmatpush2.bf16.msra.mxu0 %v6276
    %8566 = vmatprep.subr.bf16.mxu0 0
    %8567 = vmatpush2.bf16.msra.mxu0 %v6247
    %8568 = vmatprep.subr.bf16.mxu0 0
    %8569 = vmatpush2.bf16.msra.mxu0 %v6218
    %8570 = vmatprep.mubr.bf16.mxu0 %v1564
    %8571 = vmatmul.mubr.bf16.gmra.mxu0 %v1563
    %v8572 = vpop.f32.mrf.mxu0
    %v8573 = vadd.f32 %v8533, %v8572
    %v8574 = vpop.f32.mrf.mxu0
    %v8575 = vpop.f32.mrf.mxu0
    %v8576 = vpop.f32.mrf.mxu0
    %8577 = vdwg.mxu0
    %8578 = vst [vmem:[%s7] sm:$0xff] %v7426
    %8579 = vst [vmem:[%s7 + $0x8] sm:$0xff] %v7428
    %8580 = vst [vmem:[%s7 + $0x10] sm:$0xff] %v7508
    %8581 = vst [vmem:[%s7 + $0x18] sm:$0xff] %v7510
    %8582 = vst [vmem:[%s7 + $0x20] sm:$0xff] %v7590
    %8583 = vst [vmem:[%s7 + $0x28] sm:$0xff] %v7592
    %8584 = vst [vmem:[%s7 + $0x30] sm:$0xff] %v7672
    %8585 = vst [vmem:[%s7 + $0x38] sm:$0xff] %v7674
    %8586 = vst [vmem:[%s7 + $0x40] sm:$0xff] %v7754
    %8587 = vst [vmem:[%s7 + $0x48] sm:$0xff] %v7756
    %8588 = vst [vmem:[%s7 + $0x50] sm:$0xff] %v7836
    %8589 = vst [vmem:[%s7 + $0x58] sm:$0xff] %v7838
    %8590 = vst [vmem:[%s7 + $0x60] sm:$0xff] %v7918
    %8591 = vst [vmem:[%s7 + $0x68] sm:$0xff] %v7920
    %8592 = vst [vmem:[%s7 + $0x70] sm:$0xff] %v8000
    %8593 = vst [vmem:[%s7 + $0x78] sm:$0xff] %v8002
    %8594 = vst [vmem:[%s7 + $0x80] sm:$0xff] %v8082
    %8595 = vst [vmem:[%s7 + $0x88] sm:$0xff] %v8084
    %8596 = vst [vmem:[%s7 + $0x90] sm:$0xff] %v8164
    %8597 = vst [vmem:[%s7 + $0x98] sm:$0xff] %v8166
    %8598 = vst [vmem:[%s7 + $0xa0] sm:$0xff] %v8246
    %8599 = vst [vmem:[%s7 + $0xa8] sm:$0xff] %v8248
    %8600 = vst [vmem:[%s7 + $0xb0] sm:$0xff] %v8328
    %8601 = vst [vmem:[%s7 + $0xb8] sm:$0xff] %v8330
    %8602 = vst [vmem:[%s7 + $0xc0] sm:$0xff] %v8410
    %8603 = vst [vmem:[%s7 + $0xc8] sm:$0xff] %v8412
    %8604 = vst [vmem:[%s7 + $0xd0] sm:$0xff] %v8492
    %8605 = vst [vmem:[%s7 + $0xd8] sm:$0xff] %v8494
    %8606 = vst [vmem:[%s7 + $0xe0] sm:$0xff] %v8573
    %v8607 = vld [vmem:[%s7] sm:$0xff]
    %v8608 = vld [vmem:[%s7 + $0x8] sm:$0xff]
    %v8609 = vld [vmem:[%s7 + $0x10] sm:$0xff]
    %v8610 = vld [vmem:[%s7 + $0x18] sm:$0xff]
    %v8611 = vld [vmem:[%s7 + $0x20] sm:$0xff]
    %v8612 = vld [vmem:[%s7 + $0x28] sm:$0xff]
    %v8613 = vld [vmem:[%s7 + $0x30] sm:$0xff]
    %v8614 = vld [vmem:[%s7 + $0x38] sm:$0xff]
    %v8615 = vmax.f32 %v8607, %v8611
    %v8616 = vmax.f32 %v8608, %v8612
    %v8617 = vmax.f32 %v8609, %v8613
    %v8618 = vmax.f32 %v8610, %v8614
    %v8619 = vmax.f32 %v8615, %v8616
    %v8620 = vmax.f32 %v8617, %v8618
    %v8621 = vmax.f32 %v8619, %v8620
    %8622 = vmax.xlane.f32.xlu0 %v8621
    %v8623 = vpop.xlane.xlu0 %8622
    %v8624 = vsub.f32 %v8607, %v8623
    %v8625 = vsub.f32 %v8608, %v8623
    %v8626 = vsub.f32 %v8609, %v8623
    %v8627 = vsub.f32 %v8610, %v8623
    %v8628 = vsub.f32 %v8611, %v8623
    %v8629 = vsub.f32 %v8612, %v8623
    %v8630 = vsub.f32 %v8613, %v8623
    %v8631 = vsub.f32 %v8614, %v8623
    %v8632 = vmul.f32 %v8624, 1.442695
    %v8633 = vpow.pop %v8632
    %v8634 = vmul.f32 %v8625, 1.442695
    %v8635 = vpow.pop %v8634
    %v8636 = vmul.f32 %v8626, 1.442695
    %v8637 = vpow.pop %v8636
    %v8638 = vmul.f32 %v8627, 1.442695
    %v8639 = vpow.pop %v8638
    %v8640 = vmul.f32 %v8628, 1.442695
    %v8641 = vpow.pop %v8640
    %v8642 = vmul.f32 %v8629, 1.442695
    %v8643 = vpow.pop %v8642
    %v8644 = vmul.f32 %v8630, 1.442695
    %v8645 = vpow.pop %v8644
    %v8646 = vmul.f32 %v8631, 1.442695
    %v8647 = vpow.pop %v8646
    %v8648 = vadd.f32 %v8633, %v8635
    %v8649 = vadd.f32 %v8648, %v8637
    %v8650 = vadd.f32 %v8649, %v8639
    %v8651 = vadd.f32 %v8650, %v8641
    %v8652 = vadd.f32 %v8651, %v8643
    %v8653 = vadd.f32 %v8652, %v8645
    %v8654 = vadd.f32 %v8653, %v8647
    %8655 = vadd.xlane.f32.xlu0 %v8654
    %v8656 = vpop.xlane.xlu0 %8655
    %v8657 = vrcp.pop %v8656
    %v8658 = vmul.f32 %v8633, %v8657
    %v8659 = vmul.f32 %v8635, %v8657
    %v8660 = vmul.f32 %v8637, %v8657
    %v8661 = vmul.f32 %v8639, %v8657
    %v8662 = vmul.f32 %v8641, %v8657
    %v8663 = vmul.f32 %v8643, %v8657
    %v8664 = vmul.f32 %v8645, %v8657
    %v8665 = vmul.f32 %v8647, %v8657
    %8666 = vst [vmem:[%s7] sm:$0xff] %v8658
    %8667 = vst [vmem:[%s7 + $0x8] sm:$0xff] %v8659
    %8668 = vst [vmem:[%s7 + $0x10] sm:$0xff] %v8660
    %8669 = vst [vmem:[%s7 + $0x18] sm:$0xff] %v8661
    %8670 = vst [vmem:[%s7 + $0x20] sm:$0xff] %v8662
    %8671 = vst [vmem:[%s7 + $0x28] sm:$0xff] %v8663
    %8672 = vst [vmem:[%s7 + $0x30] sm:$0xff] %v8664
    %8673 = vst [vmem:[%s7 + $0x38] sm:$0xff] %v8665
    %v8674 = vld [vmem:[%s7 + $0x40] sm:$0xff]
    %v8675 = vld [vmem:[%s7 + $0x48] sm:$0xff]
    %v8676 = vld [vmem:[%s7 + $0x50] sm:$0xff]
    %v8677 = vld [vmem:[%s7 + $0x58] sm:$0xff]
    %v8678 = vld [vmem:[%s7 + $0x60] sm:$0xff]
    %v8679 = vld [vmem:[%s7 + $0x68] sm:$0xff]
    %v8680 = vld [vmem:[%s7 + $0x70] sm:$0xff]
    %v8681 = vld [vmem:[%s7 + $0x78] sm:$0xff]
    %v8682 = vld [vmem:[%s7 + $0x80] sm:$0xff]
    %v8683 = vld [vmem:[%s7 + $0x88] sm:$0xff]
    %v8684 = vmul.f32 %v8674, 1.442695
    %v8685 = vpow.pop %v8684
    %v8686 = vmul.f32 %v8675, 1.442695
    %v8687 = vpow.pop %v8686
    %v8688 = vmul.f32 %v8676, 1.442695
    %v8689 = vpow.pop %v8688
    %v8690 = vmul.f32 %v8677, 1.442695
    %v8691 = vpow.pop %v8690
    %v8692 = vmul.f32 %v8678, 1.442695
    %v8693 = vpow.pop %v8692
    %v8694 = vmul.f32 %v8679, 1.442695
    %v8695 = vpow.pop %v8694
    %v8696 = vmul.f32 %v8680, 1.442695
    %v8697 = vpow.pop %v8696
    %v8698 = vmul.f32 %v8681, 1.442695
    %v8699 = vpow.pop %v8698
    %v8700 = vmul.f32 %v8682, 1.442695
    %v8701 = vpow.pop %v8700
    %v8702 = vmul.f32 %v8683, 1.442695
    %v8703 = vpow.pop %v8702
    %8704 = vst [vmem:[%s7 + $0x40] sm:$0xff] %v8685
    %8705 = vst [vmem:[%s7 + $0x48] sm:$0xff] %v8687
    %8706 = vst [vmem:[%s7 + $0x50] sm:$0xff] %v8689
    %8707 = vst [vmem:[%s7 + $0x58] sm:$0xff] %v8691
    %8708 = vst [vmem:[%s7 + $0x60] sm:$0xff] %v8693
    %8709 = vst [vmem:[%s7 + $0x68] sm:$0xff] %v8695
    %8710 = vst [vmem:[%s7 + $0x70] sm:$0xff] %v8697
    %8711 = vst [vmem:[%s7 + $0x78] sm:$0xff] %v8699
    %8712 = vst [vmem:[%s7 + $0x80] sm:$0xff] %v8701
    %8713 = vst [vmem:[%s7 + $0x88] sm:$0xff] %v8703
    %v8714 = vld [vmem:[%s7 + $0xe0] sm:$0xff]
    %8715 = vmax.xlane.f32.xlu0 %v8714
    %v8716 = vpop.xlane.xlu0 %8715
    %v8717 = vsub.f32 %v8714, %v8716
    %v8718 = vmul.f32 %v8717, 1.442695
    %v8719 = vpow.pop %v8718
    %8720 = vadd.xlane.f32.xlu0 %v8719
    %v8721 = vpop.xlane.xlu0 %8720
    %v8722 = vrcp.pop %v8721
    %v8723 = vmul.f32 %v8719, %v8722
    %8724 = vst [vmem:[%s7 + $0xe0] sm:$0xff] %v8723
    // Predicated region
    $region54: #{mtp_forward_mdn.1} parent=1 // pred_check
      _
    $region55: #{mtp_forward_mdn.1} parent=1 // pred_check_branch
      %8726 = sbr.rel (0) target = $region57
    $region56: #{mtp_forward_mdn.1} parent=1 // pred_region
      _
    $region57: #{mtp_forward_mdn.1} parent=1 // pred_fallthru
      _
    // Predicated region
    $region58: #{mtp_forward_mdn.1} parent=1 // pred_check
      _
    $region59: #{mtp_forward_mdn.1} parent=1 // pred_check_branch
      %8728 = sbr.rel (0) target = $region61
    $region60: #{mtp_forward_mdn.1} parent=1 // pred_region
      _
    $region61: #{mtp_forward_mdn.1} parent=1 // pred_fallthru
      _
    %8729 = vsyncpa [#allocation3], 1
    %8730 = vsyncpa [#allocation5], 1
    %8731 = vsyncpa [#allocation8], 1
    %8732 = vsyncpa [#allocation11], 1

</llo_original>
